<compile_context>
chip_gen: v6e
topology: v6e:2x2x1
jax: 0.10.0
libtpu: 0.0.40
codegen_flags: <defaults>
</compile_context>

<pallas_src>
import functools
import numpy as np
import jax
import jax.numpy as jnp
from jax.experimental import pallas as pl
from jax.experimental.pallas import tpu as pltpu

# ----------------------------------------------------------------------------
# Static network geometry (LeNet-5 on 32x32x3 inputs, implied by 16*5*5).
# ----------------------------------------------------------------------------
KH = 5                                   # square conv kernels
C_IN, H_IN, W_IN = 3, 32, 32
C1, C2 = 6, 16
H1, W1 = H_IN - KH + 1, W_IN - KH + 1    # 28, 28  conv1 output
P1H, P1W = H1 // 2, W1 // 2              # 14, 14  pool1 output
H2, W2 = P1H - KH + 1, P1W - KH + 1      # 10, 10  conv2 output
P2H, P2W = H2 // 2, W2 // 2              # 5, 5    pool2 output
FC1, FC2, FC3 = 120, 84, 10

KPAD = 128                               # padded planar K (= C*W) of conv GEMMs
NPAD = 128                               # one W-parity half of the conv GEMM N dim
HPAD = 128                               # padded MLP hidden width


# ----------------------------------------------------------------------------
# Single fused kernel: conv1+pool1+conv2+pool2+fc1+fc2+fc3 for BBLK images
# ----------------------------------------------------------------------------
def _lenet_kernel(x_ref, w1_ref, b1_ref, w2_ref, b2_ref,
                  f1w_ref, f1b_ref, f2w_ref, f2b_ref, f3w_ref, f3b_ref,
                  o_ref, acc1_ref, p1_ref, acc2_ref, *, bblk):
    """One block of `bblk` images per grid step.

    x_ref  : (32*bblk, 128) bf16  interleaved planar rows: row = m*bblk + b,
                                  lane = c*32 + w (zero padded to 128)
    w?_ref : (5, 128, 256)  bf16  banded conv GEMM slabs, one per row offset
    b?_ref : (1, 128)       f32   conv bias, one W-parity block only
    f1w    : (5, 128, 128)  bf16  fc1, one slab per pooled row r
    f2w/f3w: (128, 128)     bf16  zero padded fc2 / fc3
    o_ref  : (bblk, 128)    f32   logits (lanes >= 10 are zero padding)
    scratch: acc1 (28*bblk,256) f32, p1 (14*bblk,128) bf16, acc2 (10*bblk,256) f32
    """
    m1 = H1 * bblk                      # 28*bblk conv1 GEMM rows
    m2 = H2 * bblk                      # 10*bblk conv2 GEMM rows

    # ---- conv1: KH row-offset GEMMs over the whole image block ----
    acc1_ref[...] = jnp.dot(x_ref[pl.ds(0, m1), :], w1_ref[0],
                            preferred_element_type=jnp.float32)
    for i in range(1, KH):
        acc1_ref[...] += jnp.dot(x_ref[pl.ds(i * bblk, m1), :], w1_ref[i],
                                 preferred_element_type=jnp.float32)

    # ---- pool1 (2x2/2): H via dense row-slab pair max, W via lane-parity
    #      halves; bias + ReLU applied once, after the max (bias is identical
    #      for all 4 pooled elements, ReLU is monotone) ----
    b1h = b1_ref[...]                                            # (1, 128)
    for r in range(P1H):
        a = jnp.maximum(acc1_ref[pl.ds((2 * r) * bblk, bblk), :],
                        acc1_ref[pl.ds((2 * r + 1) * bblk, bblk), :])   # (bblk,256)
        a = jnp.maximum(a[:, :NPAD], a[:, NPAD:])                       # (bblk,128)
        p1_ref[pl.ds(r * bblk, bblk), :] = (
            jnp.maximum(a + b1h, 0.0).astype(p1_ref.dtype))

    # ---- conv2 (same banded-GEMM structure, input lane = c*14 + w) ----
    acc2_ref[...] = jnp.dot(p1_ref[pl.ds(0, m2), :], w2_ref[0],
                            preferred_element_type=jnp.float32)
    for j in range(1, KH):
        acc2_ref[...] += jnp.dot(p1_ref[pl.ds(j * bblk, m2), :], w2_ref[j],
                                 preferred_element_type=jnp.float32)

    # ---- pool2 fused with fc1 accumulation (no feature flatten / HBM trip) ----
    b2h = b2_ref[...]
    h = jnp.zeros((bblk, HPAD), jnp.float32)
    for r in range(P2H):
        a = jnp.maximum(acc2_ref[pl.ds((2 * r) * bblk, bblk), :],
                        acc2_ref[pl.ds((2 * r + 1) * bblk, bblk), :])
        a = jnp.maximum(a[:, :NPAD], a[:, NPAD:])
        feat = jnp.maximum(a + b2h, 0.0).astype(jnp.bfloat16)          # (bblk,128)
        h = h + jnp.dot(feat, f1w_ref[r], preferred_element_type=jnp.float32)

    # ---- MLP head ----
    h = jnp.maximum(h + f1b_ref[...], 0.0)
    h = jnp.dot(h.astype(jnp.bfloat16), f2w_ref[...],
                preferred_element_type=jnp.float32)
    h = jnp.maximum(h + f2b_ref[...], 0.0)
    h = jnp.dot(h.astype(jnp.bfloat16), f3w_ref[...],
                preferred_element_type=jnp.float32)
    o_ref[...] = h + f3b_ref[...]


def _pick_bblk(batch):
    # >= 16 keeps every bf16 slice aligned to the (16,128) packed tile and makes
    # the conv1 GEMM M >= 448; 32 for larger batches to amortize step overhead
    # further while still leaving multiple grid steps (v7x megacore sharding).
    return 16 if batch <= 64 else 32


def lenet_forward_pallas(xp, kp, bblk, nblk):
    kern = functools.partial(_lenet_kernel, bblk=bblk)
    return pl.pallas_call(
        kern,
        out_shape=jax.ShapeDtypeStruct((nblk * bblk, HPAD), jnp.float32),
        grid=(nblk,),
        in_specs=[
            pl.BlockSpec((H_IN * bblk, KPAD), lambda t: (t, 0)),      # x rows
            pl.BlockSpec((KH, KPAD, 2 * NPAD), lambda t: (0, 0, 0)),  # conv1 slabs
            pl.BlockSpec((1, NPAD), lambda t: (0, 0)),                # conv1 bias
            pl.BlockSpec((KH, KPAD, 2 * NPAD), lambda t: (0, 0, 0)),  # conv2 slabs
            pl.BlockSpec((1, NPAD), lambda t: (0, 0)),                # conv2 bias
            pl.BlockSpec((P2H, NPAD, HPAD), lambda t: (0, 0, 0)),     # fc1 slabs
            pl.BlockSpec((1, HPAD), lambda t: (0, 0)),                # fc1 bias
            pl.BlockSpec((HPAD, HPAD), lambda t: (0, 0)),             # fc2
            pl.BlockSpec((1, HPAD), lambda t: (0, 0)),
            pl.BlockSpec((HPAD, HPAD), lambda t: (0, 0)),             # fc3
            pl.BlockSpec((1, HPAD), lambda t: (0, 0)),
        ],
        out_specs=pl.BlockSpec((bblk, HPAD), lambda t: (t, 0)),
        scratch_shapes=[
            pltpu.VMEM((H1 * bblk, 2 * NPAD), jnp.float32),   # conv1 accumulator
            pltpu.VMEM((P1H * bblk, NPAD), jnp.bfloat16),     # pool1 output
            pltpu.VMEM((H2 * bblk, 2 * NPAD), jnp.float32),   # conv2 accumulator
        ],
        compiler_params=pltpu.CompilerParams(
            dimension_semantics=("parallel",),
            vmem_limit_bytes=32 * 1024 * 1024,
        ),
    )(xp, kp["w1b"], kp["b1v"], kp["w2b"], kp["b2v"],
      kp["f1w"], kp["f1b"], kp["f2w"], kp["f2b"], kp["f3w"], kp["f3b"])


# ----------------------------------------------------------------------------
# One-time weight packing (banded conv GEMM slabs, permuted/padded FC weights)
# ----------------------------------------------------------------------------
def _banded_conv_weight(w, w_in):
    """w: (Co, Ci, KH, KH) -> (KH, 128, 256) banded GEMM slabs.

    GEMM input row layout :  k = c*w_in + w_col                 (planar, 0-pad)
    GEMM output col layout:  n = (ow % 2)*128 + co*Wp + ow//2,  Wp = Wo//2
    so the two 128-lane halves of the output are the even / odd ow columns in
    pooled planar order -> W-pooling is max(first half, second half).
    """
    w = np.asarray(w, np.float32)
    co_n, ci_n = w.shape[0], w.shape[1]
    wo = w_in - KH + 1
    wp = wo // 2
    out = np.zeros((KH, KPAD, 2 * NPAD), np.float32)
    for i in range(KH):
        for co in range(co_n):
            for c in range(ci_n):
                for j in range(KH):
                    for ow in range(wo):
                        k = c * w_in + ow + j
                        n = (ow % 2) * NPAD + co * wp + ow // 2
                        out[i, k, n] = w[co, c, i, j]
    return out


def _banded_conv_bias(b, wp):
    # NOTE: only the lanes < co_n*wp carry the bias; all padded lanes MUST stay
    # zero so that ReLU/max-pool keep them exactly 0 and nothing leaks into the
    # (zero-weight) padded K lanes of the next layer.
    b = np.asarray(b, np.float32)
    v = np.zeros((1, NPAD), np.float32)
    for co in range(b.shape[0]):
        v[0, co * wp:(co + 1) * wp] = b[co]
    return v


def _pack_fc1(w, b):
    """fc1 weight (400,120) [in,out] -> (5,128,128): slab r maps the pooled
    row-r feature (lane = co*5 + ow) against torch flatten index co*25+r*5+ow."""
    w = np.asarray(w, np.float32)
    wp = np.zeros((P2H, NPAD, HPAD), np.float32)
    for r in range(P2H):
        for co in range(C2):
            for ow in range(P2W):
                wp[r, co * P2W + ow, :FC1] = w[co * (P2H * P2W) + r * P2W + ow, :]
    bp = np.zeros((1, HPAD), np.float32)
    bp[0, :FC1] = np.asarray(b, np.float32)
    return wp, bp


def _pack_fc(w, b):
    w = np.asarray(w, np.float32)
    i, o = w.shape
    wp = np.zeros((HPAD, HPAD), np.float32)
    wp[:i, :o] = w
    bp = np.zeros((1, HPAD), np.float32)
    bp[0, :o] = np.asarray(b, np.float32)
    return wp, bp


def prepare_params(params):
    """Pack once at init: banded conv slabs + padded FC weights, bf16 operands."""
    w1b = _banded_conv_weight(params["conv1_w"], W_IN)
    b1v = _banded_conv_bias(params["conv1_b"], P1W)
    w2b = _banded_conv_weight(params["conv2_w"], P1W)
    b2v = _banded_conv_bias(params["conv2_b"], P2W)
    f1w, f1b = _pack_fc1(params["fc1_w"], params["fc1_b"])
    f2w, f2b = _pack_fc(params["fc2_w"], params["fc2_b"])
    f3w, f3b = _pack_fc(params["fc3_w"], params["fc3_b"])
    bf = jnp.bfloat16
    return {
        "w1b": jnp.asarray(w1b, bf), "b1v": jnp.asarray(b1v, jnp.float32),
        "w2b": jnp.asarray(w2b, bf), "b2v": jnp.asarray(b2v, jnp.float32),
        "f1w": jnp.asarray(f1w, bf), "f1b": jnp.asarray(f1b, jnp.float32),
        "f2w": jnp.asarray(f2w, bf), "f2b": jnp.asarray(f2b, jnp.float32),
        "f3w": jnp.asarray(f3w, bf), "f3b": jnp.asarray(f3b, jnp.float32),
    }


# ----------------------------------------------------------------------------
# Forward pass
# ----------------------------------------------------------------------------
def net_forward(kparams, x):
    """x: (B, 3, 32, 32) NCHW f32 -> logits (B, 10) f32."""
    B = x.shape[0]
    bblk = _pick_bblk(B)
    nblk = -(-B // bblk)
    bpad = nblk * bblk
    # planar per-row layout: (B, H, C*W), lane = c*W + w, zero-padded to 128
    xp = x.transpose(0, 2, 1, 3).reshape(B, H_IN, C_IN * W_IN)
    xp = jnp.pad(xp, ((0, bpad - B), (0, 0), (0, KPAD - C_IN * W_IN)))
    # interleave images within each block: global row = (t*32 + m)*bblk + b
    xp = xp.reshape(nblk, bblk, H_IN, KPAD).transpose(0, 2, 1, 3)
    xp = xp.reshape(nblk * H_IN * bblk, KPAD).astype(jnp.bfloat16)
    out = lenet_forward_pallas(xp, kparams, bblk, nblk)    # (bpad, 128) f32
    return out[:B, :FC3]


# ----------------------------------------------------------------------------
# Parameters (deterministic, matching nn.Module shapes) + pure-JAX reference
# ----------------------------------------------------------------------------
def init_params(key):
    ks = jax.random.split(key, 10)
    u = lambda k, shape, s: jax.random.uniform(k, shape, jnp.float32, -s, s)
    return {
        "conv1_w": u(ks[0], (C1, C_IN, KH, KH), 0.2),
        "conv1_b": u(ks[1], (C1,), 0.2),
        "conv2_w": u(ks[2], (C2, C1, KH, KH), 0.2),
        "conv2_b": u(ks[3], (C2,), 0.2),
        "fc1_w": u(ks[4], (C2 * P2H * P2W, FC1), 0.15),   # stored [in, out]
        "fc1_b": u(ks[5], (FC1,), 0.15),
        "fc2_w": u(ks[6], (FC1, FC2), 0.15),
        "fc2_b": u(ks[7], (FC2,), 0.15),
        "fc3_w": u(ks[8], (FC2, FC3), 0.15),
        "fc3_b": u(ks[9], (FC3,), 0.15),
    }


def reference_forward(params, x):
    """Pure-JAX f32 reference with the exact torch Net semantics."""
    def conv(y, w, b):
        y = jax.lax.conv_general_dilated(
            y, w, window_strides=(1, 1), padding="VALID",
            dimension_numbers=("NCHW", "OIHW", "NCHW"))
        return jnp.maximum(y + b[None, :, None, None], 0.0)

    def pool(y):
        return jax.lax.reduce_window(
            y, -jnp.inf, jax.lax.max,
            window_dimensions=(1, 1, 2, 2), window_strides=(1, 1, 2, 2),
            padding="VALID")

    y = pool(conv(x, params["conv1_w"], params["conv1_b"]))
    y = pool(conv(y, params["conv2_w"], params["conv2_b"]))
    y = y.reshape(y.shape[0], -1)                      # NCHW flatten == torch.flatten
    y = jnp.maximum(y @ params["fc1_w"] + params["fc1_b"], 0.0)
    y = jnp.maximum(y @ params["fc2_w"] + params["fc2_b"], 0.0)
    return y @ params["fc3_w"] + params["fc3_b"]


if __name__ == "__main__":
    key = jax.random.PRNGKey(0)
    pkey, xkey = jax.random.split(key)
    params = init_params(pkey)
    kparams = prepare_params(params)                    # one-time packing
    # Net's flatten (16*5*5) implies 32x32 spatial input, 3 channels.
    x = jax.random.normal(xkey, (2, C_IN, H_IN, W_IN), dtype=jnp.float32)

    out = jax.block_until_ready(jax.jit(net_forward)(kparams, x))
    assert out.shape == (2, FC3), out.shape

    ref = jax.block_until_ready(reference_forward(params, x))
    assert jnp.allclose(out, ref, atol=2e-1, rtol=2e-1), (
        "max |diff| = %f" % float(jnp.max(jnp.abs(out - ref))))

    print("KERNEL_OK")
</pallas_src>

<mosaic_0001>
module attributes {stable_mosaic.version = 11 : i64} {
  func.func @_lenet_kernel(%arg0: i32, %arg1: memref<512x128xbf16, #tpu.memory_space<vmem>>, %arg2: memref<5x128x256xbf16, #tpu.memory_space<vmem>>, %arg3: memref<1x128xf32, #tpu.memory_space<vmem>>, %arg4: memref<5x128x256xbf16, #tpu.memory_space<vmem>>, %arg5: memref<1x128xf32, #tpu.memory_space<vmem>>, %arg6: memref<5x128x128xbf16, #tpu.memory_space<vmem>>, %arg7: memref<1x128xf32, #tpu.memory_space<vmem>>, %arg8: memref<128x128xbf16, #tpu.memory_space<vmem>>, %arg9: memref<1x128xf32, #tpu.memory_space<vmem>>, %arg10: memref<128x128xbf16, #tpu.memory_space<vmem>>, %arg11: memref<1x128xf32, #tpu.memory_space<vmem>>, %arg12: memref<16x128xf32, #tpu.memory_space<vmem>>, %arg13: memref<448x256xf32, #tpu.memory_space<vmem>>, %arg14: memref<224x128xbf16, #tpu.memory_space<vmem>>, %arg15: memref<160x256xf32, #tpu.memory_space<vmem>>) attributes {dimension_semantics = [#tpu.dimension_semantics<parallel>], iteration_bounds = array<i64: 1>, scalar_prefetch = 0 : i64, scratch_operands = 3 : i64, tpu.core_type = #tpu.core_type<tc>, window_params = [{transform_indices = @transform_0, window_bounds = array<i64: 512, 128>}, {pipeline_mode = #tpu.pipeline_mode<synchronous>, transform_indices = @transform_1, window_bounds = array<i64: 5, 128, 256>}, {pipeline_mode = #tpu.pipeline_mode<synchronous>, transform_indices = @transform_2, window_bounds = array<i64: 1, 128>}, {pipeline_mode = #tpu.pipeline_mode<synchronous>, transform_indices = @transform_3, window_bounds = array<i64: 5, 128, 256>}, {pipeline_mode = #tpu.pipeline_mode<synchronous>, transform_indices = @transform_4, window_bounds = array<i64: 1, 128>}, {pipeline_mode = #tpu.pipeline_mode<synchronous>, transform_indices = @transform_5, window_bounds = array<i64: 5, 128, 128>}, {pipeline_mode = #tpu.pipeline_mode<synchronous>, transform_indices = @transform_6, window_bounds = array<i64: 1, 128>}, {pipeline_mode = #tpu.pipeline_mode<synchronous>, transform_indices = @transform_7, window_bounds = array<i64: 128, 128>}, {pipeline_mode = #tpu.pipeline_mode<synchronous>, transform_indices = @transform_8, window_bounds = array<i64: 1, 128>}, {pipeline_mode = #tpu.pipeline_mode<synchronous>, transform_indices = @transform_9, window_bounds = array<i64: 128, 128>}, {pipeline_mode = #tpu.pipeline_mode<synchronous>, transform_indices = @transform_10, window_bounds = array<i64: 1, 128>}, {transform_indices = @transform_11, window_bounds = array<i64: 16, 128>}]} {
    %c0 = arith.constant 0 : index
    %c0_0 = arith.constant 0 : index
    %0 = vector.load %arg1[%c0, %c0_0] : memref<512x128xbf16, #tpu.memory_space<vmem>>, vector<448x128xbf16>
    %c0_1 = arith.constant 0 : index
    %c0_2 = arith.constant 0 : index
    %c0_3 = arith.constant 0 : index
    %1 = vector.load %arg2[%c0_1, %c0_2, %c0_3] : memref<5x128x256xbf16, #tpu.memory_space<vmem>>, vector<1x128x256xbf16>
    %2 = vector.shape_cast %1 : vector<1x128x256xbf16> to vector<128x256xbf16>
    %cst = arith.constant dense<0.000000e+00> : vector<448x256xf32>
    %3 = tpu.matmul %0, %2, %cst {dimension_numbers = #tpu.dot_dimension_numbers<[1], [0], [0], [1], [0, 0, 1, 1], [], []>} : vector<448x128xbf16>, vector<128x256xbf16>, vector<448x256xf32> -> vector<448x256xf32>
    %c0_4 = arith.constant 0 : index
    %c0_5 = arith.constant 0 : index
    %4 = vector.load %arg13[%c0_4, %c0_5] : memref<448x256xf32, #tpu.memory_space<vmem>>, vector<448x256xf32>
    tpu.vector_store %arg13[%c0_4, %c0_5], %3 {strides = array<i32>} : memref<448x256xf32, #tpu.memory_space<vmem>>, vector<448x256xf32>,
    %c0_6 = arith.constant 0 : index
    %c0_7 = arith.constant 0 : index
    %5 = vector.load %arg13[%c0_6, %c0_7] : memref<448x256xf32, #tpu.memory_space<vmem>>, vector<448x256xf32>
    %c16 = arith.constant 16 : index
    %c0_8 = arith.constant 0 : index
    %6 = vector.load %arg1[%c16, %c0_8] : memref<512x128xbf16, #tpu.memory_space<vmem>>, vector<448x128xbf16>
    %c1 = arith.constant 1 : index
    %c0_9 = arith.constant 0 : index
    %c0_10 = arith.constant 0 : index
    %7 = vector.load %arg2[%c1, %c0_9, %c0_10] : memref<5x128x256xbf16, #tpu.memory_space<vmem>>, vector<1x128x256xbf16>
    %8 = vector.shape_cast %7 : vector<1x128x256xbf16> to vector<128x256xbf16>
    %cst_11 = arith.constant dense<0.000000e+00> : vector<448x256xf32>
    %9 = tpu.matmul %6, %8, %cst_11 {dimension_numbers = #tpu.dot_dimension_numbers<[1], [0], [0], [1], [0, 0, 1, 1], [], []>} : vector<448x128xbf16>, vector<128x256xbf16>, vector<448x256xf32> -> vector<448x256xf32>
    %10 = arith.addf %5, %9 : vector<448x256xf32>
    %c0_12 = arith.constant 0 : index
    %c0_13 = arith.constant 0 : index
    %11 = vector.load %arg13[%c0_12, %c0_13] : memref<448x256xf32, #tpu.memory_space<vmem>>, vector<448x256xf32>
    tpu.vector_store %arg13[%c0_12, %c0_13], %10 {strides = array<i32>} : memref<448x256xf32, #tpu.memory_space<vmem>>, vector<448x256xf32>,
    %c0_14 = arith.constant 0 : index
    %c0_15 = arith.constant 0 : index
    %12 = vector.load %arg13[%c0_14, %c0_15] : memref<448x256xf32, #tpu.memory_space<vmem>>, vector<448x256xf32>
    %c32 = arith.constant 32 : index
    %c0_16 = arith.constant 0 : index
    %13 = vector.load %arg1[%c32, %c0_16] : memref<512x128xbf16, #tpu.memory_space<vmem>>, vector<448x128xbf16>
    %c2 = arith.constant 2 : index
    %c0_17 = arith.constant 0 : index
    %c0_18 = arith.constant 0 : index
    %14 = vector.load %arg2[%c2, %c0_17, %c0_18] : memref<5x128x256xbf16, #tpu.memory_space<vmem>>, vector<1x128x256xbf16>
    %15 = vector.shape_cast %14 : vector<1x128x256xbf16> to vector<128x256xbf16>
    %cst_19 = arith.constant dense<0.000000e+00> : vector<448x256xf32>
    %16 = tpu.matmul %13, %15, %cst_19 {dimension_numbers = #tpu.dot_dimension_numbers<[1], [0], [0], [1], [0, 0, 1, 1], [], []>} : vector<448x128xbf16>, vector<128x256xbf16>, vector<448x256xf32> -> vector<448x256xf32>
    %17 = arith.addf %12, %16 : vector<448x256xf32>
    %c0_20 = arith.constant 0 : index
    %c0_21 = arith.constant 0 : index
    %18 = vector.load %arg13[%c0_20, %c0_21] : memref<448x256xf32, #tpu.memory_space<vmem>>, vector<448x256xf32>
    tpu.vector_store %arg13[%c0_20, %c0_21], %17 {strides = array<i32>} : memref<448x256xf32, #tpu.memory_space<vmem>>, vector<448x256xf32>,
    %c0_22 = arith.constant 0 : index
    %c0_23 = arith.constant 0 : index
    %19 = vector.load %arg13[%c0_22, %c0_23] : memref<448x256xf32, #tpu.memory_space<vmem>>, vector<448x256xf32>
    %c48 = arith.constant 48 : index
    %c0_24 = arith.constant 0 : index
    %20 = vector.load %arg1[%c48, %c0_24] : memref<512x128xbf16, #tpu.memory_space<vmem>>, vector<448x128xbf16>
    %c3 = arith.constant 3 : index
    %c0_25 = arith.constant 0 : index
    %c0_26 = arith.constant 0 : index
    %21 = vector.load %arg2[%c3, %c0_25, %c0_26] : memref<5x128x256xbf16, #tpu.memory_space<vmem>>, vector<1x128x256xbf16>
    %22 = vector.shape_cast %21 : vector<1x128x256xbf16> to vector<128x256xbf16>
    %cst_27 = arith.constant dense<0.000000e+00> : vector<448x256xf32>
    %23 = tpu.matmul %20, %22, %cst_27 {dimension_numbers = #tpu.dot_dimension_numbers<[1], [0], [0], [1], [0, 0, 1, 1], [], []>} : vector<448x128xbf16>, vector<128x256xbf16>, vector<448x256xf32> -> vector<448x256xf32>
    %24 = arith.addf %19, %23 : vector<448x256xf32>
    %c0_28 = arith.constant 0 : index
    %c0_29 = arith.constant 0 : index
    %25 = vector.load %arg13[%c0_28, %c0_29] : memref<448x256xf32, #tpu.memory_space<vmem>>, vector<448x256xf32>
    tpu.vector_store %arg13[%c0_28, %c0_29], %24 {strides = array<i32>} : memref<448x256xf32, #tpu.memory_space<vmem>>, vector<448x256xf32>,
    %c0_30 = arith.constant 0 : index
    %c0_31 = arith.constant 0 : index
    %26 = vector.load %arg13[%c0_30, %c0_31] : memref<448x256xf32, #tpu.memory_space<vmem>>, vector<448x256xf32>
    %c64 = arith.constant 64 : index
    %c0_32 = arith.constant 0 : index
    %27 = vector.load %arg1[%c64, %c0_32] : memref<512x128xbf16, #tpu.memory_space<vmem>>, vector<448x128xbf16>
    %c4 = arith.constant 4 : index
    %c0_33 = arith.constant 0 : index
    %c0_34 = arith.constant 0 : index
    %28 = vector.load %arg2[%c4, %c0_33, %c0_34] : memref<5x128x256xbf16, #tpu.memory_space<vmem>>, vector<1x128x256xbf16>
    %29 = vector.shape_cast %28 : vector<1x128x256xbf16> to vector<128x256xbf16>
    %cst_35 = arith.constant dense<0.000000e+00> : vector<448x256xf32>
    %30 = tpu.matmul %27, %29, %cst_35 {dimension_numbers = #tpu.dot_dimension_numbers<[1], [0], [0], [1], [0, 0, 1, 1], [], []>} : vector<448x128xbf16>, vector<128x256xbf16>, vector<448x256xf32> -> vector<448x256xf32>
    %31 = arith.addf %26, %30 : vector<448x256xf32>
    %c0_36 = arith.constant 0 : index
    %c0_37 = arith.constant 0 : index
    %32 = vector.load %arg13[%c0_36, %c0_37] : memref<448x256xf32, #tpu.memory_space<vmem>>, vector<448x256xf32>
    tpu.vector_store %arg13[%c0_36, %c0_37], %31 {strides = array<i32>} : memref<448x256xf32, #tpu.memory_space<vmem>>, vector<448x256xf32>,
    %c0_38 = arith.constant 0 : index
    %c0_39 = arith.constant 0 : index
    %33 = vector.load %arg3[%c0_38, %c0_39] : memref<1x128xf32, #tpu.memory_space<vmem>>, vector<1x128xf32>
    %c0_40 = arith.constant 0 : index
    %c0_41 = arith.constant 0 : index
    %34 = vector.load %arg13[%c0_40, %c0_41] : memref<448x256xf32, #tpu.memory_space<vmem>>, vector<16x256xf32>
    %c16_42 = arith.constant 16 : index
    %c0_43 = arith.constant 0 : index
    %35 = vector.load %arg13[%c16_42, %c0_43] : memref<448x256xf32, #tpu.memory_space<vmem>>, vector<16x256xf32>
    %36 = arith.maximumf %34, %35 : vector<16x256xf32>
    %37 = vector.extract_strided_slice %36 {offsets = [0, 0], sizes = [16, 128], strides = [1, 1]} : vector<16x256xf32> to vector<16x128xf32>
    %38 = vector.extract_strided_slice %36 {offsets = [0, 128], sizes = [16, 128], strides = [1, 1]} : vector<16x256xf32> to vector<16x128xf32>
    %39 = arith.maximumf %37, %38 : vector<16x128xf32>
    %40 = vector.broadcast %33 : vector<1x128xf32> to vector<16x128xf32>
    %41 = arith.addf %39, %40 : vector<16x128xf32>
    %cst_44 = arith.constant 0.000000e+00 : f32
    %42 = vector.broadcast %cst_44 : f32 to vector<16x128xf32>
    %43 = arith.maximumf %41, %42 : vector<16x128xf32>
    %44 = arith.truncf %43 : vector<16x128xf32> to vector<16x128xbf16>
    %c0_45 = arith.constant 0 : index
    %c0_46 = arith.constant 0 : index
    %45 = vector.load %arg14[%c0_45, %c0_46] : memref<224x128xbf16, #tpu.memory_space<vmem>>, vector<16x128xbf16>
    tpu.vector_store %arg14[%c0_45, %c0_46], %44 {strides = array<i32>} : memref<224x128xbf16, #tpu.memory_space<vmem>>, vector<16x128xbf16>,
    %c32_47 = arith.constant 32 : index
    %c0_48 = arith.constant 0 : index
    %46 = vector.load %arg13[%c32_47, %c0_48] : memref<448x256xf32, #tpu.memory_space<vmem>>, vector<16x256xf32>
    %c48_49 = arith.constant 48 : index
    %c0_50 = arith.constant 0 : index
    %47 = vector.load %arg13[%c48_49, %c0_50] : memref<448x256xf32, #tpu.memory_space<vmem>>, vector<16x256xf32>
    %48 = arith.maximumf %46, %47 : vector<16x256xf32>
    %49 = vector.extract_strided_slice %48 {offsets = [0, 0], sizes = [16, 128], strides = [1, 1]} : vector<16x256xf32> to vector<16x128xf32>
    %50 = vector.extract_strided_slice %48 {offsets = [0, 128], sizes = [16, 128], strides = [1, 1]} : vector<16x256xf32> to vector<16x128xf32>
    %51 = arith.maximumf %49, %50 : vector<16x128xf32>
    %52 = vector.broadcast %33 : vector<1x128xf32> to vector<16x128xf32>
    %53 = arith.addf %51, %52 : vector<16x128xf32>
    %cst_51 = arith.constant 0.000000e+00 : f32
    %54 = vector.broadcast %cst_51 : f32 to vector<16x128xf32>
    %55 = arith.maximumf %53, %54 : vector<16x128xf32>
    %56 = arith.truncf %55 : vector<16x128xf32> to vector<16x128xbf16>
    %c16_52 = arith.constant 16 : index
    %c0_53 = arith.constant 0 : index
    %57 = vector.load %arg14[%c16_52, %c0_53] : memref<224x128xbf16, #tpu.memory_space<vmem>>, vector<16x128xbf16>
    tpu.vector_store %arg14[%c16_52, %c0_53], %56 {strides = array<i32>} : memref<224x128xbf16, #tpu.memory_space<vmem>>, vector<16x128xbf16>,
    %c64_54 = arith.constant 64 : index
    %c0_55 = arith.constant 0 : index
    %58 = vector.load %arg13[%c64_54, %c0_55] : memref<448x256xf32, #tpu.memory_space<vmem>>, vector<16x256xf32>
    %c80 = arith.constant 80 : index
    %c0_56 = arith.constant 0 : index
    %59 = vector.load %arg13[%c80, %c0_56] : memref<448x256xf32, #tpu.memory_space<vmem>>, vector<16x256xf32>
    %60 = arith.maximumf %58, %59 : vector<16x256xf32>
    %61 = vector.extract_strided_slice %60 {offsets = [0, 0], sizes = [16, 128], strides = [1, 1]} : vector<16x256xf32> to vector<16x128xf32>
    %62 = vector.extract_strided_slice %60 {offsets = [0, 128], sizes = [16, 128], strides = [1, 1]} : vector<16x256xf32> to vector<16x128xf32>
    %63 = arith.maximumf %61, %62 : vector<16x128xf32>
    %64 = vector.broadcast %33 : vector<1x128xf32> to vector<16x128xf32>
    %65 = arith.addf %63, %64 : vector<16x128xf32>
    %cst_57 = arith.constant 0.000000e+00 : f32
    %66 = vector.broadcast %cst_57 : f32 to vector<16x128xf32>
    %67 = arith.maximumf %65, %66 : vector<16x128xf32>
    %68 = arith.truncf %67 : vector<16x128xf32> to vector<16x128xbf16>
    %c32_58 = arith.constant 32 : index
    %c0_59 = arith.constant 0 : index
    %69 = vector.load %arg14[%c32_58, %c0_59] : memref<224x128xbf16, #tpu.memory_space<vmem>>, vector<16x128xbf16>
    tpu.vector_store %arg14[%c32_58, %c0_59], %68 {strides = array<i32>} : memref<224x128xbf16, #tpu.memory_space<vmem>>, vector<16x128xbf16>,
    %c96 = arith.constant 96 : index
    %c0_60 = arith.constant 0 : index
    %70 = vector.load %arg13[%c96, %c0_60] : memref<448x256xf32, #tpu.memory_space<vmem>>, vector<16x256xf32>
    %c112 = arith.constant 112 : index
    %c0_61 = arith.constant 0 : index
    %71 = vector.load %arg13[%c112, %c0_61] : memref<448x256xf32, #tpu.memory_space<vmem>>, vector<16x256xf32>
    %72 = arith.maximumf %70, %71 : vector<16x256xf32>
    %73 = vector.extract_strided_slice %72 {offsets = [0, 0], sizes = [16, 128], strides = [1, 1]} : vector<16x256xf32> to vector<16x128xf32>
    %74 = vector.extract_strided_slice %72 {offsets = [0, 128], sizes = [16, 128], strides = [1, 1]} : vector<16x256xf32> to vector<16x128xf32>
    %75 = arith.maximumf %73, %74 : vector<16x128xf32>
    %76 = vector.broadcast %33 : vector<1x128xf32> to vector<16x128xf32>
    %77 = arith.addf %75, %76 : vector<16x128xf32>
    %cst_62 = arith.constant 0.000000e+00 : f32
    %78 = vector.broadcast %cst_62 : f32 to vector<16x128xf32>
    %79 = arith.maximumf %77, %78 : vector<16x128xf32>
    %80 = arith.truncf %79 : vector<16x128xf32> to vector<16x128xbf16>
    %c48_63 = arith.constant 48 : index
    %c0_64 = arith.constant 0 : index
    %81 = vector.load %arg14[%c48_63, %c0_64] : memref<224x128xbf16, #tpu.memory_space<vmem>>, vector<16x128xbf16>
    tpu.vector_store %arg14[%c48_63, %c0_64], %80 {strides = array<i32>} : memref<224x128xbf16, #tpu.memory_space<vmem>>, vector<16x128xbf16>,
    %c128 = arith.constant 128 : index
    %c0_65 = arith.constant 0 : index
    %82 = vector.load %arg13[%c128, %c0_65] : memref<448x256xf32, #tpu.memory_space<vmem>>, vector<16x256xf32>
    %c144 = arith.constant 144 : index
    %c0_66 = arith.constant 0 : index
    %83 = vector.load %arg13[%c144, %c0_66] : memref<448x256xf32, #tpu.memory_space<vmem>>, vector<16x256xf32>
    %84 = arith.maximumf %82, %83 : vector<16x256xf32>
    %85 = vector.extract_strided_slice %84 {offsets = [0, 0], sizes = [16, 128], strides = [1, 1]} : vector<16x256xf32> to vector<16x128xf32>
    %86 = vector.extract_strided_slice %84 {offsets = [0, 128], sizes = [16, 128], strides = [1, 1]} : vector<16x256xf32> to vector<16x128xf32>
    %87 = arith.maximumf %85, %86 : vector<16x128xf32>
    %88 = vector.broadcast %33 : vector<1x128xf32> to vector<16x128xf32>
    %89 = arith.addf %87, %88 : vector<16x128xf32>
    %cst_67 = arith.constant 0.000000e+00 : f32
    %90 = vector.broadcast %cst_67 : f32 to vector<16x128xf32>
    %91 = arith.maximumf %89, %90 : vector<16x128xf32>
    %92 = arith.truncf %91 : vector<16x128xf32> to vector<16x128xbf16>
    %c64_68 = arith.constant 64 : index
    %c0_69 = arith.constant 0 : index
    %93 = vector.load %arg14[%c64_68, %c0_69] : memref<224x128xbf16, #tpu.memory_space<vmem>>, vector<16x128xbf16>
    tpu.vector_store %arg14[%c64_68, %c0_69], %92 {strides = array<i32>} : memref<224x128xbf16, #tpu.memory_space<vmem>>, vector<16x128xbf16>,
    %c160 = arith.constant 160 : index
    %c0_70 = arith.constant 0 : index
    %94 = vector.load %arg13[%c160, %c0_70] : memref<448x256xf32, #tpu.memory_space<vmem>>, vector<16x256xf32>
    %c176 = arith.constant 176 : index
    %c0_71 = arith.constant 0 : index
    %95 = vector.load %arg13[%c176, %c0_71] : memref<448x256xf32, #tpu.memory_space<vmem>>, vector<16x256xf32>
    %96 = arith.maximumf %94, %95 : vector<16x256xf32>
    %97 = vector.extract_strided_slice %96 {offsets = [0, 0], sizes = [16, 128], strides = [1, 1]} : vector<16x256xf32> to vector<16x128xf32>
    %98 = vector.extract_strided_slice %96 {offsets = [0, 128], sizes = [16, 128], strides = [1, 1]} : vector<16x256xf32> to vector<16x128xf32>
    %99 = arith.maximumf %97, %98 : vector<16x128xf32>
    %100 = vector.broadcast %33 : vector<1x128xf32> to vector<16x128xf32>
    %101 = arith.addf %99, %100 : vector<16x128xf32>
    %cst_72 = arith.constant 0.000000e+00 : f32
    %102 = vector.broadcast %cst_72 : f32 to vector<16x128xf32>
    %103 = arith.maximumf %101, %102 : vector<16x128xf32>
    %104 = arith.truncf %103 : vector<16x128xf32> to vector<16x128xbf16>
    %c80_73 = arith.constant 80 : index
    %c0_74 = arith.constant 0 : index
    %105 = vector.load %arg14[%c80_73, %c0_74] : memref<224x128xbf16, #tpu.memory_space<vmem>>, vector<16x128xbf16>
    tpu.vector_store %arg14[%c80_73, %c0_74], %104 {strides = array<i32>} : memref<224x128xbf16, #tpu.memory_space<vmem>>, vector<16x128xbf16>,
    %c192 = arith.constant 192 : index
    %c0_75 = arith.constant 0 : index
    %106 = vector.load %arg13[%c192, %c0_75] : memref<448x256xf32, #tpu.memory_space<vmem>>, vector<16x256xf32>
    %c208 = arith.constant 208 : index
    %c0_76 = arith.constant 0 : index
    %107 = vector.load %arg13[%c208, %c0_76] : memref<448x256xf32, #tpu.memory_space<vmem>>, vector<16x256xf32>
    %108 = arith.maximumf %106, %107 : vector<16x256xf32>
    %109 = vector.extract_strided_slice %108 {offsets = [0, 0], sizes = [16, 128], strides = [1, 1]} : vector<16x256xf32> to vector<16x128xf32>
    %110 = vector.extract_strided_slice %108 {offsets = [0, 128], sizes = [16, 128], strides = [1, 1]} : vector<16x256xf32> to vector<16x128xf32>
    %111 = arith.maximumf %109, %110 : vector<16x128xf32>
    %112 = vector.broadcast %33 : vector<1x128xf32> to vector<16x128xf32>
    %113 = arith.addf %111, %112 : vector<16x128xf32>
    %cst_77 = arith.constant 0.000000e+00 : f32
    %114 = vector.broadcast %cst_77 : f32 to vector<16x128xf32>
    %115 = arith.maximumf %113, %114 : vector<16x128xf32>
    %116 = arith.truncf %115 : vector<16x128xf32> to vector<16x128xbf16>
    %c96_78 = arith.constant 96 : index
    %c0_79 = arith.constant 0 : index
    %117 = vector.load %arg14[%c96_78, %c0_79] : memref<224x128xbf16, #tpu.memory_space<vmem>>, vector<16x128xbf16>
    tpu.vector_store %arg14[%c96_78, %c0_79], %116 {strides = array<i32>} : memref<224x128xbf16, #tpu.memory_space<vmem>>, vector<16x128xbf16>,
    %c224 = arith.constant 224 : index
    %c0_80 = arith.constant 0 : index
    %118 = vector.load %arg13[%c224, %c0_80] : memref<448x256xf32, #tpu.memory_space<vmem>>, vector<16x256xf32>
    %c240 = arith.constant 240 : index
    %c0_81 = arith.constant 0 : index
    %119 = vector.load %arg13[%c240, %c0_81] : memref<448x256xf32, #tpu.memory_space<vmem>>, vector<16x256xf32>
    %120 = arith.maximumf %118, %119 : vector<16x256xf32>
    %121 = vector.extract_strided_slice %120 {offsets = [0, 0], sizes = [16, 128], strides = [1, 1]} : vector<16x256xf32> to vector<16x128xf32>
    %122 = vector.extract_strided_slice %120 {offsets = [0, 128], sizes = [16, 128], strides = [1, 1]} : vector<16x256xf32> to vector<16x128xf32>
    %123 = arith.maximumf %121, %122 : vector<16x128xf32>
    %124 = vector.broadcast %33 : vector<1x128xf32> to vector<16x128xf32>
    %125 = arith.addf %123, %124 : vector<16x128xf32>
    %cst_82 = arith.constant 0.000000e+00 : f32
    %126 = vector.broadcast %cst_82 : f32 to vector<16x128xf32>
    %127 = arith.maximumf %125, %126 : vector<16x128xf32>
    %128 = arith.truncf %127 : vector<16x128xf32> to vector<16x128xbf16>
    %c112_83 = arith.constant 112 : index
    %c0_84 = arith.constant 0 : index
    %129 = vector.load %arg14[%c112_83, %c0_84] : memref<224x128xbf16, #tpu.memory_space<vmem>>, vector<16x128xbf16>
    tpu.vector_store %arg14[%c112_83, %c0_84], %128 {strides = array<i32>} : memref<224x128xbf16, #tpu.memory_space<vmem>>, vector<16x128xbf16>,
    %c256 = arith.constant 256 : index
    %c0_85 = arith.constant 0 : index
    %130 = vector.load %arg13[%c256, %c0_85] : memref<448x256xf32, #tpu.memory_space<vmem>>, vector<16x256xf32>
    %c272 = arith.constant 272 : index
    %c0_86 = arith.constant 0 : index
    %131 = vector.load %arg13[%c272, %c0_86] : memref<448x256xf32, #tpu.memory_space<vmem>>, vector<16x256xf32>
    %132 = arith.maximumf %130, %131 : vector<16x256xf32>
    %133 = vector.extract_strided_slice %132 {offsets = [0, 0], sizes = [16, 128], strides = [1, 1]} : vector<16x256xf32> to vector<16x128xf32>
    %134 = vector.extract_strided_slice %132 {offsets = [0, 128], sizes = [16, 128], strides = [1, 1]} : vector<16x256xf32> to vector<16x128xf32>
    %135 = arith.maximumf %133, %134 : vector<16x128xf32>
    %136 = vector.broadcast %33 : vector<1x128xf32> to vector<16x128xf32>
    %137 = arith.addf %135, %136 : vector<16x128xf32>
    %cst_87 = arith.constant 0.000000e+00 : f32
    %138 = vector.broadcast %cst_87 : f32 to vector<16x128xf32>
    %139 = arith.maximumf %137, %138 : vector<16x128xf32>
    %140 = arith.truncf %139 : vector<16x128xf32> to vector<16x128xbf16>
    %c128_88 = arith.constant 128 : index
    %c0_89 = arith.constant 0 : index
    %141 = vector.load %arg14[%c128_88, %c0_89] : memref<224x128xbf16, #tpu.memory_space<vmem>>, vector<16x128xbf16>
    tpu.vector_store %arg14[%c128_88, %c0_89], %140 {strides = array<i32>} : memref<224x128xbf16, #tpu.memory_space<vmem>>, vector<16x128xbf16>,
    %c288 = arith.constant 288 : index
    %c0_90 = arith.constant 0 : index
    %142 = vector.load %arg13[%c288, %c0_90] : memref<448x256xf32, #tpu.memory_space<vmem>>, vector<16x256xf32>
    %c304 = arith.constant 304 : index
    %c0_91 = arith.constant 0 : index
    %143 = vector.load %arg13[%c304, %c0_91] : memref<448x256xf32, #tpu.memory_space<vmem>>, vector<16x256xf32>
    %144 = arith.maximumf %142, %143 : vector<16x256xf32>
    %145 = vector.extract_strided_slice %144 {offsets = [0, 0], sizes = [16, 128], strides = [1, 1]} : vector<16x256xf32> to vector<16x128xf32>
    %146 = vector.extract_strided_slice %144 {offsets = [0, 128], sizes = [16, 128], strides = [1, 1]} : vector<16x256xf32> to vector<16x128xf32>
    %147 = arith.maximumf %145, %146 : vector<16x128xf32>
    %148 = vector.broadcast %33 : vector<1x128xf32> to vector<16x128xf32>
    %149 = arith.addf %147, %148 : vector<16x128xf32>
    %cst_92 = arith.constant 0.000000e+00 : f32
    %150 = vector.broadcast %cst_92 : f32 to vector<16x128xf32>
    %151 = arith.maximumf %149, %150 : vector<16x128xf32>
    %152 = arith.truncf %151 : vector<16x128xf32> to vector<16x128xbf16>
    %c144_93 = arith.constant 144 : index
    %c0_94 = arith.constant 0 : index
    %153 = vector.load %arg14[%c144_93, %c0_94] : memref<224x128xbf16, #tpu.memory_space<vmem>>, vector<16x128xbf16>
    tpu.vector_store %arg14[%c144_93, %c0_94], %152 {strides = array<i32>} : memref<224x128xbf16, #tpu.memory_space<vmem>>, vector<16x128xbf16>,
    %c320 = arith.constant 320 : index
    %c0_95 = arith.constant 0 : index
    %154 = vector.load %arg13[%c320, %c0_95] : memref<448x256xf32, #tpu.memory_space<vmem>>, vector<16x256xf32>
    %c336 = arith.constant 336 : index
    %c0_96 = arith.constant 0 : index
    %155 = vector.load %arg13[%c336, %c0_96] : memref<448x256xf32, #tpu.memory_space<vmem>>, vector<16x256xf32>
    %156 = arith.maximumf %154, %155 : vector<16x256xf32>
    %157 = vector.extract_strided_slice %156 {offsets = [0, 0], sizes = [16, 128], strides = [1, 1]} : vector<16x256xf32> to vector<16x128xf32>
    %158 = vector.extract_strided_slice %156 {offsets = [0, 128], sizes = [16, 128], strides = [1, 1]} : vector<16x256xf32> to vector<16x128xf32>
    %159 = arith.maximumf %157, %158 : vector<16x128xf32>
    %160 = vector.broadcast %33 : vector<1x128xf32> to vector<16x128xf32>
    %161 = arith.addf %159, %160 : vector<16x128xf32>
    %cst_97 = arith.constant 0.000000e+00 : f32
    %162 = vector.broadcast %cst_97 : f32 to vector<16x128xf32>
    %163 = arith.maximumf %161, %162 : vector<16x128xf32>
    %164 = arith.truncf %163 : vector<16x128xf32> to vector<16x128xbf16>
    %c160_98 = arith.constant 160 : index
    %c0_99 = arith.constant 0 : index
    %165 = vector.load %arg14[%c160_98, %c0_99] : memref<224x128xbf16, #tpu.memory_space<vmem>>, vector<16x128xbf16>
    tpu.vector_store %arg14[%c160_98, %c0_99], %164 {strides = array<i32>} : memref<224x128xbf16, #tpu.memory_space<vmem>>, vector<16x128xbf16>,
    %c352 = arith.constant 352 : index
    %c0_100 = arith.constant 0 : index
    %166 = vector.load %arg13[%c352, %c0_100] : memref<448x256xf32, #tpu.memory_space<vmem>>, vector<16x256xf32>
    %c368 = arith.constant 368 : index
    %c0_101 = arith.constant 0 : index
    %167 = vector.load %arg13[%c368, %c0_101] : memref<448x256xf32, #tpu.memory_space<vmem>>, vector<16x256xf32>
    %168 = arith.maximumf %166, %167 : vector<16x256xf32>
    %169 = vector.extract_strided_slice %168 {offsets = [0, 0], sizes = [16, 128], strides = [1, 1]} : vector<16x256xf32> to vector<16x128xf32>
    %170 = vector.extract_strided_slice %168 {offsets = [0, 128], sizes = [16, 128], strides = [1, 1]} : vector<16x256xf32> to vector<16x128xf32>
    %171 = arith.maximumf %169, %170 : vector<16x128xf32>
    %172 = vector.broadcast %33 : vector<1x128xf32> to vector<16x128xf32>
    %173 = arith.addf %171, %172 : vector<16x128xf32>
    %cst_102 = arith.constant 0.000000e+00 : f32
    %174 = vector.broadcast %cst_102 : f32 to vector<16x128xf32>
    %175 = arith.maximumf %173, %174 : vector<16x128xf32>
    %176 = arith.truncf %175 : vector<16x128xf32> to vector<16x128xbf16>
    %c176_103 = arith.constant 176 : index
    %c0_104 = arith.constant 0 : index
    %177 = vector.load %arg14[%c176_103, %c0_104] : memref<224x128xbf16, #tpu.memory_space<vmem>>, vector<16x128xbf16>
    tpu.vector_store %arg14[%c176_103, %c0_104], %176 {strides = array<i32>} : memref<224x128xbf16, #tpu.memory_space<vmem>>, vector<16x128xbf16>,
    %c384 = arith.constant 384 : index
    %c0_105 = arith.constant 0 : index
    %178 = vector.load %arg13[%c384, %c0_105] : memref<448x256xf32, #tpu.memory_space<vmem>>, vector<16x256xf32>
    %c400 = arith.constant 400 : index
    %c0_106 = arith.constant 0 : index
    %179 = vector.load %arg13[%c400, %c0_106] : memref<448x256xf32, #tpu.memory_space<vmem>>, vector<16x256xf32>
    %180 = arith.maximumf %178, %179 : vector<16x256xf32>
    %181 = vector.extract_strided_slice %180 {offsets = [0, 0], sizes = [16, 128], strides = [1, 1]} : vector<16x256xf32> to vector<16x128xf32>
    %182 = vector.extract_strided_slice %180 {offsets = [0, 128], sizes = [16, 128], strides = [1, 1]} : vector<16x256xf32> to vector<16x128xf32>
    %183 = arith.maximumf %181, %182 : vector<16x128xf32>
    %184 = vector.broadcast %33 : vector<1x128xf32> to vector<16x128xf32>
    %185 = arith.addf %183, %184 : vector<16x128xf32>
    %cst_107 = arith.constant 0.000000e+00 : f32
    %186 = vector.broadcast %cst_107 : f32 to vector<16x128xf32>
    %187 = arith.maximumf %185, %186 : vector<16x128xf32>
    %188 = arith.truncf %187 : vector<16x128xf32> to vector<16x128xbf16>
    %c192_108 = arith.constant 192 : index
    %c0_109 = arith.constant 0 : index
    %189 = vector.load %arg14[%c192_108, %c0_109] : memref<224x128xbf16, #tpu.memory_space<vmem>>, vector<16x128xbf16>
    tpu.vector_store %arg14[%c192_108, %c0_109], %188 {strides = array<i32>} : memref<224x128xbf16, #tpu.memory_space<vmem>>, vector<16x128xbf16>,
    %c416 = arith.constant 416 : index
    %c0_110 = arith.constant 0 : index
    %190 = vector.load %arg13[%c416, %c0_110] : memref<448x256xf32, #tpu.memory_space<vmem>>, vector<16x256xf32>
    %c432 = arith.constant 432 : index
    %c0_111 = arith.constant 0 : index
    %191 = vector.load %arg13[%c432, %c0_111] : memref<448x256xf32, #tpu.memory_space<vmem>>, vector<16x256xf32>
    %192 = arith.maximumf %190, %191 : vector<16x256xf32>
    %193 = vector.extract_strided_slice %192 {offsets = [0, 0], sizes = [16, 128], strides = [1, 1]} : vector<16x256xf32> to vector<16x128xf32>
    %194 = vector.extract_strided_slice %192 {offsets = [0, 128], sizes = [16, 128], strides = [1, 1]} : vector<16x256xf32> to vector<16x128xf32>
    %195 = arith.maximumf %193, %194 : vector<16x128xf32>
    %196 = vector.broadcast %33 : vector<1x128xf32> to vector<16x128xf32>
    %197 = arith.addf %195, %196 : vector<16x128xf32>
    %cst_112 = arith.constant 0.000000e+00 : f32
    %198 = vector.broadcast %cst_112 : f32 to vector<16x128xf32>
    %199 = arith.maximumf %197, %198 : vector<16x128xf32>
    %200 = arith.truncf %199 : vector<16x128xf32> to vector<16x128xbf16>
    %c208_113 = arith.constant 208 : index
    %c0_114 = arith.constant 0 : index
    %201 = vector.load %arg14[%c208_113, %c0_114] : memref<224x128xbf16, #tpu.memory_space<vmem>>, vector<16x128xbf16>
    tpu.vector_store %arg14[%c208_113, %c0_114], %200 {strides = array<i32>} : memref<224x128xbf16, #tpu.memory_space<vmem>>, vector<16x128xbf16>,
    %c0_115 = arith.constant 0 : index
    %c0_116 = arith.constant 0 : index
    %202 = vector.load %arg14[%c0_115, %c0_116] : memref<224x128xbf16, #tpu.memory_space<vmem>>, vector<160x128xbf16>
    %c0_117 = arith.constant 0 : index
    %c0_118 = arith.constant 0 : index
    %c0_119 = arith.constant 0 : index
    %203 = vector.load %arg4[%c0_117, %c0_118, %c0_119] : memref<5x128x256xbf16, #tpu.memory_space<vmem>>, vector<1x128x256xbf16>
    %204 = vector.shape_cast %203 : vector<1x128x256xbf16> to vector<128x256xbf16>
    %cst_120 = arith.constant dense<0.000000e+00> : vector<160x256xf32>
    %205 = tpu.matmul %202, %204, %cst_120 {dimension_numbers = #tpu.dot_dimension_numbers<[1], [0], [0], [1], [0, 0, 1, 1], [], []>} : vector<160x128xbf16>, vector<128x256xbf16>, vector<160x256xf32> -> vector<160x256xf32>
    %c0_121 = arith.constant 0 : index
    %c0_122 = arith.constant 0 : index
    %206 = vector.load %arg15[%c0_121, %c0_122] : memref<160x256xf32, #tpu.memory_space<vmem>>, vector<160x256xf32>
    tpu.vector_store %arg15[%c0_121, %c0_122], %205 {strides = array<i32>} : memref<160x256xf32, #tpu.memory_space<vmem>>, vector<160x256xf32>,
    %c0_123 = arith.constant 0 : index
    %c0_124 = arith.constant 0 : index
    %207 = vector.load %arg15[%c0_123, %c0_124] : memref<160x256xf32, #tpu.memory_space<vmem>>, vector<160x256xf32>
    %c16_125 = arith.constant 16 : index
    %c0_126 = arith.constant 0 : index
    %208 = vector.load %arg14[%c16_125, %c0_126] : memref<224x128xbf16, #tpu.memory_space<vmem>>, vector<160x128xbf16>
    %c1_127 = arith.constant 1 : index
    %c0_128 = arith.constant 0 : index
    %c0_129 = arith.constant 0 : index
    %209 = vector.load %arg4[%c1_127, %c0_128, %c0_129] : memref<5x128x256xbf16, #tpu.memory_space<vmem>>, vector<1x128x256xbf16>
    %210 = vector.shape_cast %209 : vector<1x128x256xbf16> to vector<128x256xbf16>
    %cst_130 = arith.constant dense<0.000000e+00> : vector<160x256xf32>
    %211 = tpu.matmul %208, %210, %cst_130 {dimension_numbers = #tpu.dot_dimension_numbers<[1], [0], [0], [1], [0, 0, 1, 1], [], []>} : vector<160x128xbf16>, vector<128x256xbf16>, vector<160x256xf32> -> vector<160x256xf32>
    %212 = arith.addf %207, %211 : vector<160x256xf32>
    %c0_131 = arith.constant 0 : index
    %c0_132 = arith.constant 0 : index
    %213 = vector.load %arg15[%c0_131, %c0_132] : memref<160x256xf32, #tpu.memory_space<vmem>>, vector<160x256xf32>
    tpu.vector_store %arg15[%c0_131, %c0_132], %212 {strides = array<i32>} : memref<160x256xf32, #tpu.memory_space<vmem>>, vector<160x256xf32>,
    %c0_133 = arith.constant 0 : index
    %c0_134 = arith.constant 0 : index
    %214 = vector.load %arg15[%c0_133, %c0_134] : memref<160x256xf32, #tpu.memory_space<vmem>>, vector<160x256xf32>
    %c32_135 = arith.constant 32 : index
    %c0_136 = arith.constant 0 : index
    %215 = vector.load %arg14[%c32_135, %c0_136] : memref<224x128xbf16, #tpu.memory_space<vmem>>, vector<160x128xbf16>
    %c2_137 = arith.constant 2 : index
    %c0_138 = arith.constant 0 : index
    %c0_139 = arith.constant 0 : index
    %216 = vector.load %arg4[%c2_137, %c0_138, %c0_139] : memref<5x128x256xbf16, #tpu.memory_space<vmem>>, vector<1x128x256xbf16>
    %217 = vector.shape_cast %216 : vector<1x128x256xbf16> to vector<128x256xbf16>
    %cst_140 = arith.constant dense<0.000000e+00> : vector<160x256xf32>
    %218 = tpu.matmul %215, %217, %cst_140 {dimension_numbers = #tpu.dot_dimension_numbers<[1], [0], [0], [1], [0, 0, 1, 1], [], []>} : vector<160x128xbf16>, vector<128x256xbf16>, vector<160x256xf32> -> vector<160x256xf32>
    %219 = arith.addf %214, %218 : vector<160x256xf32>
    %c0_141 = arith.constant 0 : index
    %c0_142 = arith.constant 0 : index
    %220 = vector.load %arg15[%c0_141, %c0_142] : memref<160x256xf32, #tpu.memory_space<vmem>>, vector<160x256xf32>
    tpu.vector_store %arg15[%c0_141, %c0_142], %219 {strides = array<i32>} : memref<160x256xf32, #tpu.memory_space<vmem>>, vector<160x256xf32>,
    %c0_143 = arith.constant 0 : index
    %c0_144 = arith.constant 0 : index
    %221 = vector.load %arg15[%c0_143, %c0_144] : memref<160x256xf32, #tpu.memory_space<vmem>>, vector<160x256xf32>
    %c48_145 = arith.constant 48 : index
    %c0_146 = arith.constant 0 : index
    %222 = vector.load %arg14[%c48_145, %c0_146] : memref<224x128xbf16, #tpu.memory_space<vmem>>, vector<160x128xbf16>
    %c3_147 = arith.constant 3 : index
    %c0_148 = arith.constant 0 : index
    %c0_149 = arith.constant 0 : index
    %223 = vector.load %arg4[%c3_147, %c0_148, %c0_149] : memref<5x128x256xbf16, #tpu.memory_space<vmem>>, vector<1x128x256xbf16>
    %224 = vector.shape_cast %223 : vector<1x128x256xbf16> to vector<128x256xbf16>
    %cst_150 = arith.constant dense<0.000000e+00> : vector<160x256xf32>
    %225 = tpu.matmul %222, %224, %cst_150 {dimension_numbers = #tpu.dot_dimension_numbers<[1], [0], [0], [1], [0, 0, 1, 1], [], []>} : vector<160x128xbf16>, vector<128x256xbf16>, vector<160x256xf32> -> vector<160x256xf32>
    %226 = arith.addf %221, %225 : vector<160x256xf32>
    %c0_151 = arith.constant 0 : index
    %c0_152 = arith.constant 0 : index
    %227 = vector.load %arg15[%c0_151, %c0_152] : memref<160x256xf32, #tpu.memory_space<vmem>>, vector<160x256xf32>
    tpu.vector_store %arg15[%c0_151, %c0_152], %226 {strides = array<i32>} : memref<160x256xf32, #tpu.memory_space<vmem>>, vector<160x256xf32>,
    %c0_153 = arith.constant 0 : index
    %c0_154 = arith.constant 0 : index
    %228 = vector.load %arg15[%c0_153, %c0_154] : memref<160x256xf32, #tpu.memory_space<vmem>>, vector<160x256xf32>
    %c64_155 = arith.constant 64 : index
    %c0_156 = arith.constant 0 : index
    %229 = vector.load %arg14[%c64_155, %c0_156] : memref<224x128xbf16, #tpu.memory_space<vmem>>, vector<160x128xbf16>
    %c4_157 = arith.constant 4 : index
    %c0_158 = arith.constant 0 : index
    %c0_159 = arith.constant 0 : index
    %230 = vector.load %arg4[%c4_157, %c0_158, %c0_159] : memref<5x128x256xbf16, #tpu.memory_space<vmem>>, vector<1x128x256xbf16>
    %231 = vector.shape_cast %230 : vector<1x128x256xbf16> to vector<128x256xbf16>
    %cst_160 = arith.constant dense<0.000000e+00> : vector<160x256xf32>
    %232 = tpu.matmul %229, %231, %cst_160 {dimension_numbers = #tpu.dot_dimension_numbers<[1], [0], [0], [1], [0, 0, 1, 1], [], []>} : vector<160x128xbf16>, vector<128x256xbf16>, vector<160x256xf32> -> vector<160x256xf32>
    %233 = arith.addf %228, %232 : vector<160x256xf32>
    %c0_161 = arith.constant 0 : index
    %c0_162 = arith.constant 0 : index
    %234 = vector.load %arg15[%c0_161, %c0_162] : memref<160x256xf32, #tpu.memory_space<vmem>>, vector<160x256xf32>
    tpu.vector_store %arg15[%c0_161, %c0_162], %233 {strides = array<i32>} : memref<160x256xf32, #tpu.memory_space<vmem>>, vector<160x256xf32>,
    %c0_163 = arith.constant 0 : index
    %c0_164 = arith.constant 0 : index
    %235 = vector.load %arg5[%c0_163, %c0_164] : memref<1x128xf32, #tpu.memory_space<vmem>>, vector<1x128xf32>
    %cst_165 = arith.constant 0.000000e+00 : f32
    %236 = vector.broadcast %cst_165 : f32 to vector<16x128xf32>
    %c0_166 = arith.constant 0 : index
    %c0_167 = arith.constant 0 : index
    %237 = vector.load %arg15[%c0_166, %c0_167] : memref<160x256xf32, #tpu.memory_space<vmem>>, vector<16x256xf32>
    %c16_168 = arith.constant 16 : index
    %c0_169 = arith.constant 0 : index
    %238 = vector.load %arg15[%c16_168, %c0_169] : memref<160x256xf32, #tpu.memory_space<vmem>>, vector<16x256xf32>
    %239 = arith.maximumf %237, %238 : vector<16x256xf32>
    %240 = vector.extract_strided_slice %239 {offsets = [0, 0], sizes = [16, 128], strides = [1, 1]} : vector<16x256xf32> to vector<16x128xf32>
    %241 = vector.extract_strided_slice %239 {offsets = [0, 128], sizes = [16, 128], strides = [1, 1]} : vector<16x256xf32> to vector<16x128xf32>
    %242 = arith.maximumf %240, %241 : vector<16x128xf32>
    %243 = vector.broadcast %235 : vector<1x128xf32> to vector<16x128xf32>
    %244 = arith.addf %242, %243 : vector<16x128xf32>
    %cst_170 = arith.constant 0.000000e+00 : f32
    %245 = vector.broadcast %cst_170 : f32 to vector<16x128xf32>
    %246 = arith.maximumf %244, %245 : vector<16x128xf32>
    %247 = arith.truncf %246 : vector<16x128xf32> to vector<16x128xbf16>
    %c0_171 = arith.constant 0 : index
    %c0_172 = arith.constant 0 : index
    %c0_173 = arith.constant 0 : index
    %248 = vector.load %arg6[%c0_171, %c0_172, %c0_173] : memref<5x128x128xbf16, #tpu.memory_space<vmem>>, vector<1x128x128xbf16>
    %249 = vector.shape_cast %248 : vector<1x128x128xbf16> to vector<128x128xbf16>
    %cst_174 = arith.constant dense<0.000000e+00> : vector<16x128xf32>
    %250 = tpu.matmul %247, %249, %cst_174 {dimension_numbers = #tpu.dot_dimension_numbers<[1], [0], [0], [1], [0, 0, 1, 1], [], []>} : vector<16x128xbf16>, vector<128x128xbf16>, vector<16x128xf32> -> vector<16x128xf32>
    %251 = arith.addf %236, %250 : vector<16x128xf32>
    %c32_175 = arith.constant 32 : index
    %c0_176 = arith.constant 0 : index
    %252 = vector.load %arg15[%c32_175, %c0_176] : memref<160x256xf32, #tpu.memory_space<vmem>>, vector<16x256xf32>
    %c48_177 = arith.constant 48 : index
    %c0_178 = arith.constant 0 : index
    %253 = vector.load %arg15[%c48_177, %c0_178] : memref<160x256xf32, #tpu.memory_space<vmem>>, vector<16x256xf32>
    %254 = arith.maximumf %252, %253 : vector<16x256xf32>
    %255 = vector.extract_strided_slice %254 {offsets = [0, 0], sizes = [16, 128], strides = [1, 1]} : vector<16x256xf32> to vector<16x128xf32>
    %256 = vector.extract_strided_slice %254 {offsets = [0, 128], sizes = [16, 128], strides = [1, 1]} : vector<16x256xf32> to vector<16x128xf32>
    %257 = arith.maximumf %255, %256 : vector<16x128xf32>
    %258 = vector.broadcast %235 : vector<1x128xf32> to vector<16x128xf32>
    %259 = arith.addf %257, %258 : vector<16x128xf32>
    %cst_179 = arith.constant 0.000000e+00 : f32
    %260 = vector.broadcast %cst_179 : f32 to vector<16x128xf32>
    %261 = arith.maximumf %259, %260 : vector<16x128xf32>
    %262 = arith.truncf %261 : vector<16x128xf32> to vector<16x128xbf16>
    %c1_180 = arith.constant 1 : index
    %c0_181 = arith.constant 0 : index
    %c0_182 = arith.constant 0 : index
    %263 = vector.load %arg6[%c1_180, %c0_181, %c0_182] : memref<5x128x128xbf16, #tpu.memory_space<vmem>>, vector<1x128x128xbf16>
    %264 = vector.shape_cast %263 : vector<1x128x128xbf16> to vector<128x128xbf16>
    %cst_183 = arith.constant dense<0.000000e+00> : vector<16x128xf32>
    %265 = tpu.matmul %262, %264, %cst_183 {dimension_numbers = #tpu.dot_dimension_numbers<[1], [0], [0], [1], [0, 0, 1, 1], [], []>} : vector<16x128xbf16>, vector<128x128xbf16>, vector<16x128xf32> -> vector<16x128xf32>
    %266 = arith.addf %251, %265 : vector<16x128xf32>
    %c64_184 = arith.constant 64 : index
    %c0_185 = arith.constant 0 : index
    %267 = vector.load %arg15[%c64_184, %c0_185] : memref<160x256xf32, #tpu.memory_space<vmem>>, vector<16x256xf32>
    %c80_186 = arith.constant 80 : index
    %c0_187 = arith.constant 0 : index
    %268 = vector.load %arg15[%c80_186, %c0_187] : memref<160x256xf32, #tpu.memory_space<vmem>>, vector<16x256xf32>
    %269 = arith.maximumf %267, %268 : vector<16x256xf32>
    %270 = vector.extract_strided_slice %269 {offsets = [0, 0], sizes = [16, 128], strides = [1, 1]} : vector<16x256xf32> to vector<16x128xf32>
    %271 = vector.extract_strided_slice %269 {offsets = [0, 128], sizes = [16, 128], strides = [1, 1]} : vector<16x256xf32> to vector<16x128xf32>
    %272 = arith.maximumf %270, %271 : vector<16x128xf32>
    %273 = vector.broadcast %235 : vector<1x128xf32> to vector<16x128xf32>
    %274 = arith.addf %272, %273 : vector<16x128xf32>
    %cst_188 = arith.constant 0.000000e+00 : f32
    %275 = vector.broadcast %cst_188 : f32 to vector<16x128xf32>
    %276 = arith.maximumf %274, %275 : vector<16x128xf32>
    %277 = arith.truncf %276 : vector<16x128xf32> to vector<16x128xbf16>
    %c2_189 = arith.constant 2 : index
    %c0_190 = arith.constant 0 : index
    %c0_191 = arith.constant 0 : index
    %278 = vector.load %arg6[%c2_189, %c0_190, %c0_191] : memref<5x128x128xbf16, #tpu.memory_space<vmem>>, vector<1x128x128xbf16>
    %279 = vector.shape_cast %278 : vector<1x128x128xbf16> to vector<128x128xbf16>
    %cst_192 = arith.constant dense<0.000000e+00> : vector<16x128xf32>
    %280 = tpu.matmul %277, %279, %cst_192 {dimension_numbers = #tpu.dot_dimension_numbers<[1], [0], [0], [1], [0, 0, 1, 1], [], []>} : vector<16x128xbf16>, vector<128x128xbf16>, vector<16x128xf32> -> vector<16x128xf32>
    %281 = arith.addf %266, %280 : vector<16x128xf32>
    %c96_193 = arith.constant 96 : index
    %c0_194 = arith.constant 0 : index
    %282 = vector.load %arg15[%c96_193, %c0_194] : memref<160x256xf32, #tpu.memory_space<vmem>>, vector<16x256xf32>
    %c112_195 = arith.constant 112 : index
    %c0_196 = arith.constant 0 : index
    %283 = vector.load %arg15[%c112_195, %c0_196] : memref<160x256xf32, #tpu.memory_space<vmem>>, vector<16x256xf32>
    %284 = arith.maximumf %282, %283 : vector<16x256xf32>
    %285 = vector.extract_strided_slice %284 {offsets = [0, 0], sizes = [16, 128], strides = [1, 1]} : vector<16x256xf32> to vector<16x128xf32>
    %286 = vector.extract_strided_slice %284 {offsets = [0, 128], sizes = [16, 128], strides = [1, 1]} : vector<16x256xf32> to vector<16x128xf32>
    %287 = arith.maximumf %285, %286 : vector<16x128xf32>
    %288 = vector.broadcast %235 : vector<1x128xf32> to vector<16x128xf32>
    %289 = arith.addf %287, %288 : vector<16x128xf32>
    %cst_197 = arith.constant 0.000000e+00 : f32
    %290 = vector.broadcast %cst_197 : f32 to vector<16x128xf32>
    %291 = arith.maximumf %289, %290 : vector<16x128xf32>
    %292 = arith.truncf %291 : vector<16x128xf32> to vector<16x128xbf16>
    %c3_198 = arith.constant 3 : index
    %c0_199 = arith.constant 0 : index
    %c0_200 = arith.constant 0 : index
    %293 = vector.load %arg6[%c3_198, %c0_199, %c0_200] : memref<5x128x128xbf16, #tpu.memory_space<vmem>>, vector<1x128x128xbf16>
    %294 = vector.shape_cast %293 : vector<1x128x128xbf16> to vector<128x128xbf16>
    %cst_201 = arith.constant dense<0.000000e+00> : vector<16x128xf32>
    %295 = tpu.matmul %292, %294, %cst_201 {dimension_numbers = #tpu.dot_dimension_numbers<[1], [0], [0], [1], [0, 0, 1, 1], [], []>} : vector<16x128xbf16>, vector<128x128xbf16>, vector<16x128xf32> -> vector<16x128xf32>
    %296 = arith.addf %281, %295 : vector<16x128xf32>
    %c128_202 = arith.constant 128 : index
    %c0_203 = arith.constant 0 : index
    %297 = vector.load %arg15[%c128_202, %c0_203] : memref<160x256xf32, #tpu.memory_space<vmem>>, vector<16x256xf32>
    %c144_204 = arith.constant 144 : index
    %c0_205 = arith.constant 0 : index
    %298 = vector.load %arg15[%c144_204, %c0_205] : memref<160x256xf32, #tpu.memory_space<vmem>>, vector<16x256xf32>
    %299 = arith.maximumf %297, %298 : vector<16x256xf32>
    %300 = vector.extract_strided_slice %299 {offsets = [0, 0], sizes = [16, 128], strides = [1, 1]} : vector<16x256xf32> to vector<16x128xf32>
    %301 = vector.extract_strided_slice %299 {offsets = [0, 128], sizes = [16, 128], strides = [1, 1]} : vector<16x256xf32> to vector<16x128xf32>
    %302 = arith.maximumf %300, %301 : vector<16x128xf32>
    %303 = vector.broadcast %235 : vector<1x128xf32> to vector<16x128xf32>
    %304 = arith.addf %302, %303 : vector<16x128xf32>
    %cst_206 = arith.constant 0.000000e+00 : f32
    %305 = vector.broadcast %cst_206 : f32 to vector<16x128xf32>
    %306 = arith.maximumf %304, %305 : vector<16x128xf32>
    %307 = arith.truncf %306 : vector<16x128xf32> to vector<16x128xbf16>
    %c4_207 = arith.constant 4 : index
    %c0_208 = arith.constant 0 : index
    %c0_209 = arith.constant 0 : index
    %308 = vector.load %arg6[%c4_207, %c0_208, %c0_209] : memref<5x128x128xbf16, #tpu.memory_space<vmem>>, vector<1x128x128xbf16>
    %309 = vector.shape_cast %308 : vector<1x128x128xbf16> to vector<128x128xbf16>
    %cst_210 = arith.constant dense<0.000000e+00> : vector<16x128xf32>
    %310 = tpu.matmul %307, %309, %cst_210 {dimension_numbers = #tpu.dot_dimension_numbers<[1], [0], [0], [1], [0, 0, 1, 1], [], []>} : vector<16x128xbf16>, vector<128x128xbf16>, vector<16x128xf32> -> vector<16x128xf32>
    %311 = arith.addf %296, %310 : vector<16x128xf32>
    %c0_211 = arith.constant 0 : index
    %c0_212 = arith.constant 0 : index
    %312 = vector.load %arg7[%c0_211, %c0_212] : memref<1x128xf32, #tpu.memory_space<vmem>>, vector<1x128xf32>
    %313 = vector.broadcast %312 : vector<1x128xf32> to vector<16x128xf32>
    %314 = arith.addf %311, %313 : vector<16x128xf32>
    %cst_213 = arith.constant 0.000000e+00 : f32
    %315 = vector.broadcast %cst_213 : f32 to vector<16x128xf32>
    %316 = arith.maximumf %314, %315 : vector<16x128xf32>
    %317 = arith.truncf %316 : vector<16x128xf32> to vector<16x128xbf16>
    %c0_214 = arith.constant 0 : index
    %c0_215 = arith.constant 0 : index
    %318 = vector.load %arg8[%c0_214, %c0_215] : memref<128x128xbf16, #tpu.memory_space<vmem>>, vector<128x128xbf16>
    %cst_216 = arith.constant dense<0.000000e+00> : vector<16x128xf32>
    %319 = tpu.matmul %317, %318, %cst_216 {dimension_numbers = #tpu.dot_dimension_numbers<[1], [0], [0], [1], [0, 0, 1, 1], [], []>} : vector<16x128xbf16>, vector<128x128xbf16>, vector<16x128xf32> -> vector<16x128xf32>
    %c0_217 = arith.constant 0 : index
    %c0_218 = arith.constant 0 : index
    %320 = vector.load %arg9[%c0_217, %c0_218] : memref<1x128xf32, #tpu.memory_space<vmem>>, vector<1x128xf32>
    %321 = vector.broadcast %320 : vector<1x128xf32> to vector<16x128xf32>
    %322 = arith.addf %319, %321 : vector<16x128xf32>
    %cst_219 = arith.constant 0.000000e+00 : f32
    %323 = vector.broadcast %cst_219 : f32 to vector<16x128xf32>
    %324 = arith.maximumf %322, %323 : vector<16x128xf32>
    %325 = arith.truncf %324 : vector<16x128xf32> to vector<16x128xbf16>
    %c0_220 = arith.constant 0 : index
    %c0_221 = arith.constant 0 : index
    %326 = vector.load %arg10[%c0_220, %c0_221] : memref<128x128xbf16, #tpu.memory_space<vmem>>, vector<128x128xbf16>
    %cst_222 = arith.constant dense<0.000000e+00> : vector<16x128xf32>
    %327 = tpu.matmul %325, %326, %cst_222 {dimension_numbers = #tpu.dot_dimension_numbers<[1], [0], [0], [1], [0, 0, 1, 1], [], []>} : vector<16x128xbf16>, vector<128x128xbf16>, vector<16x128xf32> -> vector<16x128xf32>
    %c0_223 = arith.constant 0 : index
    %c0_224 = arith.constant 0 : index
    %328 = vector.load %arg11[%c0_223, %c0_224] : memref<1x128xf32, #tpu.memory_space<vmem>>, vector<1x128xf32>
    %329 = vector.broadcast %328 : vector<1x128xf32> to vector<16x128xf32>
    %330 = arith.addf %327, %329 : vector<16x128xf32>
    %c0_225 = arith.constant 0 : index
    %c0_226 = arith.constant 0 : index
    %331 = vector.load %arg12[%c0_225, %c0_226] : memref<16x128xf32, #tpu.memory_space<vmem>>, vector<16x128xf32>
    tpu.vector_store %arg12[%c0_225, %c0_226], %330 {strides = array<i32>} : memref<16x128xf32, #tpu.memory_space<vmem>>, vector<16x128xf32>,
    return
  }
  func.func @transform_0(%arg0: i32) -> (i32, i32) {
    %c0_i32 = arith.constant 0 : i32
    %c0_i32_0 = arith.constant 0 : i32
    return %arg0, %c0_i32 : i32, i32
  }
  func.func @transform_1(%arg0: i32) -> (i32, i32, i32) {
    %c0_i32 = arith.constant 0 : i32
    %c0_i32_0 = arith.constant 0 : i32
    %c0_i32_1 = arith.constant 0 : i32
    %c0_i32_2 = arith.constant 0 : i32
    return %c0_i32, %c0_i32_0, %c0_i32_1 : i32, i32, i32
  }
  func.func @transform_2(%arg0: i32) -> (i32, i32) {
    %c0_i32 = arith.constant 0 : i32
    %c0_i32_0 = arith.constant 0 : i32
    %c0_i32_1 = arith.constant 0 : i32
    return %c0_i32, %c0_i32_0 : i32, i32
  }
  func.func @transform_3(%arg0: i32) -> (i32, i32, i32) {
    %c0_i32 = arith.constant 0 : i32
    %c0_i32_0 = arith.constant 0 : i32
    %c0_i32_1 = arith.constant 0 : i32
    %c0_i32_2 = arith.constant 0 : i32
    return %c0_i32, %c0_i32_0, %c0_i32_1 : i32, i32, i32
  }
  func.func @transform_4(%arg0: i32) -> (i32, i32) {
    %c0_i32 = arith.constant 0 : i32
    %c0_i32_0 = arith.constant 0 : i32
    %c0_i32_1 = arith.constant 0 : i32
    return %c0_i32, %c0_i32_0 : i32, i32
  }
  func.func @transform_5(%arg0: i32) -> (i32, i32, i32) {
    %c0_i32 = arith.constant 0 : i32
    %c0_i32_0 = arith.constant 0 : i32
    %c0_i32_1 = arith.constant 0 : i32
    %c0_i32_2 = arith.constant 0 : i32
    return %c0_i32, %c0_i32_0, %c0_i32_1 : i32, i32, i32
  }
  func.func @transform_6(%arg0: i32) -> (i32, i32) {
    %c0_i32 = arith.constant 0 : i32
    %c0_i32_0 = arith.constant 0 : i32
    %c0_i32_1 = arith.constant 0 : i32
    return %c0_i32, %c0_i32_0 : i32, i32
  }
  func.func @transform_7(%arg0: i32) -> (i32, i32) {
    %c0_i32 = arith.constant 0 : i32
    %c0_i32_0 = arith.constant 0 : i32
    %c0_i32_1 = arith.constant 0 : i32
    return %c0_i32, %c0_i32_0 : i32, i32
  }
  func.func @transform_8(%arg0: i32) -> (i32, i32) {
    %c0_i32 = arith.constant 0 : i32
    %c0_i32_0 = arith.constant 0 : i32
    %c0_i32_1 = arith.constant 0 : i32
    return %c0_i32, %c0_i32_0 : i32, i32
  }
  func.func @transform_9(%arg0: i32) -> (i32, i32) {
    %c0_i32 = arith.constant 0 : i32
    %c0_i32_0 = arith.constant 0 : i32
    %c0_i32_1 = arith.constant 0 : i32
    return %c0_i32, %c0_i32_0 : i32, i32
  }
  func.func @transform_10(%arg0: i32) -> (i32, i32) {
    %c0_i32 = arith.constant 0 : i32
    %c0_i32_0 = arith.constant 0 : i32
    %c0_i32_1 = arith.constant 0 : i32
    return %c0_i32, %c0_i32_0 : i32, i32
  }
  func.func @transform_11(%arg0: i32) -> (i32, i32) {
    %c0_i32 = arith.constant 0 : i32
    %c0_i32_0 = arith.constant 0 : i32
    return %arg0, %c0_i32 : i32, i32
  }
}

</mosaic_0001>

<llo_original>
// kernel: net_forward.1
$region0: #{net_forward.1}
  #allocation0 [shape = 'u32[]', space=smem, size = 0x4, offset = 0x4, fixed_abs, tag = 'smem constant byte address 0x4 - core index']
  #allocation1 [shape = 'u32[144,128]{1,0:T(1,128)}', space=vmem, size = 0x12000, scoped, tag = 'internal scratch']
  #allocation2 [shape = 'f32[448,256]{1,0:T(8,128)}', space=vmem, size = 0x70000, scoped, tag = 'scratch operand']
  #allocation3 [shape = 'bf16[224,128]{1,0:T(8,128)(2,1)}', space=vmem, size = 0xe000, scoped, tag = 'scratch operand']
  #allocation4 [shape = 'f32[160,256]{1,0:T(8,128)}', space=vmem, size = 0x28000, scoped, tag = 'scratch operand']
  %s0 = inlined_call_operand.vmem [shape: bf16[512,128], index: 0, kind: input, shape index: {}]
  %s1 = inlined_call_operand.vmem [shape: bf16[5,128,256], index: 1, kind: input, shape index: {}]
  %s2 = inlined_call_operand.vmem [shape: f32[1,128], index: 2, kind: input, shape index: {}]
  %s3 = inlined_call_operand.vmem [shape: bf16[5,128,256], index: 3, kind: input, shape index: {}]
  %s4 = inlined_call_operand.vmem [shape: f32[1,128], index: 4, kind: input, shape index: {}]
  %s5 = inlined_call_operand.hbm [shape: bf16[5,128,128], index: 5, kind: input, shape index: {}]
  %s6 = inlined_call_operand.vmem [shape: f32[1,128], index: 6, kind: input, shape index: {}]
  %s7 = inlined_call_operand.vmem [shape: bf16[128,128], index: 7, kind: input, shape index: {}]
  %s8 = inlined_call_operand.vmem [shape: f32[1,128], index: 8, kind: input, shape index: {}]
  %s9 = inlined_call_operand.vmem [shape: bf16[128,128], index: 9, kind: input, shape index: {}]
  %s10 = inlined_call_operand.vmem [shape: f32[1,128], index: 10, kind: input, shape index: {}]
  %s11 = inlined_call_operand.vmem [shape: f32[16,128], index: 11, kind: output, shape index: {}]
  %s12 = sld [smem:[#allocation0]]
  $region58: #{net_forward.1} parent=0
    _
  %s14 = ssub.s32 1, %s12
  %s15 = scalar_select 0, %s14, %s12
  $region1: #{net_forward.1} parent=0
    #allocation5 [shape = 'u8[163840]{0}', space=vmem, size = 0x28000, scoped, tag = 'input window, operand 5, single buffered']
    #allocation6 [shape = 's32[1]{0}', space=sflag, size = 0x4, scoped, tag = 'scoped memory for net_forward.1']
    %16 = vsyncpa [#allocation6], 0
    // Predicated region
    $region2: #{net_forward.1} parent=1 // pred_check
      _
    $region3: #{net_forward.1} parent=1 // pred_check_branch
      %18 = sbr.rel (0) target = $region5
    $region4: #{net_forward.1} parent=1 // pred_region
      _
    $region5: #{net_forward.1} parent=1 // pred_fallthru
      _
    // Predicated region
    $region6: #{net_forward.1} parent=1 // pred_check
      _
    $region7: #{net_forward.1} parent=1 // pred_check_branch
      %20 = sbr.rel (0) target = $region9
    $region8: #{net_forward.1} parent=1 // pred_region
      _
    $region9: #{net_forward.1} parent=1 // pred_fallthru
      _
    // Predicated region
    $region10: #{net_forward.1} parent=1 // pred_check
      _
    $region11: #{net_forward.1} parent=1 // pred_check_branch
      %22 = sbr.rel (0) target = $region13
    $region12: #{net_forward.1} parent=1 // pred_region
      _
    $region13: #{net_forward.1} parent=1 // pred_fallthru
      _
    // Predicated region
    $region14: #{net_forward.1} parent=1 // pred_check
      _
    $region15: #{net_forward.1} parent=1 // pred_check_branch
      %24 = sbr.rel (0) target = $region17
    $region16: #{net_forward.1} parent=1 // pred_region
      _
    $region17: #{net_forward.1} parent=1 // pred_fallthru
      _
    // Predicated region
    $region18: #{net_forward.1} parent=1 // pred_check
      _
    $region19: #{net_forward.1} parent=1 // pred_check_branch
      %26 = sbr.rel (0) target = $region21
    $region20: #{net_forward.1} parent=1 // pred_region
      _
    $region21: #{net_forward.1} parent=1 // pred_fallthru
      _
    // Predicated region
    $region22: #{net_forward.1} parent=1 // pred_check
      _
    $region23: #{net_forward.1} parent=1 // pred_check_branch
      %28 = sbr.rel (0) target = $region25
    $region24: #{net_forward.1} parent=1 // pred_region
      %s30 = ssub.s32 5120, 5120
      %31 = vsyncadd [#allocation6], %s30
      %s32 = sshll.u32 [#allocation5], 4
      %s33 = int_to_ptr.vmem [resolvable:$true] %s32
      %38 = dma.hbm_to_vmem [thread:$0]  %s5, 5120, %s33, [#allocation6], 64, 64, 4
    $region25: #{net_forward.1} parent=1 // pred_fallthru
      _
    // Predicated region
    $region26: #{net_forward.1} parent=1 // pred_check
      _
    $region27: #{net_forward.1} parent=1 // pred_check_branch
      %40 = sbr.rel (0) target = $region29
    $region28: #{net_forward.1} parent=1 // pred_region
      _
    $region29: #{net_forward.1} parent=1 // pred_fallthru
      _
    // Predicated region
    $region30: #{net_forward.1} parent=1 // pred_check
      _
    $region31: #{net_forward.1} parent=1 // pred_check_branch
      %42 = sbr.rel (0) target = $region33
    $region32: #{net_forward.1} parent=1 // pred_region
      _
    $region33: #{net_forward.1} parent=1 // pred_fallthru
      _
    // Predicated region
    $region34: #{net_forward.1} parent=1 // pred_check
      _
    $region35: #{net_forward.1} parent=1 // pred_check_branch
      %44 = sbr.rel (0) target = $region37
    $region36: #{net_forward.1} parent=1 // pred_region
      _
    $region37: #{net_forward.1} parent=1 // pred_fallthru
      _
    // Predicated region
    $region38: #{net_forward.1} parent=1 // pred_check
      _
    $region39: #{net_forward.1} parent=1 // pred_check_branch
      %46 = sbr.rel (0) target = $region41
    $region40: #{net_forward.1} parent=1 // pred_region
      _
    $region41: #{net_forward.1} parent=1 // pred_fallthru
      _
    // Predicated region
    $region42: #{net_forward.1} parent=1 // pred_check
      _
    $region43: #{net_forward.1} parent=1 // pred_check_branch
      %48 = sbr.rel (0) target = $region45
    $region44: #{net_forward.1} parent=1 // pred_region
      _
    $region45: #{net_forward.1} parent=1 // pred_fallthru
      _
    // Predicated region
    $region46: #{net_forward.1} parent=1 // pred_check
      _
    $region47: #{net_forward.1} parent=1 // pred_check_branch
      %50 = sbr.rel (0) target = $region49
    $region48: #{net_forward.1} parent=1 // pred_region
      %51 = dma.done [#allocation6], 5120
    $region49: #{net_forward.1} parent=1 // pred_fallthru
      _
    %v53 = vld [vmem:[%s0] sm:$0xf]
    %v54 = vld [vmem:[%s0 + $0x4] sm:$0xf]
    %v55 = vld [vmem:[%s0 + $0x8] sm:$0xf]
    %v56 = vld [vmem:[%s0 + $0xc] sm:$0xf]
    %v57 = vld [vmem:[%s0 + $0x10] sm:$0xf]
    %v58 = vld [vmem:[%s0 + $0x14] sm:$0xf]
    %v59 = vld [vmem:[%s0 + $0x18] sm:$0xf]
    %v60 = vld [vmem:[%s0 + $0x1c] sm:$0xf]
    %v61 = vld [vmem:[%s0 + $0x20] sm:$0xf]
    %v62 = vld [vmem:[%s0 + $0x24] sm:$0xf]
    %v63 = vld [vmem:[%s0 + $0x28] sm:$0xf]
    %v64 = vld [vmem:[%s0 + $0x2c] sm:$0xf]
    %v65 = vld [vmem:[%s0 + $0x30] sm:$0xf]
    %v66 = vld [vmem:[%s0 + $0x34] sm:$0xf]
    %v67 = vld [vmem:[%s0 + $0x38] sm:$0xf]
    %v68 = vld [vmem:[%s0 + $0x3c] sm:$0xf]
    %v69 = vld [vmem:[%s0 + $0x40] sm:$0xf]
    %v70 = vld [vmem:[%s0 + $0x44] sm:$0xf]
    %v71 = vld [vmem:[%s0 + $0x48] sm:$0xf]
    %v72 = vld [vmem:[%s0 + $0x4c] sm:$0xf]
    %v73 = vld [vmem:[%s0 + $0x50] sm:$0xf]
    %v74 = vld [vmem:[%s0 + $0x54] sm:$0xf]
    %v75 = vld [vmem:[%s0 + $0x58] sm:$0xf]
    %v76 = vld [vmem:[%s0 + $0x5c] sm:$0xf]
    %v77 = vld [vmem:[%s0 + $0x60] sm:$0xf]
    %v78 = vld [vmem:[%s0 + $0x64] sm:$0xf]
    %v79 = vld [vmem:[%s0 + $0x68] sm:$0xf]
    %v80 = vld [vmem:[%s0 + $0x6c] sm:$0xf]
    %v81 = vld [vmem:[%s0 + $0x70] sm:$0xf]
    %v82 = vld [vmem:[%s0 + $0x74] sm:$0xf]
    %v83 = vld [vmem:[%s0 + $0x78] sm:$0xf]
    %v84 = vld [vmem:[%s0 + $0x7c] sm:$0xf]
    %v85 = vld [vmem:[%s0 + $0x80] sm:$0xf]
    %v86 = vld [vmem:[%s0 + $0x84] sm:$0xf]
    %v87 = vld [vmem:[%s0 + $0x88] sm:$0xf]
    %v88 = vld [vmem:[%s0 + $0x8c] sm:$0xf]
    %v89 = vld [vmem:[%s0 + $0x90] sm:$0xf]
    %v90 = vld [vmem:[%s0 + $0x94] sm:$0xf]
    %v91 = vld [vmem:[%s0 + $0x98] sm:$0xf]
    %v92 = vld [vmem:[%s0 + $0x9c] sm:$0xf]
    %v93 = vld [vmem:[%s0 + $0xa0] sm:$0xf]
    %v94 = vld [vmem:[%s0 + $0xa4] sm:$0xf]
    %v95 = vld [vmem:[%s0 + $0xa8] sm:$0xf]
    %v96 = vld [vmem:[%s0 + $0xac] sm:$0xf]
    %v97 = vld [vmem:[%s0 + $0xb0] sm:$0xf]
    %v98 = vld [vmem:[%s0 + $0xb4] sm:$0xf]
    %v99 = vld [vmem:[%s0 + $0xb8] sm:$0xf]
    %v100 = vld [vmem:[%s0 + $0xbc] sm:$0xf]
    %v101 = vld [vmem:[%s0 + $0xc0] sm:$0xf]
    %v102 = vld [vmem:[%s0 + $0xc4] sm:$0xf]
    %v103 = vld [vmem:[%s0 + $0xc8] sm:$0xf]
    %v104 = vld [vmem:[%s0 + $0xcc] sm:$0xf]
    %v105 = vld [vmem:[%s0 + $0xd0] sm:$0xf]
    %v106 = vld [vmem:[%s0 + $0xd4] sm:$0xf]
    %v107 = vld [vmem:[%s0 + $0xd8] sm:$0xf]
    %v108 = vld [vmem:[%s0 + $0xdc] sm:$0xf]
    %v109 = vld [vmem:[%s1] sm:$0xff]
    %v110 = vld [vmem:[%s1 + $0x8] sm:$0xff]
    %v111 = vld [vmem:[%s1 + $0x10] sm:$0xff]
    %v112 = vld [vmem:[%s1 + $0x18] sm:$0xff]
    %v113 = vld [vmem:[%s1 + $0x20] sm:$0xff]
    %v114 = vld [vmem:[%s1 + $0x28] sm:$0xff]
    %v115 = vld [vmem:[%s1 + $0x30] sm:$0xff]
    %v116 = vld [vmem:[%s1 + $0x38] sm:$0xff]
    %v117 = vld [vmem:[%s1 + $0x40] sm:$0xff]
    %v118 = vld [vmem:[%s1 + $0x48] sm:$0xff]
    %v119 = vld [vmem:[%s1 + $0x50] sm:$0xff]
    %v120 = vld [vmem:[%s1 + $0x58] sm:$0xff]
    %v121 = vld [vmem:[%s1 + $0x60] sm:$0xff]
    %v122 = vld [vmem:[%s1 + $0x68] sm:$0xff]
    %v123 = vld [vmem:[%s1 + $0x70] sm:$0xff]
    %v124 = vld [vmem:[%s1 + $0x78] sm:$0xff]
    %v181 = vunpack.c.l.b16 %v53
    %v182 = vunpack.c.l.b16 %v54
    %v183 = vunpack.c.l.b16 %v55
    %v184 = vunpack.c.l.b16 %v56
    %v185 = vunpack.c.l.b16 %v57
    %v186 = vunpack.c.l.b16 %v58
    %v187 = vunpack.c.l.b16 %v59
    %v188 = vunpack.c.l.b16 %v60
    %v189 = vunpack.c.l.b16 %v61
    %v190 = vunpack.c.l.b16 %v62
    %v191 = vunpack.c.l.b16 %v63
    %v192 = vunpack.c.l.b16 %v64
    %v193 = vunpack.c.l.b16 %v65
    %v194 = vunpack.c.l.b16 %v66
    %v195 = vunpack.c.l.b16 %v67
    %v196 = vunpack.c.l.b16 %v68
    %v197 = vunpack.c.l.b16 %v69
    %v198 = vunpack.c.l.b16 %v70
    %v199 = vunpack.c.l.b16 %v71
    %v200 = vunpack.c.l.b16 %v72
    %v201 = vunpack.c.l.b16 %v73
    %v202 = vunpack.c.l.b16 %v74
    %v203 = vunpack.c.l.b16 %v75
    %v204 = vunpack.c.l.b16 %v76
    %v205 = vunpack.c.l.b16 %v77
    %v206 = vunpack.c.l.b16 %v78
    %v207 = vunpack.c.l.b16 %v79
    %v208 = vunpack.c.l.b16 %v80
    %v209 = vunpack.c.l.b16 %v81
    %v210 = vunpack.c.l.b16 %v82
    %v211 = vunpack.c.l.b16 %v83
    %v212 = vunpack.c.l.b16 %v84
    %v213 = vunpack.c.l.b16 %v85
    %v214 = vunpack.c.l.b16 %v86
    %v215 = vunpack.c.l.b16 %v87
    %v216 = vunpack.c.l.b16 %v88
    %v217 = vunpack.c.l.b16 %v89
    %v218 = vunpack.c.l.b16 %v90
    %v219 = vunpack.c.l.b16 %v91
    %v220 = vunpack.c.l.b16 %v92
    %v221 = vunpack.c.l.b16 %v93
    %v222 = vunpack.c.l.b16 %v94
    %v223 = vunpack.c.l.b16 %v95
    %v224 = vunpack.c.l.b16 %v96
    %v225 = vunpack.c.l.b16 %v97
    %v226 = vunpack.c.l.b16 %v98
    %v227 = vunpack.c.l.b16 %v99
    %v228 = vunpack.c.l.b16 %v100
    %v229 = vunpack.c.l.b16 %v101
    %v230 = vunpack.c.l.b16 %v102
    %v231 = vunpack.c.l.b16 %v103
    %v232 = vunpack.c.l.b16 %v104
    %v233 = vunpack.c.l.b16 %v105
    %v234 = vunpack.c.l.b16 %v106
    %v235 = vunpack.c.l.b16 %v107
    %v236 = vunpack.c.l.b16 %v108
    %v237 = vpack.c.b16 %v182, %v181
    %v238 = vpack.c.b16 %v184, %v183
    %v239 = vpack.c.b16 %v186, %v185
    %v240 = vpack.c.b16 %v188, %v187
    %v241 = vpack.c.b16 %v190, %v189
    %v242 = vpack.c.b16 %v192, %v191
    %v243 = vpack.c.b16 %v194, %v193
    %v244 = vpack.c.b16 %v196, %v195
    %v245 = vpack.c.b16 %v198, %v197
    %v246 = vpack.c.b16 %v200, %v199
    %v247 = vpack.c.b16 %v202, %v201
    %v248 = vpack.c.b16 %v204, %v203
    %v249 = vpack.c.b16 %v206, %v205
    %v250 = vpack.c.b16 %v208, %v207
    %v251 = vpack.c.b16 %v210, %v209
    %v252 = vpack.c.b16 %v212, %v211
    %v253 = vpack.c.b16 %v214, %v213
    %v254 = vpack.c.b16 %v216, %v215
    %v255 = vpack.c.b16 %v218, %v217
    %v256 = vpack.c.b16 %v220, %v219
    %v257 = vpack.c.b16 %v222, %v221
    %v258 = vpack.c.b16 %v224, %v223
    %v259 = vpack.c.b16 %v226, %v225
    %v260 = vpack.c.b16 %v228, %v227
    %v261 = vpack.c.b16 %v230, %v229
    %v262 = vpack.c.b16 %v232, %v231
    %v263 = vpack.c.b16 %v234, %v233
    %v264 = vpack.c.b16 %v236, %v235
    %v309 = vunpack.c.l.b16 %v109
    %v310 = vunpack.c.h.b16 %v109
    %v311 = vunpack.c.l.b16 %v110
    %v312 = vunpack.c.h.b16 %v110
    %v313 = vunpack.c.l.b16 %v111
    %v314 = vunpack.c.h.b16 %v111
    %v315 = vunpack.c.l.b16 %v112
    %v316 = vunpack.c.h.b16 %v112
    %v317 = vunpack.c.l.b16 %v113
    %v318 = vunpack.c.h.b16 %v113
    %v319 = vunpack.c.l.b16 %v114
    %v320 = vunpack.c.h.b16 %v114
    %v321 = vunpack.c.l.b16 %v115
    %v322 = vunpack.c.h.b16 %v115
    %v323 = vunpack.c.l.b16 %v116
    %v324 = vunpack.c.h.b16 %v116
    %v325 = vunpack.c.l.b16 %v117
    %v326 = vunpack.c.h.b16 %v117
    %v327 = vunpack.c.l.b16 %v118
    %v328 = vunpack.c.h.b16 %v118
    %v329 = vunpack.c.l.b16 %v119
    %v330 = vunpack.c.h.b16 %v119
    %v331 = vunpack.c.l.b16 %v120
    %v332 = vunpack.c.h.b16 %v120
    %v333 = vunpack.c.l.b16 %v121
    %v334 = vunpack.c.h.b16 %v121
    %v335 = vunpack.c.l.b16 %v122
    %v336 = vunpack.c.h.b16 %v122
    %v337 = vunpack.c.l.b16 %v123
    %v338 = vunpack.c.h.b16 %v123
    %v339 = vunpack.c.l.b16 %v124
    %v340 = vunpack.c.h.b16 %v124
    %v341 = vpack.c.b16 %v311, %v309
    %v342 = vpack.c.b16 %v312, %v310
    %v343 = vpack.c.b16 %v315, %v313
    %v344 = vpack.c.b16 %v316, %v314
    %v345 = vpack.c.b16 %v319, %v317
    %v346 = vpack.c.b16 %v320, %v318
    %v347 = vpack.c.b16 %v323, %v321
    %v348 = vpack.c.b16 %v324, %v322
    %v349 = vpack.c.b16 %v327, %v325
    %v350 = vpack.c.b16 %v328, %v326
    %v351 = vpack.c.b16 %v331, %v329
    %v352 = vpack.c.b16 %v332, %v330
    %v353 = vpack.c.b16 %v335, %v333
    %v354 = vpack.c.b16 %v336, %v334
    %v355 = vpack.c.b16 %v339, %v337
    %v356 = vpack.c.b16 %v340, %v338
    %373 = vmatprep.subr.bf16.mxu0 %v356
    %374 = vmatpush1.bf16.msra.mxu0 %v355
    %375 = vmatprep.subr.bf16.mxu0 %v354
    %376 = vmatpush1.bf16.msra.mxu0 %v353
    %377 = vmatprep.subr.bf16.mxu0 %v352
    %378 = vmatpush1.bf16.msra.mxu0 %v351
    %379 = vmatprep.subr.bf16.mxu0 %v350
    %380 = vmatpush1.bf16.msra.mxu0 %v349
    %381 = vmatprep.subr.bf16.mxu0 %v348
    %382 = vmatpush1.bf16.msra.mxu0 %v347
    %383 = vmatprep.subr.bf16.mxu0 %v346
    %384 = vmatpush1.bf16.msra.mxu0 %v345
    %385 = vmatprep.subr.bf16.mxu0 %v344
    %386 = vmatpush1.bf16.msra.mxu0 %v343
    %387 = vmatprep.subr.bf16.mxu0 %v342
    %388 = vmatpush1.bf16.msra.mxu0 %v341
    %389 = vmatprep.subr.bf16.mxu0 0
    %390 = vmatpush2.bf16.msra.mxu0 0
    %391 = vmatprep.subr.bf16.mxu0 0
    %392 = vmatpush2.bf16.msra.mxu0 0
    %393 = vmatprep.subr.bf16.mxu0 0
    %394 = vmatpush2.bf16.msra.mxu0 0
    %395 = vmatprep.subr.bf16.mxu0 0
    %396 = vmatpush2.bf16.msra.mxu0 0
    %397 = vmatprep.subr.bf16.mxu0 0
    %398 = vmatpush2.bf16.msra.mxu0 0
    %399 = vmatprep.subr.bf16.mxu0 0
    %400 = vmatpush2.bf16.msra.mxu0 0
    %401 = vmatprep.subr.bf16.mxu0 0
    %402 = vmatpush2.bf16.msra.mxu0 0
    %403 = vmatprep.subr.bf16.mxu0 0
    %404 = vmatpush2.bf16.msra.mxu0 0
    %405 = vmatprep.mubr.bf16.mxu0 0
    %406 = vmatmul.mubr.bf16.gmra.mxu0 %v237
    %v407 = vpop.f32.mrf.mxu0
    %v408 = vadd.f32 0.0, %v407
    %v409 = vpop.f32.mrf.mxu0
    %v410 = vadd.f32 0.0, %v409
    %v411 = vpop.f32.mrf.mxu0
    %v412 = vadd.f32 0.0, %v411
    %v413 = vpop.f32.mrf.mxu0
    %v414 = vadd.f32 0.0, %v413
    %415 = vmatprep.mubr.bf16.mxu0 0
    %416 = vmatmul.mubr.bf16.gmra.mxu0 %v238
    %v417 = vpop.f32.mrf.mxu0
    %v418 = vadd.f32 0.0, %v417
    %v419 = vpop.f32.mrf.mxu0
    %v420 = vadd.f32 0.0, %v419
    %v421 = vpop.f32.mrf.mxu0
    %v422 = vadd.f32 0.0, %v421
    %v423 = vpop.f32.mrf.mxu0
    %v424 = vadd.f32 0.0, %v423
    %425 = vmatprep.mubr.bf16.mxu0 0
    %426 = vmatmul.mubr.bf16.gmra.mxu0 %v239
    %v427 = vpop.f32.mrf.mxu0
    %v428 = vadd.f32 0.0, %v427
    %v429 = vpop.f32.mrf.mxu0
    %v430 = vadd.f32 0.0, %v429
    %v431 = vpop.f32.mrf.mxu0
    %v432 = vadd.f32 0.0, %v431
    %v433 = vpop.f32.mrf.mxu0
    %v434 = vadd.f32 0.0, %v433
    %435 = vmatprep.mubr.bf16.mxu0 0
    %436 = vmatmul.mubr.bf16.gmra.mxu0 %v240
    %v437 = vpop.f32.mrf.mxu0
    %v438 = vadd.f32 0.0, %v437
    %v439 = vpop.f32.mrf.mxu0
    %v440 = vadd.f32 0.0, %v439
    %v441 = vpop.f32.mrf.mxu0
    %v442 = vadd.f32 0.0, %v441
    %v443 = vpop.f32.mrf.mxu0
    %v444 = vadd.f32 0.0, %v443
    %445 = vmatprep.mubr.bf16.mxu0 0
    %446 = vmatmul.mubr.bf16.gmra.mxu0 %v241
    %v447 = vpop.f32.mrf.mxu0
    %v448 = vadd.f32 0.0, %v447
    %v449 = vpop.f32.mrf.mxu0
    %v450 = vadd.f32 0.0, %v449
    %v451 = vpop.f32.mrf.mxu0
    %v452 = vadd.f32 0.0, %v451
    %v453 = vpop.f32.mrf.mxu0
    %v454 = vadd.f32 0.0, %v453
    %455 = vmatprep.mubr.bf16.mxu0 0
    %456 = vmatmul.mubr.bf16.gmra.mxu0 %v242
    %v457 = vpop.f32.mrf.mxu0
    %v458 = vadd.f32 0.0, %v457
    %v459 = vpop.f32.mrf.mxu0
    %v460 = vadd.f32 0.0, %v459
    %v461 = vpop.f32.mrf.mxu0
    %v462 = vadd.f32 0.0, %v461
    %v463 = vpop.f32.mrf.mxu0
    %v464 = vadd.f32 0.0, %v463
    %465 = vmatprep.mubr.bf16.mxu0 0
    %466 = vmatmul.mubr.bf16.gmra.mxu0 %v243
    %v467 = vpop.f32.mrf.mxu0
    %v468 = vadd.f32 0.0, %v467
    %v469 = vpop.f32.mrf.mxu0
    %v470 = vadd.f32 0.0, %v469
    %v471 = vpop.f32.mrf.mxu0
    %v472 = vadd.f32 0.0, %v471
    %v473 = vpop.f32.mrf.mxu0
    %v474 = vadd.f32 0.0, %v473
    %475 = vmatprep.mubr.bf16.mxu0 0
    %476 = vmatmul.mubr.bf16.gmra.mxu0 %v244
    %v477 = vpop.f32.mrf.mxu0
    %v478 = vadd.f32 0.0, %v477
    %v479 = vpop.f32.mrf.mxu0
    %v480 = vadd.f32 0.0, %v479
    %v481 = vpop.f32.mrf.mxu0
    %v482 = vadd.f32 0.0, %v481
    %v483 = vpop.f32.mrf.mxu0
    %v484 = vadd.f32 0.0, %v483
    %485 = vmatprep.mubr.bf16.mxu0 0
    %486 = vmatmul.mubr.bf16.gmra.mxu0 %v245
    %v487 = vpop.f32.mrf.mxu0
    %v488 = vadd.f32 0.0, %v487
    %v489 = vpop.f32.mrf.mxu0
    %v490 = vadd.f32 0.0, %v489
    %v491 = vpop.f32.mrf.mxu0
    %v492 = vadd.f32 0.0, %v491
    %v493 = vpop.f32.mrf.mxu0
    %v494 = vadd.f32 0.0, %v493
    %495 = vmatprep.mubr.bf16.mxu0 0
    %496 = vmatmul.mubr.bf16.gmra.mxu0 %v246
    %v497 = vpop.f32.mrf.mxu0
    %v498 = vadd.f32 0.0, %v497
    %v499 = vpop.f32.mrf.mxu0
    %v500 = vadd.f32 0.0, %v499
    %v501 = vpop.f32.mrf.mxu0
    %v502 = vadd.f32 0.0, %v501
    %v503 = vpop.f32.mrf.mxu0
    %v504 = vadd.f32 0.0, %v503
    %505 = vmatprep.mubr.bf16.mxu0 0
    %506 = vmatmul.mubr.bf16.gmra.mxu0 %v247
    %v507 = vpop.f32.mrf.mxu0
    %v508 = vadd.f32 0.0, %v507
    %v509 = vpop.f32.mrf.mxu0
    %v510 = vadd.f32 0.0, %v509
    %v511 = vpop.f32.mrf.mxu0
    %v512 = vadd.f32 0.0, %v511
    %v513 = vpop.f32.mrf.mxu0
    %v514 = vadd.f32 0.0, %v513
    %515 = vmatprep.mubr.bf16.mxu0 0
    %516 = vmatmul.mubr.bf16.gmra.mxu0 %v248
    %v517 = vpop.f32.mrf.mxu0
    %v518 = vadd.f32 0.0, %v517
    %v519 = vpop.f32.mrf.mxu0
    %v520 = vadd.f32 0.0, %v519
    %v521 = vpop.f32.mrf.mxu0
    %v522 = vadd.f32 0.0, %v521
    %v523 = vpop.f32.mrf.mxu0
    %v524 = vadd.f32 0.0, %v523
    %525 = vmatprep.mubr.bf16.mxu0 0
    %526 = vmatmul.mubr.bf16.gmra.mxu0 %v249
    %v527 = vpop.f32.mrf.mxu0
    %v528 = vadd.f32 0.0, %v527
    %v529 = vpop.f32.mrf.mxu0
    %v530 = vadd.f32 0.0, %v529
    %v531 = vpop.f32.mrf.mxu0
    %v532 = vadd.f32 0.0, %v531
    %v533 = vpop.f32.mrf.mxu0
    %v534 = vadd.f32 0.0, %v533
    %535 = vmatprep.mubr.bf16.mxu0 0
    %536 = vmatmul.mubr.bf16.gmra.mxu0 %v250
    %v537 = vpop.f32.mrf.mxu0
    %v538 = vadd.f32 0.0, %v537
    %v539 = vpop.f32.mrf.mxu0
    %v540 = vadd.f32 0.0, %v539
    %v541 = vpop.f32.mrf.mxu0
    %v542 = vadd.f32 0.0, %v541
    %v543 = vpop.f32.mrf.mxu0
    %v544 = vadd.f32 0.0, %v543
    %545 = vmatprep.mubr.bf16.mxu0 0
    %546 = vmatmul.mubr.bf16.gmra.mxu0 %v251
    %v547 = vpop.f32.mrf.mxu0
    %v548 = vadd.f32 0.0, %v547
    %v549 = vpop.f32.mrf.mxu0
    %v550 = vadd.f32 0.0, %v549
    %v551 = vpop.f32.mrf.mxu0
    %v552 = vadd.f32 0.0, %v551
    %v553 = vpop.f32.mrf.mxu0
    %v554 = vadd.f32 0.0, %v553
    %555 = vmatprep.mubr.bf16.mxu0 0
    %556 = vmatmul.mubr.bf16.gmra.mxu0 %v252
    %v557 = vpop.f32.mrf.mxu0
    %v558 = vadd.f32 0.0, %v557
    %v559 = vpop.f32.mrf.mxu0
    %v560 = vadd.f32 0.0, %v559
    %v561 = vpop.f32.mrf.mxu0
    %v562 = vadd.f32 0.0, %v561
    %v563 = vpop.f32.mrf.mxu0
    %v564 = vadd.f32 0.0, %v563
    %565 = vmatprep.mubr.bf16.mxu0 0
    %566 = vmatmul.mubr.bf16.gmra.mxu0 %v253
    %v567 = vpop.f32.mrf.mxu0
    %v568 = vadd.f32 0.0, %v567
    %v569 = vpop.f32.mrf.mxu0
    %v570 = vadd.f32 0.0, %v569
    %v571 = vpop.f32.mrf.mxu0
    %v572 = vadd.f32 0.0, %v571
    %v573 = vpop.f32.mrf.mxu0
    %v574 = vadd.f32 0.0, %v573
    %575 = vmatprep.mubr.bf16.mxu0 0
    %576 = vmatmul.mubr.bf16.gmra.mxu0 %v254
    %v577 = vpop.f32.mrf.mxu0
    %v578 = vadd.f32 0.0, %v577
    %v579 = vpop.f32.mrf.mxu0
    %v580 = vadd.f32 0.0, %v579
    %v581 = vpop.f32.mrf.mxu0
    %v582 = vadd.f32 0.0, %v581
    %v583 = vpop.f32.mrf.mxu0
    %v584 = vadd.f32 0.0, %v583
    %585 = vmatprep.mubr.bf16.mxu0 0
    %586 = vmatmul.mubr.bf16.gmra.mxu0 %v255
    %v587 = vpop.f32.mrf.mxu0
    %v588 = vadd.f32 0.0, %v587
    %v589 = vpop.f32.mrf.mxu0
    %v590 = vadd.f32 0.0, %v589
    %v591 = vpop.f32.mrf.mxu0
    %v592 = vadd.f32 0.0, %v591
    %v593 = vpop.f32.mrf.mxu0
    %v594 = vadd.f32 0.0, %v593
    %595 = vmatprep.mubr.bf16.mxu0 0
    %596 = vmatmul.mubr.bf16.gmra.mxu0 %v256
    %v597 = vpop.f32.mrf.mxu0
    %v598 = vadd.f32 0.0, %v597
    %v599 = vpop.f32.mrf.mxu0
    %v600 = vadd.f32 0.0, %v599
    %v601 = vpop.f32.mrf.mxu0
    %v602 = vadd.f32 0.0, %v601
    %v603 = vpop.f32.mrf.mxu0
    %v604 = vadd.f32 0.0, %v603
    %605 = vmatprep.mubr.bf16.mxu0 0
    %606 = vmatmul.mubr.bf16.gmra.mxu0 %v257
    %v607 = vpop.f32.mrf.mxu0
    %v608 = vadd.f32 0.0, %v607
    %v609 = vpop.f32.mrf.mxu0
    %v610 = vadd.f32 0.0, %v609
    %v611 = vpop.f32.mrf.mxu0
    %v612 = vadd.f32 0.0, %v611
    %v613 = vpop.f32.mrf.mxu0
    %v614 = vadd.f32 0.0, %v613
    %615 = vmatprep.mubr.bf16.mxu0 0
    %616 = vmatmul.mubr.bf16.gmra.mxu0 %v258
    %v617 = vpop.f32.mrf.mxu0
    %v618 = vadd.f32 0.0, %v617
    %v619 = vpop.f32.mrf.mxu0
    %v620 = vadd.f32 0.0, %v619
    %v621 = vpop.f32.mrf.mxu0
    %v622 = vadd.f32 0.0, %v621
    %v623 = vpop.f32.mrf.mxu0
    %v624 = vadd.f32 0.0, %v623
    %625 = vmatprep.mubr.bf16.mxu0 0
    %626 = vmatmul.mubr.bf16.gmra.mxu0 %v259
    %v627 = vpop.f32.mrf.mxu0
    %v628 = vadd.f32 0.0, %v627
    %v629 = vpop.f32.mrf.mxu0
    %v630 = vadd.f32 0.0, %v629
    %v631 = vpop.f32.mrf.mxu0
    %v632 = vadd.f32 0.0, %v631
    %v633 = vpop.f32.mrf.mxu0
    %v634 = vadd.f32 0.0, %v633
    %635 = vmatprep.mubr.bf16.mxu0 0
    %636 = vmatmul.mubr.bf16.gmra.mxu0 %v260
    %v637 = vpop.f32.mrf.mxu0
    %v638 = vadd.f32 0.0, %v637
    %v639 = vpop.f32.mrf.mxu0
    %v640 = vadd.f32 0.0, %v639
    %v641 = vpop.f32.mrf.mxu0
    %v642 = vadd.f32 0.0, %v641
    %v643 = vpop.f32.mrf.mxu0
    %v644 = vadd.f32 0.0, %v643
    %645 = vmatprep.mubr.bf16.mxu0 0
    %646 = vmatmul.mubr.bf16.gmra.mxu0 %v261
    %v647 = vpop.f32.mrf.mxu0
    %v648 = vadd.f32 0.0, %v647
    %v649 = vpop.f32.mrf.mxu0
    %v650 = vadd.f32 0.0, %v649
    %v651 = vpop.f32.mrf.mxu0
    %v652 = vadd.f32 0.0, %v651
    %v653 = vpop.f32.mrf.mxu0
    %v654 = vadd.f32 0.0, %v653
    %655 = vmatprep.mubr.bf16.mxu0 0
    %656 = vmatmul.mubr.bf16.gmra.mxu0 %v262
    %v657 = vpop.f32.mrf.mxu0
    %v658 = vadd.f32 0.0, %v657
    %v659 = vpop.f32.mrf.mxu0
    %v660 = vadd.f32 0.0, %v659
    %v661 = vpop.f32.mrf.mxu0
    %v662 = vadd.f32 0.0, %v661
    %v663 = vpop.f32.mrf.mxu0
    %v664 = vadd.f32 0.0, %v663
    %665 = vmatprep.mubr.bf16.mxu0 0
    %666 = vmatmul.mubr.bf16.gmra.mxu0 %v263
    %v667 = vpop.f32.mrf.mxu0
    %v668 = vadd.f32 0.0, %v667
    %v669 = vpop.f32.mrf.mxu0
    %v670 = vadd.f32 0.0, %v669
    %v671 = vpop.f32.mrf.mxu0
    %v672 = vadd.f32 0.0, %v671
    %v673 = vpop.f32.mrf.mxu0
    %v674 = vadd.f32 0.0, %v673
    %675 = vmatprep.mubr.bf16.mxu0 0
    %676 = vmatmul.mubr.bf16.gmra.mxu0 %v264
    %v677 = vpop.f32.mrf.mxu0
    %v678 = vadd.f32 0.0, %v677
    %v679 = vpop.f32.mrf.mxu0
    %v680 = vadd.f32 0.0, %v679
    %v681 = vpop.f32.mrf.mxu0
    %v682 = vadd.f32 0.0, %v681
    %v683 = vpop.f32.mrf.mxu0
    %v684 = vadd.f32 0.0, %v683
    %685 = vdwg.mxu0
    %686 = vst [vmem:[#allocation2] sm:$0xff] %v408
    %687 = vst [vmem:[#allocation2 + $0x8] sm:$0xff] %v410
    %688 = vst [vmem:[#allocation2 + $0x10] sm:$0xff] %v412
    %689 = vst [vmem:[#allocation2 + $0x18] sm:$0xff] %v414
    %690 = vst [vmem:[#allocation2 + $0x20] sm:$0xff] %v418
    %691 = vst [vmem:[#allocation2 + $0x28] sm:$0xff] %v420
    %692 = vst [vmem:[#allocation2 + $0x30] sm:$0xff] %v422
    %693 = vst [vmem:[#allocation2 + $0x38] sm:$0xff] %v424
    %694 = vst [vmem:[#allocation2 + $0x40] sm:$0xff] %v428
    %695 = vst [vmem:[#allocation2 + $0x48] sm:$0xff] %v430
    %696 = vst [vmem:[#allocation2 + $0x50] sm:$0xff] %v432
    %697 = vst [vmem:[#allocation2 + $0x58] sm:$0xff] %v434
    %698 = vst [vmem:[#allocation2 + $0x60] sm:$0xff] %v438
    %699 = vst [vmem:[#allocation2 + $0x68] sm:$0xff] %v440
    %700 = vst [vmem:[#allocation2 + $0x70] sm:$0xff] %v442
    %701 = vst [vmem:[#allocation2 + $0x78] sm:$0xff] %v444
    %702 = vst [vmem:[#allocation2 + $0x80] sm:$0xff] %v448
    %703 = vst [vmem:[#allocation2 + $0x88] sm:$0xff] %v450
    %704 = vst [vmem:[#allocation2 + $0x90] sm:$0xff] %v452
    %705 = vst [vmem:[#allocation2 + $0x98] sm:$0xff] %v454
    %706 = vst [vmem:[#allocation2 + $0xa0] sm:$0xff] %v458
    %707 = vst [vmem:[#allocation2 + $0xa8] sm:$0xff] %v460
    %708 = vst [vmem:[#allocation2 + $0xb0] sm:$0xff] %v462
    %709 = vst [vmem:[#allocation2 + $0xb8] sm:$0xff] %v464
    %710 = vst [vmem:[#allocation2 + $0xc0] sm:$0xff] %v468
    %711 = vst [vmem:[#allocation2 + $0xc8] sm:$0xff] %v470
    %712 = vst [vmem:[#allocation2 + $0xd0] sm:$0xff] %v472
    %713 = vst [vmem:[#allocation2 + $0xd8] sm:$0xff] %v474
    %714 = vst [vmem:[#allocation2 + $0xe0] sm:$0xff] %v478
    %715 = vst [vmem:[#allocation2 + $0xe8] sm:$0xff] %v480
    %716 = vst [vmem:[#allocation2 + $0xf0] sm:$0xff] %v482
    %717 = vst [vmem:[#allocation2 + $0xf8] sm:$0xff] %v484
    %718 = vst [vmem:[#allocation2 + $0x100] sm:$0xff] %v488
    %719 = vst [vmem:[#allocation2 + $0x108] sm:$0xff] %v490
    %720 = vst [vmem:[#allocation2 + $0x110] sm:$0xff] %v492
    %721 = vst [vmem:[#allocation2 + $0x118] sm:$0xff] %v494
    %722 = vst [vmem:[#allocation2 + $0x120] sm:$0xff] %v498
    %723 = vst [vmem:[#allocation2 + $0x128] sm:$0xff] %v500
    %724 = vst [vmem:[#allocation2 + $0x130] sm:$0xff] %v502
    %725 = vst [vmem:[#allocation2 + $0x138] sm:$0xff] %v504
    %726 = vst [vmem:[#allocation2 + $0x140] sm:$0xff] %v508
    %727 = vst [vmem:[#allocation2 + $0x148] sm:$0xff] %v510
    %728 = vst [vmem:[#allocation2 + $0x150] sm:$0xff] %v512
    %729 = vst [vmem:[#allocation2 + $0x158] sm:$0xff] %v514
    %730 = vst [vmem:[#allocation2 + $0x160] sm:$0xff] %v518
    %731 = vst [vmem:[#allocation2 + $0x168] sm:$0xff] %v520
    %732 = vst [vmem:[#allocation2 + $0x170] sm:$0xff] %v522
    %733 = vst [vmem:[#allocation2 + $0x178] sm:$0xff] %v524
    %734 = vst [vmem:[#allocation2 + $0x180] sm:$0xff] %v528
    %735 = vst [vmem:[#allocation2 + $0x188] sm:$0xff] %v530
    %736 = vst [vmem:[#allocation2 + $0x190] sm:$0xff] %v532
    %737 = vst [vmem:[#allocation2 + $0x198] sm:$0xff] %v534
    %738 = vst [vmem:[#allocation2 + $0x1a0] sm:$0xff] %v538
    %739 = vst [vmem:[#allocation2 + $0x1a8] sm:$0xff] %v540
    %740 = vst [vmem:[#allocation2 + $0x1b0] sm:$0xff] %v542
    %741 = vst [vmem:[#allocation2 + $0x1b8] sm:$0xff] %v544
    %742 = vst [vmem:[#allocation2 + $0x1c0] sm:$0xff] %v548
    %743 = vst [vmem:[#allocation2 + $0x1c8] sm:$0xff] %v550
    %744 = vst [vmem:[#allocation2 + $0x1d0] sm:$0xff] %v552
    %745 = vst [vmem:[#allocation2 + $0x1d8] sm:$0xff] %v554
    %746 = vst [vmem:[#allocation2 + $0x1e0] sm:$0xff] %v558
    %747 = vst [vmem:[#allocation2 + $0x1e8] sm:$0xff] %v560
    %748 = vst [vmem:[#allocation2 + $0x1f0] sm:$0xff] %v562
    %749 = vst [vmem:[#allocation2 + $0x1f8] sm:$0xff] %v564
    %750 = vst [vmem:[#allocation2 + $0x200] sm:$0xff] %v568
    %751 = vst [vmem:[#allocation2 + $0x208] sm:$0xff] %v570
    %752 = vst [vmem:[#allocation2 + $0x210] sm:$0xff] %v572
    %753 = vst [vmem:[#allocation2 + $0x218] sm:$0xff] %v574
    %754 = vst [vmem:[#allocation2 + $0x220] sm:$0xff] %v578
    %755 = vst [vmem:[#allocation2 + $0x228] sm:$0xff] %v580
    %756 = vst [vmem:[#allocation2 + $0x230] sm:$0xff] %v582
    %757 = vst [vmem:[#allocation2 + $0x238] sm:$0xff] %v584
    %758 = vst [vmem:[#allocation2 + $0x240] sm:$0xff] %v588
    %759 = vst [vmem:[#allocation2 + $0x248] sm:$0xff] %v590
    %760 = vst [vmem:[#allocation2 + $0x250] sm:$0xff] %v592
    %761 = vst [vmem:[#allocation2 + $0x258] sm:$0xff] %v594
    %762 = vst [vmem:[#allocation2 + $0x260] sm:$0xff] %v598
    %763 = vst [vmem:[#allocation2 + $0x268] sm:$0xff] %v600
    %764 = vst [vmem:[#allocation2 + $0x270] sm:$0xff] %v602
    %765 = vst [vmem:[#allocation2 + $0x278] sm:$0xff] %v604
    %766 = vst [vmem:[#allocation2 + $0x280] sm:$0xff] %v608
    %767 = vst [vmem:[#allocation2 + $0x288] sm:$0xff] %v610
    %768 = vst [vmem:[#allocation2 + $0x290] sm:$0xff] %v612
    %769 = vst [vmem:[#allocation2 + $0x298] sm:$0xff] %v614
    %770 = vst [vmem:[#allocation2 + $0x2a0] sm:$0xff] %v618
    %771 = vst [vmem:[#allocation2 + $0x2a8] sm:$0xff] %v620
    %772 = vst [vmem:[#allocation2 + $0x2b0] sm:$0xff] %v622
    %773 = vst [vmem:[#allocation2 + $0x2b8] sm:$0xff] %v624
    %774 = vst [vmem:[#allocation2 + $0x2c0] sm:$0xff] %v628
    %775 = vst [vmem:[#allocation2 + $0x2c8] sm:$0xff] %v630
    %776 = vst [vmem:[#allocation2 + $0x2d0] sm:$0xff] %v632
    %777 = vst [vmem:[#allocation2 + $0x2d8] sm:$0xff] %v634
    %778 = vst [vmem:[#allocation2 + $0x2e0] sm:$0xff] %v638
    %779 = vst [vmem:[#allocation2 + $0x2e8] sm:$0xff] %v640
    %780 = vst [vmem:[#allocation2 + $0x2f0] sm:$0xff] %v642
    %781 = vst [vmem:[#allocation2 + $0x2f8] sm:$0xff] %v644
    %782 = vst [vmem:[#allocation2 + $0x300] sm:$0xff] %v648
    %783 = vst [vmem:[#allocation2 + $0x308] sm:$0xff] %v650
    %784 = vst [vmem:[#allocation2 + $0x310] sm:$0xff] %v652
    %785 = vst [vmem:[#allocation2 + $0x318] sm:$0xff] %v654
    %786 = vst [vmem:[#allocation2 + $0x320] sm:$0xff] %v658
    %787 = vst [vmem:[#allocation2 + $0x328] sm:$0xff] %v660
    %788 = vst [vmem:[#allocation2 + $0x330] sm:$0xff] %v662
    %789 = vst [vmem:[#allocation2 + $0x338] sm:$0xff] %v664
    %790 = vst [vmem:[#allocation2 + $0x340] sm:$0xff] %v668
    %791 = vst [vmem:[#allocation2 + $0x348] sm:$0xff] %v670
    %792 = vst [vmem:[#allocation2 + $0x350] sm:$0xff] %v672
    %793 = vst [vmem:[#allocation2 + $0x358] sm:$0xff] %v674
    %794 = vst [vmem:[#allocation2 + $0x360] sm:$0xff] %v678
    %795 = vst [vmem:[#allocation2 + $0x368] sm:$0xff] %v680
    %796 = vst [vmem:[#allocation2 + $0x370] sm:$0xff] %v682
    %797 = vst [vmem:[#allocation2 + $0x378] sm:$0xff] %v684
    %v798 = vld [vmem:[#allocation2] sm:$0xff]
    %v799 = vld [vmem:[#allocation2 + $0x8] sm:$0xff]
    %v800 = vld [vmem:[#allocation2 + $0x10] sm:$0xff]
    %v801 = vld [vmem:[#allocation2 + $0x18] sm:$0xff]
    %v802 = vld [vmem:[#allocation2 + $0x20] sm:$0xff]
    %v803 = vld [vmem:[#allocation2 + $0x28] sm:$0xff]
    %v804 = vld [vmem:[#allocation2 + $0x30] sm:$0xff]
    %v805 = vld [vmem:[#allocation2 + $0x38] sm:$0xff]
    %v806 = vld [vmem:[#allocation2 + $0x40] sm:$0xff]
    %v807 = vld [vmem:[#allocation2 + $0x48] sm:$0xff]
    %v808 = vld [vmem:[#allocation2 + $0x50] sm:$0xff]
    %v809 = vld [vmem:[#allocation2 + $0x58] sm:$0xff]
    %v810 = vld [vmem:[#allocation2 + $0x60] sm:$0xff]
    %v811 = vld [vmem:[#allocation2 + $0x68] sm:$0xff]
    %v812 = vld [vmem:[#allocation2 + $0x70] sm:$0xff]
    %v813 = vld [vmem:[#allocation2 + $0x78] sm:$0xff]
    %v814 = vld [vmem:[#allocation2 + $0x80] sm:$0xff]
    %v815 = vld [vmem:[#allocation2 + $0x88] sm:$0xff]
    %v816 = vld [vmem:[#allocation2 + $0x90] sm:$0xff]
    %v817 = vld [vmem:[#allocation2 + $0x98] sm:$0xff]
    %v818 = vld [vmem:[#allocation2 + $0xa0] sm:$0xff]
    %v819 = vld [vmem:[#allocation2 + $0xa8] sm:$0xff]
    %v820 = vld [vmem:[#allocation2 + $0xb0] sm:$0xff]
    %v821 = vld [vmem:[#allocation2 + $0xb8] sm:$0xff]
    %v822 = vld [vmem:[#allocation2 + $0xc0] sm:$0xff]
    %v823 = vld [vmem:[#allocation2 + $0xc8] sm:$0xff]
    %v824 = vld [vmem:[#allocation2 + $0xd0] sm:$0xff]
    %v825 = vld [vmem:[#allocation2 + $0xd8] sm:$0xff]
    %v826 = vld [vmem:[#allocation2 + $0xe0] sm:$0xff]
    %v827 = vld [vmem:[#allocation2 + $0xe8] sm:$0xff]
    %v828 = vld [vmem:[#allocation2 + $0xf0] sm:$0xff]
    %v829 = vld [vmem:[#allocation2 + $0xf8] sm:$0xff]
    %v830 = vld [vmem:[#allocation2 + $0x100] sm:$0xff]
    %v831 = vld [vmem:[#allocation2 + $0x108] sm:$0xff]
    %v832 = vld [vmem:[#allocation2 + $0x110] sm:$0xff]
    %v833 = vld [vmem:[#allocation2 + $0x118] sm:$0xff]
    %v834 = vld [vmem:[#allocation2 + $0x120] sm:$0xff]
    %v835 = vld [vmem:[#allocation2 + $0x128] sm:$0xff]
    %v836 = vld [vmem:[#allocation2 + $0x130] sm:$0xff]
    %v837 = vld [vmem:[#allocation2 + $0x138] sm:$0xff]
    %v838 = vld [vmem:[#allocation2 + $0x140] sm:$0xff]
    %v839 = vld [vmem:[#allocation2 + $0x148] sm:$0xff]
    %v840 = vld [vmem:[#allocation2 + $0x150] sm:$0xff]
    %v841 = vld [vmem:[#allocation2 + $0x158] sm:$0xff]
    %v842 = vld [vmem:[#allocation2 + $0x160] sm:$0xff]
    %v843 = vld [vmem:[#allocation2 + $0x168] sm:$0xff]
    %v844 = vld [vmem:[#allocation2 + $0x170] sm:$0xff]
    %v845 = vld [vmem:[#allocation2 + $0x178] sm:$0xff]
    %v846 = vld [vmem:[#allocation2 + $0x180] sm:$0xff]
    %v847 = vld [vmem:[#allocation2 + $0x188] sm:$0xff]
    %v848 = vld [vmem:[#allocation2 + $0x190] sm:$0xff]
    %v849 = vld [vmem:[#allocation2 + $0x198] sm:$0xff]
    %v850 = vld [vmem:[#allocation2 + $0x1a0] sm:$0xff]
    %v851 = vld [vmem:[#allocation2 + $0x1a8] sm:$0xff]
    %v852 = vld [vmem:[#allocation2 + $0x1b0] sm:$0xff]
    %v853 = vld [vmem:[#allocation2 + $0x1b8] sm:$0xff]
    %v854 = vld [vmem:[#allocation2 + $0x1c0] sm:$0xff]
    %v855 = vld [vmem:[#allocation2 + $0x1c8] sm:$0xff]
    %v856 = vld [vmem:[#allocation2 + $0x1d0] sm:$0xff]
    %v857 = vld [vmem:[#allocation2 + $0x1d8] sm:$0xff]
    %v858 = vld [vmem:[#allocation2 + $0x1e0] sm:$0xff]
    %v859 = vld [vmem:[#allocation2 + $0x1e8] sm:$0xff]
    %v860 = vld [vmem:[#allocation2 + $0x1f0] sm:$0xff]
    %v861 = vld [vmem:[#allocation2 + $0x1f8] sm:$0xff]
    %v862 = vld [vmem:[#allocation2 + $0x200] sm:$0xff]
    %v863 = vld [vmem:[#allocation2 + $0x208] sm:$0xff]
    %v864 = vld [vmem:[#allocation2 + $0x210] sm:$0xff]
    %v865 = vld [vmem:[#allocation2 + $0x218] sm:$0xff]
    %v866 = vld [vmem:[#allocation2 + $0x220] sm:$0xff]
    %v867 = vld [vmem:[#allocation2 + $0x228] sm:$0xff]
    %v868 = vld [vmem:[#allocation2 + $0x230] sm:$0xff]
    %v869 = vld [vmem:[#allocation2 + $0x238] sm:$0xff]
    %v870 = vld [vmem:[#allocation2 + $0x240] sm:$0xff]
    %v871 = vld [vmem:[#allocation2 + $0x248] sm:$0xff]
    %v872 = vld [vmem:[#allocation2 + $0x250] sm:$0xff]
    %v873 = vld [vmem:[#allocation2 + $0x258] sm:$0xff]
    %v874 = vld [vmem:[#allocation2 + $0x260] sm:$0xff]
    %v875 = vld [vmem:[#allocation2 + $0x268] sm:$0xff]
    %v876 = vld [vmem:[#allocation2 + $0x270] sm:$0xff]
    %v877 = vld [vmem:[#allocation2 + $0x278] sm:$0xff]
    %v878 = vld [vmem:[#allocation2 + $0x280] sm:$0xff]
    %v879 = vld [vmem:[#allocation2 + $0x288] sm:$0xff]
    %v880 = vld [vmem:[#allocation2 + $0x290] sm:$0xff]
    %v881 = vld [vmem:[#allocation2 + $0x298] sm:$0xff]
    %v882 = vld [vmem:[#allocation2 + $0x2a0] sm:$0xff]
    %v883 = vld [vmem:[#allocation2 + $0x2a8] sm:$0xff]
    %v884 = vld [vmem:[#allocation2 + $0x2b0] sm:$0xff]
    %v885 = vld [vmem:[#allocation2 + $0x2b8] sm:$0xff]
    %v886 = vld [vmem:[#allocation2 + $0x2c0] sm:$0xff]
    %v887 = vld [vmem:[#allocation2 + $0x2c8] sm:$0xff]
    %v888 = vld [vmem:[#allocation2 + $0x2d0] sm:$0xff]
    %v889 = vld [vmem:[#allocation2 + $0x2d8] sm:$0xff]
    %v890 = vld [vmem:[#allocation2 + $0x2e0] sm:$0xff]
    %v891 = vld [vmem:[#allocation2 + $0x2e8] sm:$0xff]
    %v892 = vld [vmem:[#allocation2 + $0x2f0] sm:$0xff]
    %v893 = vld [vmem:[#allocation2 + $0x2f8] sm:$0xff]
    %v894 = vld [vmem:[#allocation2 + $0x300] sm:$0xff]
    %v895 = vld [vmem:[#allocation2 + $0x308] sm:$0xff]
    %v896 = vld [vmem:[#allocation2 + $0x310] sm:$0xff]
    %v897 = vld [vmem:[#allocation2 + $0x318] sm:$0xff]
    %v898 = vld [vmem:[#allocation2 + $0x320] sm:$0xff]
    %v899 = vld [vmem:[#allocation2 + $0x328] sm:$0xff]
    %v900 = vld [vmem:[#allocation2 + $0x330] sm:$0xff]
    %v901 = vld [vmem:[#allocation2 + $0x338] sm:$0xff]
    %v902 = vld [vmem:[#allocation2 + $0x340] sm:$0xff]
    %v903 = vld [vmem:[#allocation2 + $0x348] sm:$0xff]
    %v904 = vld [vmem:[#allocation2 + $0x350] sm:$0xff]
    %v905 = vld [vmem:[#allocation2 + $0x358] sm:$0xff]
    %v906 = vld [vmem:[#allocation2 + $0x360] sm:$0xff]
    %v907 = vld [vmem:[#allocation2 + $0x368] sm:$0xff]
    %v908 = vld [vmem:[#allocation2 + $0x370] sm:$0xff]
    %v909 = vld [vmem:[#allocation2 + $0x378] sm:$0xff]
    %v910 = vld [vmem:[%s0 + $0x8] sm:$0xf]
    %v911 = vld [vmem:[%s0 + $0xc] sm:$0xf]
    %v912 = vld [vmem:[%s0 + $0x10] sm:$0xf]
    %v913 = vld [vmem:[%s0 + $0x14] sm:$0xf]
    %v914 = vld [vmem:[%s0 + $0x18] sm:$0xf]
    %v915 = vld [vmem:[%s0 + $0x1c] sm:$0xf]
    %v916 = vld [vmem:[%s0 + $0x20] sm:$0xf]
    %v917 = vld [vmem:[%s0 + $0x24] sm:$0xf]
    %v918 = vld [vmem:[%s0 + $0x28] sm:$0xf]
    %v919 = vld [vmem:[%s0 + $0x2c] sm:$0xf]
    %v920 = vld [vmem:[%s0 + $0x30] sm:$0xf]
    %v921 = vld [vmem:[%s0 + $0x34] sm:$0xf]
    %v922 = vld [vmem:[%s0 + $0x38] sm:$0xf]
    %v923 = vld [vmem:[%s0 + $0x3c] sm:$0xf]
    %v924 = vld [vmem:[%s0 + $0x40] sm:$0xf]
    %v925 = vld [vmem:[%s0 + $0x44] sm:$0xf]
    %v926 = vld [vmem:[%s0 + $0x48] sm:$0xf]
    %v927 = vld [vmem:[%s0 + $0x4c] sm:$0xf]
    %v928 = vld [vmem:[%s0 + $0x50] sm:$0xf]
    %v929 = vld [vmem:[%s0 + $0x54] sm:$0xf]
    %v930 = vld [vmem:[%s0 + $0x58] sm:$0xf]
    %v931 = vld [vmem:[%s0 + $0x5c] sm:$0xf]
    %v932 = vld [vmem:[%s0 + $0x60] sm:$0xf]
    %v933 = vld [vmem:[%s0 + $0x64] sm:$0xf]
    %v934 = vld [vmem:[%s0 + $0x68] sm:$0xf]
    %v935 = vld [vmem:[%s0 + $0x6c] sm:$0xf]
    %v936 = vld [vmem:[%s0 + $0x70] sm:$0xf]
    %v937 = vld [vmem:[%s0 + $0x74] sm:$0xf]
    %v938 = vld [vmem:[%s0 + $0x78] sm:$0xf]
    %v939 = vld [vmem:[%s0 + $0x7c] sm:$0xf]
    %v940 = vld [vmem:[%s0 + $0x80] sm:$0xf]
    %v941 = vld [vmem:[%s0 + $0x84] sm:$0xf]
    %v942 = vld [vmem:[%s0 + $0x88] sm:$0xf]
    %v943 = vld [vmem:[%s0 + $0x8c] sm:$0xf]
    %v944 = vld [vmem:[%s0 + $0x90] sm:$0xf]
    %v945 = vld [vmem:[%s0 + $0x94] sm:$0xf]
    %v946 = vld [vmem:[%s0 + $0x98] sm:$0xf]
    %v947 = vld [vmem:[%s0 + $0x9c] sm:$0xf]
    %v948 = vld [vmem:[%s0 + $0xa0] sm:$0xf]
    %v949 = vld [vmem:[%s0 + $0xa4] sm:$0xf]
    %v950 = vld [vmem:[%s0 + $0xa8] sm:$0xf]
    %v951 = vld [vmem:[%s0 + $0xac] sm:$0xf]
    %v952 = vld [vmem:[%s0 + $0xb0] sm:$0xf]
    %v953 = vld [vmem:[%s0 + $0xb4] sm:$0xf]
    %v954 = vld [vmem:[%s0 + $0xb8] sm:$0xf]
    %v955 = vld [vmem:[%s0 + $0xbc] sm:$0xf]
    %v956 = vld [vmem:[%s0 + $0xc0] sm:$0xf]
    %v957 = vld [vmem:[%s0 + $0xc4] sm:$0xf]
    %v958 = vld [vmem:[%s0 + $0xc8] sm:$0xf]
    %v959 = vld [vmem:[%s0 + $0xcc] sm:$0xf]
    %v960 = vld [vmem:[%s0 + $0xd0] sm:$0xf]
    %v961 = vld [vmem:[%s0 + $0xd4] sm:$0xf]
    %v962 = vld [vmem:[%s0 + $0xd8] sm:$0xf]
    %v963 = vld [vmem:[%s0 + $0xdc] sm:$0xf]
    %v964 = vld [vmem:[%s0 + $0xe0] sm:$0xf]
    %v965 = vld [vmem:[%s0 + $0xe4] sm:$0xf]
    %s966 = scalar_lea.vmem %s1, 128
    %v967 = vld [vmem:[%s966] sm:$0xff]
    %v968 = vld [vmem:[%s966 + $0x8] sm:$0xff]
    %v969 = vld [vmem:[%s966 + $0x10] sm:$0xff]
    %v970 = vld [vmem:[%s966 + $0x18] sm:$0xff]
    %v971 = vld [vmem:[%s966 + $0x20] sm:$0xff]
    %v972 = vld [vmem:[%s966 + $0x28] sm:$0xff]
    %v973 = vld [vmem:[%s966 + $0x30] sm:$0xff]
    %v974 = vld [vmem:[%s966 + $0x38] sm:$0xff]
    %v975 = vld [vmem:[%s966 + $0x40] sm:$0xff]
    %v976 = vld [vmem:[%s966 + $0x48] sm:$0xff]
    %v977 = vld [vmem:[%s966 + $0x50] sm:$0xff]
    %v978 = vld [vmem:[%s966 + $0x58] sm:$0xff]
    %v979 = vld [vmem:[%s966 + $0x60] sm:$0xff]
    %v980 = vld [vmem:[%s966 + $0x68] sm:$0xff]
    %v981 = vld [vmem:[%s966 + $0x70] sm:$0xff]
    %v982 = vld [vmem:[%s966 + $0x78] sm:$0xff]
    %v1039 = vunpack.c.l.b16 %v910
    %v1040 = vunpack.c.l.b16 %v911
    %v1041 = vunpack.c.l.b16 %v912
    %v1042 = vunpack.c.l.b16 %v913
    %v1043 = vunpack.c.l.b16 %v914
    %v1044 = vunpack.c.l.b16 %v915
    %v1045 = vunpack.c.l.b16 %v916
    %v1046 = vunpack.c.l.b16 %v917
    %v1047 = vunpack.c.l.b16 %v918
    %v1048 = vunpack.c.l.b16 %v919
    %v1049 = vunpack.c.l.b16 %v920
    %v1050 = vunpack.c.l.b16 %v921
    %v1051 = vunpack.c.l.b16 %v922
    %v1052 = vunpack.c.l.b16 %v923
    %v1053 = vunpack.c.l.b16 %v924
    %v1054 = vunpack.c.l.b16 %v925
    %v1055 = vunpack.c.l.b16 %v926
    %v1056 = vunpack.c.l.b16 %v927
    %v1057 = vunpack.c.l.b16 %v928
    %v1058 = vunpack.c.l.b16 %v929
    %v1059 = vunpack.c.l.b16 %v930
    %v1060 = vunpack.c.l.b16 %v931
    %v1061 = vunpack.c.l.b16 %v932
    %v1062 = vunpack.c.l.b16 %v933
    %v1063 = vunpack.c.l.b16 %v934
    %v1064 = vunpack.c.l.b16 %v935
    %v1065 = vunpack.c.l.b16 %v936
    %v1066 = vunpack.c.l.b16 %v937
    %v1067 = vunpack.c.l.b16 %v938
    %v1068 = vunpack.c.l.b16 %v939
    %v1069 = vunpack.c.l.b16 %v940
    %v1070 = vunpack.c.l.b16 %v941
    %v1071 = vunpack.c.l.b16 %v942
    %v1072 = vunpack.c.l.b16 %v943
    %v1073 = vunpack.c.l.b16 %v944
    %v1074 = vunpack.c.l.b16 %v945
    %v1075 = vunpack.c.l.b16 %v946
    %v1076 = vunpack.c.l.b16 %v947
    %v1077 = vunpack.c.l.b16 %v948
    %v1078 = vunpack.c.l.b16 %v949
    %v1079 = vunpack.c.l.b16 %v950
    %v1080 = vunpack.c.l.b16 %v951
    %v1081 = vunpack.c.l.b16 %v952
    %v1082 = vunpack.c.l.b16 %v953
    %v1083 = vunpack.c.l.b16 %v954
    %v1084 = vunpack.c.l.b16 %v955
    %v1085 = vunpack.c.l.b16 %v956
    %v1086 = vunpack.c.l.b16 %v957
    %v1087 = vunpack.c.l.b16 %v958
    %v1088 = vunpack.c.l.b16 %v959
    %v1089 = vunpack.c.l.b16 %v960
    %v1090 = vunpack.c.l.b16 %v961
    %v1091 = vunpack.c.l.b16 %v962
    %v1092 = vunpack.c.l.b16 %v963
    %v1093 = vunpack.c.l.b16 %v964
    %v1094 = vunpack.c.l.b16 %v965
    %v1095 = vpack.c.b16 %v1040, %v1039
    %v1096 = vpack.c.b16 %v1042, %v1041
    %v1097 = vpack.c.b16 %v1044, %v1043
    %v1098 = vpack.c.b16 %v1046, %v1045
    %v1099 = vpack.c.b16 %v1048, %v1047
    %v1100 = vpack.c.b16 %v1050, %v1049
    %v1101 = vpack.c.b16 %v1052, %v1051
    %v1102 = vpack.c.b16 %v1054, %v1053
    %v1103 = vpack.c.b16 %v1056, %v1055
    %v1104 = vpack.c.b16 %v1058, %v1057
    %v1105 = vpack.c.b16 %v1060, %v1059
    %v1106 = vpack.c.b16 %v1062, %v1061
    %v1107 = vpack.c.b16 %v1064, %v1063
    %v1108 = vpack.c.b16 %v1066, %v1065
    %v1109 = vpack.c.b16 %v1068, %v1067
    %v1110 = vpack.c.b16 %v1070, %v1069
    %v1111 = vpack.c.b16 %v1072, %v1071
    %v1112 = vpack.c.b16 %v1074, %v1073
    %v1113 = vpack.c.b16 %v1076, %v1075
    %v1114 = vpack.c.b16 %v1078, %v1077
    %v1115 = vpack.c.b16 %v1080, %v1079
    %v1116 = vpack.c.b16 %v1082, %v1081
    %v1117 = vpack.c.b16 %v1084, %v1083
    %v1118 = vpack.c.b16 %v1086, %v1085
    %v1119 = vpack.c.b16 %v1088, %v1087
    %v1120 = vpack.c.b16 %v1090, %v1089
    %v1121 = vpack.c.b16 %v1092, %v1091
    %v1122 = vpack.c.b16 %v1094, %v1093
    %v1167 = vunpack.c.l.b16 %v967
    %v1168 = vunpack.c.h.b16 %v967
    %v1169 = vunpack.c.l.b16 %v968
    %v1170 = vunpack.c.h.b16 %v968
    %v1171 = vunpack.c.l.b16 %v969
    %v1172 = vunpack.c.h.b16 %v969
    %v1173 = vunpack.c.l.b16 %v970
    %v1174 = vunpack.c.h.b16 %v970
    %v1175 = vunpack.c.l.b16 %v971
    %v1176 = vunpack.c.h.b16 %v971
    %v1177 = vunpack.c.l.b16 %v972
    %v1178 = vunpack.c.h.b16 %v972
    %v1179 = vunpack.c.l.b16 %v973
    %v1180 = vunpack.c.h.b16 %v973
    %v1181 = vunpack.c.l.b16 %v974
    %v1182 = vunpack.c.h.b16 %v974
    %v1183 = vunpack.c.l.b16 %v975
    %v1184 = vunpack.c.h.b16 %v975
    %v1185 = vunpack.c.l.b16 %v976
    %v1186 = vunpack.c.h.b16 %v976
    %v1187 = vunpack.c.l.b16 %v977
    %v1188 = vunpack.c.h.b16 %v977
    %v1189 = vunpack.c.l.b16 %v978
    %v1190 = vunpack.c.h.b16 %v978
    %v1191 = vunpack.c.l.b16 %v979
    %v1192 = vunpack.c.h.b16 %v979
    %v1193 = vunpack.c.l.b16 %v980
    %v1194 = vunpack.c.h.b16 %v980
    %v1195 = vunpack.c.l.b16 %v981
    %v1196 = vunpack.c.h.b16 %v981
    %v1197 = vunpack.c.l.b16 %v982
    %v1198 = vunpack.c.h.b16 %v982
    %v1199 = vpack.c.b16 %v1169, %v1167
    %v1200 = vpack.c.b16 %v1170, %v1168
    %v1201 = vpack.c.b16 %v1173, %v1171
    %v1202 = vpack.c.b16 %v1174, %v1172
    %v1203 = vpack.c.b16 %v1177, %v1175
    %v1204 = vpack.c.b16 %v1178, %v1176
    %v1205 = vpack.c.b16 %v1181, %v1179
    %v1206 = vpack.c.b16 %v1182, %v1180
    %v1207 = vpack.c.b16 %v1185, %v1183
    %v1208 = vpack.c.b16 %v1186, %v1184
    %v1209 = vpack.c.b16 %v1189, %v1187
    %v1210 = vpack.c.b16 %v1190, %v1188
    %v1211 = vpack.c.b16 %v1193, %v1191
    %v1212 = vpack.c.b16 %v1194, %v1192
    %v1213 = vpack.c.b16 %v1197, %v1195
    %v1214 = vpack.c.b16 %v1198, %v1196
    %1231 = vmatprep.subr.bf16.mxu0 %v1214
    %1232 = vmatpush1.bf16.msra.mxu0 %v1213
    %1233 = vmatprep.subr.bf16.mxu0 %v1212
    %1234 = vmatpush1.bf16.msra.mxu0 %v1211
    %1235 = vmatprep.subr.bf16.mxu0 %v1210
    %1236 = vmatpush1.bf16.msra.mxu0 %v1209
    %1237 = vmatprep.subr.bf16.mxu0 %v1208
    %1238 = vmatpush1.bf16.msra.mxu0 %v1207
    %1239 = vmatprep.subr.bf16.mxu0 %v1206
    %1240 = vmatpush1.bf16.msra.mxu0 %v1205
    %1241 = vmatprep.subr.bf16.mxu0 %v1204
    %1242 = vmatpush1.bf16.msra.mxu0 %v1203
    %1243 = vmatprep.subr.bf16.mxu0 %v1202
    %1244 = vmatpush1.bf16.msra.mxu0 %v1201
    %1245 = vmatprep.subr.bf16.mxu0 %v1200
    %1246 = vmatpush1.bf16.msra.mxu0 %v1199
    %1247 = vmatprep.subr.bf16.mxu0 0
    %1248 = vmatpush2.bf16.msra.mxu0 0
    %1249 = vmatprep.subr.bf16.mxu0 0
    %1250 = vmatpush2.bf16.msra.mxu0 0
    %1251 = vmatprep.subr.bf16.mxu0 0
    %1252 = vmatpush2.bf16.msra.mxu0 0
    %1253 = vmatprep.subr.bf16.mxu0 0
    %1254 = vmatpush2.bf16.msra.mxu0 0
    %1255 = vmatprep.subr.bf16.mxu0 0
    %1256 = vmatpush2.bf16.msra.mxu0 0
    %1257 = vmatprep.subr.bf16.mxu0 0
    %1258 = vmatpush2.bf16.msra.mxu0 0
    %1259 = vmatprep.subr.bf16.mxu0 0
    %1260 = vmatpush2.bf16.msra.mxu0 0
    %1261 = vmatprep.subr.bf16.mxu0 0
    %1262 = vmatpush2.bf16.msra.mxu0 0
    %1263 = vmatprep.mubr.bf16.mxu0 0
    %1264 = vmatmul.mubr.bf16.gmra.mxu0 %v1095
    %v1265 = vpop.f32.mrf.mxu0
    %v1266 = vadd.f32 0.0, %v1265
    %v1267 = vpop.f32.mrf.mxu0
    %v1268 = vadd.f32 0.0, %v1267
    %v1269 = vpop.f32.mrf.mxu0
    %v1270 = vadd.f32 0.0, %v1269
    %v1271 = vpop.f32.mrf.mxu0
    %v1272 = vadd.f32 0.0, %v1271
    %1273 = vmatprep.mubr.bf16.mxu0 0
    %1274 = vmatmul.mubr.bf16.gmra.mxu0 %v1096
    %v1275 = vpop.f32.mrf.mxu0
    %v1276 = vadd.f32 0.0, %v1275
    %v1277 = vpop.f32.mrf.mxu0
    %v1278 = vadd.f32 0.0, %v1277
    %v1279 = vpop.f32.mrf.mxu0
    %v1280 = vadd.f32 0.0, %v1279
    %v1281 = vpop.f32.mrf.mxu0
    %v1282 = vadd.f32 0.0, %v1281
    %1283 = vmatprep.mubr.bf16.mxu0 0
    %1284 = vmatmul.mubr.bf16.gmra.mxu0 %v1097
    %v1285 = vpop.f32.mrf.mxu0
    %v1286 = vadd.f32 0.0, %v1285
    %v1287 = vpop.f32.mrf.mxu0
    %v1288 = vadd.f32 0.0, %v1287
    %v1289 = vpop.f32.mrf.mxu0
    %v1290 = vadd.f32 0.0, %v1289
    %v1291 = vpop.f32.mrf.mxu0
    %v1292 = vadd.f32 0.0, %v1291
    %1293 = vmatprep.mubr.bf16.mxu0 0
    %1294 = vmatmul.mubr.bf16.gmra.mxu0 %v1098
    %v1295 = vpop.f32.mrf.mxu0
    %v1296 = vadd.f32 0.0, %v1295
    %v1297 = vpop.f32.mrf.mxu0
    %v1298 = vadd.f32 0.0, %v1297
    %v1299 = vpop.f32.mrf.mxu0
    %v1300 = vadd.f32 0.0, %v1299
    %v1301 = vpop.f32.mrf.mxu0
    %v1302 = vadd.f32 0.0, %v1301
    %1303 = vmatprep.mubr.bf16.mxu0 0
    %1304 = vmatmul.mubr.bf16.gmra.mxu0 %v1099
    %v1305 = vpop.f32.mrf.mxu0
    %v1306 = vadd.f32 0.0, %v1305
    %v1307 = vpop.f32.mrf.mxu0
    %v1308 = vadd.f32 0.0, %v1307
    %v1309 = vpop.f32.mrf.mxu0
    %v1310 = vadd.f32 0.0, %v1309
    %v1311 = vpop.f32.mrf.mxu0
    %v1312 = vadd.f32 0.0, %v1311
    %1313 = vmatprep.mubr.bf16.mxu0 0
    %1314 = vmatmul.mubr.bf16.gmra.mxu0 %v1100
    %v1315 = vpop.f32.mrf.mxu0
    %v1316 = vadd.f32 0.0, %v1315
    %v1317 = vpop.f32.mrf.mxu0
    %v1318 = vadd.f32 0.0, %v1317
    %v1319 = vpop.f32.mrf.mxu0
    %v1320 = vadd.f32 0.0, %v1319
    %v1321 = vpop.f32.mrf.mxu0
    %v1322 = vadd.f32 0.0, %v1321
    %1323 = vmatprep.mubr.bf16.mxu0 0
    %1324 = vmatmul.mubr.bf16.gmra.mxu0 %v1101
    %v1325 = vpop.f32.mrf.mxu0
    %v1326 = vadd.f32 0.0, %v1325
    %v1327 = vpop.f32.mrf.mxu0
    %v1328 = vadd.f32 0.0, %v1327
    %v1329 = vpop.f32.mrf.mxu0
    %v1330 = vadd.f32 0.0, %v1329
    %v1331 = vpop.f32.mrf.mxu0
    %v1332 = vadd.f32 0.0, %v1331
    %1333 = vmatprep.mubr.bf16.mxu0 0
    %1334 = vmatmul.mubr.bf16.gmra.mxu0 %v1102
    %v1335 = vpop.f32.mrf.mxu0
    %v1336 = vadd.f32 0.0, %v1335
    %v1337 = vpop.f32.mrf.mxu0
    %v1338 = vadd.f32 0.0, %v1337
    %v1339 = vpop.f32.mrf.mxu0
    %v1340 = vadd.f32 0.0, %v1339
    %v1341 = vpop.f32.mrf.mxu0
    %v1342 = vadd.f32 0.0, %v1341
    %1343 = vmatprep.mubr.bf16.mxu0 0
    %1344 = vmatmul.mubr.bf16.gmra.mxu0 %v1103
    %v1345 = vpop.f32.mrf.mxu0
    %v1346 = vadd.f32 0.0, %v1345
    %v1347 = vpop.f32.mrf.mxu0
    %v1348 = vadd.f32 0.0, %v1347
    %v1349 = vpop.f32.mrf.mxu0
    %v1350 = vadd.f32 0.0, %v1349
    %v1351 = vpop.f32.mrf.mxu0
    %v1352 = vadd.f32 0.0, %v1351
    %1353 = vmatprep.mubr.bf16.mxu0 0
    %1354 = vmatmul.mubr.bf16.gmra.mxu0 %v1104
    %v1355 = vpop.f32.mrf.mxu0
    %v1356 = vadd.f32 0.0, %v1355
    %v1357 = vpop.f32.mrf.mxu0
    %v1358 = vadd.f32 0.0, %v1357
    %v1359 = vpop.f32.mrf.mxu0
    %v1360 = vadd.f32 0.0, %v1359
    %v1361 = vpop.f32.mrf.mxu0
    %v1362 = vadd.f32 0.0, %v1361
    %1363 = vmatprep.mubr.bf16.mxu0 0
    %1364 = vmatmul.mubr.bf16.gmra.mxu0 %v1105
    %v1365 = vpop.f32.mrf.mxu0
    %v1366 = vadd.f32 0.0, %v1365
    %v1367 = vpop.f32.mrf.mxu0
    %v1368 = vadd.f32 0.0, %v1367
    %v1369 = vpop.f32.mrf.mxu0
    %v1370 = vadd.f32 0.0, %v1369
    %v1371 = vpop.f32.mrf.mxu0
    %v1372 = vadd.f32 0.0, %v1371
    %1373 = vmatprep.mubr.bf16.mxu0 0
    %1374 = vmatmul.mubr.bf16.gmra.mxu0 %v1106
    %v1375 = vpop.f32.mrf.mxu0
    %v1376 = vadd.f32 0.0, %v1375
    %v1377 = vpop.f32.mrf.mxu0
    %v1378 = vadd.f32 0.0, %v1377
    %v1379 = vpop.f32.mrf.mxu0
    %v1380 = vadd.f32 0.0, %v1379
    %v1381 = vpop.f32.mrf.mxu0
    %v1382 = vadd.f32 0.0, %v1381
    %1383 = vmatprep.mubr.bf16.mxu0 0
    %1384 = vmatmul.mubr.bf16.gmra.mxu0 %v1107
    %v1385 = vpop.f32.mrf.mxu0
    %v1386 = vadd.f32 0.0, %v1385
    %v1387 = vpop.f32.mrf.mxu0
    %v1388 = vadd.f32 0.0, %v1387
    %v1389 = vpop.f32.mrf.mxu0
    %v1390 = vadd.f32 0.0, %v1389
    %v1391 = vpop.f32.mrf.mxu0
    %v1392 = vadd.f32 0.0, %v1391
    %1393 = vmatprep.mubr.bf16.mxu0 0
    %1394 = vmatmul.mubr.bf16.gmra.mxu0 %v1108
    %v1395 = vpop.f32.mrf.mxu0
    %v1396 = vadd.f32 0.0, %v1395
    %v1397 = vpop.f32.mrf.mxu0
    %v1398 = vadd.f32 0.0, %v1397
    %v1399 = vpop.f32.mrf.mxu0
    %v1400 = vadd.f32 0.0, %v1399
    %v1401 = vpop.f32.mrf.mxu0
    %v1402 = vadd.f32 0.0, %v1401
    %1403 = vmatprep.mubr.bf16.mxu0 0
    %1404 = vmatmul.mubr.bf16.gmra.mxu0 %v1109
    %v1405 = vpop.f32.mrf.mxu0
    %v1406 = vadd.f32 0.0, %v1405
    %v1407 = vpop.f32.mrf.mxu0
    %v1408 = vadd.f32 0.0, %v1407
    %v1409 = vpop.f32.mrf.mxu0
    %v1410 = vadd.f32 0.0, %v1409
    %v1411 = vpop.f32.mrf.mxu0
    %v1412 = vadd.f32 0.0, %v1411
    %1413 = vmatprep.mubr.bf16.mxu0 0
    %1414 = vmatmul.mubr.bf16.gmra.mxu0 %v1110
    %v1415 = vpop.f32.mrf.mxu0
    %v1416 = vadd.f32 0.0, %v1415
    %v1417 = vpop.f32.mrf.mxu0
    %v1418 = vadd.f32 0.0, %v1417
    %v1419 = vpop.f32.mrf.mxu0
    %v1420 = vadd.f32 0.0, %v1419
    %v1421 = vpop.f32.mrf.mxu0
    %v1422 = vadd.f32 0.0, %v1421
    %1423 = vmatprep.mubr.bf16.mxu0 0
    %1424 = vmatmul.mubr.bf16.gmra.mxu0 %v1111
    %v1425 = vpop.f32.mrf.mxu0
    %v1426 = vadd.f32 0.0, %v1425
    %v1427 = vpop.f32.mrf.mxu0
    %v1428 = vadd.f32 0.0, %v1427
    %v1429 = vpop.f32.mrf.mxu0
    %v1430 = vadd.f32 0.0, %v1429
    %v1431 = vpop.f32.mrf.mxu0
    %v1432 = vadd.f32 0.0, %v1431
    %1433 = vmatprep.mubr.bf16.mxu0 0
    %1434 = vmatmul.mubr.bf16.gmra.mxu0 %v1112
    %v1435 = vpop.f32.mrf.mxu0
    %v1436 = vadd.f32 0.0, %v1435
    %v1437 = vpop.f32.mrf.mxu0
    %v1438 = vadd.f32 0.0, %v1437
    %v1439 = vpop.f32.mrf.mxu0
    %v1440 = vadd.f32 0.0, %v1439
    %v1441 = vpop.f32.mrf.mxu0
    %v1442 = vadd.f32 0.0, %v1441
    %1443 = vmatprep.mubr.bf16.mxu0 0
    %1444 = vmatmul.mubr.bf16.gmra.mxu0 %v1113
    %v1445 = vpop.f32.mrf.mxu0
    %v1446 = vadd.f32 0.0, %v1445
    %v1447 = vpop.f32.mrf.mxu0
    %v1448 = vadd.f32 0.0, %v1447
    %v1449 = vpop.f32.mrf.mxu0
    %v1450 = vadd.f32 0.0, %v1449
    %v1451 = vpop.f32.mrf.mxu0
    %v1452 = vadd.f32 0.0, %v1451
    %1453 = vmatprep.mubr.bf16.mxu0 0
    %1454 = vmatmul.mubr.bf16.gmra.mxu0 %v1114
    %v1455 = vpop.f32.mrf.mxu0
    %v1456 = vadd.f32 0.0, %v1455
    %v1457 = vpop.f32.mrf.mxu0
    %v1458 = vadd.f32 0.0, %v1457
    %v1459 = vpop.f32.mrf.mxu0
    %v1460 = vadd.f32 0.0, %v1459
    %v1461 = vpop.f32.mrf.mxu0
    %v1462 = vadd.f32 0.0, %v1461
    %1463 = vmatprep.mubr.bf16.mxu0 0
    %1464 = vmatmul.mubr.bf16.gmra.mxu0 %v1115
    %v1465 = vpop.f32.mrf.mxu0
    %v1466 = vadd.f32 0.0, %v1465
    %v1467 = vpop.f32.mrf.mxu0
    %v1468 = vadd.f32 0.0, %v1467
    %v1469 = vpop.f32.mrf.mxu0
    %v1470 = vadd.f32 0.0, %v1469
    %v1471 = vpop.f32.mrf.mxu0
    %v1472 = vadd.f32 0.0, %v1471
    %1473 = vmatprep.mubr.bf16.mxu0 0
    %1474 = vmatmul.mubr.bf16.gmra.mxu0 %v1116
    %v1475 = vpop.f32.mrf.mxu0
    %v1476 = vadd.f32 0.0, %v1475
    %v1477 = vpop.f32.mrf.mxu0
    %v1478 = vadd.f32 0.0, %v1477
    %v1479 = vpop.f32.mrf.mxu0
    %v1480 = vadd.f32 0.0, %v1479
    %v1481 = vpop.f32.mrf.mxu0
    %v1482 = vadd.f32 0.0, %v1481
    %1483 = vmatprep.mubr.bf16.mxu0 0
    %1484 = vmatmul.mubr.bf16.gmra.mxu0 %v1117
    %v1485 = vpop.f32.mrf.mxu0
    %v1486 = vadd.f32 0.0, %v1485
    %v1487 = vpop.f32.mrf.mxu0
    %v1488 = vadd.f32 0.0, %v1487
    %v1489 = vpop.f32.mrf.mxu0
    %v1490 = vadd.f32 0.0, %v1489
    %v1491 = vpop.f32.mrf.mxu0
    %v1492 = vadd.f32 0.0, %v1491
    %1493 = vmatprep.mubr.bf16.mxu0 0
    %1494 = vmatmul.mubr.bf16.gmra.mxu0 %v1118
    %v1495 = vpop.f32.mrf.mxu0
    %v1496 = vadd.f32 0.0, %v1495
    %v1497 = vpop.f32.mrf.mxu0
    %v1498 = vadd.f32 0.0, %v1497
    %v1499 = vpop.f32.mrf.mxu0
    %v1500 = vadd.f32 0.0, %v1499
    %v1501 = vpop.f32.mrf.mxu0
    %v1502 = vadd.f32 0.0, %v1501
    %1503 = vmatprep.mubr.bf16.mxu0 0
    %1504 = vmatmul.mubr.bf16.gmra.mxu0 %v1119
    %v1505 = vpop.f32.mrf.mxu0
    %v1506 = vadd.f32 0.0, %v1505
    %v1507 = vpop.f32.mrf.mxu0
    %v1508 = vadd.f32 0.0, %v1507
    %v1509 = vpop.f32.mrf.mxu0
    %v1510 = vadd.f32 0.0, %v1509
    %v1511 = vpop.f32.mrf.mxu0
    %v1512 = vadd.f32 0.0, %v1511
    %1513 = vmatprep.mubr.bf16.mxu0 0
    %1514 = vmatmul.mubr.bf16.gmra.mxu0 %v1120
    %v1515 = vpop.f32.mrf.mxu0
    %v1516 = vadd.f32 0.0, %v1515
    %v1517 = vpop.f32.mrf.mxu0
    %v1518 = vadd.f32 0.0, %v1517
    %v1519 = vpop.f32.mrf.mxu0
    %v1520 = vadd.f32 0.0, %v1519
    %v1521 = vpop.f32.mrf.mxu0
    %v1522 = vadd.f32 0.0, %v1521
    %1523 = vmatprep.mubr.bf16.mxu0 0
    %1524 = vmatmul.mubr.bf16.gmra.mxu0 %v1121
    %v1525 = vpop.f32.mrf.mxu0
    %v1526 = vadd.f32 0.0, %v1525
    %v1527 = vpop.f32.mrf.mxu0
    %v1528 = vadd.f32 0.0, %v1527
    %v1529 = vpop.f32.mrf.mxu0
    %v1530 = vadd.f32 0.0, %v1529
    %v1531 = vpop.f32.mrf.mxu0
    %v1532 = vadd.f32 0.0, %v1531
    %1533 = vmatprep.mubr.bf16.mxu0 0
    %1534 = vmatmul.mubr.bf16.gmra.mxu0 %v1122
    %v1535 = vpop.f32.mrf.mxu0
    %v1536 = vadd.f32 0.0, %v1535
    %v1537 = vpop.f32.mrf.mxu0
    %v1538 = vadd.f32 0.0, %v1537
    %v1539 = vpop.f32.mrf.mxu0
    %v1540 = vadd.f32 0.0, %v1539
    %v1541 = vpop.f32.mrf.mxu0
    %v1542 = vadd.f32 0.0, %v1541
    %1543 = vdwg.mxu0
    %v1544 = vadd.f32 %v798, %v1266
    %v1545 = vadd.f32 %v799, %v1268
    %v1546 = vadd.f32 %v800, %v1270
    %v1547 = vadd.f32 %v801, %v1272
    %v1548 = vadd.f32 %v802, %v1276
    %v1549 = vadd.f32 %v803, %v1278
    %v1550 = vadd.f32 %v804, %v1280
    %v1551 = vadd.f32 %v805, %v1282
    %v1552 = vadd.f32 %v806, %v1286
    %v1553 = vadd.f32 %v807, %v1288
    %v1554 = vadd.f32 %v808, %v1290
    %v1555 = vadd.f32 %v809, %v1292
    %v1556 = vadd.f32 %v810, %v1296
    %v1557 = vadd.f32 %v811, %v1298
    %v1558 = vadd.f32 %v812, %v1300
    %v1559 = vadd.f32 %v813, %v1302
    %v1560 = vadd.f32 %v814, %v1306
    %v1561 = vadd.f32 %v815, %v1308
    %v1562 = vadd.f32 %v816, %v1310
    %v1563 = vadd.f32 %v817, %v1312
    %v1564 = vadd.f32 %v818, %v1316
    %v1565 = vadd.f32 %v819, %v1318
    %v1566 = vadd.f32 %v820, %v1320
    %v1567 = vadd.f32 %v821, %v1322
    %v1568 = vadd.f32 %v822, %v1326
    %v1569 = vadd.f32 %v823, %v1328
    %v1570 = vadd.f32 %v824, %v1330
    %v1571 = vadd.f32 %v825, %v1332
    %v1572 = vadd.f32 %v826, %v1336
    %v1573 = vadd.f32 %v827, %v1338
    %v1574 = vadd.f32 %v828, %v1340
    %v1575 = vadd.f32 %v829, %v1342
    %v1576 = vadd.f32 %v830, %v1346
    %v1577 = vadd.f32 %v831, %v1348
    %v1578 = vadd.f32 %v832, %v1350
    %v1579 = vadd.f32 %v833, %v1352
    %v1580 = vadd.f32 %v834, %v1356
    %v1581 = vadd.f32 %v835, %v1358
    %v1582 = vadd.f32 %v836, %v1360
    %v1583 = vadd.f32 %v837, %v1362
    %v1584 = vadd.f32 %v838, %v1366
    %v1585 = vadd.f32 %v839, %v1368
    %v1586 = vadd.f32 %v840, %v1370
    %v1587 = vadd.f32 %v841, %v1372
    %v1588 = vadd.f32 %v842, %v1376
    %v1589 = vadd.f32 %v843, %v1378
    %v1590 = vadd.f32 %v844, %v1380
    %v1591 = vadd.f32 %v845, %v1382
    %v1592 = vadd.f32 %v846, %v1386
    %v1593 = vadd.f32 %v847, %v1388
    %v1594 = vadd.f32 %v848, %v1390
    %v1595 = vadd.f32 %v849, %v1392
    %v1596 = vadd.f32 %v850, %v1396
    %v1597 = vadd.f32 %v851, %v1398
    %v1598 = vadd.f32 %v852, %v1400
    %v1599 = vadd.f32 %v853, %v1402
    %v1600 = vadd.f32 %v854, %v1406
    %v1601 = vadd.f32 %v855, %v1408
    %v1602 = vadd.f32 %v856, %v1410
    %v1603 = vadd.f32 %v857, %v1412
    %v1604 = vadd.f32 %v858, %v1416
    %v1605 = vadd.f32 %v859, %v1418
    %v1606 = vadd.f32 %v860, %v1420
    %v1607 = vadd.f32 %v861, %v1422
    %v1608 = vadd.f32 %v862, %v1426
    %v1609 = vadd.f32 %v863, %v1428
    %v1610 = vadd.f32 %v864, %v1430
    %v1611 = vadd.f32 %v865, %v1432
    %v1612 = vadd.f32 %v866, %v1436
    %v1613 = vadd.f32 %v867, %v1438
    %v1614 = vadd.f32 %v868, %v1440
    %v1615 = vadd.f32 %v869, %v1442
    %v1616 = vadd.f32 %v870, %v1446
    %v1617 = vadd.f32 %v871, %v1448
    %v1618 = vadd.f32 %v872, %v1450
    %v1619 = vadd.f32 %v873, %v1452
    %v1620 = vadd.f32 %v874, %v1456
    %v1621 = vadd.f32 %v875, %v1458
    %v1622 = vadd.f32 %v876, %v1460
    %v1623 = vadd.f32 %v877, %v1462
    %v1624 = vadd.f32 %v878, %v1466
    %v1625 = vadd.f32 %v879, %v1468
    %v1626 = vadd.f32 %v880, %v1470
    %v1627 = vadd.f32 %v881, %v1472
    %v1628 = vadd.f32 %v882, %v1476
    %v1629 = vadd.f32 %v883, %v1478
    %v1630 = vadd.f32 %v884, %v1480
    %v1631 = vadd.f32 %v885, %v1482
    %v1632 = vadd.f32 %v886, %v1486
    %v1633 = vadd.f32 %v887, %v1488
    %v1634 = vadd.f32 %v888, %v1490
    %v1635 = vadd.f32 %v889, %v1492
    %v1636 = vadd.f32 %v890, %v1496
    %v1637 = vadd.f32 %v891, %v1498
    %v1638 = vadd.f32 %v892, %v1500
    %v1639 = vadd.f32 %v893, %v1502
    %v1640 = vadd.f32 %v894, %v1506
    %v1641 = vadd.f32 %v895, %v1508
    %v1642 = vadd.f32 %v896, %v1510
    %v1643 = vadd.f32 %v897, %v1512
    %v1644 = vadd.f32 %v898, %v1516
    %v1645 = vadd.f32 %v899, %v1518
    %v1646 = vadd.f32 %v900, %v1520
    %v1647 = vadd.f32 %v901, %v1522
    %v1648 = vadd.f32 %v902, %v1526
    %v1649 = vadd.f32 %v903, %v1528
    %v1650 = vadd.f32 %v904, %v1530
    %v1651 = vadd.f32 %v905, %v1532
    %v1652 = vadd.f32 %v906, %v1536
    %v1653 = vadd.f32 %v907, %v1538
    %v1654 = vadd.f32 %v908, %v1540
    %v1655 = vadd.f32 %v909, %v1542
    %1656 = vst [vmem:[#allocation2] sm:$0xff] %v1544
    %1657 = vst [vmem:[#allocation2 + $0x8] sm:$0xff] %v1545
    %1658 = vst [vmem:[#allocation2 + $0x10] sm:$0xff] %v1546
    %1659 = vst [vmem:[#allocation2 + $0x18] sm:$0xff] %v1547
    %1660 = vst [vmem:[#allocation2 + $0x20] sm:$0xff] %v1548
    %1661 = vst [vmem:[#allocation2 + $0x28] sm:$0xff] %v1549
    %1662 = vst [vmem:[#allocation2 + $0x30] sm:$0xff] %v1550
    %1663 = vst [vmem:[#allocation2 + $0x38] sm:$0xff] %v1551
    %1664 = vst [vmem:[#allocation2 + $0x40] sm:$0xff] %v1552
    %1665 = vst [vmem:[#allocation2 + $0x48] sm:$0xff] %v1553
    %1666 = vst [vmem:[#allocation2 + $0x50] sm:$0xff] %v1554
    %1667 = vst [vmem:[#allocation2 + $0x58] sm:$0xff] %v1555
    %1668 = vst [vmem:[#allocation2 + $0x60] sm:$0xff] %v1556
    %1669 = vst [vmem:[#allocation2 + $0x68] sm:$0xff] %v1557
    %1670 = vst [vmem:[#allocation2 + $0x70] sm:$0xff] %v1558
    %1671 = vst [vmem:[#allocation2 + $0x78] sm:$0xff] %v1559
    %1672 = vst [vmem:[#allocation2 + $0x80] sm:$0xff] %v1560
    %1673 = vst [vmem:[#allocation2 + $0x88] sm:$0xff] %v1561
    %1674 = vst [vmem:[#allocation2 + $0x90] sm:$0xff] %v1562
    %1675 = vst [vmem:[#allocation2 + $0x98] sm:$0xff] %v1563
    %1676 = vst [vmem:[#allocation2 + $0xa0] sm:$0xff] %v1564
    %1677 = vst [vmem:[#allocation2 + $0xa8] sm:$0xff] %v1565
    %1678 = vst [vmem:[#allocation2 + $0xb0] sm:$0xff] %v1566
    %1679 = vst [vmem:[#allocation2 + $0xb8] sm:$0xff] %v1567
    %1680 = vst [vmem:[#allocation2 + $0xc0] sm:$0xff] %v1568
    %1681 = vst [vmem:[#allocation2 + $0xc8] sm:$0xff] %v1569
    %1682 = vst [vmem:[#allocation2 + $0xd0] sm:$0xff] %v1570
    %1683 = vst [vmem:[#allocation2 + $0xd8] sm:$0xff] %v1571
    %1684 = vst [vmem:[#allocation2 + $0xe0] sm:$0xff] %v1572
    %1685 = vst [vmem:[#allocation2 + $0xe8] sm:$0xff] %v1573
    %1686 = vst [vmem:[#allocation2 + $0xf0] sm:$0xff] %v1574
    %1687 = vst [vmem:[#allocation2 + $0xf8] sm:$0xff] %v1575
    %1688 = vst [vmem:[#allocation2 + $0x100] sm:$0xff] %v1576
    %1689 = vst [vmem:[#allocation2 + $0x108] sm:$0xff] %v1577
    %1690 = vst [vmem:[#allocation2 + $0x110] sm:$0xff] %v1578
    %1691 = vst [vmem:[#allocation2 + $0x118] sm:$0xff] %v1579
    %1692 = vst [vmem:[#allocation2 + $0x120] sm:$0xff] %v1580
    %1693 = vst [vmem:[#allocation2 + $0x128] sm:$0xff] %v1581
    %1694 = vst [vmem:[#allocation2 + $0x130] sm:$0xff] %v1582
    %1695 = vst [vmem:[#allocation2 + $0x138] sm:$0xff] %v1583
    %1696 = vst [vmem:[#allocation2 + $0x140] sm:$0xff] %v1584
    %1697 = vst [vmem:[#allocation2 + $0x148] sm:$0xff] %v1585
    %1698 = vst [vmem:[#allocation2 + $0x150] sm:$0xff] %v1586
    %1699 = vst [vmem:[#allocation2 + $0x158] sm:$0xff] %v1587
    %1700 = vst [vmem:[#allocation2 + $0x160] sm:$0xff] %v1588
    %1701 = vst [vmem:[#allocation2 + $0x168] sm:$0xff] %v1589
    %1702 = vst [vmem:[#allocation2 + $0x170] sm:$0xff] %v1590
    %1703 = vst [vmem:[#allocation2 + $0x178] sm:$0xff] %v1591
    %1704 = vst [vmem:[#allocation2 + $0x180] sm:$0xff] %v1592
    %1705 = vst [vmem:[#allocation2 + $0x188] sm:$0xff] %v1593
    %1706 = vst [vmem:[#allocation2 + $0x190] sm:$0xff] %v1594
    %1707 = vst [vmem:[#allocation2 + $0x198] sm:$0xff] %v1595
    %1708 = vst [vmem:[#allocation2 + $0x1a0] sm:$0xff] %v1596
    %1709 = vst [vmem:[#allocation2 + $0x1a8] sm:$0xff] %v1597
    %1710 = vst [vmem:[#allocation2 + $0x1b0] sm:$0xff] %v1598
    %1711 = vst [vmem:[#allocation2 + $0x1b8] sm:$0xff] %v1599
    %1712 = vst [vmem:[#allocation2 + $0x1c0] sm:$0xff] %v1600
    %1713 = vst [vmem:[#allocation2 + $0x1c8] sm:$0xff] %v1601
    %1714 = vst [vmem:[#allocation2 + $0x1d0] sm:$0xff] %v1602
    %1715 = vst [vmem:[#allocation2 + $0x1d8] sm:$0xff] %v1603
    %1716 = vst [vmem:[#allocation2 + $0x1e0] sm:$0xff] %v1604
    %1717 = vst [vmem:[#allocation2 + $0x1e8] sm:$0xff] %v1605
    %1718 = vst [vmem:[#allocation2 + $0x1f0] sm:$0xff] %v1606
    %1719 = vst [vmem:[#allocation2 + $0x1f8] sm:$0xff] %v1607
    %1720 = vst [vmem:[#allocation2 + $0x200] sm:$0xff] %v1608
    %1721 = vst [vmem:[#allocation2 + $0x208] sm:$0xff] %v1609
    %1722 = vst [vmem:[#allocation2 + $0x210] sm:$0xff] %v1610
    %1723 = vst [vmem:[#allocation2 + $0x218] sm:$0xff] %v1611
    %1724 = vst [vmem:[#allocation2 + $0x220] sm:$0xff] %v1612
    %1725 = vst [vmem:[#allocation2 + $0x228] sm:$0xff] %v1613
    %1726 = vst [vmem:[#allocation2 + $0x230] sm:$0xff] %v1614
    %1727 = vst [vmem:[#allocation2 + $0x238] sm:$0xff] %v1615
    %1728 = vst [vmem:[#allocation2 + $0x240] sm:$0xff] %v1616
    %1729 = vst [vmem:[#allocation2 + $0x248] sm:$0xff] %v1617
    %1730 = vst [vmem:[#allocation2 + $0x250] sm:$0xff] %v1618
    %1731 = vst [vmem:[#allocation2 + $0x258] sm:$0xff] %v1619
    %1732 = vst [vmem:[#allocation2 + $0x260] sm:$0xff] %v1620
    %1733 = vst [vmem:[#allocation2 + $0x268] sm:$0xff] %v1621
    %1734 = vst [vmem:[#allocation2 + $0x270] sm:$0xff] %v1622
    %1735 = vst [vmem:[#allocation2 + $0x278] sm:$0xff] %v1623
    %1736 = vst [vmem:[#allocation2 + $0x280] sm:$0xff] %v1624
    %1737 = vst [vmem:[#allocation2 + $0x288] sm:$0xff] %v1625
    %1738 = vst [vmem:[#allocation2 + $0x290] sm:$0xff] %v1626
    %1739 = vst [vmem:[#allocation2 + $0x298] sm:$0xff] %v1627
    %1740 = vst [vmem:[#allocation2 + $0x2a0] sm:$0xff] %v1628
    %1741 = vst [vmem:[#allocation2 + $0x2a8] sm:$0xff] %v1629
    %1742 = vst [vmem:[#allocation2 + $0x2b0] sm:$0xff] %v1630
    %1743 = vst [vmem:[#allocation2 + $0x2b8] sm:$0xff] %v1631
    %1744 = vst [vmem:[#allocation2 + $0x2c0] sm:$0xff] %v1632
    %1745 = vst [vmem:[#allocation2 + $0x2c8] sm:$0xff] %v1633
    %1746 = vst [vmem:[#allocation2 + $0x2d0] sm:$0xff] %v1634
    %1747 = vst [vmem:[#allocation2 + $0x2d8] sm:$0xff] %v1635
    %1748 = vst [vmem:[#allocation2 + $0x2e0] sm:$0xff] %v1636
    %1749 = vst [vmem:[#allocation2 + $0x2e8] sm:$0xff] %v1637
    %1750 = vst [vmem:[#allocation2 + $0x2f0] sm:$0xff] %v1638
    %1751 = vst [vmem:[#allocation2 + $0x2f8] sm:$0xff] %v1639
    %1752 = vst [vmem:[#allocation2 + $0x300] sm:$0xff] %v1640
    %1753 = vst [vmem:[#allocation2 + $0x308] sm:$0xff] %v1641
    %1754 = vst [vmem:[#allocation2 + $0x310] sm:$0xff] %v1642
    %1755 = vst [vmem:[#allocation2 + $0x318] sm:$0xff] %v1643
    %1756 = vst [vmem:[#allocation2 + $0x320] sm:$0xff] %v1644
    %1757 = vst [vmem:[#allocation2 + $0x328] sm:$0xff] %v1645
    %1758 = vst [vmem:[#allocation2 + $0x330] sm:$0xff] %v1646
    %1759 = vst [vmem:[#allocation2 + $0x338] sm:$0xff] %v1647
    %1760 = vst [vmem:[#allocation2 + $0x340] sm:$0xff] %v1648
    %1761 = vst [vmem:[#allocation2 + $0x348] sm:$0xff] %v1649
    %1762 = vst [vmem:[#allocation2 + $0x350] sm:$0xff] %v1650
    %1763 = vst [vmem:[#allocation2 + $0x358] sm:$0xff] %v1651
    %1764 = vst [vmem:[#allocation2 + $0x360] sm:$0xff] %v1652
    %1765 = vst [vmem:[#allocation2 + $0x368] sm:$0xff] %v1653
    %1766 = vst [vmem:[#allocation2 + $0x370] sm:$0xff] %v1654
    %1767 = vst [vmem:[#allocation2 + $0x378] sm:$0xff] %v1655
    %v1768 = vld [vmem:[#allocation2] sm:$0xff]
    %v1769 = vld [vmem:[#allocation2 + $0x8] sm:$0xff]
    %v1770 = vld [vmem:[#allocation2 + $0x10] sm:$0xff]
    %v1771 = vld [vmem:[#allocation2 + $0x18] sm:$0xff]
    %v1772 = vld [vmem:[#allocation2 + $0x20] sm:$0xff]
    %v1773 = vld [vmem:[#allocation2 + $0x28] sm:$0xff]
    %v1774 = vld [vmem:[#allocation2 + $0x30] sm:$0xff]
    %v1775 = vld [vmem:[#allocation2 + $0x38] sm:$0xff]
    %v1776 = vld [vmem:[#allocation2 + $0x40] sm:$0xff]
    %v1777 = vld [vmem:[#allocation2 + $0x48] sm:$0xff]
    %v1778 = vld [vmem:[#allocation2 + $0x50] sm:$0xff]
    %v1779 = vld [vmem:[#allocation2 + $0x58] sm:$0xff]
    %v1780 = vld [vmem:[#allocation2 + $0x60] sm:$0xff]
    %v1781 = vld [vmem:[#allocation2 + $0x68] sm:$0xff]
    %v1782 = vld [vmem:[#allocation2 + $0x70] sm:$0xff]
    %v1783 = vld [vmem:[#allocation2 + $0x78] sm:$0xff]
    %v1784 = vld [vmem:[#allocation2 + $0x80] sm:$0xff]
    %v1785 = vld [vmem:[#allocation2 + $0x88] sm:$0xff]
    %v1786 = vld [vmem:[#allocation2 + $0x90] sm:$0xff]
    %v1787 = vld [vmem:[#allocation2 + $0x98] sm:$0xff]
    %v1788 = vld [vmem:[#allocation2 + $0xa0] sm:$0xff]
    %v1789 = vld [vmem:[#allocation2 + $0xa8] sm:$0xff]
    %v1790 = vld [vmem:[#allocation2 + $0xb0] sm:$0xff]
    %v1791 = vld [vmem:[#allocation2 + $0xb8] sm:$0xff]
    %v1792 = vld [vmem:[#allocation2 + $0xc0] sm:$0xff]
    %v1793 = vld [vmem:[#allocation2 + $0xc8] sm:$0xff]
    %v1794 = vld [vmem:[#allocation2 + $0xd0] sm:$0xff]
    %v1795 = vld [vmem:[#allocation2 + $0xd8] sm:$0xff]
    %v1796 = vld [vmem:[#allocation2 + $0xe0] sm:$0xff]
    %v1797 = vld [vmem:[#allocation2 + $0xe8] sm:$0xff]
    %v1798 = vld [vmem:[#allocation2 + $0xf0] sm:$0xff]
    %v1799 = vld [vmem:[#allocation2 + $0xf8] sm:$0xff]
    %v1800 = vld [vmem:[#allocation2 + $0x100] sm:$0xff]
    %v1801 = vld [vmem:[#allocation2 + $0x108] sm:$0xff]
    %v1802 = vld [vmem:[#allocation2 + $0x110] sm:$0xff]
    %v1803 = vld [vmem:[#allocation2 + $0x118] sm:$0xff]
    %v1804 = vld [vmem:[#allocation2 + $0x120] sm:$0xff]
    %v1805 = vld [vmem:[#allocation2 + $0x128] sm:$0xff]
    %v1806 = vld [vmem:[#allocation2 + $0x130] sm:$0xff]
    %v1807 = vld [vmem:[#allocation2 + $0x138] sm:$0xff]
    %v1808 = vld [vmem:[#allocation2 + $0x140] sm:$0xff]
    %v1809 = vld [vmem:[#allocation2 + $0x148] sm:$0xff]
    %v1810 = vld [vmem:[#allocation2 + $0x150] sm:$0xff]
    %v1811 = vld [vmem:[#allocation2 + $0x158] sm:$0xff]
    %v1812 = vld [vmem:[#allocation2 + $0x160] sm:$0xff]
    %v1813 = vld [vmem:[#allocation2 + $0x168] sm:$0xff]
    %v1814 = vld [vmem:[#allocation2 + $0x170] sm:$0xff]
    %v1815 = vld [vmem:[#allocation2 + $0x178] sm:$0xff]
    %v1816 = vld [vmem:[#allocation2 + $0x180] sm:$0xff]
    %v1817 = vld [vmem:[#allocation2 + $0x188] sm:$0xff]
    %v1818 = vld [vmem:[#allocation2 + $0x190] sm:$0xff]
    %v1819 = vld [vmem:[#allocation2 + $0x198] sm:$0xff]
    %v1820 = vld [vmem:[#allocation2 + $0x1a0] sm:$0xff]
    %v1821 = vld [vmem:[#allocation2 + $0x1a8] sm:$0xff]
    %v1822 = vld [vmem:[#allocation2 + $0x1b0] sm:$0xff]
    %v1823 = vld [vmem:[#allocation2 + $0x1b8] sm:$0xff]
    %v1824 = vld [vmem:[#allocation2 + $0x1c0] sm:$0xff]
    %v1825 = vld [vmem:[#allocation2 + $0x1c8] sm:$0xff]
    %v1826 = vld [vmem:[#allocation2 + $0x1d0] sm:$0xff]
    %v1827 = vld [vmem:[#allocation2 + $0x1d8] sm:$0xff]
    %v1828 = vld [vmem:[#allocation2 + $0x1e0] sm:$0xff]
    %v1829 = vld [vmem:[#allocation2 + $0x1e8] sm:$0xff]
    %v1830 = vld [vmem:[#allocation2 + $0x1f0] sm:$0xff]
    %v1831 = vld [vmem:[#allocation2 + $0x1f8] sm:$0xff]
    %v1832 = vld [vmem:[#allocation2 + $0x200] sm:$0xff]
    %v1833 = vld [vmem:[#allocation2 + $0x208] sm:$0xff]
    %v1834 = vld [vmem:[#allocation2 + $0x210] sm:$0xff]
    %v1835 = vld [vmem:[#allocation2 + $0x218] sm:$0xff]
    %v1836 = vld [vmem:[#allocation2 + $0x220] sm:$0xff]
    %v1837 = vld [vmem:[#allocation2 + $0x228] sm:$0xff]
    %v1838 = vld [vmem:[#allocation2 + $0x230] sm:$0xff]
    %v1839 = vld [vmem:[#allocation2 + $0x238] sm:$0xff]
    %v1840 = vld [vmem:[#allocation2 + $0x240] sm:$0xff]
    %v1841 = vld [vmem:[#allocation2 + $0x248] sm:$0xff]
    %v1842 = vld [vmem:[#allocation2 + $0x250] sm:$0xff]
    %v1843 = vld [vmem:[#allocation2 + $0x258] sm:$0xff]
    %v1844 = vld [vmem:[#allocation2 + $0x260] sm:$0xff]
    %v1845 = vld [vmem:[#allocation2 + $0x268] sm:$0xff]
    %v1846 = vld [vmem:[#allocation2 + $0x270] sm:$0xff]
    %v1847 = vld [vmem:[#allocation2 + $0x278] sm:$0xff]
    %v1848 = vld [vmem:[#allocation2 + $0x280] sm:$0xff]
    %v1849 = vld [vmem:[#allocation2 + $0x288] sm:$0xff]
    %v1850 = vld [vmem:[#allocation2 + $0x290] sm:$0xff]
    %v1851 = vld [vmem:[#allocation2 + $0x298] sm:$0xff]
    %v1852 = vld [vmem:[#allocation2 + $0x2a0] sm:$0xff]
    %v1853 = vld [vmem:[#allocation2 + $0x2a8] sm:$0xff]
    %v1854 = vld [vmem:[#allocation2 + $0x2b0] sm:$0xff]
    %v1855 = vld [vmem:[#allocation2 + $0x2b8] sm:$0xff]
    %v1856 = vld [vmem:[#allocation2 + $0x2c0] sm:$0xff]
    %v1857 = vld [vmem:[#allocation2 + $0x2c8] sm:$0xff]
    %v1858 = vld [vmem:[#allocation2 + $0x2d0] sm:$0xff]
    %v1859 = vld [vmem:[#allocation2 + $0x2d8] sm:$0xff]
    %v1860 = vld [vmem:[#allocation2 + $0x2e0] sm:$0xff]
    %v1861 = vld [vmem:[#allocation2 + $0x2e8] sm:$0xff]
    %v1862 = vld [vmem:[#allocation2 + $0x2f0] sm:$0xff]
    %v1863 = vld [vmem:[#allocation2 + $0x2f8] sm:$0xff]
    %v1864 = vld [vmem:[#allocation2 + $0x300] sm:$0xff]
    %v1865 = vld [vmem:[#allocation2 + $0x308] sm:$0xff]
    %v1866 = vld [vmem:[#allocation2 + $0x310] sm:$0xff]
    %v1867 = vld [vmem:[#allocation2 + $0x318] sm:$0xff]
    %v1868 = vld [vmem:[#allocation2 + $0x320] sm:$0xff]
    %v1869 = vld [vmem:[#allocation2 + $0x328] sm:$0xff]
    %v1870 = vld [vmem:[#allocation2 + $0x330] sm:$0xff]
    %v1871 = vld [vmem:[#allocation2 + $0x338] sm:$0xff]
    %v1872 = vld [vmem:[#allocation2 + $0x340] sm:$0xff]
    %v1873 = vld [vmem:[#allocation2 + $0x348] sm:$0xff]
    %v1874 = vld [vmem:[#allocation2 + $0x350] sm:$0xff]
    %v1875 = vld [vmem:[#allocation2 + $0x358] sm:$0xff]
    %v1876 = vld [vmem:[#allocation2 + $0x360] sm:$0xff]
    %v1877 = vld [vmem:[#allocation2 + $0x368] sm:$0xff]
    %v1878 = vld [vmem:[#allocation2 + $0x370] sm:$0xff]
    %v1879 = vld [vmem:[#allocation2 + $0x378] sm:$0xff]
    %v1880 = vld [vmem:[%s0 + $0x10] sm:$0xf]
    %v1881 = vld [vmem:[%s0 + $0x14] sm:$0xf]
    %v1882 = vld [vmem:[%s0 + $0x18] sm:$0xf]
    %v1883 = vld [vmem:[%s0 + $0x1c] sm:$0xf]
    %v1884 = vld [vmem:[%s0 + $0x20] sm:$0xf]
    %v1885 = vld [vmem:[%s0 + $0x24] sm:$0xf]
    %v1886 = vld [vmem:[%s0 + $0x28] sm:$0xf]
    %v1887 = vld [vmem:[%s0 + $0x2c] sm:$0xf]
    %v1888 = vld [vmem:[%s0 + $0x30] sm:$0xf]
    %v1889 = vld [vmem:[%s0 + $0x34] sm:$0xf]
    %v1890 = vld [vmem:[%s0 + $0x38] sm:$0xf]
    %v1891 = vld [vmem:[%s0 + $0x3c] sm:$0xf]
    %v1892 = vld [vmem:[%s0 + $0x40] sm:$0xf]
    %v1893 = vld [vmem:[%s0 + $0x44] sm:$0xf]
    %v1894 = vld [vmem:[%s0 + $0x48] sm:$0xf]
    %v1895 = vld [vmem:[%s0 + $0x4c] sm:$0xf]
    %v1896 = vld [vmem:[%s0 + $0x50] sm:$0xf]
    %v1897 = vld [vmem:[%s0 + $0x54] sm:$0xf]
    %v1898 = vld [vmem:[%s0 + $0x58] sm:$0xf]
    %v1899 = vld [vmem:[%s0 + $0x5c] sm:$0xf]
    %v1900 = vld [vmem:[%s0 + $0x60] sm:$0xf]
    %v1901 = vld [vmem:[%s0 + $0x64] sm:$0xf]
    %v1902 = vld [vmem:[%s0 + $0x68] sm:$0xf]
    %v1903 = vld [vmem:[%s0 + $0x6c] sm:$0xf]
    %v1904 = vld [vmem:[%s0 + $0x70] sm:$0xf]
    %v1905 = vld [vmem:[%s0 + $0x74] sm:$0xf]
    %v1906 = vld [vmem:[%s0 + $0x78] sm:$0xf]
    %v1907 = vld [vmem:[%s0 + $0x7c] sm:$0xf]
    %v1908 = vld [vmem:[%s0 + $0x80] sm:$0xf]
    %v1909 = vld [vmem:[%s0 + $0x84] sm:$0xf]
    %v1910 = vld [vmem:[%s0 + $0x88] sm:$0xf]
    %v1911 = vld [vmem:[%s0 + $0x8c] sm:$0xf]
    %v1912 = vld [vmem:[%s0 + $0x90] sm:$0xf]
    %v1913 = vld [vmem:[%s0 + $0x94] sm:$0xf]
    %v1914 = vld [vmem:[%s0 + $0x98] sm:$0xf]
    %v1915 = vld [vmem:[%s0 + $0x9c] sm:$0xf]
    %v1916 = vld [vmem:[%s0 + $0xa0] sm:$0xf]
    %v1917 = vld [vmem:[%s0 + $0xa4] sm:$0xf]
    %v1918 = vld [vmem:[%s0 + $0xa8] sm:$0xf]
    %v1919 = vld [vmem:[%s0 + $0xac] sm:$0xf]
    %v1920 = vld [vmem:[%s0 + $0xb0] sm:$0xf]
    %v1921 = vld [vmem:[%s0 + $0xb4] sm:$0xf]
    %v1922 = vld [vmem:[%s0 + $0xb8] sm:$0xf]
    %v1923 = vld [vmem:[%s0 + $0xbc] sm:$0xf]
    %v1924 = vld [vmem:[%s0 + $0xc0] sm:$0xf]
    %v1925 = vld [vmem:[%s0 + $0xc4] sm:$0xf]
    %v1926 = vld [vmem:[%s0 + $0xc8] sm:$0xf]
    %v1927 = vld [vmem:[%s0 + $0xcc] sm:$0xf]
    %v1928 = vld [vmem:[%s0 + $0xd0] sm:$0xf]
    %v1929 = vld [vmem:[%s0 + $0xd4] sm:$0xf]
    %v1930 = vld [vmem:[%s0 + $0xd8] sm:$0xf]
    %v1931 = vld [vmem:[%s0 + $0xdc] sm:$0xf]
    %v1932 = vld [vmem:[%s0 + $0xe0] sm:$0xf]
    %v1933 = vld [vmem:[%s0 + $0xe4] sm:$0xf]
    %v1934 = vld [vmem:[%s0 + $0xe8] sm:$0xf]
    %v1935 = vld [vmem:[%s0 + $0xec] sm:$0xf]
    %s1936 = scalar_lea.vmem %s1, 256
    %v1937 = vld [vmem:[%s1936] sm:$0xff]
    %v1938 = vld [vmem:[%s1936 + $0x8] sm:$0xff]
    %v1939 = vld [vmem:[%s1936 + $0x10] sm:$0xff]
    %v1940 = vld [vmem:[%s1936 + $0x18] sm:$0xff]
    %v1941 = vld [vmem:[%s1936 + $0x20] sm:$0xff]
    %v1942 = vld [vmem:[%s1936 + $0x28] sm:$0xff]
    %v1943 = vld [vmem:[%s1936 + $0x30] sm:$0xff]
    %v1944 = vld [vmem:[%s1936 + $0x38] sm:$0xff]
    %v1945 = vld [vmem:[%s1936 + $0x40] sm:$0xff]
    %v1946 = vld [vmem:[%s1936 + $0x48] sm:$0xff]
    %v1947 = vld [vmem:[%s1936 + $0x50] sm:$0xff]
    %v1948 = vld [vmem:[%s1936 + $0x58] sm:$0xff]
    %v1949 = vld [vmem:[%s1936 + $0x60] sm:$0xff]
    %v1950 = vld [vmem:[%s1936 + $0x68] sm:$0xff]
    %v1951 = vld [vmem:[%s1936 + $0x70] sm:$0xff]
    %v1952 = vld [vmem:[%s1936 + $0x78] sm:$0xff]
    %v2009 = vunpack.c.l.b16 %v1880
    %v2010 = vunpack.c.l.b16 %v1881
    %v2011 = vunpack.c.l.b16 %v1882
    %v2012 = vunpack.c.l.b16 %v1883
    %v2013 = vunpack.c.l.b16 %v1884
    %v2014 = vunpack.c.l.b16 %v1885
    %v2015 = vunpack.c.l.b16 %v1886
    %v2016 = vunpack.c.l.b16 %v1887
    %v2017 = vunpack.c.l.b16 %v1888
    %v2018 = vunpack.c.l.b16 %v1889
    %v2019 = vunpack.c.l.b16 %v1890
    %v2020 = vunpack.c.l.b16 %v1891
    %v2021 = vunpack.c.l.b16 %v1892
    %v2022 = vunpack.c.l.b16 %v1893
    %v2023 = vunpack.c.l.b16 %v1894
    %v2024 = vunpack.c.l.b16 %v1895
    %v2025 = vunpack.c.l.b16 %v1896
    %v2026 = vunpack.c.l.b16 %v1897
    %v2027 = vunpack.c.l.b16 %v1898
    %v2028 = vunpack.c.l.b16 %v1899
    %v2029 = vunpack.c.l.b16 %v1900
    %v2030 = vunpack.c.l.b16 %v1901
    %v2031 = vunpack.c.l.b16 %v1902
    %v2032 = vunpack.c.l.b16 %v1903
    %v2033 = vunpack.c.l.b16 %v1904
    %v2034 = vunpack.c.l.b16 %v1905
    %v2035 = vunpack.c.l.b16 %v1906
    %v2036 = vunpack.c.l.b16 %v1907
    %v2037 = vunpack.c.l.b16 %v1908
    %v2038 = vunpack.c.l.b16 %v1909
    %v2039 = vunpack.c.l.b16 %v1910
    %v2040 = vunpack.c.l.b16 %v1911
    %v2041 = vunpack.c.l.b16 %v1912
    %v2042 = vunpack.c.l.b16 %v1913
    %v2043 = vunpack.c.l.b16 %v1914
    %v2044 = vunpack.c.l.b16 %v1915
    %v2045 = vunpack.c.l.b16 %v1916
    %v2046 = vunpack.c.l.b16 %v1917
    %v2047 = vunpack.c.l.b16 %v1918
    %v2048 = vunpack.c.l.b16 %v1919
    %v2049 = vunpack.c.l.b16 %v1920
    %v2050 = vunpack.c.l.b16 %v1921
    %v2051 = vunpack.c.l.b16 %v1922
    %v2052 = vunpack.c.l.b16 %v1923
    %v2053 = vunpack.c.l.b16 %v1924
    %v2054 = vunpack.c.l.b16 %v1925
    %v2055 = vunpack.c.l.b16 %v1926
    %v2056 = vunpack.c.l.b16 %v1927
    %v2057 = vunpack.c.l.b16 %v1928
    %v2058 = vunpack.c.l.b16 %v1929
    %v2059 = vunpack.c.l.b16 %v1930
    %v2060 = vunpack.c.l.b16 %v1931
    %v2061 = vunpack.c.l.b16 %v1932
    %v2062 = vunpack.c.l.b16 %v1933
    %v2063 = vunpack.c.l.b16 %v1934
    %v2064 = vunpack.c.l.b16 %v1935
    %v2065 = vpack.c.b16 %v2010, %v2009
    %v2066 = vpack.c.b16 %v2012, %v2011
    %v2067 = vpack.c.b16 %v2014, %v2013
    %v2068 = vpack.c.b16 %v2016, %v2015
    %v2069 = vpack.c.b16 %v2018, %v2017
    %v2070 = vpack.c.b16 %v2020, %v2019
    %v2071 = vpack.c.b16 %v2022, %v2021
    %v2072 = vpack.c.b16 %v2024, %v2023
    %v2073 = vpack.c.b16 %v2026, %v2025
    %v2074 = vpack.c.b16 %v2028, %v2027
    %v2075 = vpack.c.b16 %v2030, %v2029
    %v2076 = vpack.c.b16 %v2032, %v2031
    %v2077 = vpack.c.b16 %v2034, %v2033
    %v2078 = vpack.c.b16 %v2036, %v2035
    %v2079 = vpack.c.b16 %v2038, %v2037
    %v2080 = vpack.c.b16 %v2040, %v2039
    %v2081 = vpack.c.b16 %v2042, %v2041
    %v2082 = vpack.c.b16 %v2044, %v2043
    %v2083 = vpack.c.b16 %v2046, %v2045
    %v2084 = vpack.c.b16 %v2048, %v2047
    %v2085 = vpack.c.b16 %v2050, %v2049
    %v2086 = vpack.c.b16 %v2052, %v2051
    %v2087 = vpack.c.b16 %v2054, %v2053
    %v2088 = vpack.c.b16 %v2056, %v2055
    %v2089 = vpack.c.b16 %v2058, %v2057
    %v2090 = vpack.c.b16 %v2060, %v2059
    %v2091 = vpack.c.b16 %v2062, %v2061
    %v2092 = vpack.c.b16 %v2064, %v2063
    %v2137 = vunpack.c.l.b16 %v1937
    %v2138 = vunpack.c.h.b16 %v1937
    %v2139 = vunpack.c.l.b16 %v1938
    %v2140 = vunpack.c.h.b16 %v1938
    %v2141 = vunpack.c.l.b16 %v1939
    %v2142 = vunpack.c.h.b16 %v1939
    %v2143 = vunpack.c.l.b16 %v1940
    %v2144 = vunpack.c.h.b16 %v1940
    %v2145 = vunpack.c.l.b16 %v1941
    %v2146 = vunpack.c.h.b16 %v1941
    %v2147 = vunpack.c.l.b16 %v1942
    %v2148 = vunpack.c.h.b16 %v1942
    %v2149 = vunpack.c.l.b16 %v1943
    %v2150 = vunpack.c.h.b16 %v1943
    %v2151 = vunpack.c.l.b16 %v1944
    %v2152 = vunpack.c.h.b16 %v1944
    %v2153 = vunpack.c.l.b16 %v1945
    %v2154 = vunpack.c.h.b16 %v1945
    %v2155 = vunpack.c.l.b16 %v1946
    %v2156 = vunpack.c.h.b16 %v1946
    %v2157 = vunpack.c.l.b16 %v1947
    %v2158 = vunpack.c.h.b16 %v1947
    %v2159 = vunpack.c.l.b16 %v1948
    %v2160 = vunpack.c.h.b16 %v1948
    %v2161 = vunpack.c.l.b16 %v1949
    %v2162 = vunpack.c.h.b16 %v1949
    %v2163 = vunpack.c.l.b16 %v1950
    %v2164 = vunpack.c.h.b16 %v1950
    %v2165 = vunpack.c.l.b16 %v1951
    %v2166 = vunpack.c.h.b16 %v1951
    %v2167 = vunpack.c.l.b16 %v1952
    %v2168 = vunpack.c.h.b16 %v1952
    %v2169 = vpack.c.b16 %v2139, %v2137
    %v2170 = vpack.c.b16 %v2140, %v2138
    %v2171 = vpack.c.b16 %v2143, %v2141
    %v2172 = vpack.c.b16 %v2144, %v2142
    %v2173 = vpack.c.b16 %v2147, %v2145
    %v2174 = vpack.c.b16 %v2148, %v2146
    %v2175 = vpack.c.b16 %v2151, %v2149
    %v2176 = vpack.c.b16 %v2152, %v2150
    %v2177 = vpack.c.b16 %v2155, %v2153
    %v2178 = vpack.c.b16 %v2156, %v2154
    %v2179 = vpack.c.b16 %v2159, %v2157
    %v2180 = vpack.c.b16 %v2160, %v2158
    %v2181 = vpack.c.b16 %v2163, %v2161
    %v2182 = vpack.c.b16 %v2164, %v2162
    %v2183 = vpack.c.b16 %v2167, %v2165
    %v2184 = vpack.c.b16 %v2168, %v2166
    %2201 = vmatprep.subr.bf16.mxu0 %v2184
    %2202 = vmatpush1.bf16.msra.mxu0 %v2183
    %2203 = vmatprep.subr.bf16.mxu0 %v2182
    %2204 = vmatpush1.bf16.msra.mxu0 %v2181
    %2205 = vmatprep.subr.bf16.mxu0 %v2180
    %2206 = vmatpush1.bf16.msra.mxu0 %v2179
    %2207 = vmatprep.subr.bf16.mxu0 %v2178
    %2208 = vmatpush1.bf16.msra.mxu0 %v2177
    %2209 = vmatprep.subr.bf16.mxu0 %v2176
    %2210 = vmatpush1.bf16.msra.mxu0 %v2175
    %2211 = vmatprep.subr.bf16.mxu0 %v2174
    %2212 = vmatpush1.bf16.msra.mxu0 %v2173
    %2213 = vmatprep.subr.bf16.mxu0 %v2172
    %2214 = vmatpush1.bf16.msra.mxu0 %v2171
    %2215 = vmatprep.subr.bf16.mxu0 %v2170
    %2216 = vmatpush1.bf16.msra.mxu0 %v2169
    %2217 = vmatprep.subr.bf16.mxu0 0
    %2218 = vmatpush2.bf16.msra.mxu0 0
    %2219 = vmatprep.subr.bf16.mxu0 0
    %2220 = vmatpush2.bf16.msra.mxu0 0
    %2221 = vmatprep.subr.bf16.mxu0 0
    %2222 = vmatpush2.bf16.msra.mxu0 0
    %2223 = vmatprep.subr.bf16.mxu0 0
    %2224 = vmatpush2.bf16.msra.mxu0 0
    %2225 = vmatprep.subr.bf16.mxu0 0
    %2226 = vmatpush2.bf16.msra.mxu0 0
    %2227 = vmatprep.subr.bf16.mxu0 0
    %2228 = vmatpush2.bf16.msra.mxu0 0
    %2229 = vmatprep.subr.bf16.mxu0 0
    %2230 = vmatpush2.bf16.msra.mxu0 0
    %2231 = vmatprep.subr.bf16.mxu0 0
    %2232 = vmatpush2.bf16.msra.mxu0 0
    %2233 = vmatprep.mubr.bf16.mxu0 0
    %2234 = vmatmul.mubr.bf16.gmra.mxu0 %v2065
    %v2235 = vpop.f32.mrf.mxu0
    %v2236 = vadd.f32 0.0, %v2235
    %v2237 = vpop.f32.mrf.mxu0
    %v2238 = vadd.f32 0.0, %v2237
    %v2239 = vpop.f32.mrf.mxu0
    %v2240 = vadd.f32 0.0, %v2239
    %v2241 = vpop.f32.mrf.mxu0
    %v2242 = vadd.f32 0.0, %v2241
    %2243 = vmatprep.mubr.bf16.mxu0 0
    %2244 = vmatmul.mubr.bf16.gmra.mxu0 %v2066
    %v2245 = vpop.f32.mrf.mxu0
    %v2246 = vadd.f32 0.0, %v2245
    %v2247 = vpop.f32.mrf.mxu0
    %v2248 = vadd.f32 0.0, %v2247
    %v2249 = vpop.f32.mrf.mxu0
    %v2250 = vadd.f32 0.0, %v2249
    %v2251 = vpop.f32.mrf.mxu0
    %v2252 = vadd.f32 0.0, %v2251
    %2253 = vmatprep.mubr.bf16.mxu0 0
    %2254 = vmatmul.mubr.bf16.gmra.mxu0 %v2067
    %v2255 = vpop.f32.mrf.mxu0
    %v2256 = vadd.f32 0.0, %v2255
    %v2257 = vpop.f32.mrf.mxu0
    %v2258 = vadd.f32 0.0, %v2257
    %v2259 = vpop.f32.mrf.mxu0
    %v2260 = vadd.f32 0.0, %v2259
    %v2261 = vpop.f32.mrf.mxu0
    %v2262 = vadd.f32 0.0, %v2261
    %2263 = vmatprep.mubr.bf16.mxu0 0
    %2264 = vmatmul.mubr.bf16.gmra.mxu0 %v2068
    %v2265 = vpop.f32.mrf.mxu0
    %v2266 = vadd.f32 0.0, %v2265
    %v2267 = vpop.f32.mrf.mxu0
    %v2268 = vadd.f32 0.0, %v2267
    %v2269 = vpop.f32.mrf.mxu0
    %v2270 = vadd.f32 0.0, %v2269
    %v2271 = vpop.f32.mrf.mxu0
    %v2272 = vadd.f32 0.0, %v2271
    %2273 = vmatprep.mubr.bf16.mxu0 0
    %2274 = vmatmul.mubr.bf16.gmra.mxu0 %v2069
    %v2275 = vpop.f32.mrf.mxu0
    %v2276 = vadd.f32 0.0, %v2275
    %v2277 = vpop.f32.mrf.mxu0
    %v2278 = vadd.f32 0.0, %v2277
    %v2279 = vpop.f32.mrf.mxu0
    %v2280 = vadd.f32 0.0, %v2279
    %v2281 = vpop.f32.mrf.mxu0
    %v2282 = vadd.f32 0.0, %v2281
    %2283 = vmatprep.mubr.bf16.mxu0 0
    %2284 = vmatmul.mubr.bf16.gmra.mxu0 %v2070
    %v2285 = vpop.f32.mrf.mxu0
    %v2286 = vadd.f32 0.0, %v2285
    %v2287 = vpop.f32.mrf.mxu0
    %v2288 = vadd.f32 0.0, %v2287
    %v2289 = vpop.f32.mrf.mxu0
    %v2290 = vadd.f32 0.0, %v2289
    %v2291 = vpop.f32.mrf.mxu0
    %v2292 = vadd.f32 0.0, %v2291
    %2293 = vmatprep.mubr.bf16.mxu0 0
    %2294 = vmatmul.mubr.bf16.gmra.mxu0 %v2071
    %v2295 = vpop.f32.mrf.mxu0
    %v2296 = vadd.f32 0.0, %v2295
    %v2297 = vpop.f32.mrf.mxu0
    %v2298 = vadd.f32 0.0, %v2297
    %v2299 = vpop.f32.mrf.mxu0
    %v2300 = vadd.f32 0.0, %v2299
    %v2301 = vpop.f32.mrf.mxu0
    %v2302 = vadd.f32 0.0, %v2301
    %2303 = vmatprep.mubr.bf16.mxu0 0
    %2304 = vmatmul.mubr.bf16.gmra.mxu0 %v2072
    %v2305 = vpop.f32.mrf.mxu0
    %v2306 = vadd.f32 0.0, %v2305
    %v2307 = vpop.f32.mrf.mxu0
    %v2308 = vadd.f32 0.0, %v2307
    %v2309 = vpop.f32.mrf.mxu0
    %v2310 = vadd.f32 0.0, %v2309
    %v2311 = vpop.f32.mrf.mxu0
    %v2312 = vadd.f32 0.0, %v2311
    %2313 = vmatprep.mubr.bf16.mxu0 0
    %2314 = vmatmul.mubr.bf16.gmra.mxu0 %v2073
    %v2315 = vpop.f32.mrf.mxu0
    %v2316 = vadd.f32 0.0, %v2315
    %v2317 = vpop.f32.mrf.mxu0
    %v2318 = vadd.f32 0.0, %v2317
    %v2319 = vpop.f32.mrf.mxu0
    %v2320 = vadd.f32 0.0, %v2319
    %v2321 = vpop.f32.mrf.mxu0
    %v2322 = vadd.f32 0.0, %v2321
    %2323 = vmatprep.mubr.bf16.mxu0 0
    %2324 = vmatmul.mubr.bf16.gmra.mxu0 %v2074
    %v2325 = vpop.f32.mrf.mxu0
    %v2326 = vadd.f32 0.0, %v2325
    %v2327 = vpop.f32.mrf.mxu0
    %v2328 = vadd.f32 0.0, %v2327
    %v2329 = vpop.f32.mrf.mxu0
    %v2330 = vadd.f32 0.0, %v2329
    %v2331 = vpop.f32.mrf.mxu0
    %v2332 = vadd.f32 0.0, %v2331
    %2333 = vmatprep.mubr.bf16.mxu0 0
    %2334 = vmatmul.mubr.bf16.gmra.mxu0 %v2075
    %v2335 = vpop.f32.mrf.mxu0
    %v2336 = vadd.f32 0.0, %v2335
    %v2337 = vpop.f32.mrf.mxu0
    %v2338 = vadd.f32 0.0, %v2337
    %v2339 = vpop.f32.mrf.mxu0
    %v2340 = vadd.f32 0.0, %v2339
    %v2341 = vpop.f32.mrf.mxu0
    %v2342 = vadd.f32 0.0, %v2341
    %2343 = vmatprep.mubr.bf16.mxu0 0
    %2344 = vmatmul.mubr.bf16.gmra.mxu0 %v2076
    %v2345 = vpop.f32.mrf.mxu0
    %v2346 = vadd.f32 0.0, %v2345
    %v2347 = vpop.f32.mrf.mxu0
    %v2348 = vadd.f32 0.0, %v2347
    %v2349 = vpop.f32.mrf.mxu0
    %v2350 = vadd.f32 0.0, %v2349
    %v2351 = vpop.f32.mrf.mxu0
    %v2352 = vadd.f32 0.0, %v2351
    %2353 = vmatprep.mubr.bf16.mxu0 0
    %2354 = vmatmul.mubr.bf16.gmra.mxu0 %v2077
    %v2355 = vpop.f32.mrf.mxu0
    %v2356 = vadd.f32 0.0, %v2355
    %v2357 = vpop.f32.mrf.mxu0
    %v2358 = vadd.f32 0.0, %v2357
    %v2359 = vpop.f32.mrf.mxu0
    %v2360 = vadd.f32 0.0, %v2359
    %v2361 = vpop.f32.mrf.mxu0
    %v2362 = vadd.f32 0.0, %v2361
    %2363 = vmatprep.mubr.bf16.mxu0 0
    %2364 = vmatmul.mubr.bf16.gmra.mxu0 %v2078
    %v2365 = vpop.f32.mrf.mxu0
    %v2366 = vadd.f32 0.0, %v2365
    %v2367 = vpop.f32.mrf.mxu0
    %v2368 = vadd.f32 0.0, %v2367
    %v2369 = vpop.f32.mrf.mxu0
    %v2370 = vadd.f32 0.0, %v2369
    %v2371 = vpop.f32.mrf.mxu0
    %v2372 = vadd.f32 0.0, %v2371
    %2373 = vmatprep.mubr.bf16.mxu0 0
    %2374 = vmatmul.mubr.bf16.gmra.mxu0 %v2079
    %v2375 = vpop.f32.mrf.mxu0
    %v2376 = vadd.f32 0.0, %v2375
    %v2377 = vpop.f32.mrf.mxu0
    %v2378 = vadd.f32 0.0, %v2377
    %v2379 = vpop.f32.mrf.mxu0
    %v2380 = vadd.f32 0.0, %v2379
    %v2381 = vpop.f32.mrf.mxu0
    %v2382 = vadd.f32 0.0, %v2381
    %2383 = vmatprep.mubr.bf16.mxu0 0
    %2384 = vmatmul.mubr.bf16.gmra.mxu0 %v2080
    %v2385 = vpop.f32.mrf.mxu0
    %v2386 = vadd.f32 0.0, %v2385
    %v2387 = vpop.f32.mrf.mxu0
    %v2388 = vadd.f32 0.0, %v2387
    %v2389 = vpop.f32.mrf.mxu0
    %v2390 = vadd.f32 0.0, %v2389
    %v2391 = vpop.f32.mrf.mxu0
    %v2392 = vadd.f32 0.0, %v2391
    %2393 = vmatprep.mubr.bf16.mxu0 0
    %2394 = vmatmul.mubr.bf16.gmra.mxu0 %v2081
    %v2395 = vpop.f32.mrf.mxu0
    %v2396 = vadd.f32 0.0, %v2395
    %v2397 = vpop.f32.mrf.mxu0
    %v2398 = vadd.f32 0.0, %v2397
    %v2399 = vpop.f32.mrf.mxu0
    %v2400 = vadd.f32 0.0, %v2399
    %v2401 = vpop.f32.mrf.mxu0
    %v2402 = vadd.f32 0.0, %v2401
    %2403 = vmatprep.mubr.bf16.mxu0 0
    %2404 = vmatmul.mubr.bf16.gmra.mxu0 %v2082
    %v2405 = vpop.f32.mrf.mxu0
    %v2406 = vadd.f32 0.0, %v2405
    %v2407 = vpop.f32.mrf.mxu0
    %v2408 = vadd.f32 0.0, %v2407
    %v2409 = vpop.f32.mrf.mxu0
    %v2410 = vadd.f32 0.0, %v2409
    %v2411 = vpop.f32.mrf.mxu0
    %v2412 = vadd.f32 0.0, %v2411
    %2413 = vmatprep.mubr.bf16.mxu0 0
    %2414 = vmatmul.mubr.bf16.gmra.mxu0 %v2083
    %v2415 = vpop.f32.mrf.mxu0
    %v2416 = vadd.f32 0.0, %v2415
    %v2417 = vpop.f32.mrf.mxu0
    %v2418 = vadd.f32 0.0, %v2417
    %v2419 = vpop.f32.mrf.mxu0
    %v2420 = vadd.f32 0.0, %v2419
    %v2421 = vpop.f32.mrf.mxu0
    %v2422 = vadd.f32 0.0, %v2421
    %2423 = vmatprep.mubr.bf16.mxu0 0
    %2424 = vmatmul.mubr.bf16.gmra.mxu0 %v2084
    %v2425 = vpop.f32.mrf.mxu0
    %v2426 = vadd.f32 0.0, %v2425
    %v2427 = vpop.f32.mrf.mxu0
    %v2428 = vadd.f32 0.0, %v2427
    %v2429 = vpop.f32.mrf.mxu0
    %v2430 = vadd.f32 0.0, %v2429
    %v2431 = vpop.f32.mrf.mxu0
    %v2432 = vadd.f32 0.0, %v2431
    %2433 = vmatprep.mubr.bf16.mxu0 0
    %2434 = vmatmul.mubr.bf16.gmra.mxu0 %v2085
    %v2435 = vpop.f32.mrf.mxu0
    %v2436 = vadd.f32 0.0, %v2435
    %v2437 = vpop.f32.mrf.mxu0
    %v2438 = vadd.f32 0.0, %v2437
    %v2439 = vpop.f32.mrf.mxu0
    %v2440 = vadd.f32 0.0, %v2439
    %v2441 = vpop.f32.mrf.mxu0
    %v2442 = vadd.f32 0.0, %v2441
    %2443 = vmatprep.mubr.bf16.mxu0 0
    %2444 = vmatmul.mubr.bf16.gmra.mxu0 %v2086
    %v2445 = vpop.f32.mrf.mxu0
    %v2446 = vadd.f32 0.0, %v2445
    %v2447 = vpop.f32.mrf.mxu0
    %v2448 = vadd.f32 0.0, %v2447
    %v2449 = vpop.f32.mrf.mxu0
    %v2450 = vadd.f32 0.0, %v2449
    %v2451 = vpop.f32.mrf.mxu0
    %v2452 = vadd.f32 0.0, %v2451
    %2453 = vmatprep.mubr.bf16.mxu0 0
    %2454 = vmatmul.mubr.bf16.gmra.mxu0 %v2087
    %v2455 = vpop.f32.mrf.mxu0
    %v2456 = vadd.f32 0.0, %v2455
    %v2457 = vpop.f32.mrf.mxu0
    %v2458 = vadd.f32 0.0, %v2457
    %v2459 = vpop.f32.mrf.mxu0
    %v2460 = vadd.f32 0.0, %v2459
    %v2461 = vpop.f32.mrf.mxu0
    %v2462 = vadd.f32 0.0, %v2461
    %2463 = vmatprep.mubr.bf16.mxu0 0
    %2464 = vmatmul.mubr.bf16.gmra.mxu0 %v2088
    %v2465 = vpop.f32.mrf.mxu0
    %v2466 = vadd.f32 0.0, %v2465
    %v2467 = vpop.f32.mrf.mxu0
    %v2468 = vadd.f32 0.0, %v2467
    %v2469 = vpop.f32.mrf.mxu0
    %v2470 = vadd.f32 0.0, %v2469
    %v2471 = vpop.f32.mrf.mxu0
    %v2472 = vadd.f32 0.0, %v2471
    %2473 = vmatprep.mubr.bf16.mxu0 0
    %2474 = vmatmul.mubr.bf16.gmra.mxu0 %v2089
    %v2475 = vpop.f32.mrf.mxu0
    %v2476 = vadd.f32 0.0, %v2475
    %v2477 = vpop.f32.mrf.mxu0
    %v2478 = vadd.f32 0.0, %v2477
    %v2479 = vpop.f32.mrf.mxu0
    %v2480 = vadd.f32 0.0, %v2479
    %v2481 = vpop.f32.mrf.mxu0
    %v2482 = vadd.f32 0.0, %v2481
    %2483 = vmatprep.mubr.bf16.mxu0 0
    %2484 = vmatmul.mubr.bf16.gmra.mxu0 %v2090
    %v2485 = vpop.f32.mrf.mxu0
    %v2486 = vadd.f32 0.0, %v2485
    %v2487 = vpop.f32.mrf.mxu0
    %v2488 = vadd.f32 0.0, %v2487
    %v2489 = vpop.f32.mrf.mxu0
    %v2490 = vadd.f32 0.0, %v2489
    %v2491 = vpop.f32.mrf.mxu0
    %v2492 = vadd.f32 0.0, %v2491
    %2493 = vmatprep.mubr.bf16.mxu0 0
    %2494 = vmatmul.mubr.bf16.gmra.mxu0 %v2091
    %v2495 = vpop.f32.mrf.mxu0
    %v2496 = vadd.f32 0.0, %v2495
    %v2497 = vpop.f32.mrf.mxu0
    %v2498 = vadd.f32 0.0, %v2497
    %v2499 = vpop.f32.mrf.mxu0
    %v2500 = vadd.f32 0.0, %v2499
    %v2501 = vpop.f32.mrf.mxu0
    %v2502 = vadd.f32 0.0, %v2501
    %2503 = vmatprep.mubr.bf16.mxu0 0
    %2504 = vmatmul.mubr.bf16.gmra.mxu0 %v2092
    %v2505 = vpop.f32.mrf.mxu0
    %v2506 = vadd.f32 0.0, %v2505
    %v2507 = vpop.f32.mrf.mxu0
    %v2508 = vadd.f32 0.0, %v2507
    %v2509 = vpop.f32.mrf.mxu0
    %v2510 = vadd.f32 0.0, %v2509
    %v2511 = vpop.f32.mrf.mxu0
    %v2512 = vadd.f32 0.0, %v2511
    %2513 = vdwg.mxu0
    %v2514 = vadd.f32 %v1768, %v2236
    %v2515 = vadd.f32 %v1769, %v2238
    %v2516 = vadd.f32 %v1770, %v2240
    %v2517 = vadd.f32 %v1771, %v2242
    %v2518 = vadd.f32 %v1772, %v2246
    %v2519 = vadd.f32 %v1773, %v2248
    %v2520 = vadd.f32 %v1774, %v2250
    %v2521 = vadd.f32 %v1775, %v2252
    %v2522 = vadd.f32 %v1776, %v2256
    %v2523 = vadd.f32 %v1777, %v2258
    %v2524 = vadd.f32 %v1778, %v2260
    %v2525 = vadd.f32 %v1779, %v2262
    %v2526 = vadd.f32 %v1780, %v2266
    %v2527 = vadd.f32 %v1781, %v2268
    %v2528 = vadd.f32 %v1782, %v2270
    %v2529 = vadd.f32 %v1783, %v2272
    %v2530 = vadd.f32 %v1784, %v2276
    %v2531 = vadd.f32 %v1785, %v2278
    %v2532 = vadd.f32 %v1786, %v2280
    %v2533 = vadd.f32 %v1787, %v2282
    %v2534 = vadd.f32 %v1788, %v2286
    %v2535 = vadd.f32 %v1789, %v2288
    %v2536 = vadd.f32 %v1790, %v2290
    %v2537 = vadd.f32 %v1791, %v2292
    %v2538 = vadd.f32 %v1792, %v2296
    %v2539 = vadd.f32 %v1793, %v2298
    %v2540 = vadd.f32 %v1794, %v2300
    %v2541 = vadd.f32 %v1795, %v2302
    %v2542 = vadd.f32 %v1796, %v2306
    %v2543 = vadd.f32 %v1797, %v2308
    %v2544 = vadd.f32 %v1798, %v2310
    %v2545 = vadd.f32 %v1799, %v2312
    %v2546 = vadd.f32 %v1800, %v2316
    %v2547 = vadd.f32 %v1801, %v2318
    %v2548 = vadd.f32 %v1802, %v2320
    %v2549 = vadd.f32 %v1803, %v2322
    %v2550 = vadd.f32 %v1804, %v2326
    %v2551 = vadd.f32 %v1805, %v2328
    %v2552 = vadd.f32 %v1806, %v2330
    %v2553 = vadd.f32 %v1807, %v2332
    %v2554 = vadd.f32 %v1808, %v2336
    %v2555 = vadd.f32 %v1809, %v2338
    %v2556 = vadd.f32 %v1810, %v2340
    %v2557 = vadd.f32 %v1811, %v2342
    %v2558 = vadd.f32 %v1812, %v2346
    %v2559 = vadd.f32 %v1813, %v2348
    %v2560 = vadd.f32 %v1814, %v2350
    %v2561 = vadd.f32 %v1815, %v2352
    %v2562 = vadd.f32 %v1816, %v2356
    %v2563 = vadd.f32 %v1817, %v2358
    %v2564 = vadd.f32 %v1818, %v2360
    %v2565 = vadd.f32 %v1819, %v2362
    %v2566 = vadd.f32 %v1820, %v2366
    %v2567 = vadd.f32 %v1821, %v2368
    %v2568 = vadd.f32 %v1822, %v2370
    %v2569 = vadd.f32 %v1823, %v2372
    %v2570 = vadd.f32 %v1824, %v2376
    %v2571 = vadd.f32 %v1825, %v2378
    %v2572 = vadd.f32 %v1826, %v2380
    %v2573 = vadd.f32 %v1827, %v2382
    %v2574 = vadd.f32 %v1828, %v2386
    %v2575 = vadd.f32 %v1829, %v2388
    %v2576 = vadd.f32 %v1830, %v2390
    %v2577 = vadd.f32 %v1831, %v2392
    %v2578 = vadd.f32 %v1832, %v2396
    %v2579 = vadd.f32 %v1833, %v2398
    %v2580 = vadd.f32 %v1834, %v2400
    %v2581 = vadd.f32 %v1835, %v2402
    %v2582 = vadd.f32 %v1836, %v2406
    %v2583 = vadd.f32 %v1837, %v2408
    %v2584 = vadd.f32 %v1838, %v2410
    %v2585 = vadd.f32 %v1839, %v2412
    %v2586 = vadd.f32 %v1840, %v2416
    %v2587 = vadd.f32 %v1841, %v2418
    %v2588 = vadd.f32 %v1842, %v2420
    %v2589 = vadd.f32 %v1843, %v2422
    %v2590 = vadd.f32 %v1844, %v2426
    %v2591 = vadd.f32 %v1845, %v2428
    %v2592 = vadd.f32 %v1846, %v2430
    %v2593 = vadd.f32 %v1847, %v2432
    %v2594 = vadd.f32 %v1848, %v2436
    %v2595 = vadd.f32 %v1849, %v2438
    %v2596 = vadd.f32 %v1850, %v2440
    %v2597 = vadd.f32 %v1851, %v2442
    %v2598 = vadd.f32 %v1852, %v2446
    %v2599 = vadd.f32 %v1853, %v2448
    %v2600 = vadd.f32 %v1854, %v2450
    %v2601 = vadd.f32 %v1855, %v2452
    %v2602 = vadd.f32 %v1856, %v2456
    %v2603 = vadd.f32 %v1857, %v2458
    %v2604 = vadd.f32 %v1858, %v2460
    %v2605 = vadd.f32 %v1859, %v2462
    %v2606 = vadd.f32 %v1860, %v2466
    %v2607 = vadd.f32 %v1861, %v2468
    %v2608 = vadd.f32 %v1862, %v2470
    %v2609 = vadd.f32 %v1863, %v2472
    %v2610 = vadd.f32 %v1864, %v2476
    %v2611 = vadd.f32 %v1865, %v2478
    %v2612 = vadd.f32 %v1866, %v2480
    %v2613 = vadd.f32 %v1867, %v2482
    %v2614 = vadd.f32 %v1868, %v2486
    %v2615 = vadd.f32 %v1869, %v2488
    %v2616 = vadd.f32 %v1870, %v2490
    %v2617 = vadd.f32 %v1871, %v2492
    %v2618 = vadd.f32 %v1872, %v2496
    %v2619 = vadd.f32 %v1873, %v2498
    %v2620 = vadd.f32 %v1874, %v2500
    %v2621 = vadd.f32 %v1875, %v2502
    %v2622 = vadd.f32 %v1876, %v2506
    %v2623 = vadd.f32 %v1877, %v2508
    %v2624 = vadd.f32 %v1878, %v2510
    %v2625 = vadd.f32 %v1879, %v2512
    %2626 = vst [vmem:[#allocation2] sm:$0xff] %v2514
    %2627 = vst [vmem:[#allocation2 + $0x8] sm:$0xff] %v2515
    %2628 = vst [vmem:[#allocation2 + $0x10] sm:$0xff] %v2516
    %2629 = vst [vmem:[#allocation2 + $0x18] sm:$0xff] %v2517
    %2630 = vst [vmem:[#allocation2 + $0x20] sm:$0xff] %v2518
    %2631 = vst [vmem:[#allocation2 + $0x28] sm:$0xff] %v2519
    %2632 = vst [vmem:[#allocation2 + $0x30] sm:$0xff] %v2520
    %2633 = vst [vmem:[#allocation2 + $0x38] sm:$0xff] %v2521
    %2634 = vst [vmem:[#allocation2 + $0x40] sm:$0xff] %v2522
    %2635 = vst [vmem:[#allocation2 + $0x48] sm:$0xff] %v2523
    %2636 = vst [vmem:[#allocation2 + $0x50] sm:$0xff] %v2524
    %2637 = vst [vmem:[#allocation2 + $0x58] sm:$0xff] %v2525
    %2638 = vst [vmem:[#allocation2 + $0x60] sm:$0xff] %v2526
    %2639 = vst [vmem:[#allocation2 + $0x68] sm:$0xff] %v2527
    %2640 = vst [vmem:[#allocation2 + $0x70] sm:$0xff] %v2528
    %2641 = vst [vmem:[#allocation2 + $0x78] sm:$0xff] %v2529
    %2642 = vst [vmem:[#allocation2 + $0x80] sm:$0xff] %v2530
    %2643 = vst [vmem:[#allocation2 + $0x88] sm:$0xff] %v2531
    %2644 = vst [vmem:[#allocation2 + $0x90] sm:$0xff] %v2532
    %2645 = vst [vmem:[#allocation2 + $0x98] sm:$0xff] %v2533
    %2646 = vst [vmem:[#allocation2 + $0xa0] sm:$0xff] %v2534
    %2647 = vst [vmem:[#allocation2 + $0xa8] sm:$0xff] %v2535
    %2648 = vst [vmem:[#allocation2 + $0xb0] sm:$0xff] %v2536
    %2649 = vst [vmem:[#allocation2 + $0xb8] sm:$0xff] %v2537
    %2650 = vst [vmem:[#allocation2 + $0xc0] sm:$0xff] %v2538
    %2651 = vst [vmem:[#allocation2 + $0xc8] sm:$0xff] %v2539
    %2652 = vst [vmem:[#allocation2 + $0xd0] sm:$0xff] %v2540
    %2653 = vst [vmem:[#allocation2 + $0xd8] sm:$0xff] %v2541
    %2654 = vst [vmem:[#allocation2 + $0xe0] sm:$0xff] %v2542
    %2655 = vst [vmem:[#allocation2 + $0xe8] sm:$0xff] %v2543
    %2656 = vst [vmem:[#allocation2 + $0xf0] sm:$0xff] %v2544
    %2657 = vst [vmem:[#allocation2 + $0xf8] sm:$0xff] %v2545
    %2658 = vst [vmem:[#allocation2 + $0x100] sm:$0xff] %v2546
    %2659 = vst [vmem:[#allocation2 + $0x108] sm:$0xff] %v2547
    %2660 = vst [vmem:[#allocation2 + $0x110] sm:$0xff] %v2548
    %2661 = vst [vmem:[#allocation2 + $0x118] sm:$0xff] %v2549
    %2662 = vst [vmem:[#allocation2 + $0x120] sm:$0xff] %v2550
    %2663 = vst [vmem:[#allocation2 + $0x128] sm:$0xff] %v2551
    %2664 = vst [vmem:[#allocation2 + $0x130] sm:$0xff] %v2552
    %2665 = vst [vmem:[#allocation2 + $0x138] sm:$0xff] %v2553
    %2666 = vst [vmem:[#allocation2 + $0x140] sm:$0xff] %v2554
    %2667 = vst [vmem:[#allocation2 + $0x148] sm:$0xff] %v2555
    %2668 = vst [vmem:[#allocation2 + $0x150] sm:$0xff] %v2556
    %2669 = vst [vmem:[#allocation2 + $0x158] sm:$0xff] %v2557
    %2670 = vst [vmem:[#allocation2 + $0x160] sm:$0xff] %v2558
    %2671 = vst [vmem:[#allocation2 + $0x168] sm:$0xff] %v2559
    %2672 = vst [vmem:[#allocation2 + $0x170] sm:$0xff] %v2560
    %2673 = vst [vmem:[#allocation2 + $0x178] sm:$0xff] %v2561
    %2674 = vst [vmem:[#allocation2 + $0x180] sm:$0xff] %v2562
    %2675 = vst [vmem:[#allocation2 + $0x188] sm:$0xff] %v2563
    %2676 = vst [vmem:[#allocation2 + $0x190] sm:$0xff] %v2564
    %2677 = vst [vmem:[#allocation2 + $0x198] sm:$0xff] %v2565
    %2678 = vst [vmem:[#allocation2 + $0x1a0] sm:$0xff] %v2566
    %2679 = vst [vmem:[#allocation2 + $0x1a8] sm:$0xff] %v2567
    %2680 = vst [vmem:[#allocation2 + $0x1b0] sm:$0xff] %v2568
    %2681 = vst [vmem:[#allocation2 + $0x1b8] sm:$0xff] %v2569
    %2682 = vst [vmem:[#allocation2 + $0x1c0] sm:$0xff] %v2570
    %2683 = vst [vmem:[#allocation2 + $0x1c8] sm:$0xff] %v2571
    %2684 = vst [vmem:[#allocation2 + $0x1d0] sm:$0xff] %v2572
    %2685 = vst [vmem:[#allocation2 + $0x1d8] sm:$0xff] %v2573
    %2686 = vst [vmem:[#allocation2 + $0x1e0] sm:$0xff] %v2574
    %2687 = vst [vmem:[#allocation2 + $0x1e8] sm:$0xff] %v2575
    %2688 = vst [vmem:[#allocation2 + $0x1f0] sm:$0xff] %v2576
    %2689 = vst [vmem:[#allocation2 + $0x1f8] sm:$0xff] %v2577
    %2690 = vst [vmem:[#allocation2 + $0x200] sm:$0xff] %v2578
    %2691 = vst [vmem:[#allocation2 + $0x208] sm:$0xff] %v2579
    %2692 = vst [vmem:[#allocation2 + $0x210] sm:$0xff] %v2580
    %2693 = vst [vmem:[#allocation2 + $0x218] sm:$0xff] %v2581
    %2694 = vst [vmem:[#allocation2 + $0x220] sm:$0xff] %v2582
    %2695 = vst [vmem:[#allocation2 + $0x228] sm:$0xff] %v2583
    %2696 = vst [vmem:[#allocation2 + $0x230] sm:$0xff] %v2584
    %2697 = vst [vmem:[#allocation2 + $0x238] sm:$0xff] %v2585
    %2698 = vst [vmem:[#allocation2 + $0x240] sm:$0xff] %v2586
    %2699 = vst [vmem:[#allocation2 + $0x248] sm:$0xff] %v2587
    %2700 = vst [vmem:[#allocation2 + $0x250] sm:$0xff] %v2588
    %2701 = vst [vmem:[#allocation2 + $0x258] sm:$0xff] %v2589
    %2702 = vst [vmem:[#allocation2 + $0x260] sm:$0xff] %v2590
    %2703 = vst [vmem:[#allocation2 + $0x268] sm:$0xff] %v2591
    %2704 = vst [vmem:[#allocation2 + $0x270] sm:$0xff] %v2592
    %2705 = vst [vmem:[#allocation2 + $0x278] sm:$0xff] %v2593
    %2706 = vst [vmem:[#allocation2 + $0x280] sm:$0xff] %v2594
    %2707 = vst [vmem:[#allocation2 + $0x288] sm:$0xff] %v2595
    %2708 = vst [vmem:[#allocation2 + $0x290] sm:$0xff] %v2596
    %2709 = vst [vmem:[#allocation2 + $0x298] sm:$0xff] %v2597
    %2710 = vst [vmem:[#allocation2 + $0x2a0] sm:$0xff] %v2598
    %2711 = vst [vmem:[#allocation2 + $0x2a8] sm:$0xff] %v2599
    %2712 = vst [vmem:[#allocation2 + $0x2b0] sm:$0xff] %v2600
    %2713 = vst [vmem:[#allocation2 + $0x2b8] sm:$0xff] %v2601
    %2714 = vst [vmem:[#allocation2 + $0x2c0] sm:$0xff] %v2602
    %2715 = vst [vmem:[#allocation2 + $0x2c8] sm:$0xff] %v2603
    %2716 = vst [vmem:[#allocation2 + $0x2d0] sm:$0xff] %v2604
    %2717 = vst [vmem:[#allocation2 + $0x2d8] sm:$0xff] %v2605
    %2718 = vst [vmem:[#allocation2 + $0x2e0] sm:$0xff] %v2606
    %2719 = vst [vmem:[#allocation2 + $0x2e8] sm:$0xff] %v2607
    %2720 = vst [vmem:[#allocation2 + $0x2f0] sm:$0xff] %v2608
    %2721 = vst [vmem:[#allocation2 + $0x2f8] sm:$0xff] %v2609
    %2722 = vst [vmem:[#allocation2 + $0x300] sm:$0xff] %v2610
    %2723 = vst [vmem:[#allocation2 + $0x308] sm:$0xff] %v2611
    %2724 = vst [vmem:[#allocation2 + $0x310] sm:$0xff] %v2612
    %2725 = vst [vmem:[#allocation2 + $0x318] sm:$0xff] %v2613
    %2726 = vst [vmem:[#allocation2 + $0x320] sm:$0xff] %v2614
    %2727 = vst [vmem:[#allocation2 + $0x328] sm:$0xff] %v2615
    %2728 = vst [vmem:[#allocation2 + $0x330] sm:$0xff] %v2616
    %2729 = vst [vmem:[#allocation2 + $0x338] sm:$0xff] %v2617
    %2730 = vst [vmem:[#allocation2 + $0x340] sm:$0xff] %v2618
    %2731 = vst [vmem:[#allocation2 + $0x348] sm:$0xff] %v2619
    %2732 = vst [vmem:[#allocation2 + $0x350] sm:$0xff] %v2620
    %2733 = vst [vmem:[#allocation2 + $0x358] sm:$0xff] %v2621
    %2734 = vst [vmem:[#allocation2 + $0x360] sm:$0xff] %v2622
    %2735 = vst [vmem:[#allocation2 + $0x368] sm:$0xff] %v2623
    %2736 = vst [vmem:[#allocation2 + $0x370] sm:$0xff] %v2624
    %2737 = vst [vmem:[#allocation2 + $0x378] sm:$0xff] %v2625
    %v2738 = vld [vmem:[#allocation2] sm:$0xff]
    %v2739 = vld [vmem:[#allocation2 + $0x8] sm:$0xff]
    %v2740 = vld [vmem:[#allocation2 + $0x10] sm:$0xff]
    %v2741 = vld [vmem:[#allocation2 + $0x18] sm:$0xff]
    %v2742 = vld [vmem:[#allocation2 + $0x20] sm:$0xff]
    %v2743 = vld [vmem:[#allocation2 + $0x28] sm:$0xff]
    %v2744 = vld [vmem:[#allocation2 + $0x30] sm:$0xff]
    %v2745 = vld [vmem:[#allocation2 + $0x38] sm:$0xff]
    %v2746 = vld [vmem:[#allocation2 + $0x40] sm:$0xff]
    %v2747 = vld [vmem:[#allocation2 + $0x48] sm:$0xff]
    %v2748 = vld [vmem:[#allocation2 + $0x50] sm:$0xff]
    %v2749 = vld [vmem:[#allocation2 + $0x58] sm:$0xff]
    %v2750 = vld [vmem:[#allocation2 + $0x60] sm:$0xff]
    %v2751 = vld [vmem:[#allocation2 + $0x68] sm:$0xff]
    %v2752 = vld [vmem:[#allocation2 + $0x70] sm:$0xff]
    %v2753 = vld [vmem:[#allocation2 + $0x78] sm:$0xff]
    %v2754 = vld [vmem:[#allocation2 + $0x80] sm:$0xff]
    %v2755 = vld [vmem:[#allocation2 + $0x88] sm:$0xff]
    %v2756 = vld [vmem:[#allocation2 + $0x90] sm:$0xff]
    %v2757 = vld [vmem:[#allocation2 + $0x98] sm:$0xff]
    %v2758 = vld [vmem:[#allocation2 + $0xa0] sm:$0xff]
    %v2759 = vld [vmem:[#allocation2 + $0xa8] sm:$0xff]
    %v2760 = vld [vmem:[#allocation2 + $0xb0] sm:$0xff]
    %v2761 = vld [vmem:[#allocation2 + $0xb8] sm:$0xff]
    %v2762 = vld [vmem:[#allocation2 + $0xc0] sm:$0xff]
    %v2763 = vld [vmem:[#allocation2 + $0xc8] sm:$0xff]
    %v2764 = vld [vmem:[#allocation2 + $0xd0] sm:$0xff]
    %v2765 = vld [vmem:[#allocation2 + $0xd8] sm:$0xff]
    %v2766 = vld [vmem:[#allocation2 + $0xe0] sm:$0xff]
    %v2767 = vld [vmem:[#allocation2 + $0xe8] sm:$0xff]
    %v2768 = vld [vmem:[#allocation2 + $0xf0] sm:$0xff]
    %v2769 = vld [vmem:[#allocation2 + $0xf8] sm:$0xff]
    %v2770 = vld [vmem:[#allocation2 + $0x100] sm:$0xff]
    %v2771 = vld [vmem:[#allocation2 + $0x108] sm:$0xff]
    %v2772 = vld [vmem:[#allocation2 + $0x110] sm:$0xff]
    %v2773 = vld [vmem:[#allocation2 + $0x118] sm:$0xff]
    %v2774 = vld [vmem:[#allocation2 + $0x120] sm:$0xff]
    %v2775 = vld [vmem:[#allocation2 + $0x128] sm:$0xff]
    %v2776 = vld [vmem:[#allocation2 + $0x130] sm:$0xff]
    %v2777 = vld [vmem:[#allocation2 + $0x138] sm:$0xff]
    %v2778 = vld [vmem:[#allocation2 + $0x140] sm:$0xff]
    %v2779 = vld [vmem:[#allocation2 + $0x148] sm:$0xff]
    %v2780 = vld [vmem:[#allocation2 + $0x150] sm:$0xff]
    %v2781 = vld [vmem:[#allocation2 + $0x158] sm:$0xff]
    %v2782 = vld [vmem:[#allocation2 + $0x160] sm:$0xff]
    %v2783 = vld [vmem:[#allocation2 + $0x168] sm:$0xff]
    %v2784 = vld [vmem:[#allocation2 + $0x170] sm:$0xff]
    %v2785 = vld [vmem:[#allocation2 + $0x178] sm:$0xff]
    %v2786 = vld [vmem:[#allocation2 + $0x180] sm:$0xff]
    %v2787 = vld [vmem:[#allocation2 + $0x188] sm:$0xff]
    %v2788 = vld [vmem:[#allocation2 + $0x190] sm:$0xff]
    %v2789 = vld [vmem:[#allocation2 + $0x198] sm:$0xff]
    %v2790 = vld [vmem:[#allocation2 + $0x1a0] sm:$0xff]
    %v2791 = vld [vmem:[#allocation2 + $0x1a8] sm:$0xff]
    %v2792 = vld [vmem:[#allocation2 + $0x1b0] sm:$0xff]
    %v2793 = vld [vmem:[#allocation2 + $0x1b8] sm:$0xff]
    %v2794 = vld [vmem:[#allocation2 + $0x1c0] sm:$0xff]
    %v2795 = vld [vmem:[#allocation2 + $0x1c8] sm:$0xff]
    %v2796 = vld [vmem:[#allocation2 + $0x1d0] sm:$0xff]
    %v2797 = vld [vmem:[#allocation2 + $0x1d8] sm:$0xff]
    %v2798 = vld [vmem:[#allocation2 + $0x1e0] sm:$0xff]
    %v2799 = vld [vmem:[#allocation2 + $0x1e8] sm:$0xff]
    %v2800 = vld [vmem:[#allocation2 + $0x1f0] sm:$0xff]
    %v2801 = vld [vmem:[#allocation2 + $0x1f8] sm:$0xff]
    %v2802 = vld [vmem:[#allocation2 + $0x200] sm:$0xff]
    %v2803 = vld [vmem:[#allocation2 + $0x208] sm:$0xff]
    %v2804 = vld [vmem:[#allocation2 + $0x210] sm:$0xff]
    %v2805 = vld [vmem:[#allocation2 + $0x218] sm:$0xff]
    %v2806 = vld [vmem:[#allocation2 + $0x220] sm:$0xff]
    %v2807 = vld [vmem:[#allocation2 + $0x228] sm:$0xff]
    %v2808 = vld [vmem:[#allocation2 + $0x230] sm:$0xff]
    %v2809 = vld [vmem:[#allocation2 + $0x238] sm:$0xff]
    %v2810 = vld [vmem:[#allocation2 + $0x240] sm:$0xff]
    %v2811 = vld [vmem:[#allocation2 + $0x248] sm:$0xff]
    %v2812 = vld [vmem:[#allocation2 + $0x250] sm:$0xff]
    %v2813 = vld [vmem:[#allocation2 + $0x258] sm:$0xff]
    %v2814 = vld [vmem:[#allocation2 + $0x260] sm:$0xff]
    %v2815 = vld [vmem:[#allocation2 + $0x268] sm:$0xff]
    %v2816 = vld [vmem:[#allocation2 + $0x270] sm:$0xff]
    %v2817 = vld [vmem:[#allocation2 + $0x278] sm:$0xff]
    %v2818 = vld [vmem:[#allocation2 + $0x280] sm:$0xff]
    %v2819 = vld [vmem:[#allocation2 + $0x288] sm:$0xff]
    %v2820 = vld [vmem:[#allocation2 + $0x290] sm:$0xff]
    %v2821 = vld [vmem:[#allocation2 + $0x298] sm:$0xff]
    %v2822 = vld [vmem:[#allocation2 + $0x2a0] sm:$0xff]
    %v2823 = vld [vmem:[#allocation2 + $0x2a8] sm:$0xff]
    %v2824 = vld [vmem:[#allocation2 + $0x2b0] sm:$0xff]
    %v2825 = vld [vmem:[#allocation2 + $0x2b8] sm:$0xff]
    %v2826 = vld [vmem:[#allocation2 + $0x2c0] sm:$0xff]
    %v2827 = vld [vmem:[#allocation2 + $0x2c8] sm:$0xff]
    %v2828 = vld [vmem:[#allocation2 + $0x2d0] sm:$0xff]
    %v2829 = vld [vmem:[#allocation2 + $0x2d8] sm:$0xff]
    %v2830 = vld [vmem:[#allocation2 + $0x2e0] sm:$0xff]
    %v2831 = vld [vmem:[#allocation2 + $0x2e8] sm:$0xff]
    %v2832 = vld [vmem:[#allocation2 + $0x2f0] sm:$0xff]
    %v2833 = vld [vmem:[#allocation2 + $0x2f8] sm:$0xff]
    %v2834 = vld [vmem:[#allocation2 + $0x300] sm:$0xff]
    %v2835 = vld [vmem:[#allocation2 + $0x308] sm:$0xff]
    %v2836 = vld [vmem:[#allocation2 + $0x310] sm:$0xff]
    %v2837 = vld [vmem:[#allocation2 + $0x318] sm:$0xff]
    %v2838 = vld [vmem:[#allocation2 + $0x320] sm:$0xff]
    %v2839 = vld [vmem:[#allocation2 + $0x328] sm:$0xff]
    %v2840 = vld [vmem:[#allocation2 + $0x330] sm:$0xff]
    %v2841 = vld [vmem:[#allocation2 + $0x338] sm:$0xff]
    %v2842 = vld [vmem:[#allocation2 + $0x340] sm:$0xff]
    %v2843 = vld [vmem:[#allocation2 + $0x348] sm:$0xff]
    %v2844 = vld [vmem:[#allocation2 + $0x350] sm:$0xff]
    %v2845 = vld [vmem:[#allocation2 + $0x358] sm:$0xff]
    %v2846 = vld [vmem:[#allocation2 + $0x360] sm:$0xff]
    %v2847 = vld [vmem:[#allocation2 + $0x368] sm:$0xff]
    %v2848 = vld [vmem:[#allocation2 + $0x370] sm:$0xff]
    %v2849 = vld [vmem:[#allocation2 + $0x378] sm:$0xff]
    %v2850 = vld [vmem:[%s0 + $0x18] sm:$0xf]
    %v2851 = vld [vmem:[%s0 + $0x1c] sm:$0xf]
    %v2852 = vld [vmem:[%s0 + $0x20] sm:$0xf]
    %v2853 = vld [vmem:[%s0 + $0x24] sm:$0xf]
    %v2854 = vld [vmem:[%s0 + $0x28] sm:$0xf]
    %v2855 = vld [vmem:[%s0 + $0x2c] sm:$0xf]
    %v2856 = vld [vmem:[%s0 + $0x30] sm:$0xf]
    %v2857 = vld [vmem:[%s0 + $0x34] sm:$0xf]
    %v2858 = vld [vmem:[%s0 + $0x38] sm:$0xf]
    %v2859 = vld [vmem:[%s0 + $0x3c] sm:$0xf]
    %v2860 = vld [vmem:[%s0 + $0x40] sm:$0xf]
    %v2861 = vld [vmem:[%s0 + $0x44] sm:$0xf]
    %v2862 = vld [vmem:[%s0 + $0x48] sm:$0xf]
    %v2863 = vld [vmem:[%s0 + $0x4c] sm:$0xf]
    %v2864 = vld [vmem:[%s0 + $0x50] sm:$0xf]
    %v2865 = vld [vmem:[%s0 + $0x54] sm:$0xf]
    %v2866 = vld [vmem:[%s0 + $0x58] sm:$0xf]
    %v2867 = vld [vmem:[%s0 + $0x5c] sm:$0xf]
    %v2868 = vld [vmem:[%s0 + $0x60] sm:$0xf]
    %v2869 = vld [vmem:[%s0 + $0x64] sm:$0xf]
    %v2870 = vld [vmem:[%s0 + $0x68] sm:$0xf]
    %v2871 = vld [vmem:[%s0 + $0x6c] sm:$0xf]
    %v2872 = vld [vmem:[%s0 + $0x70] sm:$0xf]
    %v2873 = vld [vmem:[%s0 + $0x74] sm:$0xf]
    %v2874 = vld [vmem:[%s0 + $0x78] sm:$0xf]
    %v2875 = vld [vmem:[%s0 + $0x7c] sm:$0xf]
    %v2876 = vld [vmem:[%s0 + $0x80] sm:$0xf]
    %v2877 = vld [vmem:[%s0 + $0x84] sm:$0xf]
    %v2878 = vld [vmem:[%s0 + $0x88] sm:$0xf]
    %v2879 = vld [vmem:[%s0 + $0x8c] sm:$0xf]
    %v2880 = vld [vmem:[%s0 + $0x90] sm:$0xf]
    %v2881 = vld [vmem:[%s0 + $0x94] sm:$0xf]
    %v2882 = vld [vmem:[%s0 + $0x98] sm:$0xf]
    %v2883 = vld [vmem:[%s0 + $0x9c] sm:$0xf]
    %v2884 = vld [vmem:[%s0 + $0xa0] sm:$0xf]
    %v2885 = vld [vmem:[%s0 + $0xa4] sm:$0xf]
    %v2886 = vld [vmem:[%s0 + $0xa8] sm:$0xf]
    %v2887 = vld [vmem:[%s0 + $0xac] sm:$0xf]
    %v2888 = vld [vmem:[%s0 + $0xb0] sm:$0xf]
    %v2889 = vld [vmem:[%s0 + $0xb4] sm:$0xf]
    %v2890 = vld [vmem:[%s0 + $0xb8] sm:$0xf]
    %v2891 = vld [vmem:[%s0 + $0xbc] sm:$0xf]
    %v2892 = vld [vmem:[%s0 + $0xc0] sm:$0xf]
    %v2893 = vld [vmem:[%s0 + $0xc4] sm:$0xf]
    %v2894 = vld [vmem:[%s0 + $0xc8] sm:$0xf]
    %v2895 = vld [vmem:[%s0 + $0xcc] sm:$0xf]
    %v2896 = vld [vmem:[%s0 + $0xd0] sm:$0xf]
    %v2897 = vld [vmem:[%s0 + $0xd4] sm:$0xf]
    %v2898 = vld [vmem:[%s0 + $0xd8] sm:$0xf]
    %v2899 = vld [vmem:[%s0 + $0xdc] sm:$0xf]
    %v2900 = vld [vmem:[%s0 + $0xe0] sm:$0xf]
    %v2901 = vld [vmem:[%s0 + $0xe4] sm:$0xf]
    %v2902 = vld [vmem:[%s0 + $0xe8] sm:$0xf]
    %v2903 = vld [vmem:[%s0 + $0xec] sm:$0xf]
    %v2904 = vld [vmem:[%s0 + $0xf0] sm:$0xf]
    %v2905 = vld [vmem:[%s0 + $0xf4] sm:$0xf]
    %s2906 = scalar_lea.vmem %s1, 384
    %v2907 = vld [vmem:[%s2906] sm:$0xff]
    %v2908 = vld [vmem:[%s2906 + $0x8] sm:$0xff]
    %v2909 = vld [vmem:[%s2906 + $0x10] sm:$0xff]
    %v2910 = vld [vmem:[%s2906 + $0x18] sm:$0xff]
    %v2911 = vld [vmem:[%s2906 + $0x20] sm:$0xff]
    %v2912 = vld [vmem:[%s2906 + $0x28] sm:$0xff]
    %v2913 = vld [vmem:[%s2906 + $0x30] sm:$0xff]
    %v2914 = vld [vmem:[%s2906 + $0x38] sm:$0xff]
    %v2915 = vld [vmem:[%s2906 + $0x40] sm:$0xff]
    %v2916 = vld [vmem:[%s2906 + $0x48] sm:$0xff]
    %v2917 = vld [vmem:[%s2906 + $0x50] sm:$0xff]
    %v2918 = vld [vmem:[%s2906 + $0x58] sm:$0xff]
    %v2919 = vld [vmem:[%s2906 + $0x60] sm:$0xff]
    %v2920 = vld [vmem:[%s2906 + $0x68] sm:$0xff]
    %v2921 = vld [vmem:[%s2906 + $0x70] sm:$0xff]
    %v2922 = vld [vmem:[%s2906 + $0x78] sm:$0xff]
    %v2979 = vunpack.c.l.b16 %v2850
    %v2980 = vunpack.c.l.b16 %v2851
    %v2981 = vunpack.c.l.b16 %v2852
    %v2982 = vunpack.c.l.b16 %v2853
    %v2983 = vunpack.c.l.b16 %v2854
    %v2984 = vunpack.c.l.b16 %v2855
    %v2985 = vunpack.c.l.b16 %v2856
    %v2986 = vunpack.c.l.b16 %v2857
    %v2987 = vunpack.c.l.b16 %v2858
    %v2988 = vunpack.c.l.b16 %v2859
    %v2989 = vunpack.c.l.b16 %v2860
    %v2990 = vunpack.c.l.b16 %v2861
    %v2991 = vunpack.c.l.b16 %v2862
    %v2992 = vunpack.c.l.b16 %v2863
    %v2993 = vunpack.c.l.b16 %v2864
    %v2994 = vunpack.c.l.b16 %v2865
    %v2995 = vunpack.c.l.b16 %v2866
    %v2996 = vunpack.c.l.b16 %v2867
    %v2997 = vunpack.c.l.b16 %v2868
    %v2998 = vunpack.c.l.b16 %v2869
    %v2999 = vunpack.c.l.b16 %v2870
    %v3000 = vunpack.c.l.b16 %v2871
    %v3001 = vunpack.c.l.b16 %v2872
    %v3002 = vunpack.c.l.b16 %v2873
    %v3003 = vunpack.c.l.b16 %v2874
    %v3004 = vunpack.c.l.b16 %v2875
    %v3005 = vunpack.c.l.b16 %v2876
    %v3006 = vunpack.c.l.b16 %v2877
    %v3007 = vunpack.c.l.b16 %v2878
    %v3008 = vunpack.c.l.b16 %v2879
    %v3009 = vunpack.c.l.b16 %v2880
    %v3010 = vunpack.c.l.b16 %v2881
    %v3011 = vunpack.c.l.b16 %v2882
    %v3012 = vunpack.c.l.b16 %v2883
    %v3013 = vunpack.c.l.b16 %v2884
    %v3014 = vunpack.c.l.b16 %v2885
    %v3015 = vunpack.c.l.b16 %v2886
    %v3016 = vunpack.c.l.b16 %v2887
    %v3017 = vunpack.c.l.b16 %v2888
    %v3018 = vunpack.c.l.b16 %v2889
    %v3019 = vunpack.c.l.b16 %v2890
    %v3020 = vunpack.c.l.b16 %v2891
    %v3021 = vunpack.c.l.b16 %v2892
    %v3022 = vunpack.c.l.b16 %v2893
    %v3023 = vunpack.c.l.b16 %v2894
    %v3024 = vunpack.c.l.b16 %v2895
    %v3025 = vunpack.c.l.b16 %v2896
    %v3026 = vunpack.c.l.b16 %v2897
    %v3027 = vunpack.c.l.b16 %v2898
    %v3028 = vunpack.c.l.b16 %v2899
    %v3029 = vunpack.c.l.b16 %v2900
    %v3030 = vunpack.c.l.b16 %v2901
    %v3031 = vunpack.c.l.b16 %v2902
    %v3032 = vunpack.c.l.b16 %v2903
    %v3033 = vunpack.c.l.b16 %v2904
    %v3034 = vunpack.c.l.b16 %v2905
    %v3035 = vpack.c.b16 %v2980, %v2979
    %v3036 = vpack.c.b16 %v2982, %v2981
    %v3037 = vpack.c.b16 %v2984, %v2983
    %v3038 = vpack.c.b16 %v2986, %v2985
    %v3039 = vpack.c.b16 %v2988, %v2987
    %v3040 = vpack.c.b16 %v2990, %v2989
    %v3041 = vpack.c.b16 %v2992, %v2991
    %v3042 = vpack.c.b16 %v2994, %v2993
    %v3043 = vpack.c.b16 %v2996, %v2995
    %v3044 = vpack.c.b16 %v2998, %v2997
    %v3045 = vpack.c.b16 %v3000, %v2999
    %v3046 = vpack.c.b16 %v3002, %v3001
    %v3047 = vpack.c.b16 %v3004, %v3003
    %v3048 = vpack.c.b16 %v3006, %v3005
    %v3049 = vpack.c.b16 %v3008, %v3007
    %v3050 = vpack.c.b16 %v3010, %v3009
    %v3051 = vpack.c.b16 %v3012, %v3011
    %v3052 = vpack.c.b16 %v3014, %v3013
    %v3053 = vpack.c.b16 %v3016, %v3015
    %v3054 = vpack.c.b16 %v3018, %v3017
    %v3055 = vpack.c.b16 %v3020, %v3019
    %v3056 = vpack.c.b16 %v3022, %v3021
    %v3057 = vpack.c.b16 %v3024, %v3023
    %v3058 = vpack.c.b16 %v3026, %v3025
    %v3059 = vpack.c.b16 %v3028, %v3027
    %v3060 = vpack.c.b16 %v3030, %v3029
    %v3061 = vpack.c.b16 %v3032, %v3031
    %v3062 = vpack.c.b16 %v3034, %v3033
    %v3107 = vunpack.c.l.b16 %v2907
    %v3108 = vunpack.c.h.b16 %v2907
    %v3109 = vunpack.c.l.b16 %v2908
    %v3110 = vunpack.c.h.b16 %v2908
    %v3111 = vunpack.c.l.b16 %v2909
    %v3112 = vunpack.c.h.b16 %v2909
    %v3113 = vunpack.c.l.b16 %v2910
    %v3114 = vunpack.c.h.b16 %v2910
    %v3115 = vunpack.c.l.b16 %v2911
    %v3116 = vunpack.c.h.b16 %v2911
    %v3117 = vunpack.c.l.b16 %v2912
    %v3118 = vunpack.c.h.b16 %v2912
    %v3119 = vunpack.c.l.b16 %v2913
    %v3120 = vunpack.c.h.b16 %v2913
    %v3121 = vunpack.c.l.b16 %v2914
    %v3122 = vunpack.c.h.b16 %v2914
    %v3123 = vunpack.c.l.b16 %v2915
    %v3124 = vunpack.c.h.b16 %v2915
    %v3125 = vunpack.c.l.b16 %v2916
    %v3126 = vunpack.c.h.b16 %v2916
    %v3127 = vunpack.c.l.b16 %v2917
    %v3128 = vunpack.c.h.b16 %v2917
    %v3129 = vunpack.c.l.b16 %v2918
    %v3130 = vunpack.c.h.b16 %v2918
    %v3131 = vunpack.c.l.b16 %v2919
    %v3132 = vunpack.c.h.b16 %v2919
    %v3133 = vunpack.c.l.b16 %v2920
    %v3134 = vunpack.c.h.b16 %v2920
    %v3135 = vunpack.c.l.b16 %v2921
    %v3136 = vunpack.c.h.b16 %v2921
    %v3137 = vunpack.c.l.b16 %v2922
    %v3138 = vunpack.c.h.b16 %v2922
    %v3139 = vpack.c.b16 %v3109, %v3107
    %v3140 = vpack.c.b16 %v3110, %v3108
    %v3141 = vpack.c.b16 %v3113, %v3111
    %v3142 = vpack.c.b16 %v3114, %v3112
    %v3143 = vpack.c.b16 %v3117, %v3115
    %v3144 = vpack.c.b16 %v3118, %v3116
    %v3145 = vpack.c.b16 %v3121, %v3119
    %v3146 = vpack.c.b16 %v3122, %v3120
    %v3147 = vpack.c.b16 %v3125, %v3123
    %v3148 = vpack.c.b16 %v3126, %v3124
    %v3149 = vpack.c.b16 %v3129, %v3127
    %v3150 = vpack.c.b16 %v3130, %v3128
    %v3151 = vpack.c.b16 %v3133, %v3131
    %v3152 = vpack.c.b16 %v3134, %v3132
    %v3153 = vpack.c.b16 %v3137, %v3135
    %v3154 = vpack.c.b16 %v3138, %v3136
    %3171 = vmatprep.subr.bf16.mxu0 %v3154
    %3172 = vmatpush1.bf16.msra.mxu0 %v3153
    %3173 = vmatprep.subr.bf16.mxu0 %v3152
    %3174 = vmatpush1.bf16.msra.mxu0 %v3151
    %3175 = vmatprep.subr.bf16.mxu0 %v3150
    %3176 = vmatpush1.bf16.msra.mxu0 %v3149
    %3177 = vmatprep.subr.bf16.mxu0 %v3148
    %3178 = vmatpush1.bf16.msra.mxu0 %v3147
    %3179 = vmatprep.subr.bf16.mxu0 %v3146
    %3180 = vmatpush1.bf16.msra.mxu0 %v3145
    %3181 = vmatprep.subr.bf16.mxu0 %v3144
    %3182 = vmatpush1.bf16.msra.mxu0 %v3143
    %3183 = vmatprep.subr.bf16.mxu0 %v3142
    %3184 = vmatpush1.bf16.msra.mxu0 %v3141
    %3185 = vmatprep.subr.bf16.mxu0 %v3140
    %3186 = vmatpush1.bf16.msra.mxu0 %v3139
    %3187 = vmatprep.subr.bf16.mxu0 0
    %3188 = vmatpush2.bf16.msra.mxu0 0
    %3189 = vmatprep.subr.bf16.mxu0 0
    %3190 = vmatpush2.bf16.msra.mxu0 0
    %3191 = vmatprep.subr.bf16.mxu0 0
    %3192 = vmatpush2.bf16.msra.mxu0 0
    %3193 = vmatprep.subr.bf16.mxu0 0
    %3194 = vmatpush2.bf16.msra.mxu0 0
    %3195 = vmatprep.subr.bf16.mxu0 0
    %3196 = vmatpush2.bf16.msra.mxu0 0
    %3197 = vmatprep.subr.bf16.mxu0 0
    %3198 = vmatpush2.bf16.msra.mxu0 0
    %3199 = vmatprep.subr.bf16.mxu0 0
    %3200 = vmatpush2.bf16.msra.mxu0 0
    %3201 = vmatprep.subr.bf16.mxu0 0
    %3202 = vmatpush2.bf16.msra.mxu0 0
    %3203 = vmatprep.mubr.bf16.mxu0 0
    %3204 = vmatmul.mubr.bf16.gmra.mxu0 %v3035
    %v3205 = vpop.f32.mrf.mxu0
    %v3206 = vadd.f32 0.0, %v3205
    %v3207 = vpop.f32.mrf.mxu0
    %v3208 = vadd.f32 0.0, %v3207
    %v3209 = vpop.f32.mrf.mxu0
    %v3210 = vadd.f32 0.0, %v3209
    %v3211 = vpop.f32.mrf.mxu0
    %v3212 = vadd.f32 0.0, %v3211
    %3213 = vmatprep.mubr.bf16.mxu0 0
    %3214 = vmatmul.mubr.bf16.gmra.mxu0 %v3036
    %v3215 = vpop.f32.mrf.mxu0
    %v3216 = vadd.f32 0.0, %v3215
    %v3217 = vpop.f32.mrf.mxu0
    %v3218 = vadd.f32 0.0, %v3217
    %v3219 = vpop.f32.mrf.mxu0
    %v3220 = vadd.f32 0.0, %v3219
    %v3221 = vpop.f32.mrf.mxu0
    %v3222 = vadd.f32 0.0, %v3221
    %3223 = vmatprep.mubr.bf16.mxu0 0
    %3224 = vmatmul.mubr.bf16.gmra.mxu0 %v3037
    %v3225 = vpop.f32.mrf.mxu0
    %v3226 = vadd.f32 0.0, %v3225
    %v3227 = vpop.f32.mrf.mxu0
    %v3228 = vadd.f32 0.0, %v3227
    %v3229 = vpop.f32.mrf.mxu0
    %v3230 = vadd.f32 0.0, %v3229
    %v3231 = vpop.f32.mrf.mxu0
    %v3232 = vadd.f32 0.0, %v3231
    %3233 = vmatprep.mubr.bf16.mxu0 0
    %3234 = vmatmul.mubr.bf16.gmra.mxu0 %v3038
    %v3235 = vpop.f32.mrf.mxu0
    %v3236 = vadd.f32 0.0, %v3235
    %v3237 = vpop.f32.mrf.mxu0
    %v3238 = vadd.f32 0.0, %v3237
    %v3239 = vpop.f32.mrf.mxu0
    %v3240 = vadd.f32 0.0, %v3239
    %v3241 = vpop.f32.mrf.mxu0
    %v3242 = vadd.f32 0.0, %v3241
    %3243 = vmatprep.mubr.bf16.mxu0 0
    %3244 = vmatmul.mubr.bf16.gmra.mxu0 %v3039
    %v3245 = vpop.f32.mrf.mxu0
    %v3246 = vadd.f32 0.0, %v3245
    %v3247 = vpop.f32.mrf.mxu0
    %v3248 = vadd.f32 0.0, %v3247
    %v3249 = vpop.f32.mrf.mxu0
    %v3250 = vadd.f32 0.0, %v3249
    %v3251 = vpop.f32.mrf.mxu0
    %v3252 = vadd.f32 0.0, %v3251
    %3253 = vmatprep.mubr.bf16.mxu0 0
    %3254 = vmatmul.mubr.bf16.gmra.mxu0 %v3040
    %v3255 = vpop.f32.mrf.mxu0
    %v3256 = vadd.f32 0.0, %v3255
    %v3257 = vpop.f32.mrf.mxu0
    %v3258 = vadd.f32 0.0, %v3257
    %v3259 = vpop.f32.mrf.mxu0
    %v3260 = vadd.f32 0.0, %v3259
    %v3261 = vpop.f32.mrf.mxu0
    %v3262 = vadd.f32 0.0, %v3261
    %3263 = vmatprep.mubr.bf16.mxu0 0
    %3264 = vmatmul.mubr.bf16.gmra.mxu0 %v3041
    %v3265 = vpop.f32.mrf.mxu0
    %v3266 = vadd.f32 0.0, %v3265
    %v3267 = vpop.f32.mrf.mxu0
    %v3268 = vadd.f32 0.0, %v3267
    %v3269 = vpop.f32.mrf.mxu0
    %v3270 = vadd.f32 0.0, %v3269
    %v3271 = vpop.f32.mrf.mxu0
    %v3272 = vadd.f32 0.0, %v3271
    %3273 = vmatprep.mubr.bf16.mxu0 0
    %3274 = vmatmul.mubr.bf16.gmra.mxu0 %v3042
    %v3275 = vpop.f32.mrf.mxu0
    %v3276 = vadd.f32 0.0, %v3275
    %v3277 = vpop.f32.mrf.mxu0
    %v3278 = vadd.f32 0.0, %v3277
    %v3279 = vpop.f32.mrf.mxu0
    %v3280 = vadd.f32 0.0, %v3279
    %v3281 = vpop.f32.mrf.mxu0
    %v3282 = vadd.f32 0.0, %v3281
    %3283 = vmatprep.mubr.bf16.mxu0 0
    %3284 = vmatmul.mubr.bf16.gmra.mxu0 %v3043
    %v3285 = vpop.f32.mrf.mxu0
    %v3286 = vadd.f32 0.0, %v3285
    %v3287 = vpop.f32.mrf.mxu0
    %v3288 = vadd.f32 0.0, %v3287
    %v3289 = vpop.f32.mrf.mxu0
    %v3290 = vadd.f32 0.0, %v3289
    %v3291 = vpop.f32.mrf.mxu0
    %v3292 = vadd.f32 0.0, %v3291
    %3293 = vmatprep.mubr.bf16.mxu0 0
    %3294 = vmatmul.mubr.bf16.gmra.mxu0 %v3044
    %v3295 = vpop.f32.mrf.mxu0
    %v3296 = vadd.f32 0.0, %v3295
    %v3297 = vpop.f32.mrf.mxu0
    %v3298 = vadd.f32 0.0, %v3297
    %v3299 = vpop.f32.mrf.mxu0
    %v3300 = vadd.f32 0.0, %v3299
    %v3301 = vpop.f32.mrf.mxu0
    %v3302 = vadd.f32 0.0, %v3301
    %3303 = vmatprep.mubr.bf16.mxu0 0
    %3304 = vmatmul.mubr.bf16.gmra.mxu0 %v3045
    %v3305 = vpop.f32.mrf.mxu0
    %v3306 = vadd.f32 0.0, %v3305
    %v3307 = vpop.f32.mrf.mxu0
    %v3308 = vadd.f32 0.0, %v3307
    %v3309 = vpop.f32.mrf.mxu0
    %v3310 = vadd.f32 0.0, %v3309
    %v3311 = vpop.f32.mrf.mxu0
    %v3312 = vadd.f32 0.0, %v3311
    %3313 = vmatprep.mubr.bf16.mxu0 0
    %3314 = vmatmul.mubr.bf16.gmra.mxu0 %v3046
    %v3315 = vpop.f32.mrf.mxu0
    %v3316 = vadd.f32 0.0, %v3315
    %v3317 = vpop.f32.mrf.mxu0
    %v3318 = vadd.f32 0.0, %v3317
    %v3319 = vpop.f32.mrf.mxu0
    %v3320 = vadd.f32 0.0, %v3319
    %v3321 = vpop.f32.mrf.mxu0
    %v3322 = vadd.f32 0.0, %v3321
    %3323 = vmatprep.mubr.bf16.mxu0 0
    %3324 = vmatmul.mubr.bf16.gmra.mxu0 %v3047
    %v3325 = vpop.f32.mrf.mxu0
    %v3326 = vadd.f32 0.0, %v3325
    %v3327 = vpop.f32.mrf.mxu0
    %v3328 = vadd.f32 0.0, %v3327
    %v3329 = vpop.f32.mrf.mxu0
    %v3330 = vadd.f32 0.0, %v3329
    %v3331 = vpop.f32.mrf.mxu0
    %v3332 = vadd.f32 0.0, %v3331
    %3333 = vmatprep.mubr.bf16.mxu0 0
    %3334 = vmatmul.mubr.bf16.gmra.mxu0 %v3048
    %v3335 = vpop.f32.mrf.mxu0
    %v3336 = vadd.f32 0.0, %v3335
    %v3337 = vpop.f32.mrf.mxu0
    %v3338 = vadd.f32 0.0, %v3337
    %v3339 = vpop.f32.mrf.mxu0
    %v3340 = vadd.f32 0.0, %v3339
    %v3341 = vpop.f32.mrf.mxu0
    %v3342 = vadd.f32 0.0, %v3341
    %3343 = vmatprep.mubr.bf16.mxu0 0
    %3344 = vmatmul.mubr.bf16.gmra.mxu0 %v3049
    %v3345 = vpop.f32.mrf.mxu0
    %v3346 = vadd.f32 0.0, %v3345
    %v3347 = vpop.f32.mrf.mxu0
    %v3348 = vadd.f32 0.0, %v3347
    %v3349 = vpop.f32.mrf.mxu0
    %v3350 = vadd.f32 0.0, %v3349
    %v3351 = vpop.f32.mrf.mxu0
    %v3352 = vadd.f32 0.0, %v3351
    %3353 = vmatprep.mubr.bf16.mxu0 0
    %3354 = vmatmul.mubr.bf16.gmra.mxu0 %v3050
    %v3355 = vpop.f32.mrf.mxu0
    %v3356 = vadd.f32 0.0, %v3355
    %v3357 = vpop.f32.mrf.mxu0
    %v3358 = vadd.f32 0.0, %v3357
    %v3359 = vpop.f32.mrf.mxu0
    %v3360 = vadd.f32 0.0, %v3359
    %v3361 = vpop.f32.mrf.mxu0
    %v3362 = vadd.f32 0.0, %v3361
    %3363 = vmatprep.mubr.bf16.mxu0 0
    %3364 = vmatmul.mubr.bf16.gmra.mxu0 %v3051
    %v3365 = vpop.f32.mrf.mxu0
    %v3366 = vadd.f32 0.0, %v3365
    %v3367 = vpop.f32.mrf.mxu0
    %v3368 = vadd.f32 0.0, %v3367
    %v3369 = vpop.f32.mrf.mxu0
    %v3370 = vadd.f32 0.0, %v3369
    %v3371 = vpop.f32.mrf.mxu0
    %v3372 = vadd.f32 0.0, %v3371
    %3373 = vmatprep.mubr.bf16.mxu0 0
    %3374 = vmatmul.mubr.bf16.gmra.mxu0 %v3052
    %v3375 = vpop.f32.mrf.mxu0
    %v3376 = vadd.f32 0.0, %v3375
    %v3377 = vpop.f32.mrf.mxu0
    %v3378 = vadd.f32 0.0, %v3377
    %v3379 = vpop.f32.mrf.mxu0
    %v3380 = vadd.f32 0.0, %v3379
    %v3381 = vpop.f32.mrf.mxu0
    %v3382 = vadd.f32 0.0, %v3381
    %3383 = vmatprep.mubr.bf16.mxu0 0
    %3384 = vmatmul.mubr.bf16.gmra.mxu0 %v3053
    %v3385 = vpop.f32.mrf.mxu0
    %v3386 = vadd.f32 0.0, %v3385
    %v3387 = vpop.f32.mrf.mxu0
    %v3388 = vadd.f32 0.0, %v3387
    %v3389 = vpop.f32.mrf.mxu0
    %v3390 = vadd.f32 0.0, %v3389
    %v3391 = vpop.f32.mrf.mxu0
    %v3392 = vadd.f32 0.0, %v3391
    %3393 = vmatprep.mubr.bf16.mxu0 0
    %3394 = vmatmul.mubr.bf16.gmra.mxu0 %v3054
    %v3395 = vpop.f32.mrf.mxu0
    %v3396 = vadd.f32 0.0, %v3395
    %v3397 = vpop.f32.mrf.mxu0
    %v3398 = vadd.f32 0.0, %v3397
    %v3399 = vpop.f32.mrf.mxu0
    %v3400 = vadd.f32 0.0, %v3399
    %v3401 = vpop.f32.mrf.mxu0
    %v3402 = vadd.f32 0.0, %v3401
    %3403 = vmatprep.mubr.bf16.mxu0 0
    %3404 = vmatmul.mubr.bf16.gmra.mxu0 %v3055
    %v3405 = vpop.f32.mrf.mxu0
    %v3406 = vadd.f32 0.0, %v3405
    %v3407 = vpop.f32.mrf.mxu0
    %v3408 = vadd.f32 0.0, %v3407
    %v3409 = vpop.f32.mrf.mxu0
    %v3410 = vadd.f32 0.0, %v3409
    %v3411 = vpop.f32.mrf.mxu0
    %v3412 = vadd.f32 0.0, %v3411
    %3413 = vmatprep.mubr.bf16.mxu0 0
    %3414 = vmatmul.mubr.bf16.gmra.mxu0 %v3056
    %v3415 = vpop.f32.mrf.mxu0
    %v3416 = vadd.f32 0.0, %v3415
    %v3417 = vpop.f32.mrf.mxu0
    %v3418 = vadd.f32 0.0, %v3417
    %v3419 = vpop.f32.mrf.mxu0
    %v3420 = vadd.f32 0.0, %v3419
    %v3421 = vpop.f32.mrf.mxu0
    %v3422 = vadd.f32 0.0, %v3421
    %3423 = vmatprep.mubr.bf16.mxu0 0
    %3424 = vmatmul.mubr.bf16.gmra.mxu0 %v3057
    %v3425 = vpop.f32.mrf.mxu0
    %v3426 = vadd.f32 0.0, %v3425
    %v3427 = vpop.f32.mrf.mxu0
    %v3428 = vadd.f32 0.0, %v3427
    %v3429 = vpop.f32.mrf.mxu0
    %v3430 = vadd.f32 0.0, %v3429
    %v3431 = vpop.f32.mrf.mxu0
    %v3432 = vadd.f32 0.0, %v3431
    %3433 = vmatprep.mubr.bf16.mxu0 0
    %3434 = vmatmul.mubr.bf16.gmra.mxu0 %v3058
    %v3435 = vpop.f32.mrf.mxu0
    %v3436 = vadd.f32 0.0, %v3435
    %v3437 = vpop.f32.mrf.mxu0
    %v3438 = vadd.f32 0.0, %v3437
    %v3439 = vpop.f32.mrf.mxu0
    %v3440 = vadd.f32 0.0, %v3439
    %v3441 = vpop.f32.mrf.mxu0
    %v3442 = vadd.f32 0.0, %v3441
    %3443 = vmatprep.mubr.bf16.mxu0 0
    %3444 = vmatmul.mubr.bf16.gmra.mxu0 %v3059
    %v3445 = vpop.f32.mrf.mxu0
    %v3446 = vadd.f32 0.0, %v3445
    %v3447 = vpop.f32.mrf.mxu0
    %v3448 = vadd.f32 0.0, %v3447
    %v3449 = vpop.f32.mrf.mxu0
    %v3450 = vadd.f32 0.0, %v3449
    %v3451 = vpop.f32.mrf.mxu0
    %v3452 = vadd.f32 0.0, %v3451
    %3453 = vmatprep.mubr.bf16.mxu0 0
    %3454 = vmatmul.mubr.bf16.gmra.mxu0 %v3060
    %v3455 = vpop.f32.mrf.mxu0
    %v3456 = vadd.f32 0.0, %v3455
    %v3457 = vpop.f32.mrf.mxu0
    %v3458 = vadd.f32 0.0, %v3457
    %v3459 = vpop.f32.mrf.mxu0
    %v3460 = vadd.f32 0.0, %v3459
    %v3461 = vpop.f32.mrf.mxu0
    %v3462 = vadd.f32 0.0, %v3461
    %3463 = vmatprep.mubr.bf16.mxu0 0
    %3464 = vmatmul.mubr.bf16.gmra.mxu0 %v3061
    %v3465 = vpop.f32.mrf.mxu0
    %v3466 = vadd.f32 0.0, %v3465
    %v3467 = vpop.f32.mrf.mxu0
    %v3468 = vadd.f32 0.0, %v3467
    %v3469 = vpop.f32.mrf.mxu0
    %v3470 = vadd.f32 0.0, %v3469
    %v3471 = vpop.f32.mrf.mxu0
    %v3472 = vadd.f32 0.0, %v3471
    %3473 = vmatprep.mubr.bf16.mxu0 0
    %3474 = vmatmul.mubr.bf16.gmra.mxu0 %v3062
    %v3475 = vpop.f32.mrf.mxu0
    %v3476 = vadd.f32 0.0, %v3475
    %v3477 = vpop.f32.mrf.mxu0
    %v3478 = vadd.f32 0.0, %v3477
    %v3479 = vpop.f32.mrf.mxu0
    %v3480 = vadd.f32 0.0, %v3479
    %v3481 = vpop.f32.mrf.mxu0
    %v3482 = vadd.f32 0.0, %v3481
    %3483 = vdwg.mxu0
    %v3484 = vadd.f32 %v2738, %v3206
    %v3485 = vadd.f32 %v2739, %v3208
    %v3486 = vadd.f32 %v2740, %v3210
    %v3487 = vadd.f32 %v2741, %v3212
    %v3488 = vadd.f32 %v2742, %v3216
    %v3489 = vadd.f32 %v2743, %v3218
    %v3490 = vadd.f32 %v2744, %v3220
    %v3491 = vadd.f32 %v2745, %v3222
    %v3492 = vadd.f32 %v2746, %v3226
    %v3493 = vadd.f32 %v2747, %v3228
    %v3494 = vadd.f32 %v2748, %v3230
    %v3495 = vadd.f32 %v2749, %v3232
    %v3496 = vadd.f32 %v2750, %v3236
    %v3497 = vadd.f32 %v2751, %v3238
    %v3498 = vadd.f32 %v2752, %v3240
    %v3499 = vadd.f32 %v2753, %v3242
    %v3500 = vadd.f32 %v2754, %v3246
    %v3501 = vadd.f32 %v2755, %v3248
    %v3502 = vadd.f32 %v2756, %v3250
    %v3503 = vadd.f32 %v2757, %v3252
    %v3504 = vadd.f32 %v2758, %v3256
    %v3505 = vadd.f32 %v2759, %v3258
    %v3506 = vadd.f32 %v2760, %v3260
    %v3507 = vadd.f32 %v2761, %v3262
    %v3508 = vadd.f32 %v2762, %v3266
    %v3509 = vadd.f32 %v2763, %v3268
    %v3510 = vadd.f32 %v2764, %v3270
    %v3511 = vadd.f32 %v2765, %v3272
    %v3512 = vadd.f32 %v2766, %v3276
    %v3513 = vadd.f32 %v2767, %v3278
    %v3514 = vadd.f32 %v2768, %v3280
    %v3515 = vadd.f32 %v2769, %v3282
    %v3516 = vadd.f32 %v2770, %v3286
    %v3517 = vadd.f32 %v2771, %v3288
    %v3518 = vadd.f32 %v2772, %v3290
    %v3519 = vadd.f32 %v2773, %v3292
    %v3520 = vadd.f32 %v2774, %v3296
    %v3521 = vadd.f32 %v2775, %v3298
    %v3522 = vadd.f32 %v2776, %v3300
    %v3523 = vadd.f32 %v2777, %v3302
    %v3524 = vadd.f32 %v2778, %v3306
    %v3525 = vadd.f32 %v2779, %v3308
    %v3526 = vadd.f32 %v2780, %v3310
    %v3527 = vadd.f32 %v2781, %v3312
    %v3528 = vadd.f32 %v2782, %v3316
    %v3529 = vadd.f32 %v2783, %v3318
    %v3530 = vadd.f32 %v2784, %v3320
    %v3531 = vadd.f32 %v2785, %v3322
    %v3532 = vadd.f32 %v2786, %v3326
    %v3533 = vadd.f32 %v2787, %v3328
    %v3534 = vadd.f32 %v2788, %v3330
    %v3535 = vadd.f32 %v2789, %v3332
    %v3536 = vadd.f32 %v2790, %v3336
    %v3537 = vadd.f32 %v2791, %v3338
    %v3538 = vadd.f32 %v2792, %v3340
    %v3539 = vadd.f32 %v2793, %v3342
    %v3540 = vadd.f32 %v2794, %v3346
    %v3541 = vadd.f32 %v2795, %v3348
    %v3542 = vadd.f32 %v2796, %v3350
    %v3543 = vadd.f32 %v2797, %v3352
    %v3544 = vadd.f32 %v2798, %v3356
    %v3545 = vadd.f32 %v2799, %v3358
    %v3546 = vadd.f32 %v2800, %v3360
    %v3547 = vadd.f32 %v2801, %v3362
    %v3548 = vadd.f32 %v2802, %v3366
    %v3549 = vadd.f32 %v2803, %v3368
    %v3550 = vadd.f32 %v2804, %v3370
    %v3551 = vadd.f32 %v2805, %v3372
    %v3552 = vadd.f32 %v2806, %v3376
    %v3553 = vadd.f32 %v2807, %v3378
    %v3554 = vadd.f32 %v2808, %v3380
    %v3555 = vadd.f32 %v2809, %v3382
    %v3556 = vadd.f32 %v2810, %v3386
    %v3557 = vadd.f32 %v2811, %v3388
    %v3558 = vadd.f32 %v2812, %v3390
    %v3559 = vadd.f32 %v2813, %v3392
    %v3560 = vadd.f32 %v2814, %v3396
    %v3561 = vadd.f32 %v2815, %v3398
    %v3562 = vadd.f32 %v2816, %v3400
    %v3563 = vadd.f32 %v2817, %v3402
    %v3564 = vadd.f32 %v2818, %v3406
    %v3565 = vadd.f32 %v2819, %v3408
    %v3566 = vadd.f32 %v2820, %v3410
    %v3567 = vadd.f32 %v2821, %v3412
    %v3568 = vadd.f32 %v2822, %v3416
    %v3569 = vadd.f32 %v2823, %v3418
    %v3570 = vadd.f32 %v2824, %v3420
    %v3571 = vadd.f32 %v2825, %v3422
    %v3572 = vadd.f32 %v2826, %v3426
    %v3573 = vadd.f32 %v2827, %v3428
    %v3574 = vadd.f32 %v2828, %v3430
    %v3575 = vadd.f32 %v2829, %v3432
    %v3576 = vadd.f32 %v2830, %v3436
    %v3577 = vadd.f32 %v2831, %v3438
    %v3578 = vadd.f32 %v2832, %v3440
    %v3579 = vadd.f32 %v2833, %v3442
    %v3580 = vadd.f32 %v2834, %v3446
    %v3581 = vadd.f32 %v2835, %v3448
    %v3582 = vadd.f32 %v2836, %v3450
    %v3583 = vadd.f32 %v2837, %v3452
    %v3584 = vadd.f32 %v2838, %v3456
    %v3585 = vadd.f32 %v2839, %v3458
    %v3586 = vadd.f32 %v2840, %v3460
    %v3587 = vadd.f32 %v2841, %v3462
    %v3588 = vadd.f32 %v2842, %v3466
    %v3589 = vadd.f32 %v2843, %v3468
    %v3590 = vadd.f32 %v2844, %v3470
    %v3591 = vadd.f32 %v2845, %v3472
    %v3592 = vadd.f32 %v2846, %v3476
    %v3593 = vadd.f32 %v2847, %v3478
    %v3594 = vadd.f32 %v2848, %v3480
    %v3595 = vadd.f32 %v2849, %v3482
    %3596 = vst [vmem:[#allocation2] sm:$0xff] %v3484
    %3597 = vst [vmem:[#allocation2 + $0x8] sm:$0xff] %v3485
    %3598 = vst [vmem:[#allocation2 + $0x10] sm:$0xff] %v3486
    %3599 = vst [vmem:[#allocation2 + $0x18] sm:$0xff] %v3487
    %3600 = vst [vmem:[#allocation2 + $0x20] sm:$0xff] %v3488
    %3601 = vst [vmem:[#allocation2 + $0x28] sm:$0xff] %v3489
    %3602 = vst [vmem:[#allocation2 + $0x30] sm:$0xff] %v3490
    %3603 = vst [vmem:[#allocation2 + $0x38] sm:$0xff] %v3491
    %3604 = vst [vmem:[#allocation2 + $0x40] sm:$0xff] %v3492
    %3605 = vst [vmem:[#allocation2 + $0x48] sm:$0xff] %v3493
    %3606 = vst [vmem:[#allocation2 + $0x50] sm:$0xff] %v3494
    %3607 = vst [vmem:[#allocation2 + $0x58] sm:$0xff] %v3495
    %3608 = vst [vmem:[#allocation2 + $0x60] sm:$0xff] %v3496
    %3609 = vst [vmem:[#allocation2 + $0x68] sm:$0xff] %v3497
    %3610 = vst [vmem:[#allocation2 + $0x70] sm:$0xff] %v3498
    %3611 = vst [vmem:[#allocation2 + $0x78] sm:$0xff] %v3499
    %3612 = vst [vmem:[#allocation2 + $0x80] sm:$0xff] %v3500
    %3613 = vst [vmem:[#allocation2 + $0x88] sm:$0xff] %v3501
    %3614 = vst [vmem:[#allocation2 + $0x90] sm:$0xff] %v3502
    %3615 = vst [vmem:[#allocation2 + $0x98] sm:$0xff] %v3503
    %3616 = vst [vmem:[#allocation2 + $0xa0] sm:$0xff] %v3504
    %3617 = vst [vmem:[#allocation2 + $0xa8] sm:$0xff] %v3505
    %3618 = vst [vmem:[#allocation2 + $0xb0] sm:$0xff] %v3506
    %3619 = vst [vmem:[#allocation2 + $0xb8] sm:$0xff] %v3507
    %3620 = vst [vmem:[#allocation2 + $0xc0] sm:$0xff] %v3508
    %3621 = vst [vmem:[#allocation2 + $0xc8] sm:$0xff] %v3509
    %3622 = vst [vmem:[#allocation2 + $0xd0] sm:$0xff] %v3510
    %3623 = vst [vmem:[#allocation2 + $0xd8] sm:$0xff] %v3511
    %3624 = vst [vmem:[#allocation2 + $0xe0] sm:$0xff] %v3512
    %3625 = vst [vmem:[#allocation2 + $0xe8] sm:$0xff] %v3513
    %3626 = vst [vmem:[#allocation2 + $0xf0] sm:$0xff] %v3514
    %3627 = vst [vmem:[#allocation2 + $0xf8] sm:$0xff] %v3515
    %3628 = vst [vmem:[#allocation2 + $0x100] sm:$0xff] %v3516
    %3629 = vst [vmem:[#allocation2 + $0x108] sm:$0xff] %v3517
    %3630 = vst [vmem:[#allocation2 + $0x110] sm:$0xff] %v3518
    %3631 = vst [vmem:[#allocation2 + $0x118] sm:$0xff] %v3519
    %3632 = vst [vmem:[#allocation2 + $0x120] sm:$0xff] %v3520
    %3633 = vst [vmem:[#allocation2 + $0x128] sm:$0xff] %v3521
    %3634 = vst [vmem:[#allocation2 + $0x130] sm:$0xff] %v3522
    %3635 = vst [vmem:[#allocation2 + $0x138] sm:$0xff] %v3523
    %3636 = vst [vmem:[#allocation2 + $0x140] sm:$0xff] %v3524
    %3637 = vst [vmem:[#allocation2 + $0x148] sm:$0xff] %v3525
    %3638 = vst [vmem:[#allocation2 + $0x150] sm:$0xff] %v3526
    %3639 = vst [vmem:[#allocation2 + $0x158] sm:$0xff] %v3527
    %3640 = vst [vmem:[#allocation2 + $0x160] sm:$0xff] %v3528
    %3641 = vst [vmem:[#allocation2 + $0x168] sm:$0xff] %v3529
    %3642 = vst [vmem:[#allocation2 + $0x170] sm:$0xff] %v3530
    %3643 = vst [vmem:[#allocation2 + $0x178] sm:$0xff] %v3531
    %3644 = vst [vmem:[#allocation2 + $0x180] sm:$0xff] %v3532
    %3645 = vst [vmem:[#allocation2 + $0x188] sm:$0xff] %v3533
    %3646 = vst [vmem:[#allocation2 + $0x190] sm:$0xff] %v3534
    %3647 = vst [vmem:[#allocation2 + $0x198] sm:$0xff] %v3535
    %3648 = vst [vmem:[#allocation2 + $0x1a0] sm:$0xff] %v3536
    %3649 = vst [vmem:[#allocation2 + $0x1a8] sm:$0xff] %v3537
    %3650 = vst [vmem:[#allocation2 + $0x1b0] sm:$0xff] %v3538
    %3651 = vst [vmem:[#allocation2 + $0x1b8] sm:$0xff] %v3539
    %3652 = vst [vmem:[#allocation2 + $0x1c0] sm:$0xff] %v3540
    %3653 = vst [vmem:[#allocation2 + $0x1c8] sm:$0xff] %v3541
    %3654 = vst [vmem:[#allocation2 + $0x1d0] sm:$0xff] %v3542
    %3655 = vst [vmem:[#allocation2 + $0x1d8] sm:$0xff] %v3543
    %3656 = vst [vmem:[#allocation2 + $0x1e0] sm:$0xff] %v3544
    %3657 = vst [vmem:[#allocation2 + $0x1e8] sm:$0xff] %v3545
    %3658 = vst [vmem:[#allocation2 + $0x1f0] sm:$0xff] %v3546
    %3659 = vst [vmem:[#allocation2 + $0x1f8] sm:$0xff] %v3547
    %3660 = vst [vmem:[#allocation2 + $0x200] sm:$0xff] %v3548
    %3661 = vst [vmem:[#allocation2 + $0x208] sm:$0xff] %v3549
    %3662 = vst [vmem:[#allocation2 + $0x210] sm:$0xff] %v3550
    %3663 = vst [vmem:[#allocation2 + $0x218] sm:$0xff] %v3551
    %3664 = vst [vmem:[#allocation2 + $0x220] sm:$0xff] %v3552
    %3665 = vst [vmem:[#allocation2 + $0x228] sm:$0xff] %v3553
    %3666 = vst [vmem:[#allocation2 + $0x230] sm:$0xff] %v3554
    %3667 = vst [vmem:[#allocation2 + $0x238] sm:$0xff] %v3555
    %3668 = vst [vmem:[#allocation2 + $0x240] sm:$0xff] %v3556
    %3669 = vst [vmem:[#allocation2 + $0x248] sm:$0xff] %v3557
    %3670 = vst [vmem:[#allocation2 + $0x250] sm:$0xff] %v3558
    %3671 = vst [vmem:[#allocation2 + $0x258] sm:$0xff] %v3559
    %3672 = vst [vmem:[#allocation2 + $0x260] sm:$0xff] %v3560
    %3673 = vst [vmem:[#allocation2 + $0x268] sm:$0xff] %v3561
    %3674 = vst [vmem:[#allocation2 + $0x270] sm:$0xff] %v3562
    %3675 = vst [vmem:[#allocation2 + $0x278] sm:$0xff] %v3563
    %3676 = vst [vmem:[#allocation2 + $0x280] sm:$0xff] %v3564
    %3677 = vst [vmem:[#allocation2 + $0x288] sm:$0xff] %v3565
    %3678 = vst [vmem:[#allocation2 + $0x290] sm:$0xff] %v3566
    %3679 = vst [vmem:[#allocation2 + $0x298] sm:$0xff] %v3567
    %3680 = vst [vmem:[#allocation2 + $0x2a0] sm:$0xff] %v3568
    %3681 = vst [vmem:[#allocation2 + $0x2a8] sm:$0xff] %v3569
    %3682 = vst [vmem:[#allocation2 + $0x2b0] sm:$0xff] %v3570
    %3683 = vst [vmem:[#allocation2 + $0x2b8] sm:$0xff] %v3571
    %3684 = vst [vmem:[#allocation2 + $0x2c0] sm:$0xff] %v3572
    %3685 = vst [vmem:[#allocation2 + $0x2c8] sm:$0xff] %v3573
    %3686 = vst [vmem:[#allocation2 + $0x2d0] sm:$0xff] %v3574
    %3687 = vst [vmem:[#allocation2 + $0x2d8] sm:$0xff] %v3575
    %3688 = vst [vmem:[#allocation2 + $0x2e0] sm:$0xff] %v3576
    %3689 = vst [vmem:[#allocation2 + $0x2e8] sm:$0xff] %v3577
    %3690 = vst [vmem:[#allocation2 + $0x2f0] sm:$0xff] %v3578
    %3691 = vst [vmem:[#allocation2 + $0x2f8] sm:$0xff] %v3579
    %3692 = vst [vmem:[#allocation2 + $0x300] sm:$0xff] %v3580
    %3693 = vst [vmem:[#allocation2 + $0x308] sm:$0xff] %v3581
    %3694 = vst [vmem:[#allocation2 + $0x310] sm:$0xff] %v3582
    %3695 = vst [vmem:[#allocation2 + $0x318] sm:$0xff] %v3583
    %3696 = vst [vmem:[#allocation2 + $0x320] sm:$0xff] %v3584
    %3697 = vst [vmem:[#allocation2 + $0x328] sm:$0xff] %v3585
    %3698 = vst [vmem:[#allocation2 + $0x330] sm:$0xff] %v3586
    %3699 = vst [vmem:[#allocation2 + $0x338] sm:$0xff] %v3587
    %3700 = vst [vmem:[#allocation2 + $0x340] sm:$0xff] %v3588
    %3701 = vst [vmem:[#allocation2 + $0x348] sm:$0xff] %v3589
    %3702 = vst [vmem:[#allocation2 + $0x350] sm:$0xff] %v3590
    %3703 = vst [vmem:[#allocation2 + $0x358] sm:$0xff] %v3591
    %3704 = vst [vmem:[#allocation2 + $0x360] sm:$0xff] %v3592
    %3705 = vst [vmem:[#allocation2 + $0x368] sm:$0xff] %v3593
    %3706 = vst [vmem:[#allocation2 + $0x370] sm:$0xff] %v3594
    %3707 = vst [vmem:[#allocation2 + $0x378] sm:$0xff] %v3595
    %v3708 = vld [vmem:[#allocation2] sm:$0xff]
    %v3709 = vld [vmem:[#allocation2 + $0x8] sm:$0xff]
    %v3710 = vld [vmem:[#allocation2 + $0x10] sm:$0xff]
    %v3711 = vld [vmem:[#allocation2 + $0x18] sm:$0xff]
    %v3712 = vld [vmem:[#allocation2 + $0x20] sm:$0xff]
    %v3713 = vld [vmem:[#allocation2 + $0x28] sm:$0xff]
    %v3714 = vld [vmem:[#allocation2 + $0x30] sm:$0xff]
    %v3715 = vld [vmem:[#allocation2 + $0x38] sm:$0xff]
    %v3716 = vld [vmem:[#allocation2 + $0x40] sm:$0xff]
    %v3717 = vld [vmem:[#allocation2 + $0x48] sm:$0xff]
    %v3718 = vld [vmem:[#allocation2 + $0x50] sm:$0xff]
    %v3719 = vld [vmem:[#allocation2 + $0x58] sm:$0xff]
    %v3720 = vld [vmem:[#allocation2 + $0x60] sm:$0xff]
    %v3721 = vld [vmem:[#allocation2 + $0x68] sm:$0xff]
    %v3722 = vld [vmem:[#allocation2 + $0x70] sm:$0xff]
    %v3723 = vld [vmem:[#allocation2 + $0x78] sm:$0xff]
    %v3724 = vld [vmem:[#allocation2 + $0x80] sm:$0xff]
    %v3725 = vld [vmem:[#allocation2 + $0x88] sm:$0xff]
    %v3726 = vld [vmem:[#allocation2 + $0x90] sm:$0xff]
    %v3727 = vld [vmem:[#allocation2 + $0x98] sm:$0xff]
    %v3728 = vld [vmem:[#allocation2 + $0xa0] sm:$0xff]
    %v3729 = vld [vmem:[#allocation2 + $0xa8] sm:$0xff]
    %v3730 = vld [vmem:[#allocation2 + $0xb0] sm:$0xff]
    %v3731 = vld [vmem:[#allocation2 + $0xb8] sm:$0xff]
    %v3732 = vld [vmem:[#allocation2 + $0xc0] sm:$0xff]
    %v3733 = vld [vmem:[#allocation2 + $0xc8] sm:$0xff]
    %v3734 = vld [vmem:[#allocation2 + $0xd0] sm:$0xff]
    %v3735 = vld [vmem:[#allocation2 + $0xd8] sm:$0xff]
    %v3736 = vld [vmem:[#allocation2 + $0xe0] sm:$0xff]
    %v3737 = vld [vmem:[#allocation2 + $0xe8] sm:$0xff]
    %v3738 = vld [vmem:[#allocation2 + $0xf0] sm:$0xff]
    %v3739 = vld [vmem:[#allocation2 + $0xf8] sm:$0xff]
    %v3740 = vld [vmem:[#allocation2 + $0x100] sm:$0xff]
    %v3741 = vld [vmem:[#allocation2 + $0x108] sm:$0xff]
    %v3742 = vld [vmem:[#allocation2 + $0x110] sm:$0xff]
    %v3743 = vld [vmem:[#allocation2 + $0x118] sm:$0xff]
    %v3744 = vld [vmem:[#allocation2 + $0x120] sm:$0xff]
    %v3745 = vld [vmem:[#allocation2 + $0x128] sm:$0xff]
    %v3746 = vld [vmem:[#allocation2 + $0x130] sm:$0xff]
    %v3747 = vld [vmem:[#allocation2 + $0x138] sm:$0xff]
    %v3748 = vld [vmem:[#allocation2 + $0x140] sm:$0xff]
    %v3749 = vld [vmem:[#allocation2 + $0x148] sm:$0xff]
    %v3750 = vld [vmem:[#allocation2 + $0x150] sm:$0xff]
    %v3751 = vld [vmem:[#allocation2 + $0x158] sm:$0xff]
    %v3752 = vld [vmem:[#allocation2 + $0x160] sm:$0xff]
    %v3753 = vld [vmem:[#allocation2 + $0x168] sm:$0xff]
    %v3754 = vld [vmem:[#allocation2 + $0x170] sm:$0xff]
    %v3755 = vld [vmem:[#allocation2 + $0x178] sm:$0xff]
    %v3756 = vld [vmem:[#allocation2 + $0x180] sm:$0xff]
    %v3757 = vld [vmem:[#allocation2 + $0x188] sm:$0xff]
    %v3758 = vld [vmem:[#allocation2 + $0x190] sm:$0xff]
    %v3759 = vld [vmem:[#allocation2 + $0x198] sm:$0xff]
    %v3760 = vld [vmem:[#allocation2 + $0x1a0] sm:$0xff]
    %v3761 = vld [vmem:[#allocation2 + $0x1a8] sm:$0xff]
    %v3762 = vld [vmem:[#allocation2 + $0x1b0] sm:$0xff]
    %v3763 = vld [vmem:[#allocation2 + $0x1b8] sm:$0xff]
    %v3764 = vld [vmem:[#allocation2 + $0x1c0] sm:$0xff]
    %v3765 = vld [vmem:[#allocation2 + $0x1c8] sm:$0xff]
    %v3766 = vld [vmem:[#allocation2 + $0x1d0] sm:$0xff]
    %v3767 = vld [vmem:[#allocation2 + $0x1d8] sm:$0xff]
    %v3768 = vld [vmem:[#allocation2 + $0x1e0] sm:$0xff]
    %v3769 = vld [vmem:[#allocation2 + $0x1e8] sm:$0xff]
    %v3770 = vld [vmem:[#allocation2 + $0x1f0] sm:$0xff]
    %v3771 = vld [vmem:[#allocation2 + $0x1f8] sm:$0xff]
    %v3772 = vld [vmem:[#allocation2 + $0x200] sm:$0xff]
    %v3773 = vld [vmem:[#allocation2 + $0x208] sm:$0xff]
    %v3774 = vld [vmem:[#allocation2 + $0x210] sm:$0xff]
    %v3775 = vld [vmem:[#allocation2 + $0x218] sm:$0xff]
    %v3776 = vld [vmem:[#allocation2 + $0x220] sm:$0xff]
    %v3777 = vld [vmem:[#allocation2 + $0x228] sm:$0xff]
    %v3778 = vld [vmem:[#allocation2 + $0x230] sm:$0xff]
    %v3779 = vld [vmem:[#allocation2 + $0x238] sm:$0xff]
    %v3780 = vld [vmem:[#allocation2 + $0x240] sm:$0xff]
    %v3781 = vld [vmem:[#allocation2 + $0x248] sm:$0xff]
    %v3782 = vld [vmem:[#allocation2 + $0x250] sm:$0xff]
    %v3783 = vld [vmem:[#allocation2 + $0x258] sm:$0xff]
    %v3784 = vld [vmem:[#allocation2 + $0x260] sm:$0xff]
    %v3785 = vld [vmem:[#allocation2 + $0x268] sm:$0xff]
    %v3786 = vld [vmem:[#allocation2 + $0x270] sm:$0xff]
    %v3787 = vld [vmem:[#allocation2 + $0x278] sm:$0xff]
    %v3788 = vld [vmem:[#allocation2 + $0x280] sm:$0xff]
    %v3789 = vld [vmem:[#allocation2 + $0x288] sm:$0xff]
    %v3790 = vld [vmem:[#allocation2 + $0x290] sm:$0xff]
    %v3791 = vld [vmem:[#allocation2 + $0x298] sm:$0xff]
    %v3792 = vld [vmem:[#allocation2 + $0x2a0] sm:$0xff]
    %v3793 = vld [vmem:[#allocation2 + $0x2a8] sm:$0xff]
    %v3794 = vld [vmem:[#allocation2 + $0x2b0] sm:$0xff]
    %v3795 = vld [vmem:[#allocation2 + $0x2b8] sm:$0xff]
    %v3796 = vld [vmem:[#allocation2 + $0x2c0] sm:$0xff]
    %v3797 = vld [vmem:[#allocation2 + $0x2c8] sm:$0xff]
    %v3798 = vld [vmem:[#allocation2 + $0x2d0] sm:$0xff]
    %v3799 = vld [vmem:[#allocation2 + $0x2d8] sm:$0xff]
    %v3800 = vld [vmem:[#allocation2 + $0x2e0] sm:$0xff]
    %v3801 = vld [vmem:[#allocation2 + $0x2e8] sm:$0xff]
    %v3802 = vld [vmem:[#allocation2 + $0x2f0] sm:$0xff]
    %v3803 = vld [vmem:[#allocation2 + $0x2f8] sm:$0xff]
    %v3804 = vld [vmem:[#allocation2 + $0x300] sm:$0xff]
    %v3805 = vld [vmem:[#allocation2 + $0x308] sm:$0xff]
    %v3806 = vld [vmem:[#allocation2 + $0x310] sm:$0xff]
    %v3807 = vld [vmem:[#allocation2 + $0x318] sm:$0xff]
    %v3808 = vld [vmem:[#allocation2 + $0x320] sm:$0xff]
    %v3809 = vld [vmem:[#allocation2 + $0x328] sm:$0xff]
    %v3810 = vld [vmem:[#allocation2 + $0x330] sm:$0xff]
    %v3811 = vld [vmem:[#allocation2 + $0x338] sm:$0xff]
    %v3812 = vld [vmem:[#allocation2 + $0x340] sm:$0xff]
    %v3813 = vld [vmem:[#allocation2 + $0x348] sm:$0xff]
    %v3814 = vld [vmem:[#allocation2 + $0x350] sm:$0xff]
    %v3815 = vld [vmem:[#allocation2 + $0x358] sm:$0xff]
    %v3816 = vld [vmem:[#allocation2 + $0x360] sm:$0xff]
    %v3817 = vld [vmem:[#allocation2 + $0x368] sm:$0xff]
    %v3818 = vld [vmem:[#allocation2 + $0x370] sm:$0xff]
    %v3819 = vld [vmem:[#allocation2 + $0x378] sm:$0xff]
    %v3820 = vld [vmem:[%s0 + $0x20] sm:$0xf]
    %v3821 = vld [vmem:[%s0 + $0x24] sm:$0xf]
    %v3822 = vld [vmem:[%s0 + $0x28] sm:$0xf]
    %v3823 = vld [vmem:[%s0 + $0x2c] sm:$0xf]
    %v3824 = vld [vmem:[%s0 + $0x30] sm:$0xf]
    %v3825 = vld [vmem:[%s0 + $0x34] sm:$0xf]
    %v3826 = vld [vmem:[%s0 + $0x38] sm:$0xf]
    %v3827 = vld [vmem:[%s0 + $0x3c] sm:$0xf]
    %v3828 = vld [vmem:[%s0 + $0x40] sm:$0xf]
    %v3829 = vld [vmem:[%s0 + $0x44] sm:$0xf]
    %v3830 = vld [vmem:[%s0 + $0x48] sm:$0xf]
    %v3831 = vld [vmem:[%s0 + $0x4c] sm:$0xf]
    %v3832 = vld [vmem:[%s0 + $0x50] sm:$0xf]
    %v3833 = vld [vmem:[%s0 + $0x54] sm:$0xf]
    %v3834 = vld [vmem:[%s0 + $0x58] sm:$0xf]
    %v3835 = vld [vmem:[%s0 + $0x5c] sm:$0xf]
    %v3836 = vld [vmem:[%s0 + $0x60] sm:$0xf]
    %v3837 = vld [vmem:[%s0 + $0x64] sm:$0xf]
    %v3838 = vld [vmem:[%s0 + $0x68] sm:$0xf]
    %v3839 = vld [vmem:[%s0 + $0x6c] sm:$0xf]
    %v3840 = vld [vmem:[%s0 + $0x70] sm:$0xf]
    %v3841 = vld [vmem:[%s0 + $0x74] sm:$0xf]
    %v3842 = vld [vmem:[%s0 + $0x78] sm:$0xf]
    %v3843 = vld [vmem:[%s0 + $0x7c] sm:$0xf]
    %v3844 = vld [vmem:[%s0 + $0x80] sm:$0xf]
    %v3845 = vld [vmem:[%s0 + $0x84] sm:$0xf]
    %v3846 = vld [vmem:[%s0 + $0x88] sm:$0xf]
    %v3847 = vld [vmem:[%s0 + $0x8c] sm:$0xf]
    %v3848 = vld [vmem:[%s0 + $0x90] sm:$0xf]
    %v3849 = vld [vmem:[%s0 + $0x94] sm:$0xf]
    %v3850 = vld [vmem:[%s0 + $0x98] sm:$0xf]
    %v3851 = vld [vmem:[%s0 + $0x9c] sm:$0xf]
    %v3852 = vld [vmem:[%s0 + $0xa0] sm:$0xf]
    %v3853 = vld [vmem:[%s0 + $0xa4] sm:$0xf]
    %v3854 = vld [vmem:[%s0 + $0xa8] sm:$0xf]
    %v3855 = vld [vmem:[%s0 + $0xac] sm:$0xf]
    %v3856 = vld [vmem:[%s0 + $0xb0] sm:$0xf]
    %v3857 = vld [vmem:[%s0 + $0xb4] sm:$0xf]
    %v3858 = vld [vmem:[%s0 + $0xb8] sm:$0xf]
    %v3859 = vld [vmem:[%s0 + $0xbc] sm:$0xf]
    %v3860 = vld [vmem:[%s0 + $0xc0] sm:$0xf]
    %v3861 = vld [vmem:[%s0 + $0xc4] sm:$0xf]
    %v3862 = vld [vmem:[%s0 + $0xc8] sm:$0xf]
    %v3863 = vld [vmem:[%s0 + $0xcc] sm:$0xf]
    %v3864 = vld [vmem:[%s0 + $0xd0] sm:$0xf]
    %v3865 = vld [vmem:[%s0 + $0xd4] sm:$0xf]
    %v3866 = vld [vmem:[%s0 + $0xd8] sm:$0xf]
    %v3867 = vld [vmem:[%s0 + $0xdc] sm:$0xf]
    %v3868 = vld [vmem:[%s0 + $0xe0] sm:$0xf]
    %v3869 = vld [vmem:[%s0 + $0xe4] sm:$0xf]
    %v3870 = vld [vmem:[%s0 + $0xe8] sm:$0xf]
    %v3871 = vld [vmem:[%s0 + $0xec] sm:$0xf]
    %v3872 = vld [vmem:[%s0 + $0xf0] sm:$0xf]
    %v3873 = vld [vmem:[%s0 + $0xf4] sm:$0xf]
    %v3874 = vld [vmem:[%s0 + $0xf8] sm:$0xf]
    %v3875 = vld [vmem:[%s0 + $0xfc] sm:$0xf]
    %s3876 = scalar_lea.vmem %s1, 512
    %v3877 = vld [vmem:[%s3876] sm:$0xff]
    %v3878 = vld [vmem:[%s3876 + $0x8] sm:$0xff]
    %v3879 = vld [vmem:[%s3876 + $0x10] sm:$0xff]
    %v3880 = vld [vmem:[%s3876 + $0x18] sm:$0xff]
    %v3881 = vld [vmem:[%s3876 + $0x20] sm:$0xff]
    %v3882 = vld [vmem:[%s3876 + $0x28] sm:$0xff]
    %v3883 = vld [vmem:[%s3876 + $0x30] sm:$0xff]
    %v3884 = vld [vmem:[%s3876 + $0x38] sm:$0xff]
    %v3885 = vld [vmem:[%s3876 + $0x40] sm:$0xff]
    %v3886 = vld [vmem:[%s3876 + $0x48] sm:$0xff]
    %v3887 = vld [vmem:[%s3876 + $0x50] sm:$0xff]
    %v3888 = vld [vmem:[%s3876 + $0x58] sm:$0xff]
    %v3889 = vld [vmem:[%s3876 + $0x60] sm:$0xff]
    %v3890 = vld [vmem:[%s3876 + $0x68] sm:$0xff]
    %v3891 = vld [vmem:[%s3876 + $0x70] sm:$0xff]
    %v3892 = vld [vmem:[%s3876 + $0x78] sm:$0xff]
    %v3949 = vunpack.c.l.b16 %v3820
    %v3950 = vunpack.c.l.b16 %v3821
    %v3951 = vunpack.c.l.b16 %v3822
    %v3952 = vunpack.c.l.b16 %v3823
    %v3953 = vunpack.c.l.b16 %v3824
    %v3954 = vunpack.c.l.b16 %v3825
    %v3955 = vunpack.c.l.b16 %v3826
    %v3956 = vunpack.c.l.b16 %v3827
    %v3957 = vunpack.c.l.b16 %v3828
    %v3958 = vunpack.c.l.b16 %v3829
    %v3959 = vunpack.c.l.b16 %v3830
    %v3960 = vunpack.c.l.b16 %v3831
    %v3961 = vunpack.c.l.b16 %v3832
    %v3962 = vunpack.c.l.b16 %v3833
    %v3963 = vunpack.c.l.b16 %v3834
    %v3964 = vunpack.c.l.b16 %v3835
    %v3965 = vunpack.c.l.b16 %v3836
    %v3966 = vunpack.c.l.b16 %v3837
    %v3967 = vunpack.c.l.b16 %v3838
    %v3968 = vunpack.c.l.b16 %v3839
    %v3969 = vunpack.c.l.b16 %v3840
    %v3970 = vunpack.c.l.b16 %v3841
    %v3971 = vunpack.c.l.b16 %v3842
    %v3972 = vunpack.c.l.b16 %v3843
    %v3973 = vunpack.c.l.b16 %v3844
    %v3974 = vunpack.c.l.b16 %v3845
    %v3975 = vunpack.c.l.b16 %v3846
    %v3976 = vunpack.c.l.b16 %v3847
    %v3977 = vunpack.c.l.b16 %v3848
    %v3978 = vunpack.c.l.b16 %v3849
    %v3979 = vunpack.c.l.b16 %v3850
    %v3980 = vunpack.c.l.b16 %v3851
    %v3981 = vunpack.c.l.b16 %v3852
    %v3982 = vunpack.c.l.b16 %v3853
    %v3983 = vunpack.c.l.b16 %v3854
    %v3984 = vunpack.c.l.b16 %v3855
    %v3985 = vunpack.c.l.b16 %v3856
    %v3986 = vunpack.c.l.b16 %v3857
    %v3987 = vunpack.c.l.b16 %v3858
    %v3988 = vunpack.c.l.b16 %v3859
    %v3989 = vunpack.c.l.b16 %v3860
    %v3990 = vunpack.c.l.b16 %v3861
    %v3991 = vunpack.c.l.b16 %v3862
    %v3992 = vunpack.c.l.b16 %v3863
    %v3993 = vunpack.c.l.b16 %v3864
    %v3994 = vunpack.c.l.b16 %v3865
    %v3995 = vunpack.c.l.b16 %v3866
    %v3996 = vunpack.c.l.b16 %v3867
    %v3997 = vunpack.c.l.b16 %v3868
    %v3998 = vunpack.c.l.b16 %v3869
    %v3999 = vunpack.c.l.b16 %v3870
    %v4000 = vunpack.c.l.b16 %v3871
    %v4001 = vunpack.c.l.b16 %v3872
    %v4002 = vunpack.c.l.b16 %v3873
    %v4003 = vunpack.c.l.b16 %v3874
    %v4004 = vunpack.c.l.b16 %v3875
    %v4005 = vpack.c.b16 %v3950, %v3949
    %v4006 = vpack.c.b16 %v3952, %v3951
    %v4007 = vpack.c.b16 %v3954, %v3953
    %v4008 = vpack.c.b16 %v3956, %v3955
    %v4009 = vpack.c.b16 %v3958, %v3957
    %v4010 = vpack.c.b16 %v3960, %v3959
    %v4011 = vpack.c.b16 %v3962, %v3961
    %v4012 = vpack.c.b16 %v3964, %v3963
    %v4013 = vpack.c.b16 %v3966, %v3965
    %v4014 = vpack.c.b16 %v3968, %v3967
    %v4015 = vpack.c.b16 %v3970, %v3969
    %v4016 = vpack.c.b16 %v3972, %v3971
    %v4017 = vpack.c.b16 %v3974, %v3973
    %v4018 = vpack.c.b16 %v3976, %v3975
    %v4019 = vpack.c.b16 %v3978, %v3977
    %v4020 = vpack.c.b16 %v3980, %v3979
    %v4021 = vpack.c.b16 %v3982, %v3981
    %v4022 = vpack.c.b16 %v3984, %v3983
    %v4023 = vpack.c.b16 %v3986, %v3985
    %v4024 = vpack.c.b16 %v3988, %v3987
    %v4025 = vpack.c.b16 %v3990, %v3989
    %v4026 = vpack.c.b16 %v3992, %v3991
    %v4027 = vpack.c.b16 %v3994, %v3993
    %v4028 = vpack.c.b16 %v3996, %v3995
    %v4029 = vpack.c.b16 %v3998, %v3997
    %v4030 = vpack.c.b16 %v4000, %v3999
    %v4031 = vpack.c.b16 %v4002, %v4001
    %v4032 = vpack.c.b16 %v4004, %v4003
    %v4077 = vunpack.c.l.b16 %v3877
    %v4078 = vunpack.c.h.b16 %v3877
    %v4079 = vunpack.c.l.b16 %v3878
    %v4080 = vunpack.c.h.b16 %v3878
    %v4081 = vunpack.c.l.b16 %v3879
    %v4082 = vunpack.c.h.b16 %v3879
    %v4083 = vunpack.c.l.b16 %v3880
    %v4084 = vunpack.c.h.b16 %v3880
    %v4085 = vunpack.c.l.b16 %v3881
    %v4086 = vunpack.c.h.b16 %v3881
    %v4087 = vunpack.c.l.b16 %v3882
    %v4088 = vunpack.c.h.b16 %v3882
    %v4089 = vunpack.c.l.b16 %v3883
    %v4090 = vunpack.c.h.b16 %v3883
    %v4091 = vunpack.c.l.b16 %v3884
    %v4092 = vunpack.c.h.b16 %v3884
    %v4093 = vunpack.c.l.b16 %v3885
    %v4094 = vunpack.c.h.b16 %v3885
    %v4095 = vunpack.c.l.b16 %v3886
    %v4096 = vunpack.c.h.b16 %v3886
    %v4097 = vunpack.c.l.b16 %v3887
    %v4098 = vunpack.c.h.b16 %v3887
    %v4099 = vunpack.c.l.b16 %v3888
    %v4100 = vunpack.c.h.b16 %v3888
    %v4101 = vunpack.c.l.b16 %v3889
    %v4102 = vunpack.c.h.b16 %v3889
    %v4103 = vunpack.c.l.b16 %v3890
    %v4104 = vunpack.c.h.b16 %v3890
    %v4105 = vunpack.c.l.b16 %v3891
    %v4106 = vunpack.c.h.b16 %v3891
    %v4107 = vunpack.c.l.b16 %v3892
    %v4108 = vunpack.c.h.b16 %v3892
    %v4109 = vpack.c.b16 %v4079, %v4077
    %v4110 = vpack.c.b16 %v4080, %v4078
    %v4111 = vpack.c.b16 %v4083, %v4081
    %v4112 = vpack.c.b16 %v4084, %v4082
    %v4113 = vpack.c.b16 %v4087, %v4085
    %v4114 = vpack.c.b16 %v4088, %v4086
    %v4115 = vpack.c.b16 %v4091, %v4089
    %v4116 = vpack.c.b16 %v4092, %v4090
    %v4117 = vpack.c.b16 %v4095, %v4093
    %v4118 = vpack.c.b16 %v4096, %v4094
    %v4119 = vpack.c.b16 %v4099, %v4097
    %v4120 = vpack.c.b16 %v4100, %v4098
    %v4121 = vpack.c.b16 %v4103, %v4101
    %v4122 = vpack.c.b16 %v4104, %v4102
    %v4123 = vpack.c.b16 %v4107, %v4105
    %v4124 = vpack.c.b16 %v4108, %v4106
    %4141 = vmatprep.subr.bf16.mxu0 %v4124
    %4142 = vmatpush1.bf16.msra.mxu0 %v4123
    %4143 = vmatprep.subr.bf16.mxu0 %v4122
    %4144 = vmatpush1.bf16.msra.mxu0 %v4121
    %4145 = vmatprep.subr.bf16.mxu0 %v4120
    %4146 = vmatpush1.bf16.msra.mxu0 %v4119
    %4147 = vmatprep.subr.bf16.mxu0 %v4118
    %4148 = vmatpush1.bf16.msra.mxu0 %v4117
    %4149 = vmatprep.subr.bf16.mxu0 %v4116
    %4150 = vmatpush1.bf16.msra.mxu0 %v4115
    %4151 = vmatprep.subr.bf16.mxu0 %v4114
    %4152 = vmatpush1.bf16.msra.mxu0 %v4113
    %4153 = vmatprep.subr.bf16.mxu0 %v4112
    %4154 = vmatpush1.bf16.msra.mxu0 %v4111
    %4155 = vmatprep.subr.bf16.mxu0 %v4110
    %4156 = vmatpush1.bf16.msra.mxu0 %v4109
    %4157 = vmatprep.subr.bf16.mxu0 0
    %4158 = vmatpush2.bf16.msra.mxu0 0
    %4159 = vmatprep.subr.bf16.mxu0 0
    %4160 = vmatpush2.bf16.msra.mxu0 0
    %4161 = vmatprep.subr.bf16.mxu0 0
    %4162 = vmatpush2.bf16.msra.mxu0 0
    %4163 = vmatprep.subr.bf16.mxu0 0
    %4164 = vmatpush2.bf16.msra.mxu0 0
    %4165 = vmatprep.subr.bf16.mxu0 0
    %4166 = vmatpush2.bf16.msra.mxu0 0
    %4167 = vmatprep.subr.bf16.mxu0 0
    %4168 = vmatpush2.bf16.msra.mxu0 0
    %4169 = vmatprep.subr.bf16.mxu0 0
    %4170 = vmatpush2.bf16.msra.mxu0 0
    %4171 = vmatprep.subr.bf16.mxu0 0
    %4172 = vmatpush2.bf16.msra.mxu0 0
    %4173 = vmatprep.mubr.bf16.mxu0 0
    %4174 = vmatmul.mubr.bf16.gmra.mxu0 %v4005
    %v4175 = vpop.f32.mrf.mxu0
    %v4176 = vadd.f32 0.0, %v4175
    %v4177 = vpop.f32.mrf.mxu0
    %v4178 = vadd.f32 0.0, %v4177
    %v4179 = vpop.f32.mrf.mxu0
    %v4180 = vadd.f32 0.0, %v4179
    %v4181 = vpop.f32.mrf.mxu0
    %v4182 = vadd.f32 0.0, %v4181
    %4183 = vmatprep.mubr.bf16.mxu0 0
    %4184 = vmatmul.mubr.bf16.gmra.mxu0 %v4006
    %v4185 = vpop.f32.mrf.mxu0
    %v4186 = vadd.f32 0.0, %v4185
    %v4187 = vpop.f32.mrf.mxu0
    %v4188 = vadd.f32 0.0, %v4187
    %v4189 = vpop.f32.mrf.mxu0
    %v4190 = vadd.f32 0.0, %v4189
    %v4191 = vpop.f32.mrf.mxu0
    %v4192 = vadd.f32 0.0, %v4191
    %4193 = vmatprep.mubr.bf16.mxu0 0
    %4194 = vmatmul.mubr.bf16.gmra.mxu0 %v4007
    %v4195 = vpop.f32.mrf.mxu0
    %v4196 = vadd.f32 0.0, %v4195
    %v4197 = vpop.f32.mrf.mxu0
    %v4198 = vadd.f32 0.0, %v4197
    %v4199 = vpop.f32.mrf.mxu0
    %v4200 = vadd.f32 0.0, %v4199
    %v4201 = vpop.f32.mrf.mxu0
    %v4202 = vadd.f32 0.0, %v4201
    %4203 = vmatprep.mubr.bf16.mxu0 0
    %4204 = vmatmul.mubr.bf16.gmra.mxu0 %v4008
    %v4205 = vpop.f32.mrf.mxu0
    %v4206 = vadd.f32 0.0, %v4205
    %v4207 = vpop.f32.mrf.mxu0
    %v4208 = vadd.f32 0.0, %v4207
    %v4209 = vpop.f32.mrf.mxu0
    %v4210 = vadd.f32 0.0, %v4209
    %v4211 = vpop.f32.mrf.mxu0
    %v4212 = vadd.f32 0.0, %v4211
    %4213 = vmatprep.mubr.bf16.mxu0 0
    %4214 = vmatmul.mubr.bf16.gmra.mxu0 %v4009
    %v4215 = vpop.f32.mrf.mxu0
    %v4216 = vadd.f32 0.0, %v4215
    %v4217 = vpop.f32.mrf.mxu0
    %v4218 = vadd.f32 0.0, %v4217
    %v4219 = vpop.f32.mrf.mxu0
    %v4220 = vadd.f32 0.0, %v4219
    %v4221 = vpop.f32.mrf.mxu0
    %v4222 = vadd.f32 0.0, %v4221
    %4223 = vmatprep.mubr.bf16.mxu0 0
    %4224 = vmatmul.mubr.bf16.gmra.mxu0 %v4010
    %v4225 = vpop.f32.mrf.mxu0
    %v4226 = vadd.f32 0.0, %v4225
    %v4227 = vpop.f32.mrf.mxu0
    %v4228 = vadd.f32 0.0, %v4227
    %v4229 = vpop.f32.mrf.mxu0
    %v4230 = vadd.f32 0.0, %v4229
    %v4231 = vpop.f32.mrf.mxu0
    %v4232 = vadd.f32 0.0, %v4231
    %4233 = vmatprep.mubr.bf16.mxu0 0
    %4234 = vmatmul.mubr.bf16.gmra.mxu0 %v4011
    %v4235 = vpop.f32.mrf.mxu0
    %v4236 = vadd.f32 0.0, %v4235
    %v4237 = vpop.f32.mrf.mxu0
    %v4238 = vadd.f32 0.0, %v4237
    %v4239 = vpop.f32.mrf.mxu0
    %v4240 = vadd.f32 0.0, %v4239
    %v4241 = vpop.f32.mrf.mxu0
    %v4242 = vadd.f32 0.0, %v4241
    %4243 = vmatprep.mubr.bf16.mxu0 0
    %4244 = vmatmul.mubr.bf16.gmra.mxu0 %v4012
    %v4245 = vpop.f32.mrf.mxu0
    %v4246 = vadd.f32 0.0, %v4245
    %v4247 = vpop.f32.mrf.mxu0
    %v4248 = vadd.f32 0.0, %v4247
    %v4249 = vpop.f32.mrf.mxu0
    %v4250 = vadd.f32 0.0, %v4249
    %v4251 = vpop.f32.mrf.mxu0
    %v4252 = vadd.f32 0.0, %v4251
    %4253 = vmatprep.mubr.bf16.mxu0 0
    %4254 = vmatmul.mubr.bf16.gmra.mxu0 %v4013
    %v4255 = vpop.f32.mrf.mxu0
    %v4256 = vadd.f32 0.0, %v4255
    %v4257 = vpop.f32.mrf.mxu0
    %v4258 = vadd.f32 0.0, %v4257
    %v4259 = vpop.f32.mrf.mxu0
    %v4260 = vadd.f32 0.0, %v4259
    %v4261 = vpop.f32.mrf.mxu0
    %v4262 = vadd.f32 0.0, %v4261
    %4263 = vmatprep.mubr.bf16.mxu0 0
    %4264 = vmatmul.mubr.bf16.gmra.mxu0 %v4014
    %v4265 = vpop.f32.mrf.mxu0
    %v4266 = vadd.f32 0.0, %v4265
    %v4267 = vpop.f32.mrf.mxu0
    %v4268 = vadd.f32 0.0, %v4267
    %v4269 = vpop.f32.mrf.mxu0
    %v4270 = vadd.f32 0.0, %v4269
    %v4271 = vpop.f32.mrf.mxu0
    %v4272 = vadd.f32 0.0, %v4271
    %4273 = vmatprep.mubr.bf16.mxu0 0
    %4274 = vmatmul.mubr.bf16.gmra.mxu0 %v4015
    %v4275 = vpop.f32.mrf.mxu0
    %v4276 = vadd.f32 0.0, %v4275
    %v4277 = vpop.f32.mrf.mxu0
    %v4278 = vadd.f32 0.0, %v4277
    %v4279 = vpop.f32.mrf.mxu0
    %v4280 = vadd.f32 0.0, %v4279
    %v4281 = vpop.f32.mrf.mxu0
    %v4282 = vadd.f32 0.0, %v4281
    %4283 = vmatprep.mubr.bf16.mxu0 0
    %4284 = vmatmul.mubr.bf16.gmra.mxu0 %v4016
    %v4285 = vpop.f32.mrf.mxu0
    %v4286 = vadd.f32 0.0, %v4285
    %v4287 = vpop.f32.mrf.mxu0
    %v4288 = vadd.f32 0.0, %v4287
    %v4289 = vpop.f32.mrf.mxu0
    %v4290 = vadd.f32 0.0, %v4289
    %v4291 = vpop.f32.mrf.mxu0
    %v4292 = vadd.f32 0.0, %v4291
    %4293 = vmatprep.mubr.bf16.mxu0 0
    %4294 = vmatmul.mubr.bf16.gmra.mxu0 %v4017
    %v4295 = vpop.f32.mrf.mxu0
    %v4296 = vadd.f32 0.0, %v4295
    %v4297 = vpop.f32.mrf.mxu0
    %v4298 = vadd.f32 0.0, %v4297
    %v4299 = vpop.f32.mrf.mxu0
    %v4300 = vadd.f32 0.0, %v4299
    %v4301 = vpop.f32.mrf.mxu0
    %v4302 = vadd.f32 0.0, %v4301
    %4303 = vmatprep.mubr.bf16.mxu0 0
    %4304 = vmatmul.mubr.bf16.gmra.mxu0 %v4018
    %v4305 = vpop.f32.mrf.mxu0
    %v4306 = vadd.f32 0.0, %v4305
    %v4307 = vpop.f32.mrf.mxu0
    %v4308 = vadd.f32 0.0, %v4307
    %v4309 = vpop.f32.mrf.mxu0
    %v4310 = vadd.f32 0.0, %v4309
    %v4311 = vpop.f32.mrf.mxu0
    %v4312 = vadd.f32 0.0, %v4311
    %4313 = vmatprep.mubr.bf16.mxu0 0
    %4314 = vmatmul.mubr.bf16.gmra.mxu0 %v4019
    %v4315 = vpop.f32.mrf.mxu0
    %v4316 = vadd.f32 0.0, %v4315
    %v4317 = vpop.f32.mrf.mxu0
    %v4318 = vadd.f32 0.0, %v4317
    %v4319 = vpop.f32.mrf.mxu0
    %v4320 = vadd.f32 0.0, %v4319
    %v4321 = vpop.f32.mrf.mxu0
    %v4322 = vadd.f32 0.0, %v4321
    %4323 = vmatprep.mubr.bf16.mxu0 0
    %4324 = vmatmul.mubr.bf16.gmra.mxu0 %v4020
    %v4325 = vpop.f32.mrf.mxu0
    %v4326 = vadd.f32 0.0, %v4325
    %v4327 = vpop.f32.mrf.mxu0
    %v4328 = vadd.f32 0.0, %v4327
    %v4329 = vpop.f32.mrf.mxu0
    %v4330 = vadd.f32 0.0, %v4329
    %v4331 = vpop.f32.mrf.mxu0
    %v4332 = vadd.f32 0.0, %v4331
    %4333 = vmatprep.mubr.bf16.mxu0 0
    %4334 = vmatmul.mubr.bf16.gmra.mxu0 %v4021
    %v4335 = vpop.f32.mrf.mxu0
    %v4336 = vadd.f32 0.0, %v4335
    %v4337 = vpop.f32.mrf.mxu0
    %v4338 = vadd.f32 0.0, %v4337
    %v4339 = vpop.f32.mrf.mxu0
    %v4340 = vadd.f32 0.0, %v4339
    %v4341 = vpop.f32.mrf.mxu0
    %v4342 = vadd.f32 0.0, %v4341
    %4343 = vmatprep.mubr.bf16.mxu0 0
    %4344 = vmatmul.mubr.bf16.gmra.mxu0 %v4022
    %v4345 = vpop.f32.mrf.mxu0
    %v4346 = vadd.f32 0.0, %v4345
    %v4347 = vpop.f32.mrf.mxu0
    %v4348 = vadd.f32 0.0, %v4347
    %v4349 = vpop.f32.mrf.mxu0
    %v4350 = vadd.f32 0.0, %v4349
    %v4351 = vpop.f32.mrf.mxu0
    %v4352 = vadd.f32 0.0, %v4351
    %4353 = vmatprep.mubr.bf16.mxu0 0
    %4354 = vmatmul.mubr.bf16.gmra.mxu0 %v4023
    %v4355 = vpop.f32.mrf.mxu0
    %v4356 = vadd.f32 0.0, %v4355
    %v4357 = vpop.f32.mrf.mxu0
    %v4358 = vadd.f32 0.0, %v4357
    %v4359 = vpop.f32.mrf.mxu0
    %v4360 = vadd.f32 0.0, %v4359
    %v4361 = vpop.f32.mrf.mxu0
    %v4362 = vadd.f32 0.0, %v4361
    %4363 = vmatprep.mubr.bf16.mxu0 0
    %4364 = vmatmul.mubr.bf16.gmra.mxu0 %v4024
    %v4365 = vpop.f32.mrf.mxu0
    %v4366 = vadd.f32 0.0, %v4365
    %v4367 = vpop.f32.mrf.mxu0
    %v4368 = vadd.f32 0.0, %v4367
    %v4369 = vpop.f32.mrf.mxu0
    %v4370 = vadd.f32 0.0, %v4369
    %v4371 = vpop.f32.mrf.mxu0
    %v4372 = vadd.f32 0.0, %v4371
    %4373 = vmatprep.mubr.bf16.mxu0 0
    %4374 = vmatmul.mubr.bf16.gmra.mxu0 %v4025
    %v4375 = vpop.f32.mrf.mxu0
    %v4376 = vadd.f32 0.0, %v4375
    %v4377 = vpop.f32.mrf.mxu0
    %v4378 = vadd.f32 0.0, %v4377
    %v4379 = vpop.f32.mrf.mxu0
    %v4380 = vadd.f32 0.0, %v4379
    %v4381 = vpop.f32.mrf.mxu0
    %v4382 = vadd.f32 0.0, %v4381
    %4383 = vmatprep.mubr.bf16.mxu0 0
    %4384 = vmatmul.mubr.bf16.gmra.mxu0 %v4026
    %v4385 = vpop.f32.mrf.mxu0
    %v4386 = vadd.f32 0.0, %v4385
    %v4387 = vpop.f32.mrf.mxu0
    %v4388 = vadd.f32 0.0, %v4387
    %v4389 = vpop.f32.mrf.mxu0
    %v4390 = vadd.f32 0.0, %v4389
    %v4391 = vpop.f32.mrf.mxu0
    %v4392 = vadd.f32 0.0, %v4391
    %4393 = vmatprep.mubr.bf16.mxu0 0
    %4394 = vmatmul.mubr.bf16.gmra.mxu0 %v4027
    %v4395 = vpop.f32.mrf.mxu0
    %v4396 = vadd.f32 0.0, %v4395
    %v4397 = vpop.f32.mrf.mxu0
    %v4398 = vadd.f32 0.0, %v4397
    %v4399 = vpop.f32.mrf.mxu0
    %v4400 = vadd.f32 0.0, %v4399
    %v4401 = vpop.f32.mrf.mxu0
    %v4402 = vadd.f32 0.0, %v4401
    %4403 = vmatprep.mubr.bf16.mxu0 0
    %4404 = vmatmul.mubr.bf16.gmra.mxu0 %v4028
    %v4405 = vpop.f32.mrf.mxu0
    %v4406 = vadd.f32 0.0, %v4405
    %v4407 = vpop.f32.mrf.mxu0
    %v4408 = vadd.f32 0.0, %v4407
    %v4409 = vpop.f32.mrf.mxu0
    %v4410 = vadd.f32 0.0, %v4409
    %v4411 = vpop.f32.mrf.mxu0
    %v4412 = vadd.f32 0.0, %v4411
    %4413 = vmatprep.mubr.bf16.mxu0 0
    %4414 = vmatmul.mubr.bf16.gmra.mxu0 %v4029
    %v4415 = vpop.f32.mrf.mxu0
    %v4416 = vadd.f32 0.0, %v4415
    %v4417 = vpop.f32.mrf.mxu0
    %v4418 = vadd.f32 0.0, %v4417
    %v4419 = vpop.f32.mrf.mxu0
    %v4420 = vadd.f32 0.0, %v4419
    %v4421 = vpop.f32.mrf.mxu0
    %v4422 = vadd.f32 0.0, %v4421
    %4423 = vmatprep.mubr.bf16.mxu0 0
    %4424 = vmatmul.mubr.bf16.gmra.mxu0 %v4030
    %v4425 = vpop.f32.mrf.mxu0
    %v4426 = vadd.f32 0.0, %v4425
    %v4427 = vpop.f32.mrf.mxu0
    %v4428 = vadd.f32 0.0, %v4427
    %v4429 = vpop.f32.mrf.mxu0
    %v4430 = vadd.f32 0.0, %v4429
    %v4431 = vpop.f32.mrf.mxu0
    %v4432 = vadd.f32 0.0, %v4431
    %4433 = vmatprep.mubr.bf16.mxu0 0
    %4434 = vmatmul.mubr.bf16.gmra.mxu0 %v4031
    %v4435 = vpop.f32.mrf.mxu0
    %v4436 = vadd.f32 0.0, %v4435
    %v4437 = vpop.f32.mrf.mxu0
    %v4438 = vadd.f32 0.0, %v4437
    %v4439 = vpop.f32.mrf.mxu0
    %v4440 = vadd.f32 0.0, %v4439
    %v4441 = vpop.f32.mrf.mxu0
    %v4442 = vadd.f32 0.0, %v4441
    %4443 = vmatprep.mubr.bf16.mxu0 0
    %4444 = vmatmul.mubr.bf16.gmra.mxu0 %v4032
    %v4445 = vpop.f32.mrf.mxu0
    %v4446 = vadd.f32 0.0, %v4445
    %v4447 = vpop.f32.mrf.mxu0
    %v4448 = vadd.f32 0.0, %v4447
    %v4449 = vpop.f32.mrf.mxu0
    %v4450 = vadd.f32 0.0, %v4449
    %v4451 = vpop.f32.mrf.mxu0
    %v4452 = vadd.f32 0.0, %v4451
    %4453 = vdwg.mxu0
    %v4454 = vadd.f32 %v3708, %v4176
    %v4455 = vadd.f32 %v3709, %v4178
    %v4456 = vadd.f32 %v3710, %v4180
    %v4457 = vadd.f32 %v3711, %v4182
    %v4458 = vadd.f32 %v3712, %v4186
    %v4459 = vadd.f32 %v3713, %v4188
    %v4460 = vadd.f32 %v3714, %v4190
    %v4461 = vadd.f32 %v3715, %v4192
    %v4462 = vadd.f32 %v3716, %v4196
    %v4463 = vadd.f32 %v3717, %v4198
    %v4464 = vadd.f32 %v3718, %v4200
    %v4465 = vadd.f32 %v3719, %v4202
    %v4466 = vadd.f32 %v3720, %v4206
    %v4467 = vadd.f32 %v3721, %v4208
    %v4468 = vadd.f32 %v3722, %v4210
    %v4469 = vadd.f32 %v3723, %v4212
    %v4470 = vadd.f32 %v3724, %v4216
    %v4471 = vadd.f32 %v3725, %v4218
    %v4472 = vadd.f32 %v3726, %v4220
    %v4473 = vadd.f32 %v3727, %v4222
    %v4474 = vadd.f32 %v3728, %v4226
    %v4475 = vadd.f32 %v3729, %v4228
    %v4476 = vadd.f32 %v3730, %v4230
    %v4477 = vadd.f32 %v3731, %v4232
    %v4478 = vadd.f32 %v3732, %v4236
    %v4479 = vadd.f32 %v3733, %v4238
    %v4480 = vadd.f32 %v3734, %v4240
    %v4481 = vadd.f32 %v3735, %v4242
    %v4482 = vadd.f32 %v3736, %v4246
    %v4483 = vadd.f32 %v3737, %v4248
    %v4484 = vadd.f32 %v3738, %v4250
    %v4485 = vadd.f32 %v3739, %v4252
    %v4486 = vadd.f32 %v3740, %v4256
    %v4487 = vadd.f32 %v3741, %v4258
    %v4488 = vadd.f32 %v3742, %v4260
    %v4489 = vadd.f32 %v3743, %v4262
    %v4490 = vadd.f32 %v3744, %v4266
    %v4491 = vadd.f32 %v3745, %v4268
    %v4492 = vadd.f32 %v3746, %v4270
    %v4493 = vadd.f32 %v3747, %v4272
    %v4494 = vadd.f32 %v3748, %v4276
    %v4495 = vadd.f32 %v3749, %v4278
    %v4496 = vadd.f32 %v3750, %v4280
    %v4497 = vadd.f32 %v3751, %v4282
    %v4498 = vadd.f32 %v3752, %v4286
    %v4499 = vadd.f32 %v3753, %v4288
    %v4500 = vadd.f32 %v3754, %v4290
    %v4501 = vadd.f32 %v3755, %v4292
    %v4502 = vadd.f32 %v3756, %v4296
    %v4503 = vadd.f32 %v3757, %v4298
    %v4504 = vadd.f32 %v3758, %v4300
    %v4505 = vadd.f32 %v3759, %v4302
    %v4506 = vadd.f32 %v3760, %v4306
    %v4507 = vadd.f32 %v3761, %v4308
    %v4508 = vadd.f32 %v3762, %v4310
    %v4509 = vadd.f32 %v3763, %v4312
    %v4510 = vadd.f32 %v3764, %v4316
    %v4511 = vadd.f32 %v3765, %v4318
    %v4512 = vadd.f32 %v3766, %v4320
    %v4513 = vadd.f32 %v3767, %v4322
    %v4514 = vadd.f32 %v3768, %v4326
    %v4515 = vadd.f32 %v3769, %v4328
    %v4516 = vadd.f32 %v3770, %v4330
    %v4517 = vadd.f32 %v3771, %v4332
    %v4518 = vadd.f32 %v3772, %v4336
    %v4519 = vadd.f32 %v3773, %v4338
    %v4520 = vadd.f32 %v3774, %v4340
    %v4521 = vadd.f32 %v3775, %v4342
    %v4522 = vadd.f32 %v3776, %v4346
    %v4523 = vadd.f32 %v3777, %v4348
    %v4524 = vadd.f32 %v3778, %v4350
    %v4525 = vadd.f32 %v3779, %v4352
    %v4526 = vadd.f32 %v3780, %v4356
    %v4527 = vadd.f32 %v3781, %v4358
    %v4528 = vadd.f32 %v3782, %v4360
    %v4529 = vadd.f32 %v3783, %v4362
    %v4530 = vadd.f32 %v3784, %v4366
    %v4531 = vadd.f32 %v3785, %v4368
    %v4532 = vadd.f32 %v3786, %v4370
    %v4533 = vadd.f32 %v3787, %v4372
    %v4534 = vadd.f32 %v3788, %v4376
    %v4535 = vadd.f32 %v3789, %v4378
    %v4536 = vadd.f32 %v3790, %v4380
    %v4537 = vadd.f32 %v3791, %v4382
    %v4538 = vadd.f32 %v3792, %v4386
    %v4539 = vadd.f32 %v3793, %v4388
    %v4540 = vadd.f32 %v3794, %v4390
    %v4541 = vadd.f32 %v3795, %v4392
    %v4542 = vadd.f32 %v3796, %v4396
    %v4543 = vadd.f32 %v3797, %v4398
    %v4544 = vadd.f32 %v3798, %v4400
    %v4545 = vadd.f32 %v3799, %v4402
    %v4546 = vadd.f32 %v3800, %v4406
    %v4547 = vadd.f32 %v3801, %v4408
    %v4548 = vadd.f32 %v3802, %v4410
    %v4549 = vadd.f32 %v3803, %v4412
    %v4550 = vadd.f32 %v3804, %v4416
    %v4551 = vadd.f32 %v3805, %v4418
    %v4552 = vadd.f32 %v3806, %v4420
    %v4553 = vadd.f32 %v3807, %v4422
    %v4554 = vadd.f32 %v3808, %v4426
    %v4555 = vadd.f32 %v3809, %v4428
    %v4556 = vadd.f32 %v3810, %v4430
    %v4557 = vadd.f32 %v3811, %v4432
    %v4558 = vadd.f32 %v3812, %v4436
    %v4559 = vadd.f32 %v3813, %v4438
    %v4560 = vadd.f32 %v3814, %v4440
    %v4561 = vadd.f32 %v3815, %v4442
    %v4562 = vadd.f32 %v3816, %v4446
    %v4563 = vadd.f32 %v3817, %v4448
    %v4564 = vadd.f32 %v3818, %v4450
    %v4565 = vadd.f32 %v3819, %v4452
    %4566 = vst [vmem:[#allocation2] sm:$0xff] %v4454
    %4567 = vst [vmem:[#allocation2 + $0x8] sm:$0xff] %v4455
    %4568 = vst [vmem:[#allocation2 + $0x10] sm:$0xff] %v4456
    %4569 = vst [vmem:[#allocation2 + $0x18] sm:$0xff] %v4457
    %4570 = vst [vmem:[#allocation2 + $0x20] sm:$0xff] %v4458
    %4571 = vst [vmem:[#allocation2 + $0x28] sm:$0xff] %v4459
    %4572 = vst [vmem:[#allocation2 + $0x30] sm:$0xff] %v4460
    %4573 = vst [vmem:[#allocation2 + $0x38] sm:$0xff] %v4461
    %4574 = vst [vmem:[#allocation2 + $0x40] sm:$0xff] %v4462
    %4575 = vst [vmem:[#allocation2 + $0x48] sm:$0xff] %v4463
    %4576 = vst [vmem:[#allocation2 + $0x50] sm:$0xff] %v4464
    %4577 = vst [vmem:[#allocation2 + $0x58] sm:$0xff] %v4465
    %4578 = vst [vmem:[#allocation2 + $0x60] sm:$0xff] %v4466
    %4579 = vst [vmem:[#allocation2 + $0x68] sm:$0xff] %v4467
    %4580 = vst [vmem:[#allocation2 + $0x70] sm:$0xff] %v4468
    %4581 = vst [vmem:[#allocation2 + $0x78] sm:$0xff] %v4469
    %4582 = vst [vmem:[#allocation2 + $0x80] sm:$0xff] %v4470
    %4583 = vst [vmem:[#allocation2 + $0x88] sm:$0xff] %v4471
    %4584 = vst [vmem:[#allocation2 + $0x90] sm:$0xff] %v4472
    %4585 = vst [vmem:[#allocation2 + $0x98] sm:$0xff] %v4473
    %4586 = vst [vmem:[#allocation2 + $0xa0] sm:$0xff] %v4474
    %4587 = vst [vmem:[#allocation2 + $0xa8] sm:$0xff] %v4475
    %4588 = vst [vmem:[#allocation2 + $0xb0] sm:$0xff] %v4476
    %4589 = vst [vmem:[#allocation2 + $0xb8] sm:$0xff] %v4477
    %4590 = vst [vmem:[#allocation2 + $0xc0] sm:$0xff] %v4478
    %4591 = vst [vmem:[#allocation2 + $0xc8] sm:$0xff] %v4479
    %4592 = vst [vmem:[#allocation2 + $0xd0] sm:$0xff] %v4480
    %4593 = vst [vmem:[#allocation2 + $0xd8] sm:$0xff] %v4481
    %4594 = vst [vmem:[#allocation2 + $0xe0] sm:$0xff] %v4482
    %4595 = vst [vmem:[#allocation2 + $0xe8] sm:$0xff] %v4483
    %4596 = vst [vmem:[#allocation2 + $0xf0] sm:$0xff] %v4484
    %4597 = vst [vmem:[#allocation2 + $0xf8] sm:$0xff] %v4485
    %4598 = vst [vmem:[#allocation2 + $0x100] sm:$0xff] %v4486
    %4599 = vst [vmem:[#allocation2 + $0x108] sm:$0xff] %v4487
    %4600 = vst [vmem:[#allocation2 + $0x110] sm:$0xff] %v4488
    %4601 = vst [vmem:[#allocation2 + $0x118] sm:$0xff] %v4489
    %4602 = vst [vmem:[#allocation2 + $0x120] sm:$0xff] %v4490
    %4603 = vst [vmem:[#allocation2 + $0x128] sm:$0xff] %v4491
    %4604 = vst [vmem:[#allocation2 + $0x130] sm:$0xff] %v4492
    %4605 = vst [vmem:[#allocation2 + $0x138] sm:$0xff] %v4493
    %4606 = vst [vmem:[#allocation2 + $0x140] sm:$0xff] %v4494
    %4607 = vst [vmem:[#allocation2 + $0x148] sm:$0xff] %v4495
    %4608 = vst [vmem:[#allocation2 + $0x150] sm:$0xff] %v4496
    %4609 = vst [vmem:[#allocation2 + $0x158] sm:$0xff] %v4497
    %4610 = vst [vmem:[#allocation2 + $0x160] sm:$0xff] %v4498
    %4611 = vst [vmem:[#allocation2 + $0x168] sm:$0xff] %v4499
    %4612 = vst [vmem:[#allocation2 + $0x170] sm:$0xff] %v4500
    %4613 = vst [vmem:[#allocation2 + $0x178] sm:$0xff] %v4501
    %4614 = vst [vmem:[#allocation2 + $0x180] sm:$0xff] %v4502
    %4615 = vst [vmem:[#allocation2 + $0x188] sm:$0xff] %v4503
    %4616 = vst [vmem:[#allocation2 + $0x190] sm:$0xff] %v4504
    %4617 = vst [vmem:[#allocation2 + $0x198] sm:$0xff] %v4505
    %4618 = vst [vmem:[#allocation2 + $0x1a0] sm:$0xff] %v4506
    %4619 = vst [vmem:[#allocation2 + $0x1a8] sm:$0xff] %v4507
    %4620 = vst [vmem:[#allocation2 + $0x1b0] sm:$0xff] %v4508
    %4621 = vst [vmem:[#allocation2 + $0x1b8] sm:$0xff] %v4509
    %4622 = vst [vmem:[#allocation2 + $0x1c0] sm:$0xff] %v4510
    %4623 = vst [vmem:[#allocation2 + $0x1c8] sm:$0xff] %v4511
    %4624 = vst [vmem:[#allocation2 + $0x1d0] sm:$0xff] %v4512
    %4625 = vst [vmem:[#allocation2 + $0x1d8] sm:$0xff] %v4513
    %4626 = vst [vmem:[#allocation2 + $0x1e0] sm:$0xff] %v4514
    %4627 = vst [vmem:[#allocation2 + $0x1e8] sm:$0xff] %v4515
    %4628 = vst [vmem:[#allocation2 + $0x1f0] sm:$0xff] %v4516
    %4629 = vst [vmem:[#allocation2 + $0x1f8] sm:$0xff] %v4517
    %4630 = vst [vmem:[#allocation2 + $0x200] sm:$0xff] %v4518
    %4631 = vst [vmem:[#allocation2 + $0x208] sm:$0xff] %v4519
    %4632 = vst [vmem:[#allocation2 + $0x210] sm:$0xff] %v4520
    %4633 = vst [vmem:[#allocation2 + $0x218] sm:$0xff] %v4521
    %4634 = vst [vmem:[#allocation2 + $0x220] sm:$0xff] %v4522
    %4635 = vst [vmem:[#allocation2 + $0x228] sm:$0xff] %v4523
    %4636 = vst [vmem:[#allocation2 + $0x230] sm:$0xff] %v4524
    %4637 = vst [vmem:[#allocation2 + $0x238] sm:$0xff] %v4525
    %4638 = vst [vmem:[#allocation2 + $0x240] sm:$0xff] %v4526
    %4639 = vst [vmem:[#allocation2 + $0x248] sm:$0xff] %v4527
    %4640 = vst [vmem:[#allocation2 + $0x250] sm:$0xff] %v4528
    %4641 = vst [vmem:[#allocation2 + $0x258] sm:$0xff] %v4529
    %4642 = vst [vmem:[#allocation2 + $0x260] sm:$0xff] %v4530
    %4643 = vst [vmem:[#allocation2 + $0x268] sm:$0xff] %v4531
    %4644 = vst [vmem:[#allocation2 + $0x270] sm:$0xff] %v4532
    %4645 = vst [vmem:[#allocation2 + $0x278] sm:$0xff] %v4533
    %4646 = vst [vmem:[#allocation2 + $0x280] sm:$0xff] %v4534
    %4647 = vst [vmem:[#allocation2 + $0x288] sm:$0xff] %v4535
    %4648 = vst [vmem:[#allocation2 + $0x290] sm:$0xff] %v4536
    %4649 = vst [vmem:[#allocation2 + $0x298] sm:$0xff] %v4537
    %4650 = vst [vmem:[#allocation2 + $0x2a0] sm:$0xff] %v4538
    %4651 = vst [vmem:[#allocation2 + $0x2a8] sm:$0xff] %v4539
    %4652 = vst [vmem:[#allocation2 + $0x2b0] sm:$0xff] %v4540
    %4653 = vst [vmem:[#allocation2 + $0x2b8] sm:$0xff] %v4541
    %4654 = vst [vmem:[#allocation2 + $0x2c0] sm:$0xff] %v4542
    %4655 = vst [vmem:[#allocation2 + $0x2c8] sm:$0xff] %v4543
    %4656 = vst [vmem:[#allocation2 + $0x2d0] sm:$0xff] %v4544
    %4657 = vst [vmem:[#allocation2 + $0x2d8] sm:$0xff] %v4545
    %4658 = vst [vmem:[#allocation2 + $0x2e0] sm:$0xff] %v4546
    %4659 = vst [vmem:[#allocation2 + $0x2e8] sm:$0xff] %v4547
    %4660 = vst [vmem:[#allocation2 + $0x2f0] sm:$0xff] %v4548
    %4661 = vst [vmem:[#allocation2 + $0x2f8] sm:$0xff] %v4549
    %4662 = vst [vmem:[#allocation2 + $0x300] sm:$0xff] %v4550
    %4663 = vst [vmem:[#allocation2 + $0x308] sm:$0xff] %v4551
    %4664 = vst [vmem:[#allocation2 + $0x310] sm:$0xff] %v4552
    %4665 = vst [vmem:[#allocation2 + $0x318] sm:$0xff] %v4553
    %4666 = vst [vmem:[#allocation2 + $0x320] sm:$0xff] %v4554
    %4667 = vst [vmem:[#allocation2 + $0x328] sm:$0xff] %v4555
    %4668 = vst [vmem:[#allocation2 + $0x330] sm:$0xff] %v4556
    %4669 = vst [vmem:[#allocation2 + $0x338] sm:$0xff] %v4557
    %4670 = vst [vmem:[#allocation2 + $0x340] sm:$0xff] %v4558
    %4671 = vst [vmem:[#allocation2 + $0x348] sm:$0xff] %v4559
    %4672 = vst [vmem:[#allocation2 + $0x350] sm:$0xff] %v4560
    %4673 = vst [vmem:[#allocation2 + $0x358] sm:$0xff] %v4561
    %4674 = vst [vmem:[#allocation2 + $0x360] sm:$0xff] %v4562
    %4675 = vst [vmem:[#allocation2 + $0x368] sm:$0xff] %v4563
    %4676 = vst [vmem:[#allocation2 + $0x370] sm:$0xff] %v4564
    %4677 = vst [vmem:[#allocation2 + $0x378] sm:$0xff] %v4565
    %v4678 = vld [vmem:[%s2] sm:$0x1]
    %v4679 = vld [vmem:[#allocation2] sm:$0xff]
    %v4680 = vld [vmem:[#allocation2 + $0x8] sm:$0xff]
    %v4681 = vld [vmem:[#allocation2 + $0x10] sm:$0xff]
    %v4682 = vld [vmem:[#allocation2 + $0x18] sm:$0xff]
    %v4683 = vld [vmem:[#allocation2 + $0x20] sm:$0xff]
    %v4684 = vld [vmem:[#allocation2 + $0x28] sm:$0xff]
    %v4685 = vld [vmem:[#allocation2 + $0x30] sm:$0xff]
    %v4686 = vld [vmem:[#allocation2 + $0x38] sm:$0xff]
    %v4687 = vmax.f32 %v4679, %v4683
    %v4688 = vmax.f32 %v4680, %v4684
    %v4689 = vmax.f32 %v4681, %v4685
    %v4690 = vmax.f32 %v4682, %v4686
    %v4691 = vmax.f32 %v4687, %v4688
    %v4692 = vmax.f32 %v4689, %v4690
    %v4694 = vlaneseq
    %v4695 = vshrl.u32 %v4694, 7
    %v4696 = vsub.s32 0, %v4695
    %v4697 = vrot.slane %v4678, %v4696
    %v4699 = vadd.f32 %v4691, %v4697
    %v4700 = vadd.f32 %v4692, %v4697
    %v4701 = vmax.f32 %v4699, 0.0
    %v4702 = vmax.f32 %v4700, 0.0
    %v4703 = vpack.c.bf16 %v4702, %v4701
    %v4705 = vunpack.c.l.b16 %v4703
    %v4706 = vunpack.c.h.b16 %v4703
    %v4707 = vpack.c.b16 %v4705, %v4705
    %v4708 = vpack.c.b16 %v4706, %v4706
    %4711 = vst [vmem:[#allocation3] sm:$0xf] %v4707
    %4712 = vst [vmem:[#allocation3 + $0x4] sm:$0xf] %v4708
    %v4713 = vld [vmem:[#allocation2 + $0x40] sm:$0xff]
    %v4714 = vld [vmem:[#allocation2 + $0x48] sm:$0xff]
    %v4715 = vld [vmem:[#allocation2 + $0x50] sm:$0xff]
    %v4716 = vld [vmem:[#allocation2 + $0x58] sm:$0xff]
    %v4717 = vld [vmem:[#allocation2 + $0x60] sm:$0xff]
    %v4718 = vld [vmem:[#allocation2 + $0x68] sm:$0xff]
    %v4719 = vld [vmem:[#allocation2 + $0x70] sm:$0xff]
    %v4720 = vld [vmem:[#allocation2 + $0x78] sm:$0xff]
    %v4721 = vmax.f32 %v4713, %v4717
    %v4722 = vmax.f32 %v4714, %v4718
    %v4723 = vmax.f32 %v4715, %v4719
    %v4724 = vmax.f32 %v4716, %v4720
    %v4725 = vmax.f32 %v4721, %v4722
    %v4726 = vmax.f32 %v4723, %v4724
    %v4727 = vadd.f32 %v4725, %v4697
    %v4728 = vadd.f32 %v4726, %v4697
    %v4729 = vmax.f32 %v4727, 0.0
    %v4730 = vmax.f32 %v4728, 0.0
    %v4731 = vpack.c.bf16 %v4730, %v4729
    %v4733 = vunpack.c.l.b16 %v4731
    %v4734 = vunpack.c.h.b16 %v4731
    %v4735 = vpack.c.b16 %v4733, %v4733
    %v4736 = vpack.c.b16 %v4734, %v4734
    %4739 = vst [vmem:[#allocation3 + $0x8] sm:$0xf] %v4735
    %4740 = vst [vmem:[#allocation3 + $0xc] sm:$0xf] %v4736
    %v4741 = vld [vmem:[#allocation2 + $0x80] sm:$0xff]
    %v4742 = vld [vmem:[#allocation2 + $0x88] sm:$0xff]
    %v4743 = vld [vmem:[#allocation2 + $0x90] sm:$0xff]
    %v4744 = vld [vmem:[#allocation2 + $0x98] sm:$0xff]
    %v4745 = vld [vmem:[#allocation2 + $0xa0] sm:$0xff]
    %v4746 = vld [vmem:[#allocation2 + $0xa8] sm:$0xff]
    %v4747 = vld [vmem:[#allocation2 + $0xb0] sm:$0xff]
    %v4748 = vld [vmem:[#allocation2 + $0xb8] sm:$0xff]
    %v4749 = vmax.f32 %v4741, %v4745
    %v4750 = vmax.f32 %v4742, %v4746
    %v4751 = vmax.f32 %v4743, %v4747
    %v4752 = vmax.f32 %v4744, %v4748
    %v4753 = vmax.f32 %v4749, %v4750
    %v4754 = vmax.f32 %v4751, %v4752
    %v4755 = vadd.f32 %v4753, %v4697
    %v4756 = vadd.f32 %v4754, %v4697
    %v4757 = vmax.f32 %v4755, 0.0
    %v4758 = vmax.f32 %v4756, 0.0
    %v4759 = vpack.c.bf16 %v4758, %v4757
    %v4761 = vunpack.c.l.b16 %v4759
    %v4762 = vunpack.c.h.b16 %v4759
    %v4763 = vpack.c.b16 %v4761, %v4761
    %v4764 = vpack.c.b16 %v4762, %v4762
    %4767 = vst [vmem:[#allocation3 + $0x10] sm:$0xf] %v4763
    %4768 = vst [vmem:[#allocation3 + $0x14] sm:$0xf] %v4764
    %v4769 = vld [vmem:[#allocation2 + $0xc0] sm:$0xff]
    %v4770 = vld [vmem:[#allocation2 + $0xc8] sm:$0xff]
    %v4771 = vld [vmem:[#allocation2 + $0xd0] sm:$0xff]
    %v4772 = vld [vmem:[#allocation2 + $0xd8] sm:$0xff]
    %v4773 = vld [vmem:[#allocation2 + $0xe0] sm:$0xff]
    %v4774 = vld [vmem:[#allocation2 + $0xe8] sm:$0xff]
    %v4775 = vld [vmem:[#allocation2 + $0xf0] sm:$0xff]
    %v4776 = vld [vmem:[#allocation2 + $0xf8] sm:$0xff]
    %v4777 = vmax.f32 %v4769, %v4773
    %v4778 = vmax.f32 %v4770, %v4774
    %v4779 = vmax.f32 %v4771, %v4775
    %v4780 = vmax.f32 %v4772, %v4776
    %v4781 = vmax.f32 %v4777, %v4778
    %v4782 = vmax.f32 %v4779, %v4780
    %v4783 = vadd.f32 %v4781, %v4697
    %v4784 = vadd.f32 %v4782, %v4697
    %v4785 = vmax.f32 %v4783, 0.0
    %v4786 = vmax.f32 %v4784, 0.0
    %v4787 = vpack.c.bf16 %v4786, %v4785
    %v4789 = vunpack.c.l.b16 %v4787
    %v4790 = vunpack.c.h.b16 %v4787
    %v4791 = vpack.c.b16 %v4789, %v4789
    %v4792 = vpack.c.b16 %v4790, %v4790
    %4795 = vst [vmem:[#allocation3 + $0x18] sm:$0xf] %v4791
    %4796 = vst [vmem:[#allocation3 + $0x1c] sm:$0xf] %v4792
    %v4797 = vld [vmem:[#allocation2 + $0x100] sm:$0xff]
    %v4798 = vld [vmem:[#allocation2 + $0x108] sm:$0xff]
    %v4799 = vld [vmem:[#allocation2 + $0x110] sm:$0xff]
    %v4800 = vld [vmem:[#allocation2 + $0x118] sm:$0xff]
    %v4801 = vld [vmem:[#allocation2 + $0x120] sm:$0xff]
    %v4802 = vld [vmem:[#allocation2 + $0x128] sm:$0xff]
    %v4803 = vld [vmem:[#allocation2 + $0x130] sm:$0xff]
    %v4804 = vld [vmem:[#allocation2 + $0x138] sm:$0xff]
    %v4805 = vmax.f32 %v4797, %v4801
    %v4806 = vmax.f32 %v4798, %v4802
    %v4807 = vmax.f32 %v4799, %v4803
    %v4808 = vmax.f32 %v4800, %v4804
    %v4809 = vmax.f32 %v4805, %v4806
    %v4810 = vmax.f32 %v4807, %v4808
    %v4811 = vadd.f32 %v4809, %v4697
    %v4812 = vadd.f32 %v4810, %v4697
    %v4813 = vmax.f32 %v4811, 0.0
    %v4814 = vmax.f32 %v4812, 0.0
    %v4815 = vpack.c.bf16 %v4814, %v4813
    %v4817 = vunpack.c.l.b16 %v4815
    %v4818 = vunpack.c.h.b16 %v4815
    %v4819 = vpack.c.b16 %v4817, %v4817
    %v4820 = vpack.c.b16 %v4818, %v4818
    %4823 = vst [vmem:[#allocation3 + $0x20] sm:$0xf] %v4819
    %4824 = vst [vmem:[#allocation3 + $0x24] sm:$0xf] %v4820
    %v4825 = vld [vmem:[#allocation2 + $0x140] sm:$0xff]
    %v4826 = vld [vmem:[#allocation2 + $0x148] sm:$0xff]
    %v4827 = vld [vmem:[#allocation2 + $0x150] sm:$0xff]
    %v4828 = vld [vmem:[#allocation2 + $0x158] sm:$0xff]
    %v4829 = vld [vmem:[#allocation2 + $0x160] sm:$0xff]
    %v4830 = vld [vmem:[#allocation2 + $0x168] sm:$0xff]
    %v4831 = vld [vmem:[#allocation2 + $0x170] sm:$0xff]
    %v4832 = vld [vmem:[#allocation2 + $0x178] sm:$0xff]
    %v4833 = vmax.f32 %v4825, %v4829
    %v4834 = vmax.f32 %v4826, %v4830
    %v4835 = vmax.f32 %v4827, %v4831
    %v4836 = vmax.f32 %v4828, %v4832
    %v4837 = vmax.f32 %v4833, %v4834
    %v4838 = vmax.f32 %v4835, %v4836
    %v4839 = vadd.f32 %v4837, %v4697
    %v4840 = vadd.f32 %v4838, %v4697
    %v4841 = vmax.f32 %v4839, 0.0
    %v4842 = vmax.f32 %v4840, 0.0
    %v4843 = vpack.c.bf16 %v4842, %v4841
    %v4845 = vunpack.c.l.b16 %v4843
    %v4846 = vunpack.c.h.b16 %v4843
    %v4847 = vpack.c.b16 %v4845, %v4845
    %v4848 = vpack.c.b16 %v4846, %v4846
    %4851 = vst [vmem:[#allocation3 + $0x28] sm:$0xf] %v4847
    %4852 = vst [vmem:[#allocation3 + $0x2c] sm:$0xf] %v4848
    %v4853 = vld [vmem:[#allocation2 + $0x180] sm:$0xff]
    %v4854 = vld [vmem:[#allocation2 + $0x188] sm:$0xff]
    %v4855 = vld [vmem:[#allocation2 + $0x190] sm:$0xff]
    %v4856 = vld [vmem:[#allocation2 + $0x198] sm:$0xff]
    %v4857 = vld [vmem:[#allocation2 + $0x1a0] sm:$0xff]
    %v4858 = vld [vmem:[#allocation2 + $0x1a8] sm:$0xff]
    %v4859 = vld [vmem:[#allocation2 + $0x1b0] sm:$0xff]
    %v4860 = vld [vmem:[#allocation2 + $0x1b8] sm:$0xff]
    %v4861 = vmax.f32 %v4853, %v4857
    %v4862 = vmax.f32 %v4854, %v4858
    %v4863 = vmax.f32 %v4855, %v4859
    %v4864 = vmax.f32 %v4856, %v4860
    %v4865 = vmax.f32 %v4861, %v4862
    %v4866 = vmax.f32 %v4863, %v4864
    %v4867 = vadd.f32 %v4865, %v4697
    %v4868 = vadd.f32 %v4866, %v4697
    %v4869 = vmax.f32 %v4867, 0.0
    %v4870 = vmax.f32 %v4868, 0.0
    %v4871 = vpack.c.bf16 %v4870, %v4869
    %v4873 = vunpack.c.l.b16 %v4871
    %v4874 = vunpack.c.h.b16 %v4871
    %v4875 = vpack.c.b16 %v4873, %v4873
    %v4876 = vpack.c.b16 %v4874, %v4874
    %4879 = vst [vmem:[#allocation3 + $0x30] sm:$0xf] %v4875
    %4880 = vst [vmem:[#allocation3 + $0x34] sm:$0xf] %v4876
    %v4881 = vld [vmem:[#allocation2 + $0x1c0] sm:$0xff]
    %v4882 = vld [vmem:[#allocation2 + $0x1c8] sm:$0xff]
    %v4883 = vld [vmem:[#allocation2 + $0x1d0] sm:$0xff]
    %v4884 = vld [vmem:[#allocation2 + $0x1d8] sm:$0xff]
    %v4885 = vld [vmem:[#allocation2 + $0x1e0] sm:$0xff]
    %v4886 = vld [vmem:[#allocation2 + $0x1e8] sm:$0xff]
    %v4887 = vld [vmem:[#allocation2 + $0x1f0] sm:$0xff]
    %v4888 = vld [vmem:[#allocation2 + $0x1f8] sm:$0xff]
    %v4889 = vmax.f32 %v4881, %v4885
    %v4890 = vmax.f32 %v4882, %v4886
    %v4891 = vmax.f32 %v4883, %v4887
    %v4892 = vmax.f32 %v4884, %v4888
    %v4893 = vmax.f32 %v4889, %v4890
    %v4894 = vmax.f32 %v4891, %v4892
    %v4895 = vadd.f32 %v4893, %v4697
    %v4896 = vadd.f32 %v4894, %v4697
    %v4897 = vmax.f32 %v4895, 0.0
    %v4898 = vmax.f32 %v4896, 0.0
    %v4899 = vpack.c.bf16 %v4898, %v4897
    %v4901 = vunpack.c.l.b16 %v4899
    %v4902 = vunpack.c.h.b16 %v4899
    %v4903 = vpack.c.b16 %v4901, %v4901
    %v4904 = vpack.c.b16 %v4902, %v4902
    %4907 = vst [vmem:[#allocation3 + $0x38] sm:$0xf] %v4903
    %4908 = vst [vmem:[#allocation3 + $0x3c] sm:$0xf] %v4904
    %v4909 = vld [vmem:[#allocation2 + $0x200] sm:$0xff]
    %v4910 = vld [vmem:[#allocation2 + $0x208] sm:$0xff]
    %v4911 = vld [vmem:[#allocation2 + $0x210] sm:$0xff]
    %v4912 = vld [vmem:[#allocation2 + $0x218] sm:$0xff]
    %v4913 = vld [vmem:[#allocation2 + $0x220] sm:$0xff]
    %v4914 = vld [vmem:[#allocation2 + $0x228] sm:$0xff]
    %v4915 = vld [vmem:[#allocation2 + $0x230] sm:$0xff]
    %v4916 = vld [vmem:[#allocation2 + $0x238] sm:$0xff]
    %v4917 = vmax.f32 %v4909, %v4913
    %v4918 = vmax.f32 %v4910, %v4914
    %v4919 = vmax.f32 %v4911, %v4915
    %v4920 = vmax.f32 %v4912, %v4916
    %v4921 = vmax.f32 %v4917, %v4918
    %v4922 = vmax.f32 %v4919, %v4920
    %v4923 = vadd.f32 %v4921, %v4697
    %v4924 = vadd.f32 %v4922, %v4697
    %v4925 = vmax.f32 %v4923, 0.0
    %v4926 = vmax.f32 %v4924, 0.0
    %v4927 = vpack.c.bf16 %v4926, %v4925
    %v4929 = vunpack.c.l.b16 %v4927
    %v4930 = vunpack.c.h.b16 %v4927
    %v4931 = vpack.c.b16 %v4929, %v4929
    %v4932 = vpack.c.b16 %v4930, %v4930
    %4935 = vst [vmem:[#allocation3 + $0x40] sm:$0xf] %v4931
    %4936 = vst [vmem:[#allocation3 + $0x44] sm:$0xf] %v4932
    %v4937 = vld [vmem:[#allocation2 + $0x240] sm:$0xff]
    %v4938 = vld [vmem:[#allocation2 + $0x248] sm:$0xff]
    %v4939 = vld [vmem:[#allocation2 + $0x250] sm:$0xff]
    %v4940 = vld [vmem:[#allocation2 + $0x258] sm:$0xff]
    %v4941 = vld [vmem:[#allocation2 + $0x260] sm:$0xff]
    %v4942 = vld [vmem:[#allocation2 + $0x268] sm:$0xff]
    %v4943 = vld [vmem:[#allocation2 + $0x270] sm:$0xff]
    %v4944 = vld [vmem:[#allocation2 + $0x278] sm:$0xff]
    %v4945 = vmax.f32 %v4937, %v4941
    %v4946 = vmax.f32 %v4938, %v4942
    %v4947 = vmax.f32 %v4939, %v4943
    %v4948 = vmax.f32 %v4940, %v4944
    %v4949 = vmax.f32 %v4945, %v4946
    %v4950 = vmax.f32 %v4947, %v4948
    %v4951 = vadd.f32 %v4949, %v4697
    %v4952 = vadd.f32 %v4950, %v4697
    %v4953 = vmax.f32 %v4951, 0.0
    %v4954 = vmax.f32 %v4952, 0.0
    %v4955 = vpack.c.bf16 %v4954, %v4953
    %v4957 = vunpack.c.l.b16 %v4955
    %v4958 = vunpack.c.h.b16 %v4955
    %v4959 = vpack.c.b16 %v4957, %v4957
    %v4960 = vpack.c.b16 %v4958, %v4958
    %4963 = vst [vmem:[#allocation3 + $0x48] sm:$0xf] %v4959
    %4964 = vst [vmem:[#allocation3 + $0x4c] sm:$0xf] %v4960
    %v4965 = vld [vmem:[#allocation2 + $0x280] sm:$0xff]
    %v4966 = vld [vmem:[#allocation2 + $0x288] sm:$0xff]
    %v4967 = vld [vmem:[#allocation2 + $0x290] sm:$0xff]
    %v4968 = vld [vmem:[#allocation2 + $0x298] sm:$0xff]
    %v4969 = vld [vmem:[#allocation2 + $0x2a0] sm:$0xff]
    %v4970 = vld [vmem:[#allocation2 + $0x2a8] sm:$0xff]
    %v4971 = vld [vmem:[#allocation2 + $0x2b0] sm:$0xff]
    %v4972 = vld [vmem:[#allocation2 + $0x2b8] sm:$0xff]
    %v4973 = vmax.f32 %v4965, %v4969
    %v4974 = vmax.f32 %v4966, %v4970
    %v4975 = vmax.f32 %v4967, %v4971
    %v4976 = vmax.f32 %v4968, %v4972
    %v4977 = vmax.f32 %v4973, %v4974
    %v4978 = vmax.f32 %v4975, %v4976
    %v4979 = vadd.f32 %v4977, %v4697
    %v4980 = vadd.f32 %v4978, %v4697
    %v4981 = vmax.f32 %v4979, 0.0
    %v4982 = vmax.f32 %v4980, 0.0
    %v4983 = vpack.c.bf16 %v4982, %v4981
    %v4985 = vunpack.c.l.b16 %v4983
    %v4986 = vunpack.c.h.b16 %v4983
    %v4987 = vpack.c.b16 %v4985, %v4985
    %v4988 = vpack.c.b16 %v4986, %v4986
    %4991 = vst [vmem:[#allocation3 + $0x50] sm:$0xf] %v4987
    %4992 = vst [vmem:[#allocation3 + $0x54] sm:$0xf] %v4988
    %v4993 = vld [vmem:[#allocation2 + $0x2c0] sm:$0xff]
    %v4994 = vld [vmem:[#allocation2 + $0x2c8] sm:$0xff]
    %v4995 = vld [vmem:[#allocation2 + $0x2d0] sm:$0xff]
    %v4996 = vld [vmem:[#allocation2 + $0x2d8] sm:$0xff]
    %v4997 = vld [vmem:[#allocation2 + $0x2e0] sm:$0xff]
    %v4998 = vld [vmem:[#allocation2 + $0x2e8] sm:$0xff]
    %v4999 = vld [vmem:[#allocation2 + $0x2f0] sm:$0xff]
    %v5000 = vld [vmem:[#allocation2 + $0x2f8] sm:$0xff]
    %v5001 = vmax.f32 %v4993, %v4997
    %v5002 = vmax.f32 %v4994, %v4998
    %v5003 = vmax.f32 %v4995, %v4999
    %v5004 = vmax.f32 %v4996, %v5000
    %v5005 = vmax.f32 %v5001, %v5002
    %v5006 = vmax.f32 %v5003, %v5004
    %v5007 = vadd.f32 %v5005, %v4697
    %v5008 = vadd.f32 %v5006, %v4697
    %v5009 = vmax.f32 %v5007, 0.0
    %v5010 = vmax.f32 %v5008, 0.0
    %v5011 = vpack.c.bf16 %v5010, %v5009
    %v5013 = vunpack.c.l.b16 %v5011
    %v5014 = vunpack.c.h.b16 %v5011
    %v5015 = vpack.c.b16 %v5013, %v5013
    %v5016 = vpack.c.b16 %v5014, %v5014
    %5019 = vst [vmem:[#allocation3 + $0x58] sm:$0xf] %v5015
    %5020 = vst [vmem:[#allocation3 + $0x5c] sm:$0xf] %v5016
    %v5021 = vld [vmem:[#allocation2 + $0x300] sm:$0xff]
    %v5022 = vld [vmem:[#allocation2 + $0x308] sm:$0xff]
    %v5023 = vld [vmem:[#allocation2 + $0x310] sm:$0xff]
    %v5024 = vld [vmem:[#allocation2 + $0x318] sm:$0xff]
    %v5025 = vld [vmem:[#allocation2 + $0x320] sm:$0xff]
    %v5026 = vld [vmem:[#allocation2 + $0x328] sm:$0xff]
    %v5027 = vld [vmem:[#allocation2 + $0x330] sm:$0xff]
    %v5028 = vld [vmem:[#allocation2 + $0x338] sm:$0xff]
    %v5029 = vmax.f32 %v5021, %v5025
    %v5030 = vmax.f32 %v5022, %v5026
    %v5031 = vmax.f32 %v5023, %v5027
    %v5032 = vmax.f32 %v5024, %v5028
    %v5033 = vmax.f32 %v5029, %v5030
    %v5034 = vmax.f32 %v5031, %v5032
    %v5035 = vadd.f32 %v5033, %v4697
    %v5036 = vadd.f32 %v5034, %v4697
    %v5037 = vmax.f32 %v5035, 0.0
    %v5038 = vmax.f32 %v5036, 0.0
    %v5039 = vpack.c.bf16 %v5038, %v5037
    %v5041 = vunpack.c.l.b16 %v5039
    %v5042 = vunpack.c.h.b16 %v5039
    %v5043 = vpack.c.b16 %v5041, %v5041
    %v5044 = vpack.c.b16 %v5042, %v5042
    %5047 = vst [vmem:[#allocation3 + $0x60] sm:$0xf] %v5043
    %5048 = vst [vmem:[#allocation3 + $0x64] sm:$0xf] %v5044
    %v5049 = vld [vmem:[#allocation2 + $0x340] sm:$0xff]
    %v5050 = vld [vmem:[#allocation2 + $0x348] sm:$0xff]
    %v5051 = vld [vmem:[#allocation2 + $0x350] sm:$0xff]
    %v5052 = vld [vmem:[#allocation2 + $0x358] sm:$0xff]
    %v5053 = vld [vmem:[#allocation2 + $0x360] sm:$0xff]
    %v5054 = vld [vmem:[#allocation2 + $0x368] sm:$0xff]
    %v5055 = vld [vmem:[#allocation2 + $0x370] sm:$0xff]
    %v5056 = vld [vmem:[#allocation2 + $0x378] sm:$0xff]
    %v5057 = vmax.f32 %v5049, %v5053
    %v5058 = vmax.f32 %v5050, %v5054
    %v5059 = vmax.f32 %v5051, %v5055
    %v5060 = vmax.f32 %v5052, %v5056
    %v5061 = vmax.f32 %v5057, %v5058
    %v5062 = vmax.f32 %v5059, %v5060
    %v5063 = vadd.f32 %v5061, %v4697
    %v5064 = vadd.f32 %v5062, %v4697
    %v5065 = vmax.f32 %v5063, 0.0
    %v5066 = vmax.f32 %v5064, 0.0
    %v5067 = vpack.c.bf16 %v5066, %v5065
    %v5069 = vunpack.c.l.b16 %v5067
    %v5070 = vunpack.c.h.b16 %v5067
    %v5071 = vpack.c.b16 %v5069, %v5069
    %v5072 = vpack.c.b16 %v5070, %v5070
    %5075 = vst [vmem:[#allocation3 + $0x68] sm:$0xf] %v5071
    %5076 = vst [vmem:[#allocation3 + $0x6c] sm:$0xf] %v5072
    %v5077 = vld [vmem:[#allocation3] sm:$0xf]
    %v5078 = vld [vmem:[#allocation3 + $0x4] sm:$0xf]
    %v5079 = vld [vmem:[#allocation3 + $0x8] sm:$0xf]
    %v5080 = vld [vmem:[#allocation3 + $0xc] sm:$0xf]
    %v5081 = vld [vmem:[#allocation3 + $0x10] sm:$0xf]
    %v5082 = vld [vmem:[#allocation3 + $0x14] sm:$0xf]
    %v5083 = vld [vmem:[#allocation3 + $0x18] sm:$0xf]
    %v5084 = vld [vmem:[#allocation3 + $0x1c] sm:$0xf]
    %v5085 = vld [vmem:[#allocation3 + $0x20] sm:$0xf]
    %v5086 = vld [vmem:[#allocation3 + $0x24] sm:$0xf]
    %v5087 = vld [vmem:[#allocation3 + $0x28] sm:$0xf]
    %v5088 = vld [vmem:[#allocation3 + $0x2c] sm:$0xf]
    %v5089 = vld [vmem:[#allocation3 + $0x30] sm:$0xf]
    %v5090 = vld [vmem:[#allocation3 + $0x34] sm:$0xf]
    %v5091 = vld [vmem:[#allocation3 + $0x38] sm:$0xf]
    %v5092 = vld [vmem:[#allocation3 + $0x3c] sm:$0xf]
    %v5093 = vld [vmem:[#allocation3 + $0x40] sm:$0xf]
    %v5094 = vld [vmem:[#allocation3 + $0x44] sm:$0xf]
    %v5095 = vld [vmem:[#allocation3 + $0x48] sm:$0xf]
    %v5096 = vld [vmem:[#allocation3 + $0x4c] sm:$0xf]
    %v5097 = vld [vmem:[%s3] sm:$0xff]
    %v5098 = vld [vmem:[%s3 + $0x8] sm:$0xff]
    %v5099 = vld [vmem:[%s3 + $0x10] sm:$0xff]
    %v5100 = vld [vmem:[%s3 + $0x18] sm:$0xff]
    %v5101 = vld [vmem:[%s3 + $0x20] sm:$0xff]
    %v5102 = vld [vmem:[%s3 + $0x28] sm:$0xff]
    %v5103 = vld [vmem:[%s3 + $0x30] sm:$0xff]
    %v5104 = vld [vmem:[%s3 + $0x38] sm:$0xff]
    %v5105 = vld [vmem:[%s3 + $0x40] sm:$0xff]
    %v5106 = vld [vmem:[%s3 + $0x48] sm:$0xff]
    %v5107 = vld [vmem:[%s3 + $0x50] sm:$0xff]
    %v5108 = vld [vmem:[%s3 + $0x58] sm:$0xff]
    %v5109 = vld [vmem:[%s3 + $0x60] sm:$0xff]
    %v5110 = vld [vmem:[%s3 + $0x68] sm:$0xff]
    %v5111 = vld [vmem:[%s3 + $0x70] sm:$0xff]
    %v5112 = vld [vmem:[%s3 + $0x78] sm:$0xff]
    %v5133 = vunpack.c.l.b16 %v5077
    %v5134 = vunpack.c.l.b16 %v5078
    %v5135 = vunpack.c.l.b16 %v5079
    %v5136 = vunpack.c.l.b16 %v5080
    %v5137 = vunpack.c.l.b16 %v5081
    %v5138 = vunpack.c.l.b16 %v5082
    %v5139 = vunpack.c.l.b16 %v5083
    %v5140 = vunpack.c.l.b16 %v5084
    %v5141 = vunpack.c.l.b16 %v5085
    %v5142 = vunpack.c.l.b16 %v5086
    %v5143 = vunpack.c.l.b16 %v5087
    %v5144 = vunpack.c.l.b16 %v5088
    %v5145 = vunpack.c.l.b16 %v5089
    %v5146 = vunpack.c.l.b16 %v5090
    %v5147 = vunpack.c.l.b16 %v5091
    %v5148 = vunpack.c.l.b16 %v5092
    %v5149 = vunpack.c.l.b16 %v5093
    %v5150 = vunpack.c.l.b16 %v5094
    %v5151 = vunpack.c.l.b16 %v5095
    %v5152 = vunpack.c.l.b16 %v5096
    %v5153 = vpack.c.b16 %v5134, %v5133
    %v5154 = vpack.c.b16 %v5136, %v5135
    %v5155 = vpack.c.b16 %v5138, %v5137
    %v5156 = vpack.c.b16 %v5140, %v5139
    %v5157 = vpack.c.b16 %v5142, %v5141
    %v5158 = vpack.c.b16 %v5144, %v5143
    %v5159 = vpack.c.b16 %v5146, %v5145
    %v5160 = vpack.c.b16 %v5148, %v5147
    %v5161 = vpack.c.b16 %v5150, %v5149
    %v5162 = vpack.c.b16 %v5152, %v5151
    %v5189 = vunpack.c.l.b16 %v5097
    %v5190 = vunpack.c.h.b16 %v5097
    %v5191 = vunpack.c.l.b16 %v5098
    %v5192 = vunpack.c.h.b16 %v5098
    %v5193 = vunpack.c.l.b16 %v5099
    %v5194 = vunpack.c.h.b16 %v5099
    %v5195 = vunpack.c.l.b16 %v5100
    %v5196 = vunpack.c.h.b16 %v5100
    %v5197 = vunpack.c.l.b16 %v5101
    %v5198 = vunpack.c.h.b16 %v5101
    %v5199 = vunpack.c.l.b16 %v5102
    %v5200 = vunpack.c.h.b16 %v5102
    %v5201 = vunpack.c.l.b16 %v5103
    %v5202 = vunpack.c.h.b16 %v5103
    %v5203 = vunpack.c.l.b16 %v5104
    %v5204 = vunpack.c.h.b16 %v5104
    %v5205 = vunpack.c.l.b16 %v5105
    %v5206 = vunpack.c.h.b16 %v5105
    %v5207 = vunpack.c.l.b16 %v5106
    %v5208 = vunpack.c.h.b16 %v5106
    %v5209 = vunpack.c.l.b16 %v5107
    %v5210 = vunpack.c.h.b16 %v5107
    %v5211 = vunpack.c.l.b16 %v5108
    %v5212 = vunpack.c.h.b16 %v5108
    %v5213 = vunpack.c.l.b16 %v5109
    %v5214 = vunpack.c.h.b16 %v5109
    %v5215 = vunpack.c.l.b16 %v5110
    %v5216 = vunpack.c.h.b16 %v5110
    %v5217 = vunpack.c.l.b16 %v5111
    %v5218 = vunpack.c.h.b16 %v5111
    %v5219 = vunpack.c.l.b16 %v5112
    %v5220 = vunpack.c.h.b16 %v5112
    %v5221 = vpack.c.b16 %v5191, %v5189
    %v5222 = vpack.c.b16 %v5192, %v5190
    %v5223 = vpack.c.b16 %v5195, %v5193
    %v5224 = vpack.c.b16 %v5196, %v5194
    %v5225 = vpack.c.b16 %v5199, %v5197
    %v5226 = vpack.c.b16 %v5200, %v5198
    %v5227 = vpack.c.b16 %v5203, %v5201
    %v5228 = vpack.c.b16 %v5204, %v5202
    %v5229 = vpack.c.b16 %v5207, %v5205
    %v5230 = vpack.c.b16 %v5208, %v5206
    %v5231 = vpack.c.b16 %v5211, %v5209
    %v5232 = vpack.c.b16 %v5212, %v5210
    %v5233 = vpack.c.b16 %v5215, %v5213
    %v5234 = vpack.c.b16 %v5216, %v5214
    %v5235 = vpack.c.b16 %v5219, %v5217
    %v5236 = vpack.c.b16 %v5220, %v5218
    %5253 = vmatprep.subr.bf16.mxu0 %v5236
    %5254 = vmatpush1.bf16.msra.mxu0 %v5235
    %5255 = vmatprep.subr.bf16.mxu0 %v5234
    %5256 = vmatpush1.bf16.msra.mxu0 %v5233
    %5257 = vmatprep.subr.bf16.mxu0 %v5232
    %5258 = vmatpush1.bf16.msra.mxu0 %v5231
    %5259 = vmatprep.subr.bf16.mxu0 %v5230
    %5260 = vmatpush1.bf16.msra.mxu0 %v5229
    %5261 = vmatprep.subr.bf16.mxu0 %v5228
    %5262 = vmatpush1.bf16.msra.mxu0 %v5227
    %5263 = vmatprep.subr.bf16.mxu0 %v5226
    %5264 = vmatpush1.bf16.msra.mxu0 %v5225
    %5265 = vmatprep.subr.bf16.mxu0 %v5224
    %5266 = vmatpush1.bf16.msra.mxu0 %v5223
    %5267 = vmatprep.subr.bf16.mxu0 %v5222
    %5268 = vmatpush1.bf16.msra.mxu0 %v5221
    %5269 = vmatprep.subr.bf16.mxu0 0
    %5270 = vmatpush2.bf16.msra.mxu0 0
    %5271 = vmatprep.subr.bf16.mxu0 0
    %5272 = vmatpush2.bf16.msra.mxu0 0
    %5273 = vmatprep.subr.bf16.mxu0 0
    %5274 = vmatpush2.bf16.msra.mxu0 0
    %5275 = vmatprep.subr.bf16.mxu0 0
    %5276 = vmatpush2.bf16.msra.mxu0 0
    %5277 = vmatprep.subr.bf16.mxu0 0
    %5278 = vmatpush2.bf16.msra.mxu0 0
    %5279 = vmatprep.subr.bf16.mxu0 0
    %5280 = vmatpush2.bf16.msra.mxu0 0
    %5281 = vmatprep.subr.bf16.mxu0 0
    %5282 = vmatpush2.bf16.msra.mxu0 0
    %5283 = vmatprep.subr.bf16.mxu0 0
    %5284 = vmatpush2.bf16.msra.mxu0 0
    %5285 = vmatprep.mubr.bf16.mxu0 0
    %5286 = vmatmul.mubr.bf16.gmra.mxu0 %v5153
    %v5287 = vpop.f32.mrf.mxu0
    %v5288 = vadd.f32 0.0, %v5287
    %v5289 = vpop.f32.mrf.mxu0
    %v5290 = vadd.f32 0.0, %v5289
    %v5291 = vpop.f32.mrf.mxu0
    %v5292 = vadd.f32 0.0, %v5291
    %v5293 = vpop.f32.mrf.mxu0
    %v5294 = vadd.f32 0.0, %v5293
    %5295 = vmatprep.mubr.bf16.mxu0 0
    %5296 = vmatmul.mubr.bf16.gmra.mxu0 %v5154
    %v5297 = vpop.f32.mrf.mxu0
    %v5298 = vadd.f32 0.0, %v5297
    %v5299 = vpop.f32.mrf.mxu0
    %v5300 = vadd.f32 0.0, %v5299
    %v5301 = vpop.f32.mrf.mxu0
    %v5302 = vadd.f32 0.0, %v5301
    %v5303 = vpop.f32.mrf.mxu0
    %v5304 = vadd.f32 0.0, %v5303
    %5305 = vmatprep.mubr.bf16.mxu0 0
    %5306 = vmatmul.mubr.bf16.gmra.mxu0 %v5155
    %v5307 = vpop.f32.mrf.mxu0
    %v5308 = vadd.f32 0.0, %v5307
    %v5309 = vpop.f32.mrf.mxu0
    %v5310 = vadd.f32 0.0, %v5309
    %v5311 = vpop.f32.mrf.mxu0
    %v5312 = vadd.f32 0.0, %v5311
    %v5313 = vpop.f32.mrf.mxu0
    %v5314 = vadd.f32 0.0, %v5313
    %5315 = vmatprep.mubr.bf16.mxu0 0
    %5316 = vmatmul.mubr.bf16.gmra.mxu0 %v5156
    %v5317 = vpop.f32.mrf.mxu0
    %v5318 = vadd.f32 0.0, %v5317
    %v5319 = vpop.f32.mrf.mxu0
    %v5320 = vadd.f32 0.0, %v5319
    %v5321 = vpop.f32.mrf.mxu0
    %v5322 = vadd.f32 0.0, %v5321
    %v5323 = vpop.f32.mrf.mxu0
    %v5324 = vadd.f32 0.0, %v5323
    %5325 = vmatprep.mubr.bf16.mxu0 0
    %5326 = vmatmul.mubr.bf16.gmra.mxu0 %v5157
    %v5327 = vpop.f32.mrf.mxu0
    %v5328 = vadd.f32 0.0, %v5327
    %v5329 = vpop.f32.mrf.mxu0
    %v5330 = vadd.f32 0.0, %v5329
    %v5331 = vpop.f32.mrf.mxu0
    %v5332 = vadd.f32 0.0, %v5331
    %v5333 = vpop.f32.mrf.mxu0
    %v5334 = vadd.f32 0.0, %v5333
    %5335 = vmatprep.mubr.bf16.mxu0 0
    %5336 = vmatmul.mubr.bf16.gmra.mxu0 %v5158
    %v5337 = vpop.f32.mrf.mxu0
    %v5338 = vadd.f32 0.0, %v5337
    %v5339 = vpop.f32.mrf.mxu0
    %v5340 = vadd.f32 0.0, %v5339
    %v5341 = vpop.f32.mrf.mxu0
    %v5342 = vadd.f32 0.0, %v5341
    %v5343 = vpop.f32.mrf.mxu0
    %v5344 = vadd.f32 0.0, %v5343
    %5345 = vmatprep.mubr.bf16.mxu0 0
    %5346 = vmatmul.mubr.bf16.gmra.mxu0 %v5159
    %v5347 = vpop.f32.mrf.mxu0
    %v5348 = vadd.f32 0.0, %v5347
    %v5349 = vpop.f32.mrf.mxu0
    %v5350 = vadd.f32 0.0, %v5349
    %v5351 = vpop.f32.mrf.mxu0
    %v5352 = vadd.f32 0.0, %v5351
    %v5353 = vpop.f32.mrf.mxu0
    %v5354 = vadd.f32 0.0, %v5353
    %5355 = vmatprep.mubr.bf16.mxu0 0
    %5356 = vmatmul.mubr.bf16.gmra.mxu0 %v5160
    %v5357 = vpop.f32.mrf.mxu0
    %v5358 = vadd.f32 0.0, %v5357
    %v5359 = vpop.f32.mrf.mxu0
    %v5360 = vadd.f32 0.0, %v5359
    %v5361 = vpop.f32.mrf.mxu0
    %v5362 = vadd.f32 0.0, %v5361
    %v5363 = vpop.f32.mrf.mxu0
    %v5364 = vadd.f32 0.0, %v5363
    %5365 = vmatprep.mubr.bf16.mxu0 0
    %5366 = vmatmul.mubr.bf16.gmra.mxu0 %v5161
    %v5367 = vpop.f32.mrf.mxu0
    %v5368 = vadd.f32 0.0, %v5367
    %v5369 = vpop.f32.mrf.mxu0
    %v5370 = vadd.f32 0.0, %v5369
    %v5371 = vpop.f32.mrf.mxu0
    %v5372 = vadd.f32 0.0, %v5371
    %v5373 = vpop.f32.mrf.mxu0
    %v5374 = vadd.f32 0.0, %v5373
    %5375 = vmatprep.mubr.bf16.mxu0 0
    %5376 = vmatmul.mubr.bf16.gmra.mxu0 %v5162
    %v5377 = vpop.f32.mrf.mxu0
    %v5378 = vadd.f32 0.0, %v5377
    %v5379 = vpop.f32.mrf.mxu0
    %v5380 = vadd.f32 0.0, %v5379
    %v5381 = vpop.f32.mrf.mxu0
    %v5382 = vadd.f32 0.0, %v5381
    %v5383 = vpop.f32.mrf.mxu0
    %v5384 = vadd.f32 0.0, %v5383
    %5385 = vdwg.mxu0
    %5386 = vst [vmem:[#allocation4] sm:$0xff] %v5288
    %5387 = vst [vmem:[#allocation4 + $0x8] sm:$0xff] %v5290
    %5388 = vst [vmem:[#allocation4 + $0x10] sm:$0xff] %v5292
    %5389 = vst [vmem:[#allocation4 + $0x18] sm:$0xff] %v5294
    %5390 = vst [vmem:[#allocation4 + $0x20] sm:$0xff] %v5298
    %5391 = vst [vmem:[#allocation4 + $0x28] sm:$0xff] %v5300
    %5392 = vst [vmem:[#allocation4 + $0x30] sm:$0xff] %v5302
    %5393 = vst [vmem:[#allocation4 + $0x38] sm:$0xff] %v5304
    %5394 = vst [vmem:[#allocation4 + $0x40] sm:$0xff] %v5308
    %5395 = vst [vmem:[#allocation4 + $0x48] sm:$0xff] %v5310
    %5396 = vst [vmem:[#allocation4 + $0x50] sm:$0xff] %v5312
    %5397 = vst [vmem:[#allocation4 + $0x58] sm:$0xff] %v5314
    %5398 = vst [vmem:[#allocation4 + $0x60] sm:$0xff] %v5318
    %5399 = vst [vmem:[#allocation4 + $0x68] sm:$0xff] %v5320
    %5400 = vst [vmem:[#allocation4 + $0x70] sm:$0xff] %v5322
    %5401 = vst [vmem:[#allocation4 + $0x78] sm:$0xff] %v5324
    %5402 = vst [vmem:[#allocation4 + $0x80] sm:$0xff] %v5328
    %5403 = vst [vmem:[#allocation4 + $0x88] sm:$0xff] %v5330
    %5404 = vst [vmem:[#allocation4 + $0x90] sm:$0xff] %v5332
    %5405 = vst [vmem:[#allocation4 + $0x98] sm:$0xff] %v5334
    %5406 = vst [vmem:[#allocation4 + $0xa0] sm:$0xff] %v5338
    %5407 = vst [vmem:[#allocation4 + $0xa8] sm:$0xff] %v5340
    %5408 = vst [vmem:[#allocation4 + $0xb0] sm:$0xff] %v5342
    %5409 = vst [vmem:[#allocation4 + $0xb8] sm:$0xff] %v5344
    %5410 = vst [vmem:[#allocation4 + $0xc0] sm:$0xff] %v5348
    %5411 = vst [vmem:[#allocation4 + $0xc8] sm:$0xff] %v5350
    %5412 = vst [vmem:[#allocation4 + $0xd0] sm:$0xff] %v5352
    %5413 = vst [vmem:[#allocation4 + $0xd8] sm:$0xff] %v5354
    %5414 = vst [vmem:[#allocation4 + $0xe0] sm:$0xff] %v5358
    %5415 = vst [vmem:[#allocation4 + $0xe8] sm:$0xff] %v5360
    %5416 = vst [vmem:[#allocation4 + $0xf0] sm:$0xff] %v5362
    %5417 = vst [vmem:[#allocation4 + $0xf8] sm:$0xff] %v5364
    %5418 = vst [vmem:[#allocation4 + $0x100] sm:$0xff] %v5368
    %5419 = vst [vmem:[#allocation4 + $0x108] sm:$0xff] %v5370
    %5420 = vst [vmem:[#allocation4 + $0x110] sm:$0xff] %v5372
    %5421 = vst [vmem:[#allocation4 + $0x118] sm:$0xff] %v5374
    %5422 = vst [vmem:[#allocation4 + $0x120] sm:$0xff] %v5378
    %5423 = vst [vmem:[#allocation4 + $0x128] sm:$0xff] %v5380
    %5424 = vst [vmem:[#allocation4 + $0x130] sm:$0xff] %v5382
    %5425 = vst [vmem:[#allocation4 + $0x138] sm:$0xff] %v5384
    %v5426 = vld [vmem:[#allocation4] sm:$0xff]
    %v5427 = vld [vmem:[#allocation4 + $0x8] sm:$0xff]
    %v5428 = vld [vmem:[#allocation4 + $0x10] sm:$0xff]
    %v5429 = vld [vmem:[#allocation4 + $0x18] sm:$0xff]
    %v5430 = vld [vmem:[#allocation4 + $0x20] sm:$0xff]
    %v5431 = vld [vmem:[#allocation4 + $0x28] sm:$0xff]
    %v5432 = vld [vmem:[#allocation4 + $0x30] sm:$0xff]
    %v5433 = vld [vmem:[#allocation4 + $0x38] sm:$0xff]
    %v5434 = vld [vmem:[#allocation4 + $0x40] sm:$0xff]
    %v5435 = vld [vmem:[#allocation4 + $0x48] sm:$0xff]
    %v5436 = vld [vmem:[#allocation4 + $0x50] sm:$0xff]
    %v5437 = vld [vmem:[#allocation4 + $0x58] sm:$0xff]
    %v5438 = vld [vmem:[#allocation4 + $0x60] sm:$0xff]
    %v5439 = vld [vmem:[#allocation4 + $0x68] sm:$0xff]
    %v5440 = vld [vmem:[#allocation4 + $0x70] sm:$0xff]
    %v5441 = vld [vmem:[#allocation4 + $0x78] sm:$0xff]
    %v5442 = vld [vmem:[#allocation4 + $0x80] sm:$0xff]
    %v5443 = vld [vmem:[#allocation4 + $0x88] sm:$0xff]
    %v5444 = vld [vmem:[#allocation4 + $0x90] sm:$0xff]
    %v5445 = vld [vmem:[#allocation4 + $0x98] sm:$0xff]
    %v5446 = vld [vmem:[#allocation4 + $0xa0] sm:$0xff]
    %v5447 = vld [vmem:[#allocation4 + $0xa8] sm:$0xff]
    %v5448 = vld [vmem:[#allocation4 + $0xb0] sm:$0xff]
    %v5449 = vld [vmem:[#allocation4 + $0xb8] sm:$0xff]
    %v5450 = vld [vmem:[#allocation4 + $0xc0] sm:$0xff]
    %v5451 = vld [vmem:[#allocation4 + $0xc8] sm:$0xff]
    %v5452 = vld [vmem:[#allocation4 + $0xd0] sm:$0xff]
    %v5453 = vld [vmem:[#allocation4 + $0xd8] sm:$0xff]
    %v5454 = vld [vmem:[#allocation4 + $0xe0] sm:$0xff]
    %v5455 = vld [vmem:[#allocation4 + $0xe8] sm:$0xff]
    %v5456 = vld [vmem:[#allocation4 + $0xf0] sm:$0xff]
    %v5457 = vld [vmem:[#allocation4 + $0xf8] sm:$0xff]
    %v5458 = vld [vmem:[#allocation4 + $0x100] sm:$0xff]
    %v5459 = vld [vmem:[#allocation4 + $0x108] sm:$0xff]
    %v5460 = vld [vmem:[#allocation4 + $0x110] sm:$0xff]
    %v5461 = vld [vmem:[#allocation4 + $0x118] sm:$0xff]
    %v5462 = vld [vmem:[#allocation4 + $0x120] sm:$0xff]
    %v5463 = vld [vmem:[#allocation4 + $0x128] sm:$0xff]
    %v5464 = vld [vmem:[#allocation4 + $0x130] sm:$0xff]
    %v5465 = vld [vmem:[#allocation4 + $0x138] sm:$0xff]
    %v5466 = vld [vmem:[#allocation3 + $0x8] sm:$0xf]
    %v5467 = vld [vmem:[#allocation3 + $0xc] sm:$0xf]
    %v5468 = vld [vmem:[#allocation3 + $0x10] sm:$0xf]
    %v5469 = vld [vmem:[#allocation3 + $0x14] sm:$0xf]
    %v5470 = vld [vmem:[#allocation3 + $0x18] sm:$0xf]
    %v5471 = vld [vmem:[#allocation3 + $0x1c] sm:$0xf]
    %v5472 = vld [vmem:[#allocation3 + $0x20] sm:$0xf]
    %v5473 = vld [vmem:[#allocation3 + $0x24] sm:$0xf]
    %v5474 = vld [vmem:[#allocation3 + $0x28] sm:$0xf]
    %v5475 = vld [vmem:[#allocation3 + $0x2c] sm:$0xf]
    %v5476 = vld [vmem:[#allocation3 + $0x30] sm:$0xf]
    %v5477 = vld [vmem:[#allocation3 + $0x34] sm:$0xf]
    %v5478 = vld [vmem:[#allocation3 + $0x38] sm:$0xf]
    %v5479 = vld [vmem:[#allocation3 + $0x3c] sm:$0xf]
    %v5480 = vld [vmem:[#allocation3 + $0x40] sm:$0xf]
    %v5481 = vld [vmem:[#allocation3 + $0x44] sm:$0xf]
    %v5482 = vld [vmem:[#allocation3 + $0x48] sm:$0xf]
    %v5483 = vld [vmem:[#allocation3 + $0x4c] sm:$0xf]
    %v5484 = vld [vmem:[#allocation3 + $0x50] sm:$0xf]
    %v5485 = vld [vmem:[#allocation3 + $0x54] sm:$0xf]
    %s5486 = scalar_lea.vmem %s3, 128
    %v5487 = vld [vmem:[%s5486] sm:$0xff]
    %v5488 = vld [vmem:[%s5486 + $0x8] sm:$0xff]
    %v5489 = vld [vmem:[%s5486 + $0x10] sm:$0xff]
    %v5490 = vld [vmem:[%s5486 + $0x18] sm:$0xff]
    %v5491 = vld [vmem:[%s5486 + $0x20] sm:$0xff]
    %v5492 = vld [vmem:[%s5486 + $0x28] sm:$0xff]
    %v5493 = vld [vmem:[%s5486 + $0x30] sm:$0xff]
    %v5494 = vld [vmem:[%s5486 + $0x38] sm:$0xff]
    %v5495 = vld [vmem:[%s5486 + $0x40] sm:$0xff]
    %v5496 = vld [vmem:[%s5486 + $0x48] sm:$0xff]
    %v5497 = vld [vmem:[%s5486 + $0x50] sm:$0xff]
    %v5498 = vld [vmem:[%s5486 + $0x58] sm:$0xff]
    %v5499 = vld [vmem:[%s5486 + $0x60] sm:$0xff]
    %v5500 = vld [vmem:[%s5486 + $0x68] sm:$0xff]
    %v5501 = vld [vmem:[%s5486 + $0x70] sm:$0xff]
    %v5502 = vld [vmem:[%s5486 + $0x78] sm:$0xff]
    %v5523 = vunpack.c.l.b16 %v5466
    %v5524 = vunpack.c.l.b16 %v5467
    %v5525 = vunpack.c.l.b16 %v5468
    %v5526 = vunpack.c.l.b16 %v5469
    %v5527 = vunpack.c.l.b16 %v5470
    %v5528 = vunpack.c.l.b16 %v5471
    %v5529 = vunpack.c.l.b16 %v5472
    %v5530 = vunpack.c.l.b16 %v5473
    %v5531 = vunpack.c.l.b16 %v5474
    %v5532 = vunpack.c.l.b16 %v5475
    %v5533 = vunpack.c.l.b16 %v5476
    %v5534 = vunpack.c.l.b16 %v5477
    %v5535 = vunpack.c.l.b16 %v5478
    %v5536 = vunpack.c.l.b16 %v5479
    %v5537 = vunpack.c.l.b16 %v5480
    %v5538 = vunpack.c.l.b16 %v5481
    %v5539 = vunpack.c.l.b16 %v5482
    %v5540 = vunpack.c.l.b16 %v5483
    %v5541 = vunpack.c.l.b16 %v5484
    %v5542 = vunpack.c.l.b16 %v5485
    %v5543 = vpack.c.b16 %v5524, %v5523
    %v5544 = vpack.c.b16 %v5526, %v5525
    %v5545 = vpack.c.b16 %v5528, %v5527
    %v5546 = vpack.c.b16 %v5530, %v5529
    %v5547 = vpack.c.b16 %v5532, %v5531
    %v5548 = vpack.c.b16 %v5534, %v5533
    %v5549 = vpack.c.b16 %v5536, %v5535
    %v5550 = vpack.c.b16 %v5538, %v5537
    %v5551 = vpack.c.b16 %v5540, %v5539
    %v5552 = vpack.c.b16 %v5542, %v5541
    %v5579 = vunpack.c.l.b16 %v5487
    %v5580 = vunpack.c.h.b16 %v5487
    %v5581 = vunpack.c.l.b16 %v5488
    %v5582 = vunpack.c.h.b16 %v5488
    %v5583 = vunpack.c.l.b16 %v5489
    %v5584 = vunpack.c.h.b16 %v5489
    %v5585 = vunpack.c.l.b16 %v5490
    %v5586 = vunpack.c.h.b16 %v5490
    %v5587 = vunpack.c.l.b16 %v5491
    %v5588 = vunpack.c.h.b16 %v5491
    %v5589 = vunpack.c.l.b16 %v5492
    %v5590 = vunpack.c.h.b16 %v5492
    %v5591 = vunpack.c.l.b16 %v5493
    %v5592 = vunpack.c.h.b16 %v5493
    %v5593 = vunpack.c.l.b16 %v5494
    %v5594 = vunpack.c.h.b16 %v5494
    %v5595 = vunpack.c.l.b16 %v5495
    %v5596 = vunpack.c.h.b16 %v5495
    %v5597 = vunpack.c.l.b16 %v5496
    %v5598 = vunpack.c.h.b16 %v5496
    %v5599 = vunpack.c.l.b16 %v5497
    %v5600 = vunpack.c.h.b16 %v5497
    %v5601 = vunpack.c.l.b16 %v5498
    %v5602 = vunpack.c.h.b16 %v5498
    %v5603 = vunpack.c.l.b16 %v5499
    %v5604 = vunpack.c.h.b16 %v5499
    %v5605 = vunpack.c.l.b16 %v5500
    %v5606 = vunpack.c.h.b16 %v5500
    %v5607 = vunpack.c.l.b16 %v5501
    %v5608 = vunpack.c.h.b16 %v5501
    %v5609 = vunpack.c.l.b16 %v5502
    %v5610 = vunpack.c.h.b16 %v5502
    %v5611 = vpack.c.b16 %v5581, %v5579
    %v5612 = vpack.c.b16 %v5582, %v5580
    %v5613 = vpack.c.b16 %v5585, %v5583
    %v5614 = vpack.c.b16 %v5586, %v5584
    %v5615 = vpack.c.b16 %v5589, %v5587
    %v5616 = vpack.c.b16 %v5590, %v5588
    %v5617 = vpack.c.b16 %v5593, %v5591
    %v5618 = vpack.c.b16 %v5594, %v5592
    %v5619 = vpack.c.b16 %v5597, %v5595
    %v5620 = vpack.c.b16 %v5598, %v5596
    %v5621 = vpack.c.b16 %v5601, %v5599
    %v5622 = vpack.c.b16 %v5602, %v5600
    %v5623 = vpack.c.b16 %v5605, %v5603
    %v5624 = vpack.c.b16 %v5606, %v5604
    %v5625 = vpack.c.b16 %v5609, %v5607
    %v5626 = vpack.c.b16 %v5610, %v5608
    %5643 = vmatprep.subr.bf16.mxu0 %v5626
    %5644 = vmatpush1.bf16.msra.mxu0 %v5625
    %5645 = vmatprep.subr.bf16.mxu0 %v5624
    %5646 = vmatpush1.bf16.msra.mxu0 %v5623
    %5647 = vmatprep.subr.bf16.mxu0 %v5622
    %5648 = vmatpush1.bf16.msra.mxu0 %v5621
    %5649 = vmatprep.subr.bf16.mxu0 %v5620
    %5650 = vmatpush1.bf16.msra.mxu0 %v5619
    %5651 = vmatprep.subr.bf16.mxu0 %v5618
    %5652 = vmatpush1.bf16.msra.mxu0 %v5617
    %5653 = vmatprep.subr.bf16.mxu0 %v5616
    %5654 = vmatpush1.bf16.msra.mxu0 %v5615
    %5655 = vmatprep.subr.bf16.mxu0 %v5614
    %5656 = vmatpush1.bf16.msra.mxu0 %v5613
    %5657 = vmatprep.subr.bf16.mxu0 %v5612
    %5658 = vmatpush1.bf16.msra.mxu0 %v5611
    %5659 = vmatprep.subr.bf16.mxu0 0
    %5660 = vmatpush2.bf16.msra.mxu0 0
    %5661 = vmatprep.subr.bf16.mxu0 0
    %5662 = vmatpush2.bf16.msra.mxu0 0
    %5663 = vmatprep.subr.bf16.mxu0 0
    %5664 = vmatpush2.bf16.msra.mxu0 0
    %5665 = vmatprep.subr.bf16.mxu0 0
    %5666 = vmatpush2.bf16.msra.mxu0 0
    %5667 = vmatprep.subr.bf16.mxu0 0
    %5668 = vmatpush2.bf16.msra.mxu0 0
    %5669 = vmatprep.subr.bf16.mxu0 0
    %5670 = vmatpush2.bf16.msra.mxu0 0
    %5671 = vmatprep.subr.bf16.mxu0 0
    %5672 = vmatpush2.bf16.msra.mxu0 0
    %5673 = vmatprep.subr.bf16.mxu0 0
    %5674 = vmatpush2.bf16.msra.mxu0 0
    %5675 = vmatprep.mubr.bf16.mxu0 0
    %5676 = vmatmul.mubr.bf16.gmra.mxu0 %v5543
    %v5677 = vpop.f32.mrf.mxu0
    %v5678 = vadd.f32 0.0, %v5677
    %v5679 = vpop.f32.mrf.mxu0
    %v5680 = vadd.f32 0.0, %v5679
    %v5681 = vpop.f32.mrf.mxu0
    %v5682 = vadd.f32 0.0, %v5681
    %v5683 = vpop.f32.mrf.mxu0
    %v5684 = vadd.f32 0.0, %v5683
    %5685 = vmatprep.mubr.bf16.mxu0 0
    %5686 = vmatmul.mubr.bf16.gmra.mxu0 %v5544
    %v5687 = vpop.f32.mrf.mxu0
    %v5688 = vadd.f32 0.0, %v5687
    %v5689 = vpop.f32.mrf.mxu0
    %v5690 = vadd.f32 0.0, %v5689
    %v5691 = vpop.f32.mrf.mxu0
    %v5692 = vadd.f32 0.0, %v5691
    %v5693 = vpop.f32.mrf.mxu0
    %v5694 = vadd.f32 0.0, %v5693
    %5695 = vmatprep.mubr.bf16.mxu0 0
    %5696 = vmatmul.mubr.bf16.gmra.mxu0 %v5545
    %v5697 = vpop.f32.mrf.mxu0
    %v5698 = vadd.f32 0.0, %v5697
    %v5699 = vpop.f32.mrf.mxu0
    %v5700 = vadd.f32 0.0, %v5699
    %v5701 = vpop.f32.mrf.mxu0
    %v5702 = vadd.f32 0.0, %v5701
    %v5703 = vpop.f32.mrf.mxu0
    %v5704 = vadd.f32 0.0, %v5703
    %5705 = vmatprep.mubr.bf16.mxu0 0
    %5706 = vmatmul.mubr.bf16.gmra.mxu0 %v5546
    %v5707 = vpop.f32.mrf.mxu0
    %v5708 = vadd.f32 0.0, %v5707
    %v5709 = vpop.f32.mrf.mxu0
    %v5710 = vadd.f32 0.0, %v5709
    %v5711 = vpop.f32.mrf.mxu0
    %v5712 = vadd.f32 0.0, %v5711
    %v5713 = vpop.f32.mrf.mxu0
    %v5714 = vadd.f32 0.0, %v5713
    %5715 = vmatprep.mubr.bf16.mxu0 0
    %5716 = vmatmul.mubr.bf16.gmra.mxu0 %v5547
    %v5717 = vpop.f32.mrf.mxu0
    %v5718 = vadd.f32 0.0, %v5717
    %v5719 = vpop.f32.mrf.mxu0
    %v5720 = vadd.f32 0.0, %v5719
    %v5721 = vpop.f32.mrf.mxu0
    %v5722 = vadd.f32 0.0, %v5721
    %v5723 = vpop.f32.mrf.mxu0
    %v5724 = vadd.f32 0.0, %v5723
    %5725 = vmatprep.mubr.bf16.mxu0 0
    %5726 = vmatmul.mubr.bf16.gmra.mxu0 %v5548
    %v5727 = vpop.f32.mrf.mxu0
    %v5728 = vadd.f32 0.0, %v5727
    %v5729 = vpop.f32.mrf.mxu0
    %v5730 = vadd.f32 0.0, %v5729
    %v5731 = vpop.f32.mrf.mxu0
    %v5732 = vadd.f32 0.0, %v5731
    %v5733 = vpop.f32.mrf.mxu0
    %v5734 = vadd.f32 0.0, %v5733
    %5735 = vmatprep.mubr.bf16.mxu0 0
    %5736 = vmatmul.mubr.bf16.gmra.mxu0 %v5549
    %v5737 = vpop.f32.mrf.mxu0
    %v5738 = vadd.f32 0.0, %v5737
    %v5739 = vpop.f32.mrf.mxu0
    %v5740 = vadd.f32 0.0, %v5739
    %v5741 = vpop.f32.mrf.mxu0
    %v5742 = vadd.f32 0.0, %v5741
    %v5743 = vpop.f32.mrf.mxu0
    %v5744 = vadd.f32 0.0, %v5743
    %5745 = vmatprep.mubr.bf16.mxu0 0
    %5746 = vmatmul.mubr.bf16.gmra.mxu0 %v5550
    %v5747 = vpop.f32.mrf.mxu0
    %v5748 = vadd.f32 0.0, %v5747
    %v5749 = vpop.f32.mrf.mxu0
    %v5750 = vadd.f32 0.0, %v5749
    %v5751 = vpop.f32.mrf.mxu0
    %v5752 = vadd.f32 0.0, %v5751
    %v5753 = vpop.f32.mrf.mxu0
    %v5754 = vadd.f32 0.0, %v5753
    %5755 = vmatprep.mubr.bf16.mxu0 0
    %5756 = vmatmul.mubr.bf16.gmra.mxu0 %v5551
    %v5757 = vpop.f32.mrf.mxu0
    %v5758 = vadd.f32 0.0, %v5757
    %v5759 = vpop.f32.mrf.mxu0
    %v5760 = vadd.f32 0.0, %v5759
    %v5761 = vpop.f32.mrf.mxu0
    %v5762 = vadd.f32 0.0, %v5761
    %v5763 = vpop.f32.mrf.mxu0
    %v5764 = vadd.f32 0.0, %v5763
    %5765 = vmatprep.mubr.bf16.mxu0 0
    %5766 = vmatmul.mubr.bf16.gmra.mxu0 %v5552
    %v5767 = vpop.f32.mrf.mxu0
    %v5768 = vadd.f32 0.0, %v5767
    %v5769 = vpop.f32.mrf.mxu0
    %v5770 = vadd.f32 0.0, %v5769
    %v5771 = vpop.f32.mrf.mxu0
    %v5772 = vadd.f32 0.0, %v5771
    %v5773 = vpop.f32.mrf.mxu0
    %v5774 = vadd.f32 0.0, %v5773
    %5775 = vdwg.mxu0
    %v5776 = vadd.f32 %v5426, %v5678
    %v5777 = vadd.f32 %v5427, %v5680
    %v5778 = vadd.f32 %v5428, %v5682
    %v5779 = vadd.f32 %v5429, %v5684
    %v5780 = vadd.f32 %v5430, %v5688
    %v5781 = vadd.f32 %v5431, %v5690
    %v5782 = vadd.f32 %v5432, %v5692
    %v5783 = vadd.f32 %v5433, %v5694
    %v5784 = vadd.f32 %v5434, %v5698
    %v5785 = vadd.f32 %v5435, %v5700
    %v5786 = vadd.f32 %v5436, %v5702
    %v5787 = vadd.f32 %v5437, %v5704
    %v5788 = vadd.f32 %v5438, %v5708
    %v5789 = vadd.f32 %v5439, %v5710
    %v5790 = vadd.f32 %v5440, %v5712
    %v5791 = vadd.f32 %v5441, %v5714
    %v5792 = vadd.f32 %v5442, %v5718
    %v5793 = vadd.f32 %v5443, %v5720
    %v5794 = vadd.f32 %v5444, %v5722
    %v5795 = vadd.f32 %v5445, %v5724
    %v5796 = vadd.f32 %v5446, %v5728
    %v5797 = vadd.f32 %v5447, %v5730
    %v5798 = vadd.f32 %v5448, %v5732
    %v5799 = vadd.f32 %v5449, %v5734
    %v5800 = vadd.f32 %v5450, %v5738
    %v5801 = vadd.f32 %v5451, %v5740
    %v5802 = vadd.f32 %v5452, %v5742
    %v5803 = vadd.f32 %v5453, %v5744
    %v5804 = vadd.f32 %v5454, %v5748
    %v5805 = vadd.f32 %v5455, %v5750
    %v5806 = vadd.f32 %v5456, %v5752
    %v5807 = vadd.f32 %v5457, %v5754
    %v5808 = vadd.f32 %v5458, %v5758
    %v5809 = vadd.f32 %v5459, %v5760
    %v5810 = vadd.f32 %v5460, %v5762
    %v5811 = vadd.f32 %v5461, %v5764
    %v5812 = vadd.f32 %v5462, %v5768
    %v5813 = vadd.f32 %v5463, %v5770
    %v5814 = vadd.f32 %v5464, %v5772
    %v5815 = vadd.f32 %v5465, %v5774
    %5816 = vst [vmem:[#allocation4] sm:$0xff] %v5776
    %5817 = vst [vmem:[#allocation4 + $0x8] sm:$0xff] %v5777
    %5818 = vst [vmem:[#allocation4 + $0x10] sm:$0xff] %v5778
    %5819 = vst [vmem:[#allocation4 + $0x18] sm:$0xff] %v5779
    %5820 = vst [vmem:[#allocation4 + $0x20] sm:$0xff] %v5780
    %5821 = vst [vmem:[#allocation4 + $0x28] sm:$0xff] %v5781
    %5822 = vst [vmem:[#allocation4 + $0x30] sm:$0xff] %v5782
    %5823 = vst [vmem:[#allocation4 + $0x38] sm:$0xff] %v5783
    %5824 = vst [vmem:[#allocation4 + $0x40] sm:$0xff] %v5784
    %5825 = vst [vmem:[#allocation4 + $0x48] sm:$0xff] %v5785
    %5826 = vst [vmem:[#allocation4 + $0x50] sm:$0xff] %v5786
    %5827 = vst [vmem:[#allocation4 + $0x58] sm:$0xff] %v5787
    %5828 = vst [vmem:[#allocation4 + $0x60] sm:$0xff] %v5788
    %5829 = vst [vmem:[#allocation4 + $0x68] sm:$0xff] %v5789
    %5830 = vst [vmem:[#allocation4 + $0x70] sm:$0xff] %v5790
    %5831 = vst [vmem:[#allocation4 + $0x78] sm:$0xff] %v5791
    %5832 = vst [vmem:[#allocation4 + $0x80] sm:$0xff] %v5792
    %5833 = vst [vmem:[#allocation4 + $0x88] sm:$0xff] %v5793
    %5834 = vst [vmem:[#allocation4 + $0x90] sm:$0xff] %v5794
    %5835 = vst [vmem:[#allocation4 + $0x98] sm:$0xff] %v5795
    %5836 = vst [vmem:[#allocation4 + $0xa0] sm:$0xff] %v5796
    %5837 = vst [vmem:[#allocation4 + $0xa8] sm:$0xff] %v5797
    %5838 = vst [vmem:[#allocation4 + $0xb0] sm:$0xff] %v5798
    %5839 = vst [vmem:[#allocation4 + $0xb8] sm:$0xff] %v5799
    %5840 = vst [vmem:[#allocation4 + $0xc0] sm:$0xff] %v5800
    %5841 = vst [vmem:[#allocation4 + $0xc8] sm:$0xff] %v5801
    %5842 = vst [vmem:[#allocation4 + $0xd0] sm:$0xff] %v5802
    %5843 = vst [vmem:[#allocation4 + $0xd8] sm:$0xff] %v5803
    %5844 = vst [vmem:[#allocation4 + $0xe0] sm:$0xff] %v5804
    %5845 = vst [vmem:[#allocation4 + $0xe8] sm:$0xff] %v5805
    %5846 = vst [vmem:[#allocation4 + $0xf0] sm:$0xff] %v5806
    %5847 = vst [vmem:[#allocation4 + $0xf8] sm:$0xff] %v5807
    %5848 = vst [vmem:[#allocation4 + $0x100] sm:$0xff] %v5808
    %5849 = vst [vmem:[#allocation4 + $0x108] sm:$0xff] %v5809
    %5850 = vst [vmem:[#allocation4 + $0x110] sm:$0xff] %v5810
    %5851 = vst [vmem:[#allocation4 + $0x118] sm:$0xff] %v5811
    %5852 = vst [vmem:[#allocation4 + $0x120] sm:$0xff] %v5812
    %5853 = vst [vmem:[#allocation4 + $0x128] sm:$0xff] %v5813
    %5854 = vst [vmem:[#allocation4 + $0x130] sm:$0xff] %v5814
    %5855 = vst [vmem:[#allocation4 + $0x138] sm:$0xff] %v5815
    %v5856 = vld [vmem:[#allocation4] sm:$0xff]
    %v5857 = vld [vmem:[#allocation4 + $0x8] sm:$0xff]
    %v5858 = vld [vmem:[#allocation4 + $0x10] sm:$0xff]
    %v5859 = vld [vmem:[#allocation4 + $0x18] sm:$0xff]
    %v5860 = vld [vmem:[#allocation4 + $0x20] sm:$0xff]
    %v5861 = vld [vmem:[#allocation4 + $0x28] sm:$0xff]
    %v5862 = vld [vmem:[#allocation4 + $0x30] sm:$0xff]
    %v5863 = vld [vmem:[#allocation4 + $0x38] sm:$0xff]
    %v5864 = vld [vmem:[#allocation4 + $0x40] sm:$0xff]
    %v5865 = vld [vmem:[#allocation4 + $0x48] sm:$0xff]
    %v5866 = vld [vmem:[#allocation4 + $0x50] sm:$0xff]
    %v5867 = vld [vmem:[#allocation4 + $0x58] sm:$0xff]
    %v5868 = vld [vmem:[#allocation4 + $0x60] sm:$0xff]
    %v5869 = vld [vmem:[#allocation4 + $0x68] sm:$0xff]
    %v5870 = vld [vmem:[#allocation4 + $0x70] sm:$0xff]
    %v5871 = vld [vmem:[#allocation4 + $0x78] sm:$0xff]
    %v5872 = vld [vmem:[#allocation4 + $0x80] sm:$0xff]
    %v5873 = vld [vmem:[#allocation4 + $0x88] sm:$0xff]
    %v5874 = vld [vmem:[#allocation4 + $0x90] sm:$0xff]
    %v5875 = vld [vmem:[#allocation4 + $0x98] sm:$0xff]
    %v5876 = vld [vmem:[#allocation4 + $0xa0] sm:$0xff]
    %v5877 = vld [vmem:[#allocation4 + $0xa8] sm:$0xff]
    %v5878 = vld [vmem:[#allocation4 + $0xb0] sm:$0xff]
    %v5879 = vld [vmem:[#allocation4 + $0xb8] sm:$0xff]
    %v5880 = vld [vmem:[#allocation4 + $0xc0] sm:$0xff]
    %v5881 = vld [vmem:[#allocation4 + $0xc8] sm:$0xff]
    %v5882 = vld [vmem:[#allocation4 + $0xd0] sm:$0xff]
    %v5883 = vld [vmem:[#allocation4 + $0xd8] sm:$0xff]
    %v5884 = vld [vmem:[#allocation4 + $0xe0] sm:$0xff]
    %v5885 = vld [vmem:[#allocation4 + $0xe8] sm:$0xff]
    %v5886 = vld [vmem:[#allocation4 + $0xf0] sm:$0xff]
    %v5887 = vld [vmem:[#allocation4 + $0xf8] sm:$0xff]
    %v5888 = vld [vmem:[#allocation4 + $0x100] sm:$0xff]
    %v5889 = vld [vmem:[#allocation4 + $0x108] sm:$0xff]
    %v5890 = vld [vmem:[#allocation4 + $0x110] sm:$0xff]
    %v5891 = vld [vmem:[#allocation4 + $0x118] sm:$0xff]
    %v5892 = vld [vmem:[#allocation4 + $0x120] sm:$0xff]
    %v5893 = vld [vmem:[#allocation4 + $0x128] sm:$0xff]
    %v5894 = vld [vmem:[#allocation4 + $0x130] sm:$0xff]
    %v5895 = vld [vmem:[#allocation4 + $0x138] sm:$0xff]
    %v5896 = vld [vmem:[#allocation3 + $0x10] sm:$0xf]
    %v5897 = vld [vmem:[#allocation3 + $0x14] sm:$0xf]
    %v5898 = vld [vmem:[#allocation3 + $0x18] sm:$0xf]
    %v5899 = vld [vmem:[#allocation3 + $0x1c] sm:$0xf]
    %v5900 = vld [vmem:[#allocation3 + $0x20] sm:$0xf]
    %v5901 = vld [vmem:[#allocation3 + $0x24] sm:$0xf]
    %v5902 = vld [vmem:[#allocation3 + $0x28] sm:$0xf]
    %v5903 = vld [vmem:[#allocation3 + $0x2c] sm:$0xf]
    %v5904 = vld [vmem:[#allocation3 + $0x30] sm:$0xf]
    %v5905 = vld [vmem:[#allocation3 + $0x34] sm:$0xf]
    %v5906 = vld [vmem:[#allocation3 + $0x38] sm:$0xf]
    %v5907 = vld [vmem:[#allocation3 + $0x3c] sm:$0xf]
    %v5908 = vld [vmem:[#allocation3 + $0x40] sm:$0xf]
    %v5909 = vld [vmem:[#allocation3 + $0x44] sm:$0xf]
    %v5910 = vld [vmem:[#allocation3 + $0x48] sm:$0xf]
    %v5911 = vld [vmem:[#allocation3 + $0x4c] sm:$0xf]
    %v5912 = vld [vmem:[#allocation3 + $0x50] sm:$0xf]
    %v5913 = vld [vmem:[#allocation3 + $0x54] sm:$0xf]
    %v5914 = vld [vmem:[#allocation3 + $0x58] sm:$0xf]
    %v5915 = vld [vmem:[#allocation3 + $0x5c] sm:$0xf]
    %s5916 = scalar_lea.vmem %s3, 256
    %v5917 = vld [vmem:[%s5916] sm:$0xff]
    %v5918 = vld [vmem:[%s5916 + $0x8] sm:$0xff]
    %v5919 = vld [vmem:[%s5916 + $0x10] sm:$0xff]
    %v5920 = vld [vmem:[%s5916 + $0x18] sm:$0xff]
    %v5921 = vld [vmem:[%s5916 + $0x20] sm:$0xff]
    %v5922 = vld [vmem:[%s5916 + $0x28] sm:$0xff]
    %v5923 = vld [vmem:[%s5916 + $0x30] sm:$0xff]
    %v5924 = vld [vmem:[%s5916 + $0x38] sm:$0xff]
    %v5925 = vld [vmem:[%s5916 + $0x40] sm:$0xff]
    %v5926 = vld [vmem:[%s5916 + $0x48] sm:$0xff]
    %v5927 = vld [vmem:[%s5916 + $0x50] sm:$0xff]
    %v5928 = vld [vmem:[%s5916 + $0x58] sm:$0xff]
    %v5929 = vld [vmem:[%s5916 + $0x60] sm:$0xff]
    %v5930 = vld [vmem:[%s5916 + $0x68] sm:$0xff]
    %v5931 = vld [vmem:[%s5916 + $0x70] sm:$0xff]
    %v5932 = vld [vmem:[%s5916 + $0x78] sm:$0xff]
    %v5953 = vunpack.c.l.b16 %v5896
    %v5954 = vunpack.c.l.b16 %v5897
    %v5955 = vunpack.c.l.b16 %v5898
    %v5956 = vunpack.c.l.b16 %v5899
    %v5957 = vunpack.c.l.b16 %v5900
    %v5958 = vunpack.c.l.b16 %v5901
    %v5959 = vunpack.c.l.b16 %v5902
    %v5960 = vunpack.c.l.b16 %v5903
    %v5961 = vunpack.c.l.b16 %v5904
    %v5962 = vunpack.c.l.b16 %v5905
    %v5963 = vunpack.c.l.b16 %v5906
    %v5964 = vunpack.c.l.b16 %v5907
    %v5965 = vunpack.c.l.b16 %v5908
    %v5966 = vunpack.c.l.b16 %v5909
    %v5967 = vunpack.c.l.b16 %v5910
    %v5968 = vunpack.c.l.b16 %v5911
    %v5969 = vunpack.c.l.b16 %v5912
    %v5970 = vunpack.c.l.b16 %v5913
    %v5971 = vunpack.c.l.b16 %v5914
    %v5972 = vunpack.c.l.b16 %v5915
    %v5973 = vpack.c.b16 %v5954, %v5953
    %v5974 = vpack.c.b16 %v5956, %v5955
    %v5975 = vpack.c.b16 %v5958, %v5957
    %v5976 = vpack.c.b16 %v5960, %v5959
    %v5977 = vpack.c.b16 %v5962, %v5961
    %v5978 = vpack.c.b16 %v5964, %v5963
    %v5979 = vpack.c.b16 %v5966, %v5965
    %v5980 = vpack.c.b16 %v5968, %v5967
    %v5981 = vpack.c.b16 %v5970, %v5969
    %v5982 = vpack.c.b16 %v5972, %v5971
    %v6009 = vunpack.c.l.b16 %v5917
    %v6010 = vunpack.c.h.b16 %v5917
    %v6011 = vunpack.c.l.b16 %v5918
    %v6012 = vunpack.c.h.b16 %v5918
    %v6013 = vunpack.c.l.b16 %v5919
    %v6014 = vunpack.c.h.b16 %v5919
    %v6015 = vunpack.c.l.b16 %v5920
    %v6016 = vunpack.c.h.b16 %v5920
    %v6017 = vunpack.c.l.b16 %v5921
    %v6018 = vunpack.c.h.b16 %v5921
    %v6019 = vunpack.c.l.b16 %v5922
    %v6020 = vunpack.c.h.b16 %v5922
    %v6021 = vunpack.c.l.b16 %v5923
    %v6022 = vunpack.c.h.b16 %v5923
    %v6023 = vunpack.c.l.b16 %v5924
    %v6024 = vunpack.c.h.b16 %v5924
    %v6025 = vunpack.c.l.b16 %v5925
    %v6026 = vunpack.c.h.b16 %v5925
    %v6027 = vunpack.c.l.b16 %v5926
    %v6028 = vunpack.c.h.b16 %v5926
    %v6029 = vunpack.c.l.b16 %v5927
    %v6030 = vunpack.c.h.b16 %v5927
    %v6031 = vunpack.c.l.b16 %v5928
    %v6032 = vunpack.c.h.b16 %v5928
    %v6033 = vunpack.c.l.b16 %v5929
    %v6034 = vunpack.c.h.b16 %v5929
    %v6035 = vunpack.c.l.b16 %v5930
    %v6036 = vunpack.c.h.b16 %v5930
    %v6037 = vunpack.c.l.b16 %v5931
    %v6038 = vunpack.c.h.b16 %v5931
    %v6039 = vunpack.c.l.b16 %v5932
    %v6040 = vunpack.c.h.b16 %v5932
    %v6041 = vpack.c.b16 %v6011, %v6009
    %v6042 = vpack.c.b16 %v6012, %v6010
    %v6043 = vpack.c.b16 %v6015, %v6013
    %v6044 = vpack.c.b16 %v6016, %v6014
    %v6045 = vpack.c.b16 %v6019, %v6017
    %v6046 = vpack.c.b16 %v6020, %v6018
    %v6047 = vpack.c.b16 %v6023, %v6021
    %v6048 = vpack.c.b16 %v6024, %v6022
    %v6049 = vpack.c.b16 %v6027, %v6025
    %v6050 = vpack.c.b16 %v6028, %v6026
    %v6051 = vpack.c.b16 %v6031, %v6029
    %v6052 = vpack.c.b16 %v6032, %v6030
    %v6053 = vpack.c.b16 %v6035, %v6033
    %v6054 = vpack.c.b16 %v6036, %v6034
    %v6055 = vpack.c.b16 %v6039, %v6037
    %v6056 = vpack.c.b16 %v6040, %v6038
    %6073 = vmatprep.subr.bf16.mxu0 %v6056
    %6074 = vmatpush1.bf16.msra.mxu0 %v6055
    %6075 = vmatprep.subr.bf16.mxu0 %v6054
    %6076 = vmatpush1.bf16.msra.mxu0 %v6053
    %6077 = vmatprep.subr.bf16.mxu0 %v6052
    %6078 = vmatpush1.bf16.msra.mxu0 %v6051
    %6079 = vmatprep.subr.bf16.mxu0 %v6050
    %6080 = vmatpush1.bf16.msra.mxu0 %v6049
    %6081 = vmatprep.subr.bf16.mxu0 %v6048
    %6082 = vmatpush1.bf16.msra.mxu0 %v6047
    %6083 = vmatprep.subr.bf16.mxu0 %v6046
    %6084 = vmatpush1.bf16.msra.mxu0 %v6045
    %6085 = vmatprep.subr.bf16.mxu0 %v6044
    %6086 = vmatpush1.bf16.msra.mxu0 %v6043
    %6087 = vmatprep.subr.bf16.mxu0 %v6042
    %6088 = vmatpush1.bf16.msra.mxu0 %v6041
    %6089 = vmatprep.subr.bf16.mxu0 0
    %6090 = vmatpush2.bf16.msra.mxu0 0
    %6091 = vmatprep.subr.bf16.mxu0 0
    %6092 = vmatpush2.bf16.msra.mxu0 0
    %6093 = vmatprep.subr.bf16.mxu0 0
    %6094 = vmatpush2.bf16.msra.mxu0 0
    %6095 = vmatprep.subr.bf16.mxu0 0
    %6096 = vmatpush2.bf16.msra.mxu0 0
    %6097 = vmatprep.subr.bf16.mxu0 0
    %6098 = vmatpush2.bf16.msra.mxu0 0
    %6099 = vmatprep.subr.bf16.mxu0 0
    %6100 = vmatpush2.bf16.msra.mxu0 0
    %6101 = vmatprep.subr.bf16.mxu0 0
    %6102 = vmatpush2.bf16.msra.mxu0 0
    %6103 = vmatprep.subr.bf16.mxu0 0
    %6104 = vmatpush2.bf16.msra.mxu0 0
    %6105 = vmatprep.mubr.bf16.mxu0 0
    %6106 = vmatmul.mubr.bf16.gmra.mxu0 %v5973
    %v6107 = vpop.f32.mrf.mxu0
    %v6108 = vadd.f32 0.0, %v6107
    %v6109 = vpop.f32.mrf.mxu0
    %v6110 = vadd.f32 0.0, %v6109
    %v6111 = vpop.f32.mrf.mxu0
    %v6112 = vadd.f32 0.0, %v6111
    %v6113 = vpop.f32.mrf.mxu0
    %v6114 = vadd.f32 0.0, %v6113
    %6115 = vmatprep.mubr.bf16.mxu0 0
    %6116 = vmatmul.mubr.bf16.gmra.mxu0 %v5974
    %v6117 = vpop.f32.mrf.mxu0
    %v6118 = vadd.f32 0.0, %v6117
    %v6119 = vpop.f32.mrf.mxu0
    %v6120 = vadd.f32 0.0, %v6119
    %v6121 = vpop.f32.mrf.mxu0
    %v6122 = vadd.f32 0.0, %v6121
    %v6123 = vpop.f32.mrf.mxu0
    %v6124 = vadd.f32 0.0, %v6123
    %6125 = vmatprep.mubr.bf16.mxu0 0
    %6126 = vmatmul.mubr.bf16.gmra.mxu0 %v5975
    %v6127 = vpop.f32.mrf.mxu0
    %v6128 = vadd.f32 0.0, %v6127
    %v6129 = vpop.f32.mrf.mxu0
    %v6130 = vadd.f32 0.0, %v6129
    %v6131 = vpop.f32.mrf.mxu0
    %v6132 = vadd.f32 0.0, %v6131
    %v6133 = vpop.f32.mrf.mxu0
    %v6134 = vadd.f32 0.0, %v6133
    %6135 = vmatprep.mubr.bf16.mxu0 0
    %6136 = vmatmul.mubr.bf16.gmra.mxu0 %v5976
    %v6137 = vpop.f32.mrf.mxu0
    %v6138 = vadd.f32 0.0, %v6137
    %v6139 = vpop.f32.mrf.mxu0
    %v6140 = vadd.f32 0.0, %v6139
    %v6141 = vpop.f32.mrf.mxu0
    %v6142 = vadd.f32 0.0, %v6141
    %v6143 = vpop.f32.mrf.mxu0
    %v6144 = vadd.f32 0.0, %v6143
    %6145 = vmatprep.mubr.bf16.mxu0 0
    %6146 = vmatmul.mubr.bf16.gmra.mxu0 %v5977
    %v6147 = vpop.f32.mrf.mxu0
    %v6148 = vadd.f32 0.0, %v6147
    %v6149 = vpop.f32.mrf.mxu0
    %v6150 = vadd.f32 0.0, %v6149
    %v6151 = vpop.f32.mrf.mxu0
    %v6152 = vadd.f32 0.0, %v6151
    %v6153 = vpop.f32.mrf.mxu0
    %v6154 = vadd.f32 0.0, %v6153
    %6155 = vmatprep.mubr.bf16.mxu0 0
    %6156 = vmatmul.mubr.bf16.gmra.mxu0 %v5978
    %v6157 = vpop.f32.mrf.mxu0
    %v6158 = vadd.f32 0.0, %v6157
    %v6159 = vpop.f32.mrf.mxu0
    %v6160 = vadd.f32 0.0, %v6159
    %v6161 = vpop.f32.mrf.mxu0
    %v6162 = vadd.f32 0.0, %v6161
    %v6163 = vpop.f32.mrf.mxu0
    %v6164 = vadd.f32 0.0, %v6163
    %6165 = vmatprep.mubr.bf16.mxu0 0
    %6166 = vmatmul.mubr.bf16.gmra.mxu0 %v5979
    %v6167 = vpop.f32.mrf.mxu0
    %v6168 = vadd.f32 0.0, %v6167
    %v6169 = vpop.f32.mrf.mxu0
    %v6170 = vadd.f32 0.0, %v6169
    %v6171 = vpop.f32.mrf.mxu0
    %v6172 = vadd.f32 0.0, %v6171
    %v6173 = vpop.f32.mrf.mxu0
    %v6174 = vadd.f32 0.0, %v6173
    %6175 = vmatprep.mubr.bf16.mxu0 0
    %6176 = vmatmul.mubr.bf16.gmra.mxu0 %v5980
    %v6177 = vpop.f32.mrf.mxu0
    %v6178 = vadd.f32 0.0, %v6177
    %v6179 = vpop.f32.mrf.mxu0
    %v6180 = vadd.f32 0.0, %v6179
    %v6181 = vpop.f32.mrf.mxu0
    %v6182 = vadd.f32 0.0, %v6181
    %v6183 = vpop.f32.mrf.mxu0
    %v6184 = vadd.f32 0.0, %v6183
    %6185 = vmatprep.mubr.bf16.mxu0 0
    %6186 = vmatmul.mubr.bf16.gmra.mxu0 %v5981
    %v6187 = vpop.f32.mrf.mxu0
    %v6188 = vadd.f32 0.0, %v6187
    %v6189 = vpop.f32.mrf.mxu0
    %v6190 = vadd.f32 0.0, %v6189
    %v6191 = vpop.f32.mrf.mxu0
    %v6192 = vadd.f32 0.0, %v6191
    %v6193 = vpop.f32.mrf.mxu0
    %v6194 = vadd.f32 0.0, %v6193
    %6195 = vmatprep.mubr.bf16.mxu0 0
    %6196 = vmatmul.mubr.bf16.gmra.mxu0 %v5982
    %v6197 = vpop.f32.mrf.mxu0
    %v6198 = vadd.f32 0.0, %v6197
    %v6199 = vpop.f32.mrf.mxu0
    %v6200 = vadd.f32 0.0, %v6199
    %v6201 = vpop.f32.mrf.mxu0
    %v6202 = vadd.f32 0.0, %v6201
    %v6203 = vpop.f32.mrf.mxu0
    %v6204 = vadd.f32 0.0, %v6203
    %6205 = vdwg.mxu0
    %v6206 = vadd.f32 %v5856, %v6108
    %v6207 = vadd.f32 %v5857, %v6110
    %v6208 = vadd.f32 %v5858, %v6112
    %v6209 = vadd.f32 %v5859, %v6114
    %v6210 = vadd.f32 %v5860, %v6118
    %v6211 = vadd.f32 %v5861, %v6120
    %v6212 = vadd.f32 %v5862, %v6122
    %v6213 = vadd.f32 %v5863, %v6124
    %v6214 = vadd.f32 %v5864, %v6128
    %v6215 = vadd.f32 %v5865, %v6130
    %v6216 = vadd.f32 %v5866, %v6132
    %v6217 = vadd.f32 %v5867, %v6134
    %v6218 = vadd.f32 %v5868, %v6138
    %v6219 = vadd.f32 %v5869, %v6140
    %v6220 = vadd.f32 %v5870, %v6142
    %v6221 = vadd.f32 %v5871, %v6144
    %v6222 = vadd.f32 %v5872, %v6148
    %v6223 = vadd.f32 %v5873, %v6150
    %v6224 = vadd.f32 %v5874, %v6152
    %v6225 = vadd.f32 %v5875, %v6154
    %v6226 = vadd.f32 %v5876, %v6158
    %v6227 = vadd.f32 %v5877, %v6160
    %v6228 = vadd.f32 %v5878, %v6162
    %v6229 = vadd.f32 %v5879, %v6164
    %v6230 = vadd.f32 %v5880, %v6168
    %v6231 = vadd.f32 %v5881, %v6170
    %v6232 = vadd.f32 %v5882, %v6172
    %v6233 = vadd.f32 %v5883, %v6174
    %v6234 = vadd.f32 %v5884, %v6178
    %v6235 = vadd.f32 %v5885, %v6180
    %v6236 = vadd.f32 %v5886, %v6182
    %v6237 = vadd.f32 %v5887, %v6184
    %v6238 = vadd.f32 %v5888, %v6188
    %v6239 = vadd.f32 %v5889, %v6190
    %v6240 = vadd.f32 %v5890, %v6192
    %v6241 = vadd.f32 %v5891, %v6194
    %v6242 = vadd.f32 %v5892, %v6198
    %v6243 = vadd.f32 %v5893, %v6200
    %v6244 = vadd.f32 %v5894, %v6202
    %v6245 = vadd.f32 %v5895, %v6204
    %6246 = vst [vmem:[#allocation4] sm:$0xff] %v6206
    %6247 = vst [vmem:[#allocation4 + $0x8] sm:$0xff] %v6207
    %6248 = vst [vmem:[#allocation4 + $0x10] sm:$0xff] %v6208
    %6249 = vst [vmem:[#allocation4 + $0x18] sm:$0xff] %v6209
    %6250 = vst [vmem:[#allocation4 + $0x20] sm:$0xff] %v6210
    %6251 = vst [vmem:[#allocation4 + $0x28] sm:$0xff] %v6211
    %6252 = vst [vmem:[#allocation4 + $0x30] sm:$0xff] %v6212
    %6253 = vst [vmem:[#allocation4 + $0x38] sm:$0xff] %v6213
    %6254 = vst [vmem:[#allocation4 + $0x40] sm:$0xff] %v6214
    %6255 = vst [vmem:[#allocation4 + $0x48] sm:$0xff] %v6215
    %6256 = vst [vmem:[#allocation4 + $0x50] sm:$0xff] %v6216
    %6257 = vst [vmem:[#allocation4 + $0x58] sm:$0xff] %v6217
    %6258 = vst [vmem:[#allocation4 + $0x60] sm:$0xff] %v6218
    %6259 = vst [vmem:[#allocation4 + $0x68] sm:$0xff] %v6219
    %6260 = vst [vmem:[#allocation4 + $0x70] sm:$0xff] %v6220
    %6261 = vst [vmem:[#allocation4 + $0x78] sm:$0xff] %v6221
    %6262 = vst [vmem:[#allocation4 + $0x80] sm:$0xff] %v6222
    %6263 = vst [vmem:[#allocation4 + $0x88] sm:$0xff] %v6223
    %6264 = vst [vmem:[#allocation4 + $0x90] sm:$0xff] %v6224
    %6265 = vst [vmem:[#allocation4 + $0x98] sm:$0xff] %v6225
    %6266 = vst [vmem:[#allocation4 + $0xa0] sm:$0xff] %v6226
    %6267 = vst [vmem:[#allocation4 + $0xa8] sm:$0xff] %v6227
    %6268 = vst [vmem:[#allocation4 + $0xb0] sm:$0xff] %v6228
    %6269 = vst [vmem:[#allocation4 + $0xb8] sm:$0xff] %v6229
    %6270 = vst [vmem:[#allocation4 + $0xc0] sm:$0xff] %v6230
    %6271 = vst [vmem:[#allocation4 + $0xc8] sm:$0xff] %v6231
    %6272 = vst [vmem:[#allocation4 + $0xd0] sm:$0xff] %v6232
    %6273 = vst [vmem:[#allocation4 + $0xd8] sm:$0xff] %v6233
    %6274 = vst [vmem:[#allocation4 + $0xe0] sm:$0xff] %v6234
    %6275 = vst [vmem:[#allocation4 + $0xe8] sm:$0xff] %v6235
    %6276 = vst [vmem:[#allocation4 + $0xf0] sm:$0xff] %v6236
    %6277 = vst [vmem:[#allocation4 + $0xf8] sm:$0xff] %v6237
    %6278 = vst [vmem:[#allocation4 + $0x100] sm:$0xff] %v6238
    %6279 = vst [vmem:[#allocation4 + $0x108] sm:$0xff] %v6239
    %6280 = vst [vmem:[#allocation4 + $0x110] sm:$0xff] %v6240
    %6281 = vst [vmem:[#allocation4 + $0x118] sm:$0xff] %v6241
    %6282 = vst [vmem:[#allocation4 + $0x120] sm:$0xff] %v6242
    %6283 = vst [vmem:[#allocation4 + $0x128] sm:$0xff] %v6243
    %6284 = vst [vmem:[#allocation4 + $0x130] sm:$0xff] %v6244
    %6285 = vst [vmem:[#allocation4 + $0x138] sm:$0xff] %v6245
    %v6286 = vld [vmem:[#allocation4] sm:$0xff]
    %v6287 = vld [vmem:[#allocation4 + $0x8] sm:$0xff]
    %v6288 = vld [vmem:[#allocation4 + $0x10] sm:$0xff]
    %v6289 = vld [vmem:[#allocation4 + $0x18] sm:$0xff]
    %v6290 = vld [vmem:[#allocation4 + $0x20] sm:$0xff]
    %v6291 = vld [vmem:[#allocation4 + $0x28] sm:$0xff]
    %v6292 = vld [vmem:[#allocation4 + $0x30] sm:$0xff]
    %v6293 = vld [vmem:[#allocation4 + $0x38] sm:$0xff]
    %v6294 = vld [vmem:[#allocation4 + $0x40] sm:$0xff]
    %v6295 = vld [vmem:[#allocation4 + $0x48] sm:$0xff]
    %v6296 = vld [vmem:[#allocation4 + $0x50] sm:$0xff]
    %v6297 = vld [vmem:[#allocation4 + $0x58] sm:$0xff]
    %v6298 = vld [vmem:[#allocation4 + $0x60] sm:$0xff]
    %v6299 = vld [vmem:[#allocation4 + $0x68] sm:$0xff]
    %v6300 = vld [vmem:[#allocation4 + $0x70] sm:$0xff]
    %v6301 = vld [vmem:[#allocation4 + $0x78] sm:$0xff]
    %v6302 = vld [vmem:[#allocation4 + $0x80] sm:$0xff]
    %v6303 = vld [vmem:[#allocation4 + $0x88] sm:$0xff]
    %v6304 = vld [vmem:[#allocation4 + $0x90] sm:$0xff]
    %v6305 = vld [vmem:[#allocation4 + $0x98] sm:$0xff]
    %v6306 = vld [vmem:[#allocation4 + $0xa0] sm:$0xff]
    %v6307 = vld [vmem:[#allocation4 + $0xa8] sm:$0xff]
    %v6308 = vld [vmem:[#allocation4 + $0xb0] sm:$0xff]
    %v6309 = vld [vmem:[#allocation4 + $0xb8] sm:$0xff]
    %v6310 = vld [vmem:[#allocation4 + $0xc0] sm:$0xff]
    %v6311 = vld [vmem:[#allocation4 + $0xc8] sm:$0xff]
    %v6312 = vld [vmem:[#allocation4 + $0xd0] sm:$0xff]
    %v6313 = vld [vmem:[#allocation4 + $0xd8] sm:$0xff]
    %v6314 = vld [vmem:[#allocation4 + $0xe0] sm:$0xff]
    %v6315 = vld [vmem:[#allocation4 + $0xe8] sm:$0xff]
    %v6316 = vld [vmem:[#allocation4 + $0xf0] sm:$0xff]
    %v6317 = vld [vmem:[#allocation4 + $0xf8] sm:$0xff]
    %v6318 = vld [vmem:[#allocation4 + $0x100] sm:$0xff]
    %v6319 = vld [vmem:[#allocation4 + $0x108] sm:$0xff]
    %v6320 = vld [vmem:[#allocation4 + $0x110] sm:$0xff]
    %v6321 = vld [vmem:[#allocation4 + $0x118] sm:$0xff]
    %v6322 = vld [vmem:[#allocation4 + $0x120] sm:$0xff]
    %v6323 = vld [vmem:[#allocation4 + $0x128] sm:$0xff]
    %v6324 = vld [vmem:[#allocation4 + $0x130] sm:$0xff]
    %v6325 = vld [vmem:[#allocation4 + $0x138] sm:$0xff]
    %v6326 = vld [vmem:[#allocation3 + $0x18] sm:$0xf]
    %v6327 = vld [vmem:[#allocation3 + $0x1c] sm:$0xf]
    %v6328 = vld [vmem:[#allocation3 + $0x20] sm:$0xf]
    %v6329 = vld [vmem:[#allocation3 + $0x24] sm:$0xf]
    %v6330 = vld [vmem:[#allocation3 + $0x28] sm:$0xf]
    %v6331 = vld [vmem:[#allocation3 + $0x2c] sm:$0xf]
    %v6332 = vld [vmem:[#allocation3 + $0x30] sm:$0xf]
    %v6333 = vld [vmem:[#allocation3 + $0x34] sm:$0xf]
    %v6334 = vld [vmem:[#allocation3 + $0x38] sm:$0xf]
    %v6335 = vld [vmem:[#allocation3 + $0x3c] sm:$0xf]
    %v6336 = vld [vmem:[#allocation3 + $0x40] sm:$0xf]
    %v6337 = vld [vmem:[#allocation3 + $0x44] sm:$0xf]
    %v6338 = vld [vmem:[#allocation3 + $0x48] sm:$0xf]
    %v6339 = vld [vmem:[#allocation3 + $0x4c] sm:$0xf]
    %v6340 = vld [vmem:[#allocation3 + $0x50] sm:$0xf]
    %v6341 = vld [vmem:[#allocation3 + $0x54] sm:$0xf]
    %v6342 = vld [vmem:[#allocation3 + $0x58] sm:$0xf]
    %v6343 = vld [vmem:[#allocation3 + $0x5c] sm:$0xf]
    %v6344 = vld [vmem:[#allocation3 + $0x60] sm:$0xf]
    %v6345 = vld [vmem:[#allocation3 + $0x64] sm:$0xf]
    %s6346 = scalar_lea.vmem %s3, 384
    %v6347 = vld [vmem:[%s6346] sm:$0xff]
    %v6348 = vld [vmem:[%s6346 + $0x8] sm:$0xff]
    %v6349 = vld [vmem:[%s6346 + $0x10] sm:$0xff]
    %v6350 = vld [vmem:[%s6346 + $0x18] sm:$0xff]
    %v6351 = vld [vmem:[%s6346 + $0x20] sm:$0xff]
    %v6352 = vld [vmem:[%s6346 + $0x28] sm:$0xff]
    %v6353 = vld [vmem:[%s6346 + $0x30] sm:$0xff]
    %v6354 = vld [vmem:[%s6346 + $0x38] sm:$0xff]
    %v6355 = vld [vmem:[%s6346 + $0x40] sm:$0xff]
    %v6356 = vld [vmem:[%s6346 + $0x48] sm:$0xff]
    %v6357 = vld [vmem:[%s6346 + $0x50] sm:$0xff]
    %v6358 = vld [vmem:[%s6346 + $0x58] sm:$0xff]
    %v6359 = vld [vmem:[%s6346 + $0x60] sm:$0xff]
    %v6360 = vld [vmem:[%s6346 + $0x68] sm:$0xff]
    %v6361 = vld [vmem:[%s6346 + $0x70] sm:$0xff]
    %v6362 = vld [vmem:[%s6346 + $0x78] sm:$0xff]
    %v6383 = vunpack.c.l.b16 %v6326
    %v6384 = vunpack.c.l.b16 %v6327
    %v6385 = vunpack.c.l.b16 %v6328
    %v6386 = vunpack.c.l.b16 %v6329
    %v6387 = vunpack.c.l.b16 %v6330
    %v6388 = vunpack.c.l.b16 %v6331
    %v6389 = vunpack.c.l.b16 %v6332
    %v6390 = vunpack.c.l.b16 %v6333
    %v6391 = vunpack.c.l.b16 %v6334
    %v6392 = vunpack.c.l.b16 %v6335
    %v6393 = vunpack.c.l.b16 %v6336
    %v6394 = vunpack.c.l.b16 %v6337
    %v6395 = vunpack.c.l.b16 %v6338
    %v6396 = vunpack.c.l.b16 %v6339
    %v6397 = vunpack.c.l.b16 %v6340
    %v6398 = vunpack.c.l.b16 %v6341
    %v6399 = vunpack.c.l.b16 %v6342
    %v6400 = vunpack.c.l.b16 %v6343
    %v6401 = vunpack.c.l.b16 %v6344
    %v6402 = vunpack.c.l.b16 %v6345
    %v6403 = vpack.c.b16 %v6384, %v6383
    %v6404 = vpack.c.b16 %v6386, %v6385
    %v6405 = vpack.c.b16 %v6388, %v6387
    %v6406 = vpack.c.b16 %v6390, %v6389
    %v6407 = vpack.c.b16 %v6392, %v6391
    %v6408 = vpack.c.b16 %v6394, %v6393
    %v6409 = vpack.c.b16 %v6396, %v6395
    %v6410 = vpack.c.b16 %v6398, %v6397
    %v6411 = vpack.c.b16 %v6400, %v6399
    %v6412 = vpack.c.b16 %v6402, %v6401
    %v6439 = vunpack.c.l.b16 %v6347
    %v6440 = vunpack.c.h.b16 %v6347
    %v6441 = vunpack.c.l.b16 %v6348
    %v6442 = vunpack.c.h.b16 %v6348
    %v6443 = vunpack.c.l.b16 %v6349
    %v6444 = vunpack.c.h.b16 %v6349
    %v6445 = vunpack.c.l.b16 %v6350
    %v6446 = vunpack.c.h.b16 %v6350
    %v6447 = vunpack.c.l.b16 %v6351
    %v6448 = vunpack.c.h.b16 %v6351
    %v6449 = vunpack.c.l.b16 %v6352
    %v6450 = vunpack.c.h.b16 %v6352
    %v6451 = vunpack.c.l.b16 %v6353
    %v6452 = vunpack.c.h.b16 %v6353
    %v6453 = vunpack.c.l.b16 %v6354
    %v6454 = vunpack.c.h.b16 %v6354
    %v6455 = vunpack.c.l.b16 %v6355
    %v6456 = vunpack.c.h.b16 %v6355
    %v6457 = vunpack.c.l.b16 %v6356
    %v6458 = vunpack.c.h.b16 %v6356
    %v6459 = vunpack.c.l.b16 %v6357
    %v6460 = vunpack.c.h.b16 %v6357
    %v6461 = vunpack.c.l.b16 %v6358
    %v6462 = vunpack.c.h.b16 %v6358
    %v6463 = vunpack.c.l.b16 %v6359
    %v6464 = vunpack.c.h.b16 %v6359
    %v6465 = vunpack.c.l.b16 %v6360
    %v6466 = vunpack.c.h.b16 %v6360
    %v6467 = vunpack.c.l.b16 %v6361
    %v6468 = vunpack.c.h.b16 %v6361
    %v6469 = vunpack.c.l.b16 %v6362
    %v6470 = vunpack.c.h.b16 %v6362
    %v6471 = vpack.c.b16 %v6441, %v6439
    %v6472 = vpack.c.b16 %v6442, %v6440
    %v6473 = vpack.c.b16 %v6445, %v6443
    %v6474 = vpack.c.b16 %v6446, %v6444
    %v6475 = vpack.c.b16 %v6449, %v6447
    %v6476 = vpack.c.b16 %v6450, %v6448
    %v6477 = vpack.c.b16 %v6453, %v6451
    %v6478 = vpack.c.b16 %v6454, %v6452
    %v6479 = vpack.c.b16 %v6457, %v6455
    %v6480 = vpack.c.b16 %v6458, %v6456
    %v6481 = vpack.c.b16 %v6461, %v6459
    %v6482 = vpack.c.b16 %v6462, %v6460
    %v6483 = vpack.c.b16 %v6465, %v6463
    %v6484 = vpack.c.b16 %v6466, %v6464
    %v6485 = vpack.c.b16 %v6469, %v6467
    %v6486 = vpack.c.b16 %v6470, %v6468
    %6503 = vmatprep.subr.bf16.mxu0 %v6486
    %6504 = vmatpush1.bf16.msra.mxu0 %v6485
    %6505 = vmatprep.subr.bf16.mxu0 %v6484
    %6506 = vmatpush1.bf16.msra.mxu0 %v6483
    %6507 = vmatprep.subr.bf16.mxu0 %v6482
    %6508 = vmatpush1.bf16.msra.mxu0 %v6481
    %6509 = vmatprep.subr.bf16.mxu0 %v6480
    %6510 = vmatpush1.bf16.msra.mxu0 %v6479
    %6511 = vmatprep.subr.bf16.mxu0 %v6478
    %6512 = vmatpush1.bf16.msra.mxu0 %v6477
    %6513 = vmatprep.subr.bf16.mxu0 %v6476
    %6514 = vmatpush1.bf16.msra.mxu0 %v6475
    %6515 = vmatprep.subr.bf16.mxu0 %v6474
    %6516 = vmatpush1.bf16.msra.mxu0 %v6473
    %6517 = vmatprep.subr.bf16.mxu0 %v6472
    %6518 = vmatpush1.bf16.msra.mxu0 %v6471
    %6519 = vmatprep.subr.bf16.mxu0 0
    %6520 = vmatpush2.bf16.msra.mxu0 0
    %6521 = vmatprep.subr.bf16.mxu0 0
    %6522 = vmatpush2.bf16.msra.mxu0 0
    %6523 = vmatprep.subr.bf16.mxu0 0
    %6524 = vmatpush2.bf16.msra.mxu0 0
    %6525 = vmatprep.subr.bf16.mxu0 0
    %6526 = vmatpush2.bf16.msra.mxu0 0
    %6527 = vmatprep.subr.bf16.mxu0 0
    %6528 = vmatpush2.bf16.msra.mxu0 0
    %6529 = vmatprep.subr.bf16.mxu0 0
    %6530 = vmatpush2.bf16.msra.mxu0 0
    %6531 = vmatprep.subr.bf16.mxu0 0
    %6532 = vmatpush2.bf16.msra.mxu0 0
    %6533 = vmatprep.subr.bf16.mxu0 0
    %6534 = vmatpush2.bf16.msra.mxu0 0
    %6535 = vmatprep.mubr.bf16.mxu0 0
    %6536 = vmatmul.mubr.bf16.gmra.mxu0 %v6403
    %v6537 = vpop.f32.mrf.mxu0
    %v6538 = vadd.f32 0.0, %v6537
    %v6539 = vpop.f32.mrf.mxu0
    %v6540 = vadd.f32 0.0, %v6539
    %v6541 = vpop.f32.mrf.mxu0
    %v6542 = vadd.f32 0.0, %v6541
    %v6543 = vpop.f32.mrf.mxu0
    %v6544 = vadd.f32 0.0, %v6543
    %6545 = vmatprep.mubr.bf16.mxu0 0
    %6546 = vmatmul.mubr.bf16.gmra.mxu0 %v6404
    %v6547 = vpop.f32.mrf.mxu0
    %v6548 = vadd.f32 0.0, %v6547
    %v6549 = vpop.f32.mrf.mxu0
    %v6550 = vadd.f32 0.0, %v6549
    %v6551 = vpop.f32.mrf.mxu0
    %v6552 = vadd.f32 0.0, %v6551
    %v6553 = vpop.f32.mrf.mxu0
    %v6554 = vadd.f32 0.0, %v6553
    %6555 = vmatprep.mubr.bf16.mxu0 0
    %6556 = vmatmul.mubr.bf16.gmra.mxu0 %v6405
    %v6557 = vpop.f32.mrf.mxu0
    %v6558 = vadd.f32 0.0, %v6557
    %v6559 = vpop.f32.mrf.mxu0
    %v6560 = vadd.f32 0.0, %v6559
    %v6561 = vpop.f32.mrf.mxu0
    %v6562 = vadd.f32 0.0, %v6561
    %v6563 = vpop.f32.mrf.mxu0
    %v6564 = vadd.f32 0.0, %v6563
    %6565 = vmatprep.mubr.bf16.mxu0 0
    %6566 = vmatmul.mubr.bf16.gmra.mxu0 %v6406
    %v6567 = vpop.f32.mrf.mxu0
    %v6568 = vadd.f32 0.0, %v6567
    %v6569 = vpop.f32.mrf.mxu0
    %v6570 = vadd.f32 0.0, %v6569
    %v6571 = vpop.f32.mrf.mxu0
    %v6572 = vadd.f32 0.0, %v6571
    %v6573 = vpop.f32.mrf.mxu0
    %v6574 = vadd.f32 0.0, %v6573
    %6575 = vmatprep.mubr.bf16.mxu0 0
    %6576 = vmatmul.mubr.bf16.gmra.mxu0 %v6407
    %v6577 = vpop.f32.mrf.mxu0
    %v6578 = vadd.f32 0.0, %v6577
    %v6579 = vpop.f32.mrf.mxu0
    %v6580 = vadd.f32 0.0, %v6579
    %v6581 = vpop.f32.mrf.mxu0
    %v6582 = vadd.f32 0.0, %v6581
    %v6583 = vpop.f32.mrf.mxu0
    %v6584 = vadd.f32 0.0, %v6583
    %6585 = vmatprep.mubr.bf16.mxu0 0
    %6586 = vmatmul.mubr.bf16.gmra.mxu0 %v6408
    %v6587 = vpop.f32.mrf.mxu0
    %v6588 = vadd.f32 0.0, %v6587
    %v6589 = vpop.f32.mrf.mxu0
    %v6590 = vadd.f32 0.0, %v6589
    %v6591 = vpop.f32.mrf.mxu0
    %v6592 = vadd.f32 0.0, %v6591
    %v6593 = vpop.f32.mrf.mxu0
    %v6594 = vadd.f32 0.0, %v6593
    %6595 = vmatprep.mubr.bf16.mxu0 0
    %6596 = vmatmul.mubr.bf16.gmra.mxu0 %v6409
    %v6597 = vpop.f32.mrf.mxu0
    %v6598 = vadd.f32 0.0, %v6597
    %v6599 = vpop.f32.mrf.mxu0
    %v6600 = vadd.f32 0.0, %v6599
    %v6601 = vpop.f32.mrf.mxu0
    %v6602 = vadd.f32 0.0, %v6601
    %v6603 = vpop.f32.mrf.mxu0
    %v6604 = vadd.f32 0.0, %v6603
    %6605 = vmatprep.mubr.bf16.mxu0 0
    %6606 = vmatmul.mubr.bf16.gmra.mxu0 %v6410
    %v6607 = vpop.f32.mrf.mxu0
    %v6608 = vadd.f32 0.0, %v6607
    %v6609 = vpop.f32.mrf.mxu0
    %v6610 = vadd.f32 0.0, %v6609
    %v6611 = vpop.f32.mrf.mxu0
    %v6612 = vadd.f32 0.0, %v6611
    %v6613 = vpop.f32.mrf.mxu0
    %v6614 = vadd.f32 0.0, %v6613
    %6615 = vmatprep.mubr.bf16.mxu0 0
    %6616 = vmatmul.mubr.bf16.gmra.mxu0 %v6411
    %v6617 = vpop.f32.mrf.mxu0
    %v6618 = vadd.f32 0.0, %v6617
    %v6619 = vpop.f32.mrf.mxu0
    %v6620 = vadd.f32 0.0, %v6619
    %v6621 = vpop.f32.mrf.mxu0
    %v6622 = vadd.f32 0.0, %v6621
    %v6623 = vpop.f32.mrf.mxu0
    %v6624 = vadd.f32 0.0, %v6623
    %6625 = vmatprep.mubr.bf16.mxu0 0
    %6626 = vmatmul.mubr.bf16.gmra.mxu0 %v6412
    %v6627 = vpop.f32.mrf.mxu0
    %v6628 = vadd.f32 0.0, %v6627
    %v6629 = vpop.f32.mrf.mxu0
    %v6630 = vadd.f32 0.0, %v6629
    %v6631 = vpop.f32.mrf.mxu0
    %v6632 = vadd.f32 0.0, %v6631
    %v6633 = vpop.f32.mrf.mxu0
    %v6634 = vadd.f32 0.0, %v6633
    %6635 = vdwg.mxu0
    %v6636 = vadd.f32 %v6286, %v6538
    %v6637 = vadd.f32 %v6287, %v6540
    %v6638 = vadd.f32 %v6288, %v6542
    %v6639 = vadd.f32 %v6289, %v6544
    %v6640 = vadd.f32 %v6290, %v6548
    %v6641 = vadd.f32 %v6291, %v6550
    %v6642 = vadd.f32 %v6292, %v6552
    %v6643 = vadd.f32 %v6293, %v6554
    %v6644 = vadd.f32 %v6294, %v6558
    %v6645 = vadd.f32 %v6295, %v6560
    %v6646 = vadd.f32 %v6296, %v6562
    %v6647 = vadd.f32 %v6297, %v6564
    %v6648 = vadd.f32 %v6298, %v6568
    %v6649 = vadd.f32 %v6299, %v6570
    %v6650 = vadd.f32 %v6300, %v6572
    %v6651 = vadd.f32 %v6301, %v6574
    %v6652 = vadd.f32 %v6302, %v6578
    %v6653 = vadd.f32 %v6303, %v6580
    %v6654 = vadd.f32 %v6304, %v6582
    %v6655 = vadd.f32 %v6305, %v6584
    %v6656 = vadd.f32 %v6306, %v6588
    %v6657 = vadd.f32 %v6307, %v6590
    %v6658 = vadd.f32 %v6308, %v6592
    %v6659 = vadd.f32 %v6309, %v6594
    %v6660 = vadd.f32 %v6310, %v6598
    %v6661 = vadd.f32 %v6311, %v6600
    %v6662 = vadd.f32 %v6312, %v6602
    %v6663 = vadd.f32 %v6313, %v6604
    %v6664 = vadd.f32 %v6314, %v6608
    %v6665 = vadd.f32 %v6315, %v6610
    %v6666 = vadd.f32 %v6316, %v6612
    %v6667 = vadd.f32 %v6317, %v6614
    %v6668 = vadd.f32 %v6318, %v6618
    %v6669 = vadd.f32 %v6319, %v6620
    %v6670 = vadd.f32 %v6320, %v6622
    %v6671 = vadd.f32 %v6321, %v6624
    %v6672 = vadd.f32 %v6322, %v6628
    %v6673 = vadd.f32 %v6323, %v6630
    %v6674 = vadd.f32 %v6324, %v6632
    %v6675 = vadd.f32 %v6325, %v6634
    %6676 = vst [vmem:[#allocation4] sm:$0xff] %v6636
    %6677 = vst [vmem:[#allocation4 + $0x8] sm:$0xff] %v6637
    %6678 = vst [vmem:[#allocation4 + $0x10] sm:$0xff] %v6638
    %6679 = vst [vmem:[#allocation4 + $0x18] sm:$0xff] %v6639
    %6680 = vst [vmem:[#allocation4 + $0x20] sm:$0xff] %v6640
    %6681 = vst [vmem:[#allocation4 + $0x28] sm:$0xff] %v6641
    %6682 = vst [vmem:[#allocation4 + $0x30] sm:$0xff] %v6642
    %6683 = vst [vmem:[#allocation4 + $0x38] sm:$0xff] %v6643
    %6684 = vst [vmem:[#allocation4 + $0x40] sm:$0xff] %v6644
    %6685 = vst [vmem:[#allocation4 + $0x48] sm:$0xff] %v6645
    %6686 = vst [vmem:[#allocation4 + $0x50] sm:$0xff] %v6646
    %6687 = vst [vmem:[#allocation4 + $0x58] sm:$0xff] %v6647
    %6688 = vst [vmem:[#allocation4 + $0x60] sm:$0xff] %v6648
    %6689 = vst [vmem:[#allocation4 + $0x68] sm:$0xff] %v6649
    %6690 = vst [vmem:[#allocation4 + $0x70] sm:$0xff] %v6650
    %6691 = vst [vmem:[#allocation4 + $0x78] sm:$0xff] %v6651
    %6692 = vst [vmem:[#allocation4 + $0x80] sm:$0xff] %v6652
    %6693 = vst [vmem:[#allocation4 + $0x88] sm:$0xff] %v6653
    %6694 = vst [vmem:[#allocation4 + $0x90] sm:$0xff] %v6654
    %6695 = vst [vmem:[#allocation4 + $0x98] sm:$0xff] %v6655
    %6696 = vst [vmem:[#allocation4 + $0xa0] sm:$0xff] %v6656
    %6697 = vst [vmem:[#allocation4 + $0xa8] sm:$0xff] %v6657
    %6698 = vst [vmem:[#allocation4 + $0xb0] sm:$0xff] %v6658
    %6699 = vst [vmem:[#allocation4 + $0xb8] sm:$0xff] %v6659
    %6700 = vst [vmem:[#allocation4 + $0xc0] sm:$0xff] %v6660
    %6701 = vst [vmem:[#allocation4 + $0xc8] sm:$0xff] %v6661
    %6702 = vst [vmem:[#allocation4 + $0xd0] sm:$0xff] %v6662
    %6703 = vst [vmem:[#allocation4 + $0xd8] sm:$0xff] %v6663
    %6704 = vst [vmem:[#allocation4 + $0xe0] sm:$0xff] %v6664
    %6705 = vst [vmem:[#allocation4 + $0xe8] sm:$0xff] %v6665
    %6706 = vst [vmem:[#allocation4 + $0xf0] sm:$0xff] %v6666
    %6707 = vst [vmem:[#allocation4 + $0xf8] sm:$0xff] %v6667
    %6708 = vst [vmem:[#allocation4 + $0x100] sm:$0xff] %v6668
    %6709 = vst [vmem:[#allocation4 + $0x108] sm:$0xff] %v6669
    %6710 = vst [vmem:[#allocation4 + $0x110] sm:$0xff] %v6670
    %6711 = vst [vmem:[#allocation4 + $0x118] sm:$0xff] %v6671
    %6712 = vst [vmem:[#allocation4 + $0x120] sm:$0xff] %v6672
    %6713 = vst [vmem:[#allocation4 + $0x128] sm:$0xff] %v6673
    %6714 = vst [vmem:[#allocation4 + $0x130] sm:$0xff] %v6674
    %6715 = vst [vmem:[#allocation4 + $0x138] sm:$0xff] %v6675
    %v6716 = vld [vmem:[#allocation4] sm:$0xff]
    %v6717 = vld [vmem:[#allocation4 + $0x8] sm:$0xff]
    %v6718 = vld [vmem:[#allocation4 + $0x10] sm:$0xff]
    %v6719 = vld [vmem:[#allocation4 + $0x18] sm:$0xff]
    %v6720 = vld [vmem:[#allocation4 + $0x20] sm:$0xff]
    %v6721 = vld [vmem:[#allocation4 + $0x28] sm:$0xff]
    %v6722 = vld [vmem:[#allocation4 + $0x30] sm:$0xff]
    %v6723 = vld [vmem:[#allocation4 + $0x38] sm:$0xff]
    %v6724 = vld [vmem:[#allocation4 + $0x40] sm:$0xff]
    %v6725 = vld [vmem:[#allocation4 + $0x48] sm:$0xff]
    %v6726 = vld [vmem:[#allocation4 + $0x50] sm:$0xff]
    %v6727 = vld [vmem:[#allocation4 + $0x58] sm:$0xff]
    %v6728 = vld [vmem:[#allocation4 + $0x60] sm:$0xff]
    %v6729 = vld [vmem:[#allocation4 + $0x68] sm:$0xff]
    %v6730 = vld [vmem:[#allocation4 + $0x70] sm:$0xff]
    %v6731 = vld [vmem:[#allocation4 + $0x78] sm:$0xff]
    %v6732 = vld [vmem:[#allocation4 + $0x80] sm:$0xff]
    %v6733 = vld [vmem:[#allocation4 + $0x88] sm:$0xff]
    %v6734 = vld [vmem:[#allocation4 + $0x90] sm:$0xff]
    %v6735 = vld [vmem:[#allocation4 + $0x98] sm:$0xff]
    %v6736 = vld [vmem:[#allocation4 + $0xa0] sm:$0xff]
    %v6737 = vld [vmem:[#allocation4 + $0xa8] sm:$0xff]
    %v6738 = vld [vmem:[#allocation4 + $0xb0] sm:$0xff]
    %v6739 = vld [vmem:[#allocation4 + $0xb8] sm:$0xff]
    %v6740 = vld [vmem:[#allocation4 + $0xc0] sm:$0xff]
    %v6741 = vld [vmem:[#allocation4 + $0xc8] sm:$0xff]
    %v6742 = vld [vmem:[#allocation4 + $0xd0] sm:$0xff]
    %v6743 = vld [vmem:[#allocation4 + $0xd8] sm:$0xff]
    %v6744 = vld [vmem:[#allocation4 + $0xe0] sm:$0xff]
    %v6745 = vld [vmem:[#allocation4 + $0xe8] sm:$0xff]
    %v6746 = vld [vmem:[#allocation4 + $0xf0] sm:$0xff]
    %v6747 = vld [vmem:[#allocation4 + $0xf8] sm:$0xff]
    %v6748 = vld [vmem:[#allocation4 + $0x100] sm:$0xff]
    %v6749 = vld [vmem:[#allocation4 + $0x108] sm:$0xff]
    %v6750 = vld [vmem:[#allocation4 + $0x110] sm:$0xff]
    %v6751 = vld [vmem:[#allocation4 + $0x118] sm:$0xff]
    %v6752 = vld [vmem:[#allocation4 + $0x120] sm:$0xff]
    %v6753 = vld [vmem:[#allocation4 + $0x128] sm:$0xff]
    %v6754 = vld [vmem:[#allocation4 + $0x130] sm:$0xff]
    %v6755 = vld [vmem:[#allocation4 + $0x138] sm:$0xff]
    %v6756 = vld [vmem:[#allocation3 + $0x20] sm:$0xf]
    %v6757 = vld [vmem:[#allocation3 + $0x24] sm:$0xf]
    %v6758 = vld [vmem:[#allocation3 + $0x28] sm:$0xf]
    %v6759 = vld [vmem:[#allocation3 + $0x2c] sm:$0xf]
    %v6760 = vld [vmem:[#allocation3 + $0x30] sm:$0xf]
    %v6761 = vld [vmem:[#allocation3 + $0x34] sm:$0xf]
    %v6762 = vld [vmem:[#allocation3 + $0x38] sm:$0xf]
    %v6763 = vld [vmem:[#allocation3 + $0x3c] sm:$0xf]
    %v6764 = vld [vmem:[#allocation3 + $0x40] sm:$0xf]
    %v6765 = vld [vmem:[#allocation3 + $0x44] sm:$0xf]
    %v6766 = vld [vmem:[#allocation3 + $0x48] sm:$0xf]
    %v6767 = vld [vmem:[#allocation3 + $0x4c] sm:$0xf]
    %v6768 = vld [vmem:[#allocation3 + $0x50] sm:$0xf]
    %v6769 = vld [vmem:[#allocation3 + $0x54] sm:$0xf]
    %v6770 = vld [vmem:[#allocation3 + $0x58] sm:$0xf]
    %v6771 = vld [vmem:[#allocation3 + $0x5c] sm:$0xf]
    %v6772 = vld [vmem:[#allocation3 + $0x60] sm:$0xf]
    %v6773 = vld [vmem:[#allocation3 + $0x64] sm:$0xf]
    %v6774 = vld [vmem:[#allocation3 + $0x68] sm:$0xf]
    %v6775 = vld [vmem:[#allocation3 + $0x6c] sm:$0xf]
    %s6776 = scalar_lea.vmem %s3, 512
    %v6777 = vld [vmem:[%s6776] sm:$0xff]
    %v6778 = vld [vmem:[%s6776 + $0x8] sm:$0xff]
    %v6779 = vld [vmem:[%s6776 + $0x10] sm:$0xff]
    %v6780 = vld [vmem:[%s6776 + $0x18] sm:$0xff]
    %v6781 = vld [vmem:[%s6776 + $0x20] sm:$0xff]
    %v6782 = vld [vmem:[%s6776 + $0x28] sm:$0xff]
    %v6783 = vld [vmem:[%s6776 + $0x30] sm:$0xff]
    %v6784 = vld [vmem:[%s6776 + $0x38] sm:$0xff]
    %v6785 = vld [vmem:[%s6776 + $0x40] sm:$0xff]
    %v6786 = vld [vmem:[%s6776 + $0x48] sm:$0xff]
    %v6787 = vld [vmem:[%s6776 + $0x50] sm:$0xff]
    %v6788 = vld [vmem:[%s6776 + $0x58] sm:$0xff]
    %v6789 = vld [vmem:[%s6776 + $0x60] sm:$0xff]
    %v6790 = vld [vmem:[%s6776 + $0x68] sm:$0xff]
    %v6791 = vld [vmem:[%s6776 + $0x70] sm:$0xff]
    %v6792 = vld [vmem:[%s6776 + $0x78] sm:$0xff]
    %v6813 = vunpack.c.l.b16 %v6756
    %v6814 = vunpack.c.l.b16 %v6757
    %v6815 = vunpack.c.l.b16 %v6758
    %v6816 = vunpack.c.l.b16 %v6759
    %v6817 = vunpack.c.l.b16 %v6760
    %v6818 = vunpack.c.l.b16 %v6761
    %v6819 = vunpack.c.l.b16 %v6762
    %v6820 = vunpack.c.l.b16 %v6763
    %v6821 = vunpack.c.l.b16 %v6764
    %v6822 = vunpack.c.l.b16 %v6765
    %v6823 = vunpack.c.l.b16 %v6766
    %v6824 = vunpack.c.l.b16 %v6767
    %v6825 = vunpack.c.l.b16 %v6768
    %v6826 = vunpack.c.l.b16 %v6769
    %v6827 = vunpack.c.l.b16 %v6770
    %v6828 = vunpack.c.l.b16 %v6771
    %v6829 = vunpack.c.l.b16 %v6772
    %v6830 = vunpack.c.l.b16 %v6773
    %v6831 = vunpack.c.l.b16 %v6774
    %v6832 = vunpack.c.l.b16 %v6775
    %v6833 = vpack.c.b16 %v6814, %v6813
    %v6834 = vpack.c.b16 %v6816, %v6815
    %v6835 = vpack.c.b16 %v6818, %v6817
    %v6836 = vpack.c.b16 %v6820, %v6819
    %v6837 = vpack.c.b16 %v6822, %v6821
    %v6838 = vpack.c.b16 %v6824, %v6823
    %v6839 = vpack.c.b16 %v6826, %v6825
    %v6840 = vpack.c.b16 %v6828, %v6827
    %v6841 = vpack.c.b16 %v6830, %v6829
    %v6842 = vpack.c.b16 %v6832, %v6831
    %v6869 = vunpack.c.l.b16 %v6777
    %v6870 = vunpack.c.h.b16 %v6777
    %v6871 = vunpack.c.l.b16 %v6778
    %v6872 = vunpack.c.h.b16 %v6778
    %v6873 = vunpack.c.l.b16 %v6779
    %v6874 = vunpack.c.h.b16 %v6779
    %v6875 = vunpack.c.l.b16 %v6780
    %v6876 = vunpack.c.h.b16 %v6780
    %v6877 = vunpack.c.l.b16 %v6781
    %v6878 = vunpack.c.h.b16 %v6781
    %v6879 = vunpack.c.l.b16 %v6782
    %v6880 = vunpack.c.h.b16 %v6782
    %v6881 = vunpack.c.l.b16 %v6783
    %v6882 = vunpack.c.h.b16 %v6783
    %v6883 = vunpack.c.l.b16 %v6784
    %v6884 = vunpack.c.h.b16 %v6784
    %v6885 = vunpack.c.l.b16 %v6785
    %v6886 = vunpack.c.h.b16 %v6785
    %v6887 = vunpack.c.l.b16 %v6786
    %v6888 = vunpack.c.h.b16 %v6786
    %v6889 = vunpack.c.l.b16 %v6787
    %v6890 = vunpack.c.h.b16 %v6787
    %v6891 = vunpack.c.l.b16 %v6788
    %v6892 = vunpack.c.h.b16 %v6788
    %v6893 = vunpack.c.l.b16 %v6789
    %v6894 = vunpack.c.h.b16 %v6789
    %v6895 = vunpack.c.l.b16 %v6790
    %v6896 = vunpack.c.h.b16 %v6790
    %v6897 = vunpack.c.l.b16 %v6791
    %v6898 = vunpack.c.h.b16 %v6791
    %v6899 = vunpack.c.l.b16 %v6792
    %v6900 = vunpack.c.h.b16 %v6792
    %v6901 = vpack.c.b16 %v6871, %v6869
    %v6902 = vpack.c.b16 %v6872, %v6870
    %v6903 = vpack.c.b16 %v6875, %v6873
    %v6904 = vpack.c.b16 %v6876, %v6874
    %v6905 = vpack.c.b16 %v6879, %v6877
    %v6906 = vpack.c.b16 %v6880, %v6878
    %v6907 = vpack.c.b16 %v6883, %v6881
    %v6908 = vpack.c.b16 %v6884, %v6882
    %v6909 = vpack.c.b16 %v6887, %v6885
    %v6910 = vpack.c.b16 %v6888, %v6886
    %v6911 = vpack.c.b16 %v6891, %v6889
    %v6912 = vpack.c.b16 %v6892, %v6890
    %v6913 = vpack.c.b16 %v6895, %v6893
    %v6914 = vpack.c.b16 %v6896, %v6894
    %v6915 = vpack.c.b16 %v6899, %v6897
    %v6916 = vpack.c.b16 %v6900, %v6898
    %6933 = vmatprep.subr.bf16.mxu0 %v6916
    %6934 = vmatpush1.bf16.msra.mxu0 %v6915
    %6935 = vmatprep.subr.bf16.mxu0 %v6914
    %6936 = vmatpush1.bf16.msra.mxu0 %v6913
    %6937 = vmatprep.subr.bf16.mxu0 %v6912
    %6938 = vmatpush1.bf16.msra.mxu0 %v6911
    %6939 = vmatprep.subr.bf16.mxu0 %v6910
    %6940 = vmatpush1.bf16.msra.mxu0 %v6909
    %6941 = vmatprep.subr.bf16.mxu0 %v6908
    %6942 = vmatpush1.bf16.msra.mxu0 %v6907
    %6943 = vmatprep.subr.bf16.mxu0 %v6906
    %6944 = vmatpush1.bf16.msra.mxu0 %v6905
    %6945 = vmatprep.subr.bf16.mxu0 %v6904
    %6946 = vmatpush1.bf16.msra.mxu0 %v6903
    %6947 = vmatprep.subr.bf16.mxu0 %v6902
    %6948 = vmatpush1.bf16.msra.mxu0 %v6901
    %6949 = vmatprep.subr.bf16.mxu0 0
    %6950 = vmatpush2.bf16.msra.mxu0 0
    %6951 = vmatprep.subr.bf16.mxu0 0
    %6952 = vmatpush2.bf16.msra.mxu0 0
    %6953 = vmatprep.subr.bf16.mxu0 0
    %6954 = vmatpush2.bf16.msra.mxu0 0
    %6955 = vmatprep.subr.bf16.mxu0 0
    %6956 = vmatpush2.bf16.msra.mxu0 0
    %6957 = vmatprep.subr.bf16.mxu0 0
    %6958 = vmatpush2.bf16.msra.mxu0 0
    %6959 = vmatprep.subr.bf16.mxu0 0
    %6960 = vmatpush2.bf16.msra.mxu0 0
    %6961 = vmatprep.subr.bf16.mxu0 0
    %6962 = vmatpush2.bf16.msra.mxu0 0
    %6963 = vmatprep.subr.bf16.mxu0 0
    %6964 = vmatpush2.bf16.msra.mxu0 0
    %6965 = vmatprep.mubr.bf16.mxu0 0
    %6966 = vmatmul.mubr.bf16.gmra.mxu0 %v6833
    %v6967 = vpop.f32.mrf.mxu0
    %v6968 = vadd.f32 0.0, %v6967
    %v6969 = vpop.f32.mrf.mxu0
    %v6970 = vadd.f32 0.0, %v6969
    %v6971 = vpop.f32.mrf.mxu0
    %v6972 = vadd.f32 0.0, %v6971
    %v6973 = vpop.f32.mrf.mxu0
    %v6974 = vadd.f32 0.0, %v6973
    %6975 = vmatprep.mubr.bf16.mxu0 0
    %6976 = vmatmul.mubr.bf16.gmra.mxu0 %v6834
    %v6977 = vpop.f32.mrf.mxu0
    %v6978 = vadd.f32 0.0, %v6977
    %v6979 = vpop.f32.mrf.mxu0
    %v6980 = vadd.f32 0.0, %v6979
    %v6981 = vpop.f32.mrf.mxu0
    %v6982 = vadd.f32 0.0, %v6981
    %v6983 = vpop.f32.mrf.mxu0
    %v6984 = vadd.f32 0.0, %v6983
    %6985 = vmatprep.mubr.bf16.mxu0 0
    %6986 = vmatmul.mubr.bf16.gmra.mxu0 %v6835
    %v6987 = vpop.f32.mrf.mxu0
    %v6988 = vadd.f32 0.0, %v6987
    %v6989 = vpop.f32.mrf.mxu0
    %v6990 = vadd.f32 0.0, %v6989
    %v6991 = vpop.f32.mrf.mxu0
    %v6992 = vadd.f32 0.0, %v6991
    %v6993 = vpop.f32.mrf.mxu0
    %v6994 = vadd.f32 0.0, %v6993
    %6995 = vmatprep.mubr.bf16.mxu0 0
    %6996 = vmatmul.mubr.bf16.gmra.mxu0 %v6836
    %v6997 = vpop.f32.mrf.mxu0
    %v6998 = vadd.f32 0.0, %v6997
    %v6999 = vpop.f32.mrf.mxu0
    %v7000 = vadd.f32 0.0, %v6999
    %v7001 = vpop.f32.mrf.mxu0
    %v7002 = vadd.f32 0.0, %v7001
    %v7003 = vpop.f32.mrf.mxu0
    %v7004 = vadd.f32 0.0, %v7003
    %7005 = vmatprep.mubr.bf16.mxu0 0
    %7006 = vmatmul.mubr.bf16.gmra.mxu0 %v6837
    %v7007 = vpop.f32.mrf.mxu0
    %v7008 = vadd.f32 0.0, %v7007
    %v7009 = vpop.f32.mrf.mxu0
    %v7010 = vadd.f32 0.0, %v7009
    %v7011 = vpop.f32.mrf.mxu0
    %v7012 = vadd.f32 0.0, %v7011
    %v7013 = vpop.f32.mrf.mxu0
    %v7014 = vadd.f32 0.0, %v7013
    %7015 = vmatprep.mubr.bf16.mxu0 0
    %7016 = vmatmul.mubr.bf16.gmra.mxu0 %v6838
    %v7017 = vpop.f32.mrf.mxu0
    %v7018 = vadd.f32 0.0, %v7017
    %v7019 = vpop.f32.mrf.mxu0
    %v7020 = vadd.f32 0.0, %v7019
    %v7021 = vpop.f32.mrf.mxu0
    %v7022 = vadd.f32 0.0, %v7021
    %v7023 = vpop.f32.mrf.mxu0
    %v7024 = vadd.f32 0.0, %v7023
    %7025 = vmatprep.mubr.bf16.mxu0 0
    %7026 = vmatmul.mubr.bf16.gmra.mxu0 %v6839
    %v7027 = vpop.f32.mrf.mxu0
    %v7028 = vadd.f32 0.0, %v7027
    %v7029 = vpop.f32.mrf.mxu0
    %v7030 = vadd.f32 0.0, %v7029
    %v7031 = vpop.f32.mrf.mxu0
    %v7032 = vadd.f32 0.0, %v7031
    %v7033 = vpop.f32.mrf.mxu0
    %v7034 = vadd.f32 0.0, %v7033
    %7035 = vmatprep.mubr.bf16.mxu0 0
    %7036 = vmatmul.mubr.bf16.gmra.mxu0 %v6840
    %v7037 = vpop.f32.mrf.mxu0
    %v7038 = vadd.f32 0.0, %v7037
    %v7039 = vpop.f32.mrf.mxu0
    %v7040 = vadd.f32 0.0, %v7039
    %v7041 = vpop.f32.mrf.mxu0
    %v7042 = vadd.f32 0.0, %v7041
    %v7043 = vpop.f32.mrf.mxu0
    %v7044 = vadd.f32 0.0, %v7043
    %7045 = vmatprep.mubr.bf16.mxu0 0
    %7046 = vmatmul.mubr.bf16.gmra.mxu0 %v6841
    %v7047 = vpop.f32.mrf.mxu0
    %v7048 = vadd.f32 0.0, %v7047
    %v7049 = vpop.f32.mrf.mxu0
    %v7050 = vadd.f32 0.0, %v7049
    %v7051 = vpop.f32.mrf.mxu0
    %v7052 = vadd.f32 0.0, %v7051
    %v7053 = vpop.f32.mrf.mxu0
    %v7054 = vadd.f32 0.0, %v7053
    %7055 = vmatprep.mubr.bf16.mxu0 0
    %7056 = vmatmul.mubr.bf16.gmra.mxu0 %v6842
    %v7057 = vpop.f32.mrf.mxu0
    %v7058 = vadd.f32 0.0, %v7057
    %v7059 = vpop.f32.mrf.mxu0
    %v7060 = vadd.f32 0.0, %v7059
    %v7061 = vpop.f32.mrf.mxu0
    %v7062 = vadd.f32 0.0, %v7061
    %v7063 = vpop.f32.mrf.mxu0
    %v7064 = vadd.f32 0.0, %v7063
    %7065 = vdwg.mxu0
    %v7066 = vadd.f32 %v6716, %v6968
    %v7067 = vadd.f32 %v6717, %v6970
    %v7068 = vadd.f32 %v6718, %v6972
    %v7069 = vadd.f32 %v6719, %v6974
    %v7070 = vadd.f32 %v6720, %v6978
    %v7071 = vadd.f32 %v6721, %v6980
    %v7072 = vadd.f32 %v6722, %v6982
    %v7073 = vadd.f32 %v6723, %v6984
    %v7074 = vadd.f32 %v6724, %v6988
    %v7075 = vadd.f32 %v6725, %v6990
    %v7076 = vadd.f32 %v6726, %v6992
    %v7077 = vadd.f32 %v6727, %v6994
    %v7078 = vadd.f32 %v6728, %v6998
    %v7079 = vadd.f32 %v6729, %v7000
    %v7080 = vadd.f32 %v6730, %v7002
    %v7081 = vadd.f32 %v6731, %v7004
    %v7082 = vadd.f32 %v6732, %v7008
    %v7083 = vadd.f32 %v6733, %v7010
    %v7084 = vadd.f32 %v6734, %v7012
    %v7085 = vadd.f32 %v6735, %v7014
    %v7086 = vadd.f32 %v6736, %v7018
    %v7087 = vadd.f32 %v6737, %v7020
    %v7088 = vadd.f32 %v6738, %v7022
    %v7089 = vadd.f32 %v6739, %v7024
    %v7090 = vadd.f32 %v6740, %v7028
    %v7091 = vadd.f32 %v6741, %v7030
    %v7092 = vadd.f32 %v6742, %v7032
    %v7093 = vadd.f32 %v6743, %v7034
    %v7094 = vadd.f32 %v6744, %v7038
    %v7095 = vadd.f32 %v6745, %v7040
    %v7096 = vadd.f32 %v6746, %v7042
    %v7097 = vadd.f32 %v6747, %v7044
    %v7098 = vadd.f32 %v6748, %v7048
    %v7099 = vadd.f32 %v6749, %v7050
    %v7100 = vadd.f32 %v6750, %v7052
    %v7101 = vadd.f32 %v6751, %v7054
    %v7102 = vadd.f32 %v6752, %v7058
    %v7103 = vadd.f32 %v6753, %v7060
    %v7104 = vadd.f32 %v6754, %v7062
    %v7105 = vadd.f32 %v6755, %v7064
    %7106 = vst [vmem:[#allocation4] sm:$0xff] %v7066
    %7107 = vst [vmem:[#allocation4 + $0x8] sm:$0xff] %v7067
    %7108 = vst [vmem:[#allocation4 + $0x10] sm:$0xff] %v7068
    %7109 = vst [vmem:[#allocation4 + $0x18] sm:$0xff] %v7069
    %7110 = vst [vmem:[#allocation4 + $0x20] sm:$0xff] %v7070
    %7111 = vst [vmem:[#allocation4 + $0x28] sm:$0xff] %v7071
    %7112 = vst [vmem:[#allocation4 + $0x30] sm:$0xff] %v7072
    %7113 = vst [vmem:[#allocation4 + $0x38] sm:$0xff] %v7073
    %7114 = vst [vmem:[#allocation4 + $0x40] sm:$0xff] %v7074
    %7115 = vst [vmem:[#allocation4 + $0x48] sm:$0xff] %v7075
    %7116 = vst [vmem:[#allocation4 + $0x50] sm:$0xff] %v7076
    %7117 = vst [vmem:[#allocation4 + $0x58] sm:$0xff] %v7077
    %7118 = vst [vmem:[#allocation4 + $0x60] sm:$0xff] %v7078
    %7119 = vst [vmem:[#allocation4 + $0x68] sm:$0xff] %v7079
    %7120 = vst [vmem:[#allocation4 + $0x70] sm:$0xff] %v7080
    %7121 = vst [vmem:[#allocation4 + $0x78] sm:$0xff] %v7081
    %7122 = vst [vmem:[#allocation4 + $0x80] sm:$0xff] %v7082
    %7123 = vst [vmem:[#allocation4 + $0x88] sm:$0xff] %v7083
    %7124 = vst [vmem:[#allocation4 + $0x90] sm:$0xff] %v7084
    %7125 = vst [vmem:[#allocation4 + $0x98] sm:$0xff] %v7085
    %7126 = vst [vmem:[#allocation4 + $0xa0] sm:$0xff] %v7086
    %7127 = vst [vmem:[#allocation4 + $0xa8] sm:$0xff] %v7087
    %7128 = vst [vmem:[#allocation4 + $0xb0] sm:$0xff] %v7088
    %7129 = vst [vmem:[#allocation4 + $0xb8] sm:$0xff] %v7089
    %7130 = vst [vmem:[#allocation4 + $0xc0] sm:$0xff] %v7090
    %7131 = vst [vmem:[#allocation4 + $0xc8] sm:$0xff] %v7091
    %7132 = vst [vmem:[#allocation4 + $0xd0] sm:$0xff] %v7092
    %7133 = vst [vmem:[#allocation4 + $0xd8] sm:$0xff] %v7093
    %7134 = vst [vmem:[#allocation4 + $0xe0] sm:$0xff] %v7094
    %7135 = vst [vmem:[#allocation4 + $0xe8] sm:$0xff] %v7095
    %7136 = vst [vmem:[#allocation4 + $0xf0] sm:$0xff] %v7096
    %7137 = vst [vmem:[#allocation4 + $0xf8] sm:$0xff] %v7097
    %7138 = vst [vmem:[#allocation4 + $0x100] sm:$0xff] %v7098
    %7139 = vst [vmem:[#allocation4 + $0x108] sm:$0xff] %v7099
    %7140 = vst [vmem:[#allocation4 + $0x110] sm:$0xff] %v7100
    %7141 = vst [vmem:[#allocation4 + $0x118] sm:$0xff] %v7101
    %7142 = vst [vmem:[#allocation4 + $0x120] sm:$0xff] %v7102
    %7143 = vst [vmem:[#allocation4 + $0x128] sm:$0xff] %v7103
    %7144 = vst [vmem:[#allocation4 + $0x130] sm:$0xff] %v7104
    %7145 = vst [vmem:[#allocation4 + $0x138] sm:$0xff] %v7105
    %v7146 = vld [vmem:[%s4] sm:$0x1]
    %v7147 = vld [vmem:[#allocation4] sm:$0xff]
    %v7148 = vld [vmem:[#allocation4 + $0x8] sm:$0xff]
    %v7149 = vld [vmem:[#allocation4 + $0x10] sm:$0xff]
    %v7150 = vld [vmem:[#allocation4 + $0x18] sm:$0xff]
    %v7151 = vld [vmem:[#allocation4 + $0x20] sm:$0xff]
    %v7152 = vld [vmem:[#allocation4 + $0x28] sm:$0xff]
    %v7153 = vld [vmem:[#allocation4 + $0x30] sm:$0xff]
    %v7154 = vld [vmem:[#allocation4 + $0x38] sm:$0xff]
    %v7155 = vmax.f32 %v7147, %v7151
    %v7156 = vmax.f32 %v7148, %v7152
    %v7157 = vmax.f32 %v7149, %v7153
    %v7158 = vmax.f32 %v7150, %v7154
    %v7159 = vmax.f32 %v7155, %v7156
    %v7160 = vmax.f32 %v7157, %v7158
    %v7162 = vlaneseq
    %v7163 = vshrl.u32 %v7162, 7
    %v7164 = vsub.s32 0, %v7163
    %v7165 = vrot.slane %v7146, %v7164
    %v7167 = vadd.f32 %v7159, %v7165
    %v7168 = vadd.f32 %v7160, %v7165
    %v7169 = vmax.f32 %v7167, 0.0
    %v7170 = vmax.f32 %v7168, 0.0
    %v7171 = vpack.c.bf16 %v7170, %v7169
    %v7172 = vld [vmem:[#allocation5] sm:$0xf]
    %v7173 = vld [vmem:[#allocation5 + $0x4] sm:$0xf]
    %v7174 = vld [vmem:[#allocation5 + $0x8] sm:$0xf]
    %v7175 = vld [vmem:[#allocation5 + $0xc] sm:$0xf]
    %v7176 = vld [vmem:[#allocation5 + $0x10] sm:$0xf]
    %v7177 = vld [vmem:[#allocation5 + $0x14] sm:$0xf]
    %v7178 = vld [vmem:[#allocation5 + $0x18] sm:$0xf]
    %v7179 = vld [vmem:[#allocation5 + $0x1c] sm:$0xf]
    %v7180 = vld [vmem:[#allocation5 + $0x20] sm:$0xf]
    %v7181 = vld [vmem:[#allocation5 + $0x24] sm:$0xf]
    %v7182 = vld [vmem:[#allocation5 + $0x28] sm:$0xf]
    %v7183 = vld [vmem:[#allocation5 + $0x2c] sm:$0xf]
    %v7184 = vld [vmem:[#allocation5 + $0x30] sm:$0xf]
    %v7185 = vld [vmem:[#allocation5 + $0x34] sm:$0xf]
    %v7186 = vld [vmem:[#allocation5 + $0x38] sm:$0xf]
    %v7187 = vld [vmem:[#allocation5 + $0x3c] sm:$0xf]
    %v7188 = vld [vmem:[#allocation4 + $0x40] sm:$0xff]
    %v7189 = vld [vmem:[#allocation4 + $0x48] sm:$0xff]
    %v7190 = vld [vmem:[#allocation4 + $0x50] sm:$0xff]
    %v7191 = vld [vmem:[#allocation4 + $0x58] sm:$0xff]
    %v7192 = vld [vmem:[#allocation4 + $0x60] sm:$0xff]
    %v7193 = vld [vmem:[#allocation4 + $0x68] sm:$0xff]
    %v7194 = vld [vmem:[#allocation4 + $0x70] sm:$0xff]
    %v7195 = vld [vmem:[#allocation4 + $0x78] sm:$0xff]
    %v7196 = vmax.f32 %v7188, %v7192
    %v7197 = vmax.f32 %v7189, %v7193
    %v7198 = vmax.f32 %v7190, %v7194
    %v7199 = vmax.f32 %v7191, %v7195
    %v7200 = vmax.f32 %v7196, %v7197
    %v7201 = vmax.f32 %v7198, %v7199
    %v7202 = vadd.f32 %v7200, %v7165
    %v7203 = vadd.f32 %v7201, %v7165
    %v7204 = vmax.f32 %v7202, 0.0
    %v7205 = vmax.f32 %v7203, 0.0
    %v7206 = vpack.c.bf16 %v7205, %v7204
    %s7207 = scalar_lea.vmem [#allocation5], 64
    %v7208 = vld [vmem:[%s7207] sm:$0xf]
    %v7209 = vld [vmem:[%s7207 + $0x4] sm:$0xf]
    %v7210 = vld [vmem:[%s7207 + $0x8] sm:$0xf]
    %v7211 = vld [vmem:[%s7207 + $0xc] sm:$0xf]
    %v7212 = vld [vmem:[%s7207 + $0x10] sm:$0xf]
    %v7213 = vld [vmem:[%s7207 + $0x14] sm:$0xf]
    %v7214 = vld [vmem:[%s7207 + $0x18] sm:$0xf]
    %v7215 = vld [vmem:[%s7207 + $0x1c] sm:$0xf]
    %v7216 = vld [vmem:[%s7207 + $0x20] sm:$0xf]
    %v7217 = vld [vmem:[%s7207 + $0x24] sm:$0xf]
    %v7218 = vld [vmem:[%s7207 + $0x28] sm:$0xf]
    %v7219 = vld [vmem:[%s7207 + $0x2c] sm:$0xf]
    %v7220 = vld [vmem:[%s7207 + $0x30] sm:$0xf]
    %v7221 = vld [vmem:[%s7207 + $0x34] sm:$0xf]
    %v7222 = vld [vmem:[%s7207 + $0x38] sm:$0xf]
    %v7223 = vld [vmem:[%s7207 + $0x3c] sm:$0xf]
    %v7240 = vunpack.c.l.b16 %v7208
    %v7241 = vunpack.c.l.b16 %v7209
    %v7242 = vunpack.c.l.b16 %v7210
    %v7243 = vunpack.c.l.b16 %v7211
    %v7244 = vunpack.c.l.b16 %v7212
    %v7245 = vunpack.c.l.b16 %v7213
    %v7246 = vunpack.c.l.b16 %v7214
    %v7247 = vunpack.c.l.b16 %v7215
    %v7248 = vunpack.c.l.b16 %v7216
    %v7249 = vunpack.c.l.b16 %v7217
    %v7250 = vunpack.c.l.b16 %v7218
    %v7251 = vunpack.c.l.b16 %v7219
    %v7252 = vunpack.c.l.b16 %v7220
    %v7253 = vunpack.c.l.b16 %v7221
    %v7254 = vunpack.c.l.b16 %v7222
    %v7255 = vunpack.c.l.b16 %v7223
    %v7256 = vpack.c.b16 %v7241, %v7240
    %v7257 = vpack.c.b16 %v7243, %v7242
    %v7258 = vpack.c.b16 %v7245, %v7244
    %v7259 = vpack.c.b16 %v7247, %v7246
    %v7260 = vpack.c.b16 %v7249, %v7248
    %v7261 = vpack.c.b16 %v7251, %v7250
    %v7262 = vpack.c.b16 %v7253, %v7252
    %v7263 = vpack.c.b16 %v7255, %v7254
    %7272 = vmatprep.subr.bf16.mxu0 0
    %7273 = vmatpush1.bf16.msra.mxu0 %v7263
    %7274 = vmatprep.subr.bf16.mxu0 0
    %7275 = vmatpush1.bf16.msra.mxu0 %v7262
    %7276 = vmatprep.subr.bf16.mxu0 0
    %7277 = vmatpush1.bf16.msra.mxu0 %v7261
    %7278 = vmatprep.subr.bf16.mxu0 0
    %7279 = vmatpush1.bf16.msra.mxu0 %v7260
    %7280 = vmatprep.subr.bf16.mxu0 0
    %7281 = vmatpush1.bf16.msra.mxu0 %v7259
    %7282 = vmatprep.subr.bf16.mxu0 0
    %7283 = vmatpush1.bf16.msra.mxu0 %v7258
    %7284 = vmatprep.subr.bf16.mxu0 0
    %7285 = vmatpush1.bf16.msra.mxu0 %v7257
    %7286 = vmatprep.subr.bf16.mxu0 0
    %7287 = vmatpush1.bf16.msra.mxu0 %v7256
    %7288 = vmatprep.subr.bf16.mxu0 0
    %7289 = vmatpush2.bf16.msra.mxu0 0
    %7290 = vmatprep.subr.bf16.mxu0 0
    %7291 = vmatpush2.bf16.msra.mxu0 0
    %7292 = vmatprep.subr.bf16.mxu0 0
    %7293 = vmatpush2.bf16.msra.mxu0 0
    %7294 = vmatprep.subr.bf16.mxu0 0
    %7295 = vmatpush2.bf16.msra.mxu0 0
    %7296 = vmatprep.subr.bf16.mxu0 0
    %7297 = vmatpush2.bf16.msra.mxu0 0
    %7298 = vmatprep.subr.bf16.mxu0 0
    %7299 = vmatpush2.bf16.msra.mxu0 0
    %7300 = vmatprep.subr.bf16.mxu0 0
    %7301 = vmatpush2.bf16.msra.mxu0 0
    %7302 = vmatprep.subr.bf16.mxu0 0
    %7303 = vmatpush2.bf16.msra.mxu0 0
    %7304 = vmatprep.mubr.bf16.mxu0 0
    %7305 = vmatmul.mubr.bf16.gmra.mxu0 %v7206
    %v7306 = vpop.f32.mrf.mxu0
    %v7307 = vadd.f32 0.0, %v7306
    %v7308 = vpop.f32.mrf.mxu0
    %v7309 = vpop.f32.mrf.mxu0
    %v7310 = vadd.f32 0.0, %v7309
    %v7311 = vpop.f32.mrf.mxu0
    %7312 = vdwg.mxu0
    %v7329 = vunpack.c.l.b16 %v7172
    %v7330 = vunpack.c.l.b16 %v7173
    %v7331 = vunpack.c.l.b16 %v7174
    %v7332 = vunpack.c.l.b16 %v7175
    %v7333 = vunpack.c.l.b16 %v7176
    %v7334 = vunpack.c.l.b16 %v7177
    %v7335 = vunpack.c.l.b16 %v7178
    %v7336 = vunpack.c.l.b16 %v7179
    %v7337 = vunpack.c.l.b16 %v7180
    %v7338 = vunpack.c.l.b16 %v7181
    %v7339 = vunpack.c.l.b16 %v7182
    %v7340 = vunpack.c.l.b16 %v7183
    %v7341 = vunpack.c.l.b16 %v7184
    %v7342 = vunpack.c.l.b16 %v7185
    %v7343 = vunpack.c.l.b16 %v7186
    %v7344 = vunpack.c.l.b16 %v7187
    %v7345 = vpack.c.b16 %v7330, %v7329
    %v7346 = vpack.c.b16 %v7332, %v7331
    %v7347 = vpack.c.b16 %v7334, %v7333
    %v7348 = vpack.c.b16 %v7336, %v7335
    %v7349 = vpack.c.b16 %v7338, %v7337
    %v7350 = vpack.c.b16 %v7340, %v7339
    %v7351 = vpack.c.b16 %v7342, %v7341
    %v7352 = vpack.c.b16 %v7344, %v7343
    %7361 = vmatprep.subr.bf16.mxu0 0
    %7362 = vmatpush1.bf16.msra.mxu0 %v7352
    %7363 = vmatprep.subr.bf16.mxu0 0
    %7364 = vmatpush1.bf16.msra.mxu0 %v7351
    %7365 = vmatprep.subr.bf16.mxu0 0
    %7366 = vmatpush1.bf16.msra.mxu0 %v7350
    %7367 = vmatprep.subr.bf16.mxu0 0
    %7368 = vmatpush1.bf16.msra.mxu0 %v7349
    %7369 = vmatprep.subr.bf16.mxu0 0
    %7370 = vmatpush1.bf16.msra.mxu0 %v7348
    %7371 = vmatprep.subr.bf16.mxu0 0
    %7372 = vmatpush1.bf16.msra.mxu0 %v7347
    %7373 = vmatprep.subr.bf16.mxu0 0
    %7374 = vmatpush1.bf16.msra.mxu0 %v7346
    %7375 = vmatprep.subr.bf16.mxu0 0
    %7376 = vmatpush1.bf16.msra.mxu0 %v7345
    %7377 = vmatprep.subr.bf16.mxu0 0
    %7378 = vmatpush2.bf16.msra.mxu0 0
    %7379 = vmatprep.subr.bf16.mxu0 0
    %7380 = vmatpush2.bf16.msra.mxu0 0
    %7381 = vmatprep.subr.bf16.mxu0 0
    %7382 = vmatpush2.bf16.msra.mxu0 0
    %7383 = vmatprep.subr.bf16.mxu0 0
    %7384 = vmatpush2.bf16.msra.mxu0 0
    %7385 = vmatprep.subr.bf16.mxu0 0
    %7386 = vmatpush2.bf16.msra.mxu0 0
    %7387 = vmatprep.subr.bf16.mxu0 0
    %7388 = vmatpush2.bf16.msra.mxu0 0
    %7389 = vmatprep.subr.bf16.mxu0 0
    %7390 = vmatpush2.bf16.msra.mxu0 0
    %7391 = vmatprep.subr.bf16.mxu0 0
    %7392 = vmatpush2.bf16.msra.mxu0 0
    %7393 = vmatprep.mubr.bf16.mxu0 0
    %7394 = vmatmul.mubr.bf16.gmra.mxu0 %v7171
    %v7395 = vpop.f32.mrf.mxu0
    %v7396 = vadd.f32 %v7307, %v7395
    %v7397 = vpop.f32.mrf.mxu0
    %v7398 = vpop.f32.mrf.mxu0
    %v7399 = vadd.f32 %v7310, %v7398
    %v7400 = vpop.f32.mrf.mxu0
    %7401 = vdwg.mxu0
    %v7402 = vld [vmem:[#allocation4 + $0x80] sm:$0xff]
    %v7403 = vld [vmem:[#allocation4 + $0x88] sm:$0xff]
    %v7404 = vld [vmem:[#allocation4 + $0x90] sm:$0xff]
    %v7405 = vld [vmem:[#allocation4 + $0x98] sm:$0xff]
    %v7406 = vld [vmem:[#allocation4 + $0xa0] sm:$0xff]
    %v7407 = vld [vmem:[#allocation4 + $0xa8] sm:$0xff]
    %v7408 = vld [vmem:[#allocation4 + $0xb0] sm:$0xff]
    %v7409 = vld [vmem:[#allocation4 + $0xb8] sm:$0xff]
    %v7410 = vmax.f32 %v7402, %v7406
    %v7411 = vmax.f32 %v7403, %v7407
    %v7412 = vmax.f32 %v7404, %v7408
    %v7413 = vmax.f32 %v7405, %v7409
    %v7414 = vmax.f32 %v7410, %v7411
    %v7415 = vmax.f32 %v7412, %v7413
    %v7416 = vadd.f32 %v7414, %v7165
    %v7417 = vadd.f32 %v7415, %v7165
    %v7418 = vmax.f32 %v7416, 0.0
    %v7419 = vmax.f32 %v7417, 0.0
    %v7420 = vpack.c.bf16 %v7419, %v7418
    %s7421 = scalar_lea.vmem [#allocation5], 128
    %v7422 = vld [vmem:[%s7421] sm:$0xf]
    %v7423 = vld [vmem:[%s7421 + $0x4] sm:$0xf]
    %v7424 = vld [vmem:[%s7421 + $0x8] sm:$0xf]
    %v7425 = vld [vmem:[%s7421 + $0xc] sm:$0xf]
    %v7426 = vld [vmem:[%s7421 + $0x10] sm:$0xf]
    %v7427 = vld [vmem:[%s7421 + $0x14] sm:$0xf]
    %v7428 = vld [vmem:[%s7421 + $0x18] sm:$0xf]
    %v7429 = vld [vmem:[%s7421 + $0x1c] sm:$0xf]
    %v7430 = vld [vmem:[%s7421 + $0x20] sm:$0xf]
    %v7431 = vld [vmem:[%s7421 + $0x24] sm:$0xf]
    %v7432 = vld [vmem:[%s7421 + $0x28] sm:$0xf]
    %v7433 = vld [vmem:[%s7421 + $0x2c] sm:$0xf]
    %v7434 = vld [vmem:[%s7421 + $0x30] sm:$0xf]
    %v7435 = vld [vmem:[%s7421 + $0x34] sm:$0xf]
    %v7436 = vld [vmem:[%s7421 + $0x38] sm:$0xf]
    %v7437 = vld [vmem:[%s7421 + $0x3c] sm:$0xf]
    %v7454 = vunpack.c.l.b16 %v7422
    %v7455 = vunpack.c.l.b16 %v7423
    %v7456 = vunpack.c.l.b16 %v7424
    %v7457 = vunpack.c.l.b16 %v7425
    %v7458 = vunpack.c.l.b16 %v7426
    %v7459 = vunpack.c.l.b16 %v7427
    %v7460 = vunpack.c.l.b16 %v7428
    %v7461 = vunpack.c.l.b16 %v7429
    %v7462 = vunpack.c.l.b16 %v7430
    %v7463 = vunpack.c.l.b16 %v7431
    %v7464 = vunpack.c.l.b16 %v7432
    %v7465 = vunpack.c.l.b16 %v7433
    %v7466 = vunpack.c.l.b16 %v7434
    %v7467 = vunpack.c.l.b16 %v7435
    %v7468 = vunpack.c.l.b16 %v7436
    %v7469 = vunpack.c.l.b16 %v7437
    %v7470 = vpack.c.b16 %v7455, %v7454
    %v7471 = vpack.c.b16 %v7457, %v7456
    %v7472 = vpack.c.b16 %v7459, %v7458
    %v7473 = vpack.c.b16 %v7461, %v7460
    %v7474 = vpack.c.b16 %v7463, %v7462
    %v7475 = vpack.c.b16 %v7465, %v7464
    %v7476 = vpack.c.b16 %v7467, %v7466
    %v7477 = vpack.c.b16 %v7469, %v7468
    %7486 = vmatprep.subr.bf16.mxu0 0
    %7487 = vmatpush1.bf16.msra.mxu0 %v7477
    %7488 = vmatprep.subr.bf16.mxu0 0
    %7489 = vmatpush1.bf16.msra.mxu0 %v7476
    %7490 = vmatprep.subr.bf16.mxu0 0
    %7491 = vmatpush1.bf16.msra.mxu0 %v7475
    %7492 = vmatprep.subr.bf16.mxu0 0
    %7493 = vmatpush1.bf16.msra.mxu0 %v7474
    %7494 = vmatprep.subr.bf16.mxu0 0
    %7495 = vmatpush1.bf16.msra.mxu0 %v7473
    %7496 = vmatprep.subr.bf16.mxu0 0
    %7497 = vmatpush1.bf16.msra.mxu0 %v7472
    %7498 = vmatprep.subr.bf16.mxu0 0
    %7499 = vmatpush1.bf16.msra.mxu0 %v7471
    %7500 = vmatprep.subr.bf16.mxu0 0
    %7501 = vmatpush1.bf16.msra.mxu0 %v7470
    %7502 = vmatprep.subr.bf16.mxu0 0
    %7503 = vmatpush2.bf16.msra.mxu0 0
    %7504 = vmatprep.subr.bf16.mxu0 0
    %7505 = vmatpush2.bf16.msra.mxu0 0
    %7506 = vmatprep.subr.bf16.mxu0 0
    %7507 = vmatpush2.bf16.msra.mxu0 0
    %7508 = vmatprep.subr.bf16.mxu0 0
    %7509 = vmatpush2.bf16.msra.mxu0 0
    %7510 = vmatprep.subr.bf16.mxu0 0
    %7511 = vmatpush2.bf16.msra.mxu0 0
    %7512 = vmatprep.subr.bf16.mxu0 0
    %7513 = vmatpush2.bf16.msra.mxu0 0
    %7514 = vmatprep.subr.bf16.mxu0 0
    %7515 = vmatpush2.bf16.msra.mxu0 0
    %7516 = vmatprep.subr.bf16.mxu0 0
    %7517 = vmatpush2.bf16.msra.mxu0 0
    %7518 = vmatprep.mubr.bf16.mxu0 0
    %7519 = vmatmul.mubr.bf16.gmra.mxu0 %v7420
    %v7520 = vpop.f32.mrf.mxu0
    %v7521 = vadd.f32 0.0, %v7520
    %v7522 = vpop.f32.mrf.mxu0
    %v7523 = vpop.f32.mrf.mxu0
    %v7524 = vadd.f32 0.0, %v7523
    %v7525 = vpop.f32.mrf.mxu0
    %7526 = vdwg.mxu0
    %v7527 = vadd.f32 %v7396, %v7521
    %v7528 = vadd.f32 %v7399, %v7524
    %v7529 = vld [vmem:[#allocation4 + $0xc0] sm:$0xff]
    %v7530 = vld [vmem:[#allocation4 + $0xc8] sm:$0xff]
    %v7531 = vld [vmem:[#allocation4 + $0xd0] sm:$0xff]
    %v7532 = vld [vmem:[#allocation4 + $0xd8] sm:$0xff]
    %v7533 = vld [vmem:[#allocation4 + $0xe0] sm:$0xff]
    %v7534 = vld [vmem:[#allocation4 + $0xe8] sm:$0xff]
    %v7535 = vld [vmem:[#allocation4 + $0xf0] sm:$0xff]
    %v7536 = vld [vmem:[#allocation4 + $0xf8] sm:$0xff]
    %v7537 = vmax.f32 %v7529, %v7533
    %v7538 = vmax.f32 %v7530, %v7534
    %v7539 = vmax.f32 %v7531, %v7535
    %v7540 = vmax.f32 %v7532, %v7536
    %v7541 = vmax.f32 %v7537, %v7538
    %v7542 = vmax.f32 %v7539, %v7540
    %v7543 = vadd.f32 %v7541, %v7165
    %v7544 = vadd.f32 %v7542, %v7165
    %v7545 = vmax.f32 %v7543, 0.0
    %v7546 = vmax.f32 %v7544, 0.0
    %v7547 = vpack.c.bf16 %v7546, %v7545
    %s7548 = scalar_lea.vmem [#allocation5], 192
    %v7549 = vld [vmem:[%s7548] sm:$0xf]
    %v7550 = vld [vmem:[%s7548 + $0x4] sm:$0xf]
    %v7551 = vld [vmem:[%s7548 + $0x8] sm:$0xf]
    %v7552 = vld [vmem:[%s7548 + $0xc] sm:$0xf]
    %v7553 = vld [vmem:[%s7548 + $0x10] sm:$0xf]
    %v7554 = vld [vmem:[%s7548 + $0x14] sm:$0xf]
    %v7555 = vld [vmem:[%s7548 + $0x18] sm:$0xf]
    %v7556 = vld [vmem:[%s7548 + $0x1c] sm:$0xf]
    %v7557 = vld [vmem:[%s7548 + $0x20] sm:$0xf]
    %v7558 = vld [vmem:[%s7548 + $0x24] sm:$0xf]
    %v7559 = vld [vmem:[%s7548 + $0x28] sm:$0xf]
    %v7560 = vld [vmem:[%s7548 + $0x2c] sm:$0xf]
    %v7561 = vld [vmem:[%s7548 + $0x30] sm:$0xf]
    %v7562 = vld [vmem:[%s7548 + $0x34] sm:$0xf]
    %v7563 = vld [vmem:[%s7548 + $0x38] sm:$0xf]
    %v7564 = vld [vmem:[%s7548 + $0x3c] sm:$0xf]
    %v7581 = vunpack.c.l.b16 %v7549
    %v7582 = vunpack.c.l.b16 %v7550
    %v7583 = vunpack.c.l.b16 %v7551
    %v7584 = vunpack.c.l.b16 %v7552
    %v7585 = vunpack.c.l.b16 %v7553
    %v7586 = vunpack.c.l.b16 %v7554
    %v7587 = vunpack.c.l.b16 %v7555
    %v7588 = vunpack.c.l.b16 %v7556
    %v7589 = vunpack.c.l.b16 %v7557
    %v7590 = vunpack.c.l.b16 %v7558
    %v7591 = vunpack.c.l.b16 %v7559
    %v7592 = vunpack.c.l.b16 %v7560
    %v7593 = vunpack.c.l.b16 %v7561
    %v7594 = vunpack.c.l.b16 %v7562
    %v7595 = vunpack.c.l.b16 %v7563
    %v7596 = vunpack.c.l.b16 %v7564
    %v7597 = vpack.c.b16 %v7582, %v7581
    %v7598 = vpack.c.b16 %v7584, %v7583
    %v7599 = vpack.c.b16 %v7586, %v7585
    %v7600 = vpack.c.b16 %v7588, %v7587
    %v7601 = vpack.c.b16 %v7590, %v7589
    %v7602 = vpack.c.b16 %v7592, %v7591
    %v7603 = vpack.c.b16 %v7594, %v7593
    %v7604 = vpack.c.b16 %v7596, %v7595
    %7613 = vmatprep.subr.bf16.mxu0 0
    %7614 = vmatpush1.bf16.msra.mxu0 %v7604
    %7615 = vmatprep.subr.bf16.mxu0 0
    %7616 = vmatpush1.bf16.msra.mxu0 %v7603
    %7617 = vmatprep.subr.bf16.mxu0 0
    %7618 = vmatpush1.bf16.msra.mxu0 %v7602
    %7619 = vmatprep.subr.bf16.mxu0 0
    %7620 = vmatpush1.bf16.msra.mxu0 %v7601
    %7621 = vmatprep.subr.bf16.mxu0 0
    %7622 = vmatpush1.bf16.msra.mxu0 %v7600
    %7623 = vmatprep.subr.bf16.mxu0 0
    %7624 = vmatpush1.bf16.msra.mxu0 %v7599
    %7625 = vmatprep.subr.bf16.mxu0 0
    %7626 = vmatpush1.bf16.msra.mxu0 %v7598
    %7627 = vmatprep.subr.bf16.mxu0 0
    %7628 = vmatpush1.bf16.msra.mxu0 %v7597
    %7629 = vmatprep.subr.bf16.mxu0 0
    %7630 = vmatpush2.bf16.msra.mxu0 0
    %7631 = vmatprep.subr.bf16.mxu0 0
    %7632 = vmatpush2.bf16.msra.mxu0 0
    %7633 = vmatprep.subr.bf16.mxu0 0
    %7634 = vmatpush2.bf16.msra.mxu0 0
    %7635 = vmatprep.subr.bf16.mxu0 0
    %7636 = vmatpush2.bf16.msra.mxu0 0
    %7637 = vmatprep.subr.bf16.mxu0 0
    %7638 = vmatpush2.bf16.msra.mxu0 0
    %7639 = vmatprep.subr.bf16.mxu0 0
    %7640 = vmatpush2.bf16.msra.mxu0 0
    %7641 = vmatprep.subr.bf16.mxu0 0
    %7642 = vmatpush2.bf16.msra.mxu0 0
    %7643 = vmatprep.subr.bf16.mxu0 0
    %7644 = vmatpush2.bf16.msra.mxu0 0
    %7645 = vmatprep.mubr.bf16.mxu0 0
    %7646 = vmatmul.mubr.bf16.gmra.mxu0 %v7547
    %v7647 = vpop.f32.mrf.mxu0
    %v7648 = vadd.f32 0.0, %v7647
    %v7649 = vpop.f32.mrf.mxu0
    %v7650 = vpop.f32.mrf.mxu0
    %v7651 = vadd.f32 0.0, %v7650
    %v7652 = vpop.f32.mrf.mxu0
    %7653 = vdwg.mxu0
    %v7654 = vadd.f32 %v7527, %v7648
    %v7655 = vadd.f32 %v7528, %v7651
    %v7656 = vld [vmem:[#allocation4 + $0x100] sm:$0xff]
    %v7657 = vld [vmem:[#allocation4 + $0x108] sm:$0xff]
    %v7658 = vld [vmem:[#allocation4 + $0x110] sm:$0xff]
    %v7659 = vld [vmem:[#allocation4 + $0x118] sm:$0xff]
    %v7660 = vld [vmem:[#allocation4 + $0x120] sm:$0xff]
    %v7661 = vld [vmem:[#allocation4 + $0x128] sm:$0xff]
    %v7662 = vld [vmem:[#allocation4 + $0x130] sm:$0xff]
    %v7663 = vld [vmem:[#allocation4 + $0x138] sm:$0xff]
    %v7664 = vmax.f32 %v7656, %v7660
    %v7665 = vmax.f32 %v7657, %v7661
    %v7666 = vmax.f32 %v7658, %v7662
    %v7667 = vmax.f32 %v7659, %v7663
    %v7668 = vmax.f32 %v7664, %v7665
    %v7669 = vmax.f32 %v7666, %v7667
    %v7670 = vadd.f32 %v7668, %v7165
    %v7671 = vadd.f32 %v7669, %v7165
    %v7672 = vmax.f32 %v7670, 0.0
    %v7673 = vmax.f32 %v7671, 0.0
    %v7674 = vpack.c.bf16 %v7673, %v7672
    %s7675 = scalar_lea.vmem [#allocation5], 256
    %v7676 = vld [vmem:[%s7675] sm:$0xf]
    %v7677 = vld [vmem:[%s7675 + $0x4] sm:$0xf]
    %v7678 = vld [vmem:[%s7675 + $0x8] sm:$0xf]
    %v7679 = vld [vmem:[%s7675 + $0xc] sm:$0xf]
    %v7680 = vld [vmem:[%s7675 + $0x10] sm:$0xf]
    %v7681 = vld [vmem:[%s7675 + $0x14] sm:$0xf]
    %v7682 = vld [vmem:[%s7675 + $0x18] sm:$0xf]
    %v7683 = vld [vmem:[%s7675 + $0x1c] sm:$0xf]
    %v7684 = vld [vmem:[%s7675 + $0x20] sm:$0xf]
    %v7685 = vld [vmem:[%s7675 + $0x24] sm:$0xf]
    %v7686 = vld [vmem:[%s7675 + $0x28] sm:$0xf]
    %v7687 = vld [vmem:[%s7675 + $0x2c] sm:$0xf]
    %v7688 = vld [vmem:[%s7675 + $0x30] sm:$0xf]
    %v7689 = vld [vmem:[%s7675 + $0x34] sm:$0xf]
    %v7690 = vld [vmem:[%s7675 + $0x38] sm:$0xf]
    %v7691 = vld [vmem:[%s7675 + $0x3c] sm:$0xf]
    %v7708 = vunpack.c.l.b16 %v7676
    %v7709 = vunpack.c.l.b16 %v7677
    %v7710 = vunpack.c.l.b16 %v7678
    %v7711 = vunpack.c.l.b16 %v7679
    %v7712 = vunpack.c.l.b16 %v7680
    %v7713 = vunpack.c.l.b16 %v7681
    %v7714 = vunpack.c.l.b16 %v7682
    %v7715 = vunpack.c.l.b16 %v7683
    %v7716 = vunpack.c.l.b16 %v7684
    %v7717 = vunpack.c.l.b16 %v7685
    %v7718 = vunpack.c.l.b16 %v7686
    %v7719 = vunpack.c.l.b16 %v7687
    %v7720 = vunpack.c.l.b16 %v7688
    %v7721 = vunpack.c.l.b16 %v7689
    %v7722 = vunpack.c.l.b16 %v7690
    %v7723 = vunpack.c.l.b16 %v7691
    %v7724 = vpack.c.b16 %v7709, %v7708
    %v7725 = vpack.c.b16 %v7711, %v7710
    %v7726 = vpack.c.b16 %v7713, %v7712
    %v7727 = vpack.c.b16 %v7715, %v7714
    %v7728 = vpack.c.b16 %v7717, %v7716
    %v7729 = vpack.c.b16 %v7719, %v7718
    %v7730 = vpack.c.b16 %v7721, %v7720
    %v7731 = vpack.c.b16 %v7723, %v7722
    %7740 = vmatprep.subr.bf16.mxu0 0
    %7741 = vmatpush1.bf16.msra.mxu0 %v7731
    %7742 = vmatprep.subr.bf16.mxu0 0
    %7743 = vmatpush1.bf16.msra.mxu0 %v7730
    %7744 = vmatprep.subr.bf16.mxu0 0
    %7745 = vmatpush1.bf16.msra.mxu0 %v7729
    %7746 = vmatprep.subr.bf16.mxu0 0
    %7747 = vmatpush1.bf16.msra.mxu0 %v7728
    %7748 = vmatprep.subr.bf16.mxu0 0
    %7749 = vmatpush1.bf16.msra.mxu0 %v7727
    %7750 = vmatprep.subr.bf16.mxu0 0
    %7751 = vmatpush1.bf16.msra.mxu0 %v7726
    %7752 = vmatprep.subr.bf16.mxu0 0
    %7753 = vmatpush1.bf16.msra.mxu0 %v7725
    %7754 = vmatprep.subr.bf16.mxu0 0
    %7755 = vmatpush1.bf16.msra.mxu0 %v7724
    %7756 = vmatprep.subr.bf16.mxu0 0
    %7757 = vmatpush2.bf16.msra.mxu0 0
    %7758 = vmatprep.subr.bf16.mxu0 0
    %7759 = vmatpush2.bf16.msra.mxu0 0
    %7760 = vmatprep.subr.bf16.mxu0 0
    %7761 = vmatpush2.bf16.msra.mxu0 0
    %7762 = vmatprep.subr.bf16.mxu0 0
    %7763 = vmatpush2.bf16.msra.mxu0 0
    %7764 = vmatprep.subr.bf16.mxu0 0
    %7765 = vmatpush2.bf16.msra.mxu0 0
    %7766 = vmatprep.subr.bf16.mxu0 0
    %7767 = vmatpush2.bf16.msra.mxu0 0
    %7768 = vmatprep.subr.bf16.mxu0 0
    %7769 = vmatpush2.bf16.msra.mxu0 0
    %7770 = vmatprep.subr.bf16.mxu0 0
    %7771 = vmatpush2.bf16.msra.mxu0 0
    %7772 = vmatprep.mubr.bf16.mxu0 0
    %7773 = vmatmul.mubr.bf16.gmra.mxu0 %v7674
    %v7774 = vpop.f32.mrf.mxu0
    %v7775 = vadd.f32 0.0, %v7774
    %v7776 = vpop.f32.mrf.mxu0
    %v7777 = vpop.f32.mrf.mxu0
    %v7778 = vadd.f32 0.0, %v7777
    %v7779 = vpop.f32.mrf.mxu0
    %7780 = vdwg.mxu0
    %v7781 = vadd.f32 %v7654, %v7775
    %v7782 = vadd.f32 %v7655, %v7778
    %v7783 = vld [vmem:[%s6] sm:$0x1]
    %v7785 = vlaneseq
    %v7786 = vshrl.u32 %v7785, 7
    %v7787 = vsub.s32 0, %v7786
    %v7788 = vrot.slane %v7783, %v7787
    %v7790 = vadd.f32 %v7781, %v7788
    %v7791 = vadd.f32 %v7782, %v7788
    %v7792 = vmax.f32 %v7790, 0.0
    %v7793 = vmax.f32 %v7791, 0.0
    %v7794 = vpack.c.bf16 %v7793, %v7792
    %v7795 = vld [vmem:[%s7] sm:$0xf]
    %v7796 = vld [vmem:[%s7 + $0x4] sm:$0xf]
    %v7797 = vld [vmem:[%s7 + $0x8] sm:$0xf]
    %v7798 = vld [vmem:[%s7 + $0xc] sm:$0xf]
    %v7799 = vld [vmem:[%s7 + $0x10] sm:$0xf]
    %v7800 = vld [vmem:[%s7 + $0x14] sm:$0xf]
    %v7801 = vld [vmem:[%s7 + $0x18] sm:$0xf]
    %v7802 = vld [vmem:[%s7 + $0x1c] sm:$0xf]
    %v7803 = vld [vmem:[%s7 + $0x20] sm:$0xf]
    %v7804 = vld [vmem:[%s7 + $0x24] sm:$0xf]
    %v7805 = vld [vmem:[%s7 + $0x28] sm:$0xf]
    %v7806 = vld [vmem:[%s7 + $0x2c] sm:$0xf]
    %v7807 = vld [vmem:[%s7 + $0x30] sm:$0xf]
    %v7808 = vld [vmem:[%s7 + $0x34] sm:$0xf]
    %v7809 = vld [vmem:[%s7 + $0x38] sm:$0xf]
    %v7810 = vld [vmem:[%s7 + $0x3c] sm:$0xf]
    %v7811 = vld [vmem:[%s8] sm:$0x1]
    %v7813 = vlaneseq
    %v7814 = vshrl.u32 %v7813, 7
    %v7815 = vsub.s32 0, %v7814
    %v7816 = vrot.slane %v7811, %v7815
    %v7834 = vunpack.c.l.b16 %v7795
    %v7835 = vunpack.c.l.b16 %v7796
    %v7836 = vunpack.c.l.b16 %v7797
    %v7837 = vunpack.c.l.b16 %v7798
    %v7838 = vunpack.c.l.b16 %v7799
    %v7839 = vunpack.c.l.b16 %v7800
    %v7840 = vunpack.c.l.b16 %v7801
    %v7841 = vunpack.c.l.b16 %v7802
    %v7842 = vunpack.c.l.b16 %v7803
    %v7843 = vunpack.c.l.b16 %v7804
    %v7844 = vunpack.c.l.b16 %v7805
    %v7845 = vunpack.c.l.b16 %v7806
    %v7846 = vunpack.c.l.b16 %v7807
    %v7847 = vunpack.c.l.b16 %v7808
    %v7848 = vunpack.c.l.b16 %v7809
    %v7849 = vunpack.c.l.b16 %v7810
    %v7850 = vpack.c.b16 %v7835, %v7834
    %v7851 = vpack.c.b16 %v7837, %v7836
    %v7852 = vpack.c.b16 %v7839, %v7838
    %v7853 = vpack.c.b16 %v7841, %v7840
    %v7854 = vpack.c.b16 %v7843, %v7842
    %v7855 = vpack.c.b16 %v7845, %v7844
    %v7856 = vpack.c.b16 %v7847, %v7846
    %v7857 = vpack.c.b16 %v7849, %v7848
    %7866 = vmatprep.subr.bf16.mxu0 0
    %7867 = vmatpush1.bf16.msra.mxu0 %v7857
    %7868 = vmatprep.subr.bf16.mxu0 0
    %7869 = vmatpush1.bf16.msra.mxu0 %v7856
    %7870 = vmatprep.subr.bf16.mxu0 0
    %7871 = vmatpush1.bf16.msra.mxu0 %v7855
    %7872 = vmatprep.subr.bf16.mxu0 0
    %7873 = vmatpush1.bf16.msra.mxu0 %v7854
    %7874 = vmatprep.subr.bf16.mxu0 0
    %7875 = vmatpush1.bf16.msra.mxu0 %v7853
    %7876 = vmatprep.subr.bf16.mxu0 0
    %7877 = vmatpush1.bf16.msra.mxu0 %v7852
    %7878 = vmatprep.subr.bf16.mxu0 0
    %7879 = vmatpush1.bf16.msra.mxu0 %v7851
    %7880 = vmatprep.subr.bf16.mxu0 0
    %7881 = vmatpush1.bf16.msra.mxu0 %v7850
    %7882 = vmatprep.subr.bf16.mxu0 0
    %7883 = vmatpush2.bf16.msra.mxu0 0
    %7884 = vmatprep.subr.bf16.mxu0 0
    %7885 = vmatpush2.bf16.msra.mxu0 0
    %7886 = vmatprep.subr.bf16.mxu0 0
    %7887 = vmatpush2.bf16.msra.mxu0 0
    %7888 = vmatprep.subr.bf16.mxu0 0
    %7889 = vmatpush2.bf16.msra.mxu0 0
    %7890 = vmatprep.subr.bf16.mxu0 0
    %7891 = vmatpush2.bf16.msra.mxu0 0
    %7892 = vmatprep.subr.bf16.mxu0 0
    %7893 = vmatpush2.bf16.msra.mxu0 0
    %7894 = vmatprep.subr.bf16.mxu0 0
    %7895 = vmatpush2.bf16.msra.mxu0 0
    %7896 = vmatprep.subr.bf16.mxu0 0
    %7897 = vmatpush2.bf16.msra.mxu0 0
    %7898 = vmatprep.mubr.bf16.mxu0 0
    %7899 = vmatmul.mubr.bf16.gmra.mxu0 %v7794
    %v7900 = vpop.f32.mrf.mxu0
    %v7901 = vadd.f32 %v7816, %v7900
    %v7902 = vpop.f32.mrf.mxu0
    %v7903 = vpop.f32.mrf.mxu0
    %v7904 = vadd.f32 %v7816, %v7903
    %v7905 = vpop.f32.mrf.mxu0
    %7906 = vdwg.mxu0
    %v7907 = vmax.f32 %v7901, 0.0
    %v7908 = vmax.f32 %v7904, 0.0
    %v7909 = vpack.c.bf16 %v7908, %v7907
    %v7910 = vld [vmem:[%s9] sm:$0xf]
    %v7911 = vld [vmem:[%s9 + $0x4] sm:$0xf]
    %v7912 = vld [vmem:[%s9 + $0x8] sm:$0xf]
    %v7913 = vld [vmem:[%s9 + $0xc] sm:$0xf]
    %v7914 = vld [vmem:[%s9 + $0x10] sm:$0xf]
    %v7915 = vld [vmem:[%s9 + $0x14] sm:$0xf]
    %v7916 = vld [vmem:[%s9 + $0x18] sm:$0xf]
    %v7917 = vld [vmem:[%s9 + $0x1c] sm:$0xf]
    %v7918 = vld [vmem:[%s9 + $0x20] sm:$0xf]
    %v7919 = vld [vmem:[%s9 + $0x24] sm:$0xf]
    %v7920 = vld [vmem:[%s9 + $0x28] sm:$0xf]
    %v7921 = vld [vmem:[%s9 + $0x2c] sm:$0xf]
    %v7922 = vld [vmem:[%s9 + $0x30] sm:$0xf]
    %v7923 = vld [vmem:[%s9 + $0x34] sm:$0xf]
    %v7924 = vld [vmem:[%s9 + $0x38] sm:$0xf]
    %v7925 = vld [vmem:[%s9 + $0x3c] sm:$0xf]
    %v7926 = vld [vmem:[%s10] sm:$0x1]
    %v7928 = vlaneseq
    %v7929 = vshrl.u32 %v7928, 7
    %v7930 = vsub.s32 0, %v7929
    %v7931 = vrot.slane %v7926, %v7930
    %v7949 = vunpack.c.l.b16 %v7910
    %v7950 = vunpack.c.l.b16 %v7911
    %v7951 = vunpack.c.l.b16 %v7912
    %v7952 = vunpack.c.l.b16 %v7913
    %v7953 = vunpack.c.l.b16 %v7914
    %v7954 = vunpack.c.l.b16 %v7915
    %v7955 = vunpack.c.l.b16 %v7916
    %v7956 = vunpack.c.l.b16 %v7917
    %v7957 = vunpack.c.l.b16 %v7918
    %v7958 = vunpack.c.l.b16 %v7919
    %v7959 = vunpack.c.l.b16 %v7920
    %v7960 = vunpack.c.l.b16 %v7921
    %v7961 = vunpack.c.l.b16 %v7922
    %v7962 = vunpack.c.l.b16 %v7923
    %v7963 = vunpack.c.l.b16 %v7924
    %v7964 = vunpack.c.l.b16 %v7925
    %v7965 = vpack.c.b16 %v7950, %v7949
    %v7966 = vpack.c.b16 %v7952, %v7951
    %v7967 = vpack.c.b16 %v7954, %v7953
    %v7968 = vpack.c.b16 %v7956, %v7955
    %v7969 = vpack.c.b16 %v7958, %v7957
    %v7970 = vpack.c.b16 %v7960, %v7959
    %v7971 = vpack.c.b16 %v7962, %v7961
    %v7972 = vpack.c.b16 %v7964, %v7963
    %7981 = vmatprep.subr.bf16.mxu0 0
    %7982 = vmatpush1.bf16.msra.mxu0 %v7972
    %7983 = vmatprep.subr.bf16.mxu0 0
    %7984 = vmatpush1.bf16.msra.mxu0 %v7971
    %7985 = vmatprep.subr.bf16.mxu0 0
    %7986 = vmatpush1.bf16.msra.mxu0 %v7970
    %7987 = vmatprep.subr.bf16.mxu0 0
    %7988 = vmatpush1.bf16.msra.mxu0 %v7969
    %7989 = vmatprep.subr.bf16.mxu0 0
    %7990 = vmatpush1.bf16.msra.mxu0 %v7968
    %7991 = vmatprep.subr.bf16.mxu0 0
    %7992 = vmatpush1.bf16.msra.mxu0 %v7967
    %7993 = vmatprep.subr.bf16.mxu0 0
    %7994 = vmatpush1.bf16.msra.mxu0 %v7966
    %7995 = vmatprep.subr.bf16.mxu0 0
    %7996 = vmatpush1.bf16.msra.mxu0 %v7965
    %7997 = vmatprep.subr.bf16.mxu0 0
    %7998 = vmatpush2.bf16.msra.mxu0 0
    %7999 = vmatprep.subr.bf16.mxu0 0
    %8000 = vmatpush2.bf16.msra.mxu0 0
    %8001 = vmatprep.subr.bf16.mxu0 0
    %8002 = vmatpush2.bf16.msra.mxu0 0
    %8003 = vmatprep.subr.bf16.mxu0 0
    %8004 = vmatpush2.bf16.msra.mxu0 0
    %8005 = vmatprep.subr.bf16.mxu0 0
    %8006 = vmatpush2.bf16.msra.mxu0 0
    %8007 = vmatprep.subr.bf16.mxu0 0
    %8008 = vmatpush2.bf16.msra.mxu0 0
    %8009 = vmatprep.subr.bf16.mxu0 0
    %8010 = vmatpush2.bf16.msra.mxu0 0
    %8011 = vmatprep.subr.bf16.mxu0 0
    %8012 = vmatpush2.bf16.msra.mxu0 0
    %8013 = vmatprep.mubr.bf16.mxu0 0
    %8014 = vmatmul.mubr.bf16.gmra.mxu0 %v7909
    %v8015 = vpop.f32.mrf.mxu0
    %v8016 = vadd.f32 %v7931, %v8015
    %v8017 = vpop.f32.mrf.mxu0
    %v8018 = vpop.f32.mrf.mxu0
    %v8019 = vadd.f32 %v7931, %v8018
    %v8020 = vpop.f32.mrf.mxu0
    %8021 = vdwg.mxu0
    %8022 = vst [vmem:[%s11] sm:$0xff] %v8016
    %8023 = vst [vmem:[%s11 + $0x8] sm:$0xff] %v8019
    // Predicated region
    $region50: #{net_forward.1} parent=1 // pred_check
      _
    $region51: #{net_forward.1} parent=1 // pred_check_branch
      %8025 = sbr.rel (0) target = $region53
    $region52: #{net_forward.1} parent=1 // pred_region
      _
    $region53: #{net_forward.1} parent=1 // pred_fallthru
      _
    // Predicated region
    $region54: #{net_forward.1} parent=1 // pred_check
      _
    $region55: #{net_forward.1} parent=1 // pred_check_branch
      %8027 = sbr.rel (0) target = $region57
    $region56: #{net_forward.1} parent=1 // pred_region
      _
    $region57: #{net_forward.1} parent=1 // pred_fallthru
      _
    %8028 = vsyncpa [#allocation6], 1

</llo_original>
